<compile_context>
chip_gen: v5e
topology: v5e:2x2
jax: 0.10.0
libtpu: 0.0.40
codegen_flags: <defaults>
</compile_context>

<pallas_src>
import jax
import jax.numpy as jnp
from jax import lax
from jax.experimental import pallas as pl
from jax.experimental.pallas import tpu as pltpu


# ------------------------------- activations --------------------------------
def _erf(x):
    # Abramowitz & Stegun 7.1.26 polynomial approximation of erf (~1.5e-7 abs err).
    a1, a2, a3, a4, a5 = 0.254829592, -0.284496736, 1.421413741, -1.453152027, 1.061405429
    p = 0.3275911
    ax = jnp.abs(x)
    t = 1.0 / (1.0 + p * ax)
    poly = ((((a5 * t + a4) * t + a3) * t + a2) * t + a1) * t
    y = 1.0 - poly * jnp.exp(-ax * ax)
    return jnp.where(x >= 0.0, y, -y)


def _gelu(x):
    # exact GELU: 0.5 * x * (1 + erf(x / sqrt(2)))  (torch F.gelu default)
    return 0.5 * x * (1.0 + _erf(x * 0.7071067811865476))


# --------------------------------- kernel ------------------------------------
def _kernelnn3_kernel(x_ref, ea_ref, gmat_ref, smat_ref, invdeg_ref, p_ref,
                      fc1w_ref, fc1b_ref, fc2w_ref, fc2b_ref, fc3w_ref, fc3b_ref,
                      cw1_ref, cb1_ref, cw2_ref, cb2_ref, cw3_ref, cb3_ref,
                      croot_ref, cbias_ref, o_ref):
    wn = p_ref.shape[0]                 # width_node (static)
    n_convs = cw1_ref.shape[0]          # always 4 for KernelNN3

    def mm(a, b):
        # bf16 x bf16 MXU matmul, f32 accumulation.
        return jnp.dot(a, b, preferred_element_type=jnp.float32)

    def bf(t):
        return t.astype(jnp.bfloat16)

    # Cyclic fold shifts: subset sums of {wn*wn/2, ..., wn} cover every multiple of
    # wn mod wn*wn, so after the fold every wn-lane block holds the full Cin-sum.
    shifts = []
    s = (wn * wn) // 2
    while s >= wn:
        shifts.append(s)
        s //= 2

    # Resident operands, loaded from VMEM once and reused by all conv layers.
    ea = ea_ref[...]                    # [E, ker_in]  bf16
    gmat = gmat_ref[...]                # [E, N]       bf16 0/1
    smat = smat_ref[...]                # [N, E]       bf16 0/1
    pmat = p_ref[...]                   # [Wn, Wn*Wn]  bf16 0/1
    inv_deg = invdeg_ref[...]           # [N, 1]       f32

    # fc1: raw node features -> width_node
    h0 = mm(x_ref[...], fc1w_ref[...]) + fc1b_ref[...]          # [N, Wn] f32

    def conv_layer(l, h):
        # per-edge weight MLP (DenseNet: Lin-ReLU-Lin-ReLU-Lin), this layer's params
        a = jnp.maximum(mm(ea, cw1_ref[l]) + cb1_ref[l], 0.0)   # [E, wk/2]
        a = jnp.maximum(mm(bf(a), cw2_ref[l]) + cb2_ref[l], 0.0)  # [E, wk]
        wflat = mm(bf(a), cw3_ref[l]) + cb3_ref[l]              # [E, Wn*Wn] f32

        hb = bf(h)
        xe = mm(gmat, hb)                                       # [E, Wn]     gather (MXU)
        xrep = mm(bf(xe), pmat)                                 # [E, Wn*Wn]  channel repeat
        prod = xrep * wflat                                     # [E, Wn*Wn]  f32 (VPU)

        # x_src @ W_e: reduce over the Cin blocks via a cyclic roll+add tree (XLU).
        acc = prod
        for sh in shifts:
            acc = acc + pltpu.roll(acc, shift=sh, axis=1)
        msg = acc[:, :wn]                                       # [E, Wn]  full Cin-sum

        agg = mm(smat, bf(msg)) * inv_deg                       # [N, Wn]  scatter-mean
        out = agg + mm(hb, croot_ref[l]) + cbias_ref[l]         # + root + bias

        # gelu after conv1..conv3; conv4 output feeds fc2 directly (no gelu).
        return jnp.where(l == n_convs - 1, out, _gelu(out))

    h = lax.fori_loop(0, n_convs, conv_layer, h0, unroll=True)  # [N, Wn] f32

    y = _gelu(mm(bf(h), fc2w_ref[...]) + fc2b_ref[...])         # gelu(fc2)
    o_ref[...] = (mm(bf(y), fc3w_ref[...]) + fc3b_ref[...]).astype(o_ref.dtype)  # fc3


# --------------------------------- wrapper ------------------------------------
def kernelnn3_forward(params, x, edge_attr, gmat, smat01, inv_deg, pmat):
    n = x.shape[0]
    wn = params["fc1_w"].shape[1]
    out_w = params["fc3_w"].shape[1]
    assert wn & (wn - 1) == 0, "width_node must be a power of two for the roll-fold"

    bf = jnp.bfloat16
    # Weights / structural matrices cast to bf16 once here (0/1 mats are exact in
    # bf16); biases and the 1/deg scale stay f32 (added/applied after f32 accum).
    ins = (
        x.astype(bf), edge_attr.astype(bf),
        gmat.astype(bf), smat01.astype(bf),
        inv_deg.astype(jnp.float32), pmat.astype(bf),
        params["fc1_w"].astype(bf), params["fc1_b"],
        params["fc2_w"].astype(bf), params["fc2_b"],
        params["fc3_w"].astype(bf), params["fc3_b"],
        params["cw1"].astype(bf), params["cb1"],
        params["cw2"].astype(bf), params["cb2"],
        params["cw3"].astype(bf), params["cb3"],
        params["croot"].astype(bf), params["cbias"],
    )
    # No grid: single program, all operands whole-array resident in VMEM (<2 MB).
    return pl.pallas_call(
        _kernelnn3_kernel,
        out_shape=jax.ShapeDtypeStruct((n, out_w), jnp.float32),
        compiler_params=pltpu.CompilerParams(vmem_limit_bytes=32 * 1024 * 1024),
    )(*ins)


# ----------------------------- pure-JAX reference -----------------------------
def kernelnn3_ref(params, x, edge_attr, src, dst, n):
    hp = jax.lax.Precision.HIGHEST
    dot = lambda a, b: jnp.dot(a, b, precision=hp)
    e = edge_attr.shape[0]
    wn = params["fc1_w"].shape[1]
    n_convs = params["cw1"].shape[0]

    x = dot(x, params["fc1_w"]) + params["fc1_b"][0]
    for i in range(n_convs):
        a = jnp.maximum(dot(edge_attr, params["cw1"][i]) + params["cb1"][i, 0], 0.0)
        a = jnp.maximum(dot(a, params["cw2"][i]) + params["cb2"][i, 0], 0.0)
        wflat = dot(a, params["cw3"][i]) + params["cb3"][i, 0]
        w = wflat.reshape(e, wn, wn)                                  # [E, Cin, Cout]
        msg = jnp.einsum("ei,eio->eo", x[src], w, precision=hp)       # x_src @ W_e
        ssum = jax.ops.segment_sum(msg, dst, num_segments=n)
        cnt = jax.ops.segment_sum(jnp.ones((e,), jnp.float32), dst, num_segments=n)
        agg = ssum / jnp.maximum(cnt, 1.0)[:, None]                   # scatter-mean
        x = agg + dot(x, params["croot"][i]) + params["cbias"][i, 0]
        if i < n_convs - 1:
            x = _gelu(x)
    x = _gelu(dot(x, params["fc2_w"]) + params["fc2_b"][0])
    return dot(x, params["fc3_w"]) + params["fc3_b"][0]


# -------------------------------- parameters ----------------------------------
def init_params(key, in_width, width_node, width_kernel, ker_in, out_width, n_convs=4):
    wk2 = width_kernel // 2
    wn2 = width_node * width_node

    def dense(k, shape, scale=1.0):
        fan_in = shape[-2]
        return scale * jax.random.normal(k, shape, jnp.float32) / jnp.sqrt(float(fan_in))

    def bias(k, shape, scale=0.1):
        return scale * jax.random.normal(k, shape, jnp.float32)

    ks = jax.random.split(key, 14)
    return {
        "fc1_w": dense(ks[0], (in_width, width_node)),
        "fc1_b": bias(ks[1], (1, width_node)),
        "fc2_w": dense(ks[2], (width_node, 128)),
        "fc2_b": bias(ks[3], (1, 128)),
        "fc3_w": dense(ks[4], (128, out_width)),
        "fc3_b": bias(ks[5], (1, out_width)),
        # stacked per-conv parameters; leading dim = conv layer index.
        "cw1": dense(ks[6], (n_convs, ker_in, wk2)),
        "cb1": bias(ks[7], (n_convs, 1, wk2)),
        "cw2": dense(ks[8], (n_convs, wk2, width_kernel)),
        "cb2": bias(ks[9], (n_convs, 1, width_kernel)),
        "cw3": dense(ks[10], (n_convs, width_kernel, wn2), scale=0.2),
        "cb3": bias(ks[11], (n_convs, 1, wn2), scale=0.02),
        "croot": dense(ks[12], (n_convs, width_node, width_node), scale=0.5),
        "cbias": bias(ks[13], (n_convs, 1, width_node)),
    }


# ----------------------------------- main --------------------------------------
if __name__ == "__main__":
    key = jax.random.PRNGKey(0)
    ks = jax.random.split(key, 5)

    # small graph & widths (KernelNN3(width_node, width_kernel, depth, ker_in, in_width, out_width))
    N, E = 32, 96
    in_width, width_node, width_kernel, ker_in, out_width = 3, 32, 64, 6, 1
    # NOTE: KernelNN3 always instantiates exactly 4 NNConv layers; its `depth`
    # argument is stored but never used in forward().
    n_convs = 4

    x = jax.random.normal(ks[0], (N, in_width), jnp.float32)
    src = jax.random.randint(ks[1], (E,), 0, N)          # edge_index[0] (source, x_j)
    dst = jax.random.randint(ks[2], (E,), 0, N)          # edge_index[1] (target, aggregate)
    edge_attr = jax.random.normal(ks[3], (E, ker_in), jnp.float32)

    # dense gather / scatter matrices encoding edge_index (demo-size only)
    gmat = jax.nn.one_hot(src, N, dtype=jnp.float32)                    # [E, N] 0/1
    dst_oh = jax.nn.one_hot(dst, N, dtype=jnp.float32)                  # [E, N] 0/1
    smat01 = dst_oh.T                                                   # [N, E] 0/1 (exact in bf16)
    deg = jnp.maximum(dst_oh.sum(axis=0), 1.0)                          # [N]
    inv_deg = (1.0 / deg)[:, None]                                      # [N, 1] f32 mean scale

    # constant 0/1 channel-repeat matrix for the per-edge weight contraction
    pmat = jnp.repeat(jnp.eye(width_node, dtype=jnp.float32), width_node, axis=1)  # [Wn, Wn*Wn]

    params = init_params(ks[4], in_width, width_node, width_kernel, ker_in,
                         out_width, n_convs)

    fwd = jax.jit(kernelnn3_forward)
    out = jax.block_until_ready(fwd(params, x, edge_attr, gmat, smat01, inv_deg, pmat))
    assert out.shape == (N, out_width)

    ref = kernelnn3_ref(params, x, edge_attr, src, dst, N)
    err = float(jnp.max(jnp.abs(out - ref)))
    scale = float(jnp.max(jnp.abs(ref))) + 1e-8
    # bf16 MXU inputs with f32 accumulation (~2^-9 relative rounding per operand,
    # compounded over fc1 + 4 conv layers + fc2/fc3) vs. an f32 HIGHEST reference.
    assert err / scale < 3e-2, f"mismatch: max abs err {err}, ref scale {scale}"

    print("KERNEL_OK")
</pallas_src>

<mosaic_0001>
module attributes {stable_mosaic.version = 11 : i64} {
  func.func @_kernelnn3_kernel(%arg0: memref<32x3xbf16, #tpu.memory_space<vmem>>, %arg1: memref<96x6xbf16, #tpu.memory_space<vmem>>, %arg2: memref<96x32xbf16, #tpu.memory_space<vmem>>, %arg3: memref<32x96xbf16, #tpu.memory_space<vmem>>, %arg4: memref<32x1xf32, #tpu.memory_space<vmem>>, %arg5: memref<32x1024xbf16, #tpu.memory_space<vmem>>, %arg6: memref<3x32xbf16, #tpu.memory_space<vmem>>, %arg7: memref<1x32xf32, #tpu.memory_space<vmem>>, %arg8: memref<32x128xbf16, #tpu.memory_space<vmem>>, %arg9: memref<1x128xf32, #tpu.memory_space<vmem>>, %arg10: memref<128x1xbf16, #tpu.memory_space<vmem>>, %arg11: memref<1x1xf32, #tpu.memory_space<vmem>>, %arg12: memref<4x6x32xbf16, #tpu.memory_space<vmem>>, %arg13: memref<4x1x32xf32, #tpu.memory_space<vmem>>, %arg14: memref<4x32x64xbf16, #tpu.memory_space<vmem>>, %arg15: memref<4x1x64xf32, #tpu.memory_space<vmem>>, %arg16: memref<4x64x1024xbf16, #tpu.memory_space<vmem>>, %arg17: memref<4x1x1024xf32, #tpu.memory_space<vmem>>, %arg18: memref<4x32x32xbf16, #tpu.memory_space<vmem>>, %arg19: memref<4x1x32xf32, #tpu.memory_space<vmem>>, %arg20: memref<32x1xf32, #tpu.memory_space<vmem>>) attributes {dimension_semantics = [], scalar_prefetch = 0 : i64, scratch_operands = 0 : i64, tpu.core_type = #tpu.core_type<tc>} {
    %c0 = arith.constant 0 : index
    %c0_0 = arith.constant 0 : index
    %0 = vector.load %arg1[%c0, %c0_0] : memref<96x6xbf16, #tpu.memory_space<vmem>>, vector<96x6xbf16>
    %c0_1 = arith.constant 0 : index
    %c0_2 = arith.constant 0 : index
    %1 = vector.load %arg2[%c0_1, %c0_2] : memref<96x32xbf16, #tpu.memory_space<vmem>>, vector<96x32xbf16>
    %c0_3 = arith.constant 0 : index
    %c0_4 = arith.constant 0 : index
    %2 = vector.load %arg3[%c0_3, %c0_4] : memref<32x96xbf16, #tpu.memory_space<vmem>>, vector<32x96xbf16>
    %c0_5 = arith.constant 0 : index
    %c0_6 = arith.constant 0 : index
    %3 = vector.load %arg5[%c0_5, %c0_6] : memref<32x1024xbf16, #tpu.memory_space<vmem>>, vector<32x1024xbf16>
    %c0_7 = arith.constant 0 : index
    %c0_8 = arith.constant 0 : index
    %4 = vector.load %arg4[%c0_7, %c0_8] : memref<32x1xf32, #tpu.memory_space<vmem>>, vector<32x1xf32>
    %c0_9 = arith.constant 0 : index
    %c0_10 = arith.constant 0 : index
    %5 = vector.load %arg0[%c0_9, %c0_10] : memref<32x3xbf16, #tpu.memory_space<vmem>>, vector<32x3xbf16>
    %c0_11 = arith.constant 0 : index
    %c0_12 = arith.constant 0 : index
    %6 = vector.load %arg6[%c0_11, %c0_12] : memref<3x32xbf16, #tpu.memory_space<vmem>>, vector<3x32xbf16>
    %cst = arith.constant dense<0.000000e+00> : vector<32x32xf32>
    %7 = tpu.matmul %5, %6, %cst {dimension_numbers = #tpu.dot_dimension_numbers<[1], [0], [0], [1], [0, 0, 1, 1], [], []>} : vector<32x3xbf16>, vector<3x32xbf16>, vector<32x32xf32> -> vector<32x32xf32>
    %c0_13 = arith.constant 0 : index
    %c0_14 = arith.constant 0 : index
    %8 = vector.load %arg7[%c0_13, %c0_14] : memref<1x32xf32, #tpu.memory_space<vmem>>, vector<1x32xf32>
    %9 = vector.broadcast %8 : vector<1x32xf32> to vector<32x32xf32>
    %10 = arith.addf %7, %9 : vector<32x32xf32>
    %c0_i32 = arith.constant 0 : i32
    %11 = arith.index_cast %c0_i32 : i32 to index
    %c0_15 = arith.constant 0 : index
    %c0_16 = arith.constant 0 : index
    %12 = vector.load %arg12[%11, %c0_15, %c0_16] : memref<4x6x32xbf16, #tpu.memory_space<vmem>>, vector<1x6x32xbf16>
    %13 = vector.shape_cast %12 : vector<1x6x32xbf16> to vector<6x32xbf16>
    %cst_17 = arith.constant dense<0.000000e+00> : vector<96x32xf32>
    %14 = tpu.matmul %0, %13, %cst_17 {dimension_numbers = #tpu.dot_dimension_numbers<[1], [0], [0], [1], [0, 0, 1, 1], [], []>} : vector<96x6xbf16>, vector<6x32xbf16>, vector<96x32xf32> -> vector<96x32xf32>
    %15 = arith.index_cast %c0_i32 : i32 to index
    %c0_18 = arith.constant 0 : index
    %c0_19 = arith.constant 0 : index
    %16 = vector.load %arg13[%15, %c0_18, %c0_19] : memref<4x1x32xf32, #tpu.memory_space<vmem>>, vector<1x1x32xf32>
    %17 = vector.shape_cast %16 : vector<1x1x32xf32> to vector<1x32xf32>
    %18 = vector.broadcast %17 : vector<1x32xf32> to vector<96x32xf32>
    %19 = arith.addf %14, %18 : vector<96x32xf32>
    %cst_20 = arith.constant 0.000000e+00 : f32
    %20 = vector.broadcast %cst_20 : f32 to vector<96x32xf32>
    %21 = arith.maximumf %19, %20 : vector<96x32xf32>
    %22 = arith.truncf %21 : vector<96x32xf32> to vector<96x32xbf16>
    %23 = arith.index_cast %c0_i32 : i32 to index
    %c0_21 = arith.constant 0 : index
    %c0_22 = arith.constant 0 : index
    %24 = vector.load %arg14[%23, %c0_21, %c0_22] : memref<4x32x64xbf16, #tpu.memory_space<vmem>>, vector<1x32x64xbf16>
    %25 = vector.shape_cast %24 : vector<1x32x64xbf16> to vector<32x64xbf16>
    %cst_23 = arith.constant dense<0.000000e+00> : vector<96x64xf32>
    %26 = tpu.matmul %22, %25, %cst_23 {dimension_numbers = #tpu.dot_dimension_numbers<[1], [0], [0], [1], [0, 0, 1, 1], [], []>} : vector<96x32xbf16>, vector<32x64xbf16>, vector<96x64xf32> -> vector<96x64xf32>
    %27 = arith.index_cast %c0_i32 : i32 to index
    %c0_24 = arith.constant 0 : index
    %c0_25 = arith.constant 0 : index
    %28 = vector.load %arg15[%27, %c0_24, %c0_25] : memref<4x1x64xf32, #tpu.memory_space<vmem>>, vector<1x1x64xf32>
    %29 = vector.shape_cast %28 : vector<1x1x64xf32> to vector<1x64xf32>
    %30 = vector.broadcast %29 : vector<1x64xf32> to vector<96x64xf32>
    %31 = arith.addf %26, %30 : vector<96x64xf32>
    %cst_26 = arith.constant 0.000000e+00 : f32
    %32 = vector.broadcast %cst_26 : f32 to vector<96x64xf32>
    %33 = arith.maximumf %31, %32 : vector<96x64xf32>
    %34 = arith.truncf %33 : vector<96x64xf32> to vector<96x64xbf16>
    %35 = arith.index_cast %c0_i32 : i32 to index
    %c0_27 = arith.constant 0 : index
    %c0_28 = arith.constant 0 : index
    %36 = vector.load %arg16[%35, %c0_27, %c0_28] : memref<4x64x1024xbf16, #tpu.memory_space<vmem>>, vector<1x64x1024xbf16>
    %37 = vector.shape_cast %36 : vector<1x64x1024xbf16> to vector<64x1024xbf16>
    %cst_29 = arith.constant dense<0.000000e+00> : vector<96x1024xf32>
    %38 = tpu.matmul %34, %37, %cst_29 {dimension_numbers = #tpu.dot_dimension_numbers<[1], [0], [0], [1], [0, 0, 1, 1], [], []>} : vector<96x64xbf16>, vector<64x1024xbf16>, vector<96x1024xf32> -> vector<96x1024xf32>
    %39 = arith.index_cast %c0_i32 : i32 to index
    %c0_30 = arith.constant 0 : index
    %c0_31 = arith.constant 0 : index
    %40 = vector.load %arg17[%39, %c0_30, %c0_31] : memref<4x1x1024xf32, #tpu.memory_space<vmem>>, vector<1x1x1024xf32>
    %41 = vector.shape_cast %40 : vector<1x1x1024xf32> to vector<1x1024xf32>
    %42 = vector.broadcast %41 : vector<1x1024xf32> to vector<96x1024xf32>
    %43 = arith.addf %38, %42 : vector<96x1024xf32>
    %44 = arith.truncf %10 : vector<32x32xf32> to vector<32x32xbf16>
    %cst_32 = arith.constant dense<0.000000e+00> : vector<96x32xf32>
    %45 = tpu.matmul %1, %44, %cst_32 {dimension_numbers = #tpu.dot_dimension_numbers<[1], [0], [0], [1], [0, 0, 1, 1], [], []>} : vector<96x32xbf16>, vector<32x32xbf16>, vector<96x32xf32> -> vector<96x32xf32>
    %46 = arith.truncf %45 : vector<96x32xf32> to vector<96x32xbf16>
    %cst_33 = arith.constant dense<0.000000e+00> : vector<96x1024xf32>
    %47 = tpu.matmul %46, %3, %cst_33 {dimension_numbers = #tpu.dot_dimension_numbers<[1], [0], [0], [1], [0, 0, 1, 1], [], []>} : vector<96x32xbf16>, vector<32x1024xbf16>, vector<96x1024xf32> -> vector<96x1024xf32>
    %48 = arith.mulf %47, %43 : vector<96x1024xf32>
    %c512_i32 = arith.constant 512 : i32
    %49 = tpu.dynamic_rotate %48 by %c512_i32 dim 1 : vector<96x1024xf32>, i32 -> vector<96x1024xf32>
    %50 = arith.addf %48, %49 : vector<96x1024xf32>
    %c256_i32 = arith.constant 256 : i32
    %51 = tpu.dynamic_rotate %50 by %c256_i32 dim 1 : vector<96x1024xf32>, i32 -> vector<96x1024xf32>
    %52 = arith.addf %50, %51 : vector<96x1024xf32>
    %c128_i32 = arith.constant 128 : i32
    %53 = tpu.dynamic_rotate %52 by %c128_i32 dim 1 : vector<96x1024xf32>, i32 -> vector<96x1024xf32>
    %54 = arith.addf %52, %53 : vector<96x1024xf32>
    %c64_i32 = arith.constant 64 : i32
    %55 = tpu.dynamic_rotate %54 by %c64_i32 dim 1 : vector<96x1024xf32>, i32 -> vector<96x1024xf32>
    %56 = arith.addf %54, %55 : vector<96x1024xf32>
    %c32_i32 = arith.constant 32 : i32
    %57 = tpu.dynamic_rotate %56 by %c32_i32 dim 1 : vector<96x1024xf32>, i32 -> vector<96x1024xf32>
    %58 = arith.addf %56, %57 : vector<96x1024xf32>
    %59 = vector.extract_strided_slice %58 {offsets = [0, 0], sizes = [96, 32], strides = [1, 1]} : vector<96x1024xf32> to vector<96x32xf32>
    %60 = arith.truncf %59 : vector<96x32xf32> to vector<96x32xbf16>
    %cst_34 = arith.constant dense<0.000000e+00> : vector<32x32xf32>
    %61 = tpu.matmul %2, %60, %cst_34 {dimension_numbers = #tpu.dot_dimension_numbers<[1], [0], [0], [1], [0, 0, 1, 1], [], []>} : vector<32x96xbf16>, vector<96x32xbf16>, vector<32x32xf32> -> vector<32x32xf32>
    %62 = vector.broadcast %4 : vector<32x1xf32> to vector<32x32xf32>
    %63 = arith.mulf %61, %62 : vector<32x32xf32>
    %64 = arith.index_cast %c0_i32 : i32 to index
    %c0_35 = arith.constant 0 : index
    %c0_36 = arith.constant 0 : index
    %65 = vector.load %arg18[%64, %c0_35, %c0_36] : memref<4x32x32xbf16, #tpu.memory_space<vmem>>, vector<1x32x32xbf16>
    %66 = vector.shape_cast %65 : vector<1x32x32xbf16> to vector<32x32xbf16>
    %cst_37 = arith.constant dense<0.000000e+00> : vector<32x32xf32>
    %67 = tpu.matmul %44, %66, %cst_37 {dimension_numbers = #tpu.dot_dimension_numbers<[1], [0], [0], [1], [0, 0, 1, 1], [], []>} : vector<32x32xbf16>, vector<32x32xbf16>, vector<32x32xf32> -> vector<32x32xf32>
    %68 = arith.addf %63, %67 : vector<32x32xf32>
    %69 = arith.index_cast %c0_i32 : i32 to index
    %c0_38 = arith.constant 0 : index
    %c0_39 = arith.constant 0 : index
    %70 = vector.load %arg19[%69, %c0_38, %c0_39] : memref<4x1x32xf32, #tpu.memory_space<vmem>>, vector<1x1x32xf32>
    %71 = vector.shape_cast %70 : vector<1x1x32xf32> to vector<1x32xf32>
    %72 = vector.broadcast %71 : vector<1x32xf32> to vector<32x32xf32>
    %73 = arith.addf %68, %72 : vector<32x32xf32>
    %c3_i32 = arith.constant 3 : i32
    %74 = arith.cmpi eq, %c0_i32, %c3_i32 : i32
    %cst_40 = arith.constant 5.000000e-01 : f32
    %75 = vector.broadcast %cst_40 : f32 to vector<32x32xf32>
    %76 = arith.mulf %75, %73 : vector<32x32xf32>
    %cst_41 = arith.constant 0.707106769 : f32
    %77 = vector.broadcast %cst_41 : f32 to vector<32x32xf32>
    %78 = arith.mulf %73, %77 : vector<32x32xf32>
    %79 = math.absf %78 : vector<32x32xf32>
    %cst_42 = arith.constant 0.327591091 : f32
    %80 = vector.broadcast %cst_42 : f32 to vector<32x32xf32>
    %81 = arith.mulf %80, %79 : vector<32x32xf32>
    %cst_43 = arith.constant 1.000000e+00 : f32
    %82 = vector.broadcast %cst_43 : f32 to vector<32x32xf32>
    %83 = arith.addf %82, %81 : vector<32x32xf32>
    %cst_44 = arith.constant 1.000000e+00 : f32
    %84 = vector.broadcast %cst_44 : f32 to vector<32x32xf32>
    %85 = arith.divf %84, %83 : vector<32x32xf32>
    %cst_45 = arith.constant 1.06140542 : f32
    %86 = vector.broadcast %cst_45 : f32 to vector<32x32xf32>
    %87 = arith.mulf %86, %85 : vector<32x32xf32>
    %cst_46 = arith.constant -1.45315206 : f32
    %88 = vector.broadcast %cst_46 : f32 to vector<32x32xf32>
    %89 = arith.addf %87, %88 : vector<32x32xf32>
    %90 = arith.mulf %89, %85 : vector<32x32xf32>
    %cst_47 = arith.constant 1.42141378 : f32
    %91 = vector.broadcast %cst_47 : f32 to vector<32x32xf32>
    %92 = arith.addf %90, %91 : vector<32x32xf32>
    %93 = arith.mulf %92, %85 : vector<32x32xf32>
    %cst_48 = arith.constant -0.284496725 : f32
    %94 = vector.broadcast %cst_48 : f32 to vector<32x32xf32>
    %95 = arith.addf %93, %94 : vector<32x32xf32>
    %96 = arith.mulf %95, %85 : vector<32x32xf32>
    %cst_49 = arith.constant 0.254829586 : f32
    %97 = vector.broadcast %cst_49 : f32 to vector<32x32xf32>
    %98 = arith.addf %96, %97 : vector<32x32xf32>
    %99 = arith.mulf %98, %85 : vector<32x32xf32>
    %cst_50 = arith.constant 0.000000e+00 : f32
    %100 = vector.broadcast %cst_50 : f32 to vector<32x32xf32>
    %101 = arith.subf %100, %79 : vector<32x32xf32>
    %102 = arith.mulf %101, %79 : vector<32x32xf32>
    %103 = math.exp %102 : vector<32x32xf32>
    %104 = arith.mulf %99, %103 : vector<32x32xf32>
    %cst_51 = arith.constant 1.000000e+00 : f32
    %105 = vector.broadcast %cst_51 : f32 to vector<32x32xf32>
    %106 = arith.subf %105, %104 : vector<32x32xf32>
    %cst_52 = arith.constant 0.000000e+00 : f32
    %107 = vector.broadcast %cst_52 : f32 to vector<32x32xf32>
    %108 = arith.cmpf oge, %78, %107 : vector<32x32xf32>
    %cst_53 = arith.constant 0.000000e+00 : f32
    %109 = vector.broadcast %cst_53 : f32 to vector<32x32xf32>
    %110 = arith.subf %109, %106 : vector<32x32xf32>
    %111 = arith.select %108, %106, %110 : vector<32x32xi1>, vector<32x32xf32>
    %cst_54 = arith.constant 1.000000e+00 : f32
    %112 = vector.broadcast %cst_54 : f32 to vector<32x32xf32>
    %113 = arith.addf %112, %111 : vector<32x32xf32>
    %114 = arith.mulf %76, %113 : vector<32x32xf32>
    %115 = arith.select %74, %73, %114 : vector<32x32xf32>
    %c1_i32 = arith.constant 1 : i32
    %116 = arith.index_cast %c1_i32 : i32 to index
    %c0_55 = arith.constant 0 : index
    %c0_56 = arith.constant 0 : index
    %117 = vector.load %arg12[%116, %c0_55, %c0_56] : memref<4x6x32xbf16, #tpu.memory_space<vmem>>, vector<1x6x32xbf16>
    %118 = vector.shape_cast %117 : vector<1x6x32xbf16> to vector<6x32xbf16>
    %cst_57 = arith.constant dense<0.000000e+00> : vector<96x32xf32>
    %119 = tpu.matmul %0, %118, %cst_57 {dimension_numbers = #tpu.dot_dimension_numbers<[1], [0], [0], [1], [0, 0, 1, 1], [], []>} : vector<96x6xbf16>, vector<6x32xbf16>, vector<96x32xf32> -> vector<96x32xf32>
    %120 = arith.index_cast %c1_i32 : i32 to index
    %c0_58 = arith.constant 0 : index
    %c0_59 = arith.constant 0 : index
    %121 = vector.load %arg13[%120, %c0_58, %c0_59] : memref<4x1x32xf32, #tpu.memory_space<vmem>>, vector<1x1x32xf32>
    %122 = vector.shape_cast %121 : vector<1x1x32xf32> to vector<1x32xf32>
    %123 = vector.broadcast %122 : vector<1x32xf32> to vector<96x32xf32>
    %124 = arith.addf %119, %123 : vector<96x32xf32>
    %cst_60 = arith.constant 0.000000e+00 : f32
    %125 = vector.broadcast %cst_60 : f32 to vector<96x32xf32>
    %126 = arith.maximumf %124, %125 : vector<96x32xf32>
    %127 = arith.truncf %126 : vector<96x32xf32> to vector<96x32xbf16>
    %128 = arith.index_cast %c1_i32 : i32 to index
    %c0_61 = arith.constant 0 : index
    %c0_62 = arith.constant 0 : index
    %129 = vector.load %arg14[%128, %c0_61, %c0_62] : memref<4x32x64xbf16, #tpu.memory_space<vmem>>, vector<1x32x64xbf16>
    %130 = vector.shape_cast %129 : vector<1x32x64xbf16> to vector<32x64xbf16>
    %cst_63 = arith.constant dense<0.000000e+00> : vector<96x64xf32>
    %131 = tpu.matmul %127, %130, %cst_63 {dimension_numbers = #tpu.dot_dimension_numbers<[1], [0], [0], [1], [0, 0, 1, 1], [], []>} : vector<96x32xbf16>, vector<32x64xbf16>, vector<96x64xf32> -> vector<96x64xf32>
    %132 = arith.index_cast %c1_i32 : i32 to index
    %c0_64 = arith.constant 0 : index
    %c0_65 = arith.constant 0 : index
    %133 = vector.load %arg15[%132, %c0_64, %c0_65] : memref<4x1x64xf32, #tpu.memory_space<vmem>>, vector<1x1x64xf32>
    %134 = vector.shape_cast %133 : vector<1x1x64xf32> to vector<1x64xf32>
    %135 = vector.broadcast %134 : vector<1x64xf32> to vector<96x64xf32>
    %136 = arith.addf %131, %135 : vector<96x64xf32>
    %cst_66 = arith.constant 0.000000e+00 : f32
    %137 = vector.broadcast %cst_66 : f32 to vector<96x64xf32>
    %138 = arith.maximumf %136, %137 : vector<96x64xf32>
    %139 = arith.truncf %138 : vector<96x64xf32> to vector<96x64xbf16>
    %140 = arith.index_cast %c1_i32 : i32 to index
    %c0_67 = arith.constant 0 : index
    %c0_68 = arith.constant 0 : index
    %141 = vector.load %arg16[%140, %c0_67, %c0_68] : memref<4x64x1024xbf16, #tpu.memory_space<vmem>>, vector<1x64x1024xbf16>
    %142 = vector.shape_cast %141 : vector<1x64x1024xbf16> to vector<64x1024xbf16>
    %cst_69 = arith.constant dense<0.000000e+00> : vector<96x1024xf32>
    %143 = tpu.matmul %139, %142, %cst_69 {dimension_numbers = #tpu.dot_dimension_numbers<[1], [0], [0], [1], [0, 0, 1, 1], [], []>} : vector<96x64xbf16>, vector<64x1024xbf16>, vector<96x1024xf32> -> vector<96x1024xf32>
    %144 = arith.index_cast %c1_i32 : i32 to index
    %c0_70 = arith.constant 0 : index
    %c0_71 = arith.constant 0 : index
    %145 = vector.load %arg17[%144, %c0_70, %c0_71] : memref<4x1x1024xf32, #tpu.memory_space<vmem>>, vector<1x1x1024xf32>
    %146 = vector.shape_cast %145 : vector<1x1x1024xf32> to vector<1x1024xf32>
    %147 = vector.broadcast %146 : vector<1x1024xf32> to vector<96x1024xf32>
    %148 = arith.addf %143, %147 : vector<96x1024xf32>
    %149 = arith.truncf %115 : vector<32x32xf32> to vector<32x32xbf16>
    %cst_72 = arith.constant dense<0.000000e+00> : vector<96x32xf32>
    %150 = tpu.matmul %1, %149, %cst_72 {dimension_numbers = #tpu.dot_dimension_numbers<[1], [0], [0], [1], [0, 0, 1, 1], [], []>} : vector<96x32xbf16>, vector<32x32xbf16>, vector<96x32xf32> -> vector<96x32xf32>
    %151 = arith.truncf %150 : vector<96x32xf32> to vector<96x32xbf16>
    %cst_73 = arith.constant dense<0.000000e+00> : vector<96x1024xf32>
    %152 = tpu.matmul %151, %3, %cst_73 {dimension_numbers = #tpu.dot_dimension_numbers<[1], [0], [0], [1], [0, 0, 1, 1], [], []>} : vector<96x32xbf16>, vector<32x1024xbf16>, vector<96x1024xf32> -> vector<96x1024xf32>
    %153 = arith.mulf %152, %148 : vector<96x1024xf32>
    %c512_i32_74 = arith.constant 512 : i32
    %154 = tpu.dynamic_rotate %153 by %c512_i32_74 dim 1 : vector<96x1024xf32>, i32 -> vector<96x1024xf32>
    %155 = arith.addf %153, %154 : vector<96x1024xf32>
    %c256_i32_75 = arith.constant 256 : i32
    %156 = tpu.dynamic_rotate %155 by %c256_i32_75 dim 1 : vector<96x1024xf32>, i32 -> vector<96x1024xf32>
    %157 = arith.addf %155, %156 : vector<96x1024xf32>
    %c128_i32_76 = arith.constant 128 : i32
    %158 = tpu.dynamic_rotate %157 by %c128_i32_76 dim 1 : vector<96x1024xf32>, i32 -> vector<96x1024xf32>
    %159 = arith.addf %157, %158 : vector<96x1024xf32>
    %c64_i32_77 = arith.constant 64 : i32
    %160 = tpu.dynamic_rotate %159 by %c64_i32_77 dim 1 : vector<96x1024xf32>, i32 -> vector<96x1024xf32>
    %161 = arith.addf %159, %160 : vector<96x1024xf32>
    %c32_i32_78 = arith.constant 32 : i32
    %162 = tpu.dynamic_rotate %161 by %c32_i32_78 dim 1 : vector<96x1024xf32>, i32 -> vector<96x1024xf32>
    %163 = arith.addf %161, %162 : vector<96x1024xf32>
    %164 = vector.extract_strided_slice %163 {offsets = [0, 0], sizes = [96, 32], strides = [1, 1]} : vector<96x1024xf32> to vector<96x32xf32>
    %165 = arith.truncf %164 : vector<96x32xf32> to vector<96x32xbf16>
    %cst_79 = arith.constant dense<0.000000e+00> : vector<32x32xf32>
    %166 = tpu.matmul %2, %165, %cst_79 {dimension_numbers = #tpu.dot_dimension_numbers<[1], [0], [0], [1], [0, 0, 1, 1], [], []>} : vector<32x96xbf16>, vector<96x32xbf16>, vector<32x32xf32> -> vector<32x32xf32>
    %167 = vector.broadcast %4 : vector<32x1xf32> to vector<32x32xf32>
    %168 = arith.mulf %166, %167 : vector<32x32xf32>
    %169 = arith.index_cast %c1_i32 : i32 to index
    %c0_80 = arith.constant 0 : index
    %c0_81 = arith.constant 0 : index
    %170 = vector.load %arg18[%169, %c0_80, %c0_81] : memref<4x32x32xbf16, #tpu.memory_space<vmem>>, vector<1x32x32xbf16>
    %171 = vector.shape_cast %170 : vector<1x32x32xbf16> to vector<32x32xbf16>
    %cst_82 = arith.constant dense<0.000000e+00> : vector<32x32xf32>
    %172 = tpu.matmul %149, %171, %cst_82 {dimension_numbers = #tpu.dot_dimension_numbers<[1], [0], [0], [1], [0, 0, 1, 1], [], []>} : vector<32x32xbf16>, vector<32x32xbf16>, vector<32x32xf32> -> vector<32x32xf32>
    %173 = arith.addf %168, %172 : vector<32x32xf32>
    %174 = arith.index_cast %c1_i32 : i32 to index
    %c0_83 = arith.constant 0 : index
    %c0_84 = arith.constant 0 : index
    %175 = vector.load %arg19[%174, %c0_83, %c0_84] : memref<4x1x32xf32, #tpu.memory_space<vmem>>, vector<1x1x32xf32>
    %176 = vector.shape_cast %175 : vector<1x1x32xf32> to vector<1x32xf32>
    %177 = vector.broadcast %176 : vector<1x32xf32> to vector<32x32xf32>
    %178 = arith.addf %173, %177 : vector<32x32xf32>
    %c3_i32_85 = arith.constant 3 : i32
    %179 = arith.cmpi eq, %c1_i32, %c3_i32_85 : i32
    %cst_86 = arith.constant 5.000000e-01 : f32
    %180 = vector.broadcast %cst_86 : f32 to vector<32x32xf32>
    %181 = arith.mulf %180, %178 : vector<32x32xf32>
    %cst_87 = arith.constant 0.707106769 : f32
    %182 = vector.broadcast %cst_87 : f32 to vector<32x32xf32>
    %183 = arith.mulf %178, %182 : vector<32x32xf32>
    %184 = math.absf %183 : vector<32x32xf32>
    %cst_88 = arith.constant 0.327591091 : f32
    %185 = vector.broadcast %cst_88 : f32 to vector<32x32xf32>
    %186 = arith.mulf %185, %184 : vector<32x32xf32>
    %cst_89 = arith.constant 1.000000e+00 : f32
    %187 = vector.broadcast %cst_89 : f32 to vector<32x32xf32>
    %188 = arith.addf %187, %186 : vector<32x32xf32>
    %cst_90 = arith.constant 1.000000e+00 : f32
    %189 = vector.broadcast %cst_90 : f32 to vector<32x32xf32>
    %190 = arith.divf %189, %188 : vector<32x32xf32>
    %cst_91 = arith.constant 1.06140542 : f32
    %191 = vector.broadcast %cst_91 : f32 to vector<32x32xf32>
    %192 = arith.mulf %191, %190 : vector<32x32xf32>
    %cst_92 = arith.constant -1.45315206 : f32
    %193 = vector.broadcast %cst_92 : f32 to vector<32x32xf32>
    %194 = arith.addf %192, %193 : vector<32x32xf32>
    %195 = arith.mulf %194, %190 : vector<32x32xf32>
    %cst_93 = arith.constant 1.42141378 : f32
    %196 = vector.broadcast %cst_93 : f32 to vector<32x32xf32>
    %197 = arith.addf %195, %196 : vector<32x32xf32>
    %198 = arith.mulf %197, %190 : vector<32x32xf32>
    %cst_94 = arith.constant -0.284496725 : f32
    %199 = vector.broadcast %cst_94 : f32 to vector<32x32xf32>
    %200 = arith.addf %198, %199 : vector<32x32xf32>
    %201 = arith.mulf %200, %190 : vector<32x32xf32>
    %cst_95 = arith.constant 0.254829586 : f32
    %202 = vector.broadcast %cst_95 : f32 to vector<32x32xf32>
    %203 = arith.addf %201, %202 : vector<32x32xf32>
    %204 = arith.mulf %203, %190 : vector<32x32xf32>
    %cst_96 = arith.constant 0.000000e+00 : f32
    %205 = vector.broadcast %cst_96 : f32 to vector<32x32xf32>
    %206 = arith.subf %205, %184 : vector<32x32xf32>
    %207 = arith.mulf %206, %184 : vector<32x32xf32>
    %208 = math.exp %207 : vector<32x32xf32>
    %209 = arith.mulf %204, %208 : vector<32x32xf32>
    %cst_97 = arith.constant 1.000000e+00 : f32
    %210 = vector.broadcast %cst_97 : f32 to vector<32x32xf32>
    %211 = arith.subf %210, %209 : vector<32x32xf32>
    %cst_98 = arith.constant 0.000000e+00 : f32
    %212 = vector.broadcast %cst_98 : f32 to vector<32x32xf32>
    %213 = arith.cmpf oge, %183, %212 : vector<32x32xf32>
    %cst_99 = arith.constant 0.000000e+00 : f32
    %214 = vector.broadcast %cst_99 : f32 to vector<32x32xf32>
    %215 = arith.subf %214, %211 : vector<32x32xf32>
    %216 = arith.select %213, %211, %215 : vector<32x32xi1>, vector<32x32xf32>
    %cst_100 = arith.constant 1.000000e+00 : f32
    %217 = vector.broadcast %cst_100 : f32 to vector<32x32xf32>
    %218 = arith.addf %217, %216 : vector<32x32xf32>
    %219 = arith.mulf %181, %218 : vector<32x32xf32>
    %220 = arith.select %179, %178, %219 : vector<32x32xf32>
    %c2_i32 = arith.constant 2 : i32
    %221 = arith.index_cast %c2_i32 : i32 to index
    %c0_101 = arith.constant 0 : index
    %c0_102 = arith.constant 0 : index
    %222 = vector.load %arg12[%221, %c0_101, %c0_102] : memref<4x6x32xbf16, #tpu.memory_space<vmem>>, vector<1x6x32xbf16>
    %223 = vector.shape_cast %222 : vector<1x6x32xbf16> to vector<6x32xbf16>
    %cst_103 = arith.constant dense<0.000000e+00> : vector<96x32xf32>
    %224 = tpu.matmul %0, %223, %cst_103 {dimension_numbers = #tpu.dot_dimension_numbers<[1], [0], [0], [1], [0, 0, 1, 1], [], []>} : vector<96x6xbf16>, vector<6x32xbf16>, vector<96x32xf32> -> vector<96x32xf32>
    %225 = arith.index_cast %c2_i32 : i32 to index
    %c0_104 = arith.constant 0 : index
    %c0_105 = arith.constant 0 : index
    %226 = vector.load %arg13[%225, %c0_104, %c0_105] : memref<4x1x32xf32, #tpu.memory_space<vmem>>, vector<1x1x32xf32>
    %227 = vector.shape_cast %226 : vector<1x1x32xf32> to vector<1x32xf32>
    %228 = vector.broadcast %227 : vector<1x32xf32> to vector<96x32xf32>
    %229 = arith.addf %224, %228 : vector<96x32xf32>
    %cst_106 = arith.constant 0.000000e+00 : f32
    %230 = vector.broadcast %cst_106 : f32 to vector<96x32xf32>
    %231 = arith.maximumf %229, %230 : vector<96x32xf32>
    %232 = arith.truncf %231 : vector<96x32xf32> to vector<96x32xbf16>
    %233 = arith.index_cast %c2_i32 : i32 to index
    %c0_107 = arith.constant 0 : index
    %c0_108 = arith.constant 0 : index
    %234 = vector.load %arg14[%233, %c0_107, %c0_108] : memref<4x32x64xbf16, #tpu.memory_space<vmem>>, vector<1x32x64xbf16>
    %235 = vector.shape_cast %234 : vector<1x32x64xbf16> to vector<32x64xbf16>
    %cst_109 = arith.constant dense<0.000000e+00> : vector<96x64xf32>
    %236 = tpu.matmul %232, %235, %cst_109 {dimension_numbers = #tpu.dot_dimension_numbers<[1], [0], [0], [1], [0, 0, 1, 1], [], []>} : vector<96x32xbf16>, vector<32x64xbf16>, vector<96x64xf32> -> vector<96x64xf32>
    %237 = arith.index_cast %c2_i32 : i32 to index
    %c0_110 = arith.constant 0 : index
    %c0_111 = arith.constant 0 : index
    %238 = vector.load %arg15[%237, %c0_110, %c0_111] : memref<4x1x64xf32, #tpu.memory_space<vmem>>, vector<1x1x64xf32>
    %239 = vector.shape_cast %238 : vector<1x1x64xf32> to vector<1x64xf32>
    %240 = vector.broadcast %239 : vector<1x64xf32> to vector<96x64xf32>
    %241 = arith.addf %236, %240 : vector<96x64xf32>
    %cst_112 = arith.constant 0.000000e+00 : f32
    %242 = vector.broadcast %cst_112 : f32 to vector<96x64xf32>
    %243 = arith.maximumf %241, %242 : vector<96x64xf32>
    %244 = arith.truncf %243 : vector<96x64xf32> to vector<96x64xbf16>
    %245 = arith.index_cast %c2_i32 : i32 to index
    %c0_113 = arith.constant 0 : index
    %c0_114 = arith.constant 0 : index
    %246 = vector.load %arg16[%245, %c0_113, %c0_114] : memref<4x64x1024xbf16, #tpu.memory_space<vmem>>, vector<1x64x1024xbf16>
    %247 = vector.shape_cast %246 : vector<1x64x1024xbf16> to vector<64x1024xbf16>
    %cst_115 = arith.constant dense<0.000000e+00> : vector<96x1024xf32>
    %248 = tpu.matmul %244, %247, %cst_115 {dimension_numbers = #tpu.dot_dimension_numbers<[1], [0], [0], [1], [0, 0, 1, 1], [], []>} : vector<96x64xbf16>, vector<64x1024xbf16>, vector<96x1024xf32> -> vector<96x1024xf32>
    %249 = arith.index_cast %c2_i32 : i32 to index
    %c0_116 = arith.constant 0 : index
    %c0_117 = arith.constant 0 : index
    %250 = vector.load %arg17[%249, %c0_116, %c0_117] : memref<4x1x1024xf32, #tpu.memory_space<vmem>>, vector<1x1x1024xf32>
    %251 = vector.shape_cast %250 : vector<1x1x1024xf32> to vector<1x1024xf32>
    %252 = vector.broadcast %251 : vector<1x1024xf32> to vector<96x1024xf32>
    %253 = arith.addf %248, %252 : vector<96x1024xf32>
    %254 = arith.truncf %220 : vector<32x32xf32> to vector<32x32xbf16>
    %cst_118 = arith.constant dense<0.000000e+00> : vector<96x32xf32>
    %255 = tpu.matmul %1, %254, %cst_118 {dimension_numbers = #tpu.dot_dimension_numbers<[1], [0], [0], [1], [0, 0, 1, 1], [], []>} : vector<96x32xbf16>, vector<32x32xbf16>, vector<96x32xf32> -> vector<96x32xf32>
    %256 = arith.truncf %255 : vector<96x32xf32> to vector<96x32xbf16>
    %cst_119 = arith.constant dense<0.000000e+00> : vector<96x1024xf32>
    %257 = tpu.matmul %256, %3, %cst_119 {dimension_numbers = #tpu.dot_dimension_numbers<[1], [0], [0], [1], [0, 0, 1, 1], [], []>} : vector<96x32xbf16>, vector<32x1024xbf16>, vector<96x1024xf32> -> vector<96x1024xf32>
    %258 = arith.mulf %257, %253 : vector<96x1024xf32>
    %c512_i32_120 = arith.constant 512 : i32
    %259 = tpu.dynamic_rotate %258 by %c512_i32_120 dim 1 : vector<96x1024xf32>, i32 -> vector<96x1024xf32>
    %260 = arith.addf %258, %259 : vector<96x1024xf32>
    %c256_i32_121 = arith.constant 256 : i32
    %261 = tpu.dynamic_rotate %260 by %c256_i32_121 dim 1 : vector<96x1024xf32>, i32 -> vector<96x1024xf32>
    %262 = arith.addf %260, %261 : vector<96x1024xf32>
    %c128_i32_122 = arith.constant 128 : i32
    %263 = tpu.dynamic_rotate %262 by %c128_i32_122 dim 1 : vector<96x1024xf32>, i32 -> vector<96x1024xf32>
    %264 = arith.addf %262, %263 : vector<96x1024xf32>
    %c64_i32_123 = arith.constant 64 : i32
    %265 = tpu.dynamic_rotate %264 by %c64_i32_123 dim 1 : vector<96x1024xf32>, i32 -> vector<96x1024xf32>
    %266 = arith.addf %264, %265 : vector<96x1024xf32>
    %c32_i32_124 = arith.constant 32 : i32
    %267 = tpu.dynamic_rotate %266 by %c32_i32_124 dim 1 : vector<96x1024xf32>, i32 -> vector<96x1024xf32>
    %268 = arith.addf %266, %267 : vector<96x1024xf32>
    %269 = vector.extract_strided_slice %268 {offsets = [0, 0], sizes = [96, 32], strides = [1, 1]} : vector<96x1024xf32> to vector<96x32xf32>
    %270 = arith.truncf %269 : vector<96x32xf32> to vector<96x32xbf16>
    %cst_125 = arith.constant dense<0.000000e+00> : vector<32x32xf32>
    %271 = tpu.matmul %2, %270, %cst_125 {dimension_numbers = #tpu.dot_dimension_numbers<[1], [0], [0], [1], [0, 0, 1, 1], [], []>} : vector<32x96xbf16>, vector<96x32xbf16>, vector<32x32xf32> -> vector<32x32xf32>
    %272 = vector.broadcast %4 : vector<32x1xf32> to vector<32x32xf32>
    %273 = arith.mulf %271, %272 : vector<32x32xf32>
    %274 = arith.index_cast %c2_i32 : i32 to index
    %c0_126 = arith.constant 0 : index
    %c0_127 = arith.constant 0 : index
    %275 = vector.load %arg18[%274, %c0_126, %c0_127] : memref<4x32x32xbf16, #tpu.memory_space<vmem>>, vector<1x32x32xbf16>
    %276 = vector.shape_cast %275 : vector<1x32x32xbf16> to vector<32x32xbf16>
    %cst_128 = arith.constant dense<0.000000e+00> : vector<32x32xf32>
    %277 = tpu.matmul %254, %276, %cst_128 {dimension_numbers = #tpu.dot_dimension_numbers<[1], [0], [0], [1], [0, 0, 1, 1], [], []>} : vector<32x32xbf16>, vector<32x32xbf16>, vector<32x32xf32> -> vector<32x32xf32>
    %278 = arith.addf %273, %277 : vector<32x32xf32>
    %279 = arith.index_cast %c2_i32 : i32 to index
    %c0_129 = arith.constant 0 : index
    %c0_130 = arith.constant 0 : index
    %280 = vector.load %arg19[%279, %c0_129, %c0_130] : memref<4x1x32xf32, #tpu.memory_space<vmem>>, vector<1x1x32xf32>
    %281 = vector.shape_cast %280 : vector<1x1x32xf32> to vector<1x32xf32>
    %282 = vector.broadcast %281 : vector<1x32xf32> to vector<32x32xf32>
    %283 = arith.addf %278, %282 : vector<32x32xf32>
    %c3_i32_131 = arith.constant 3 : i32
    %284 = arith.cmpi eq, %c2_i32, %c3_i32_131 : i32
    %cst_132 = arith.constant 5.000000e-01 : f32
    %285 = vector.broadcast %cst_132 : f32 to vector<32x32xf32>
    %286 = arith.mulf %285, %283 : vector<32x32xf32>
    %cst_133 = arith.constant 0.707106769 : f32
    %287 = vector.broadcast %cst_133 : f32 to vector<32x32xf32>
    %288 = arith.mulf %283, %287 : vector<32x32xf32>
    %289 = math.absf %288 : vector<32x32xf32>
    %cst_134 = arith.constant 0.327591091 : f32
    %290 = vector.broadcast %cst_134 : f32 to vector<32x32xf32>
    %291 = arith.mulf %290, %289 : vector<32x32xf32>
    %cst_135 = arith.constant 1.000000e+00 : f32
    %292 = vector.broadcast %cst_135 : f32 to vector<32x32xf32>
    %293 = arith.addf %292, %291 : vector<32x32xf32>
    %cst_136 = arith.constant 1.000000e+00 : f32
    %294 = vector.broadcast %cst_136 : f32 to vector<32x32xf32>
    %295 = arith.divf %294, %293 : vector<32x32xf32>
    %cst_137 = arith.constant 1.06140542 : f32
    %296 = vector.broadcast %cst_137 : f32 to vector<32x32xf32>
    %297 = arith.mulf %296, %295 : vector<32x32xf32>
    %cst_138 = arith.constant -1.45315206 : f32
    %298 = vector.broadcast %cst_138 : f32 to vector<32x32xf32>
    %299 = arith.addf %297, %298 : vector<32x32xf32>
    %300 = arith.mulf %299, %295 : vector<32x32xf32>
    %cst_139 = arith.constant 1.42141378 : f32
    %301 = vector.broadcast %cst_139 : f32 to vector<32x32xf32>
    %302 = arith.addf %300, %301 : vector<32x32xf32>
    %303 = arith.mulf %302, %295 : vector<32x32xf32>
    %cst_140 = arith.constant -0.284496725 : f32
    %304 = vector.broadcast %cst_140 : f32 to vector<32x32xf32>
    %305 = arith.addf %303, %304 : vector<32x32xf32>
    %306 = arith.mulf %305, %295 : vector<32x32xf32>
    %cst_141 = arith.constant 0.254829586 : f32
    %307 = vector.broadcast %cst_141 : f32 to vector<32x32xf32>
    %308 = arith.addf %306, %307 : vector<32x32xf32>
    %309 = arith.mulf %308, %295 : vector<32x32xf32>
    %cst_142 = arith.constant 0.000000e+00 : f32
    %310 = vector.broadcast %cst_142 : f32 to vector<32x32xf32>
    %311 = arith.subf %310, %289 : vector<32x32xf32>
    %312 = arith.mulf %311, %289 : vector<32x32xf32>
    %313 = math.exp %312 : vector<32x32xf32>
    %314 = arith.mulf %309, %313 : vector<32x32xf32>
    %cst_143 = arith.constant 1.000000e+00 : f32
    %315 = vector.broadcast %cst_143 : f32 to vector<32x32xf32>
    %316 = arith.subf %315, %314 : vector<32x32xf32>
    %cst_144 = arith.constant 0.000000e+00 : f32
    %317 = vector.broadcast %cst_144 : f32 to vector<32x32xf32>
    %318 = arith.cmpf oge, %288, %317 : vector<32x32xf32>
    %cst_145 = arith.constant 0.000000e+00 : f32
    %319 = vector.broadcast %cst_145 : f32 to vector<32x32xf32>
    %320 = arith.subf %319, %316 : vector<32x32xf32>
    %321 = arith.select %318, %316, %320 : vector<32x32xi1>, vector<32x32xf32>
    %cst_146 = arith.constant 1.000000e+00 : f32
    %322 = vector.broadcast %cst_146 : f32 to vector<32x32xf32>
    %323 = arith.addf %322, %321 : vector<32x32xf32>
    %324 = arith.mulf %286, %323 : vector<32x32xf32>
    %325 = arith.select %284, %283, %324 : vector<32x32xf32>
    %c3_i32_147 = arith.constant 3 : i32
    %326 = arith.index_cast %c3_i32_147 : i32 to index
    %c0_148 = arith.constant 0 : index
    %c0_149 = arith.constant 0 : index
    %327 = vector.load %arg12[%326, %c0_148, %c0_149] : memref<4x6x32xbf16, #tpu.memory_space<vmem>>, vector<1x6x32xbf16>
    %328 = vector.shape_cast %327 : vector<1x6x32xbf16> to vector<6x32xbf16>
    %cst_150 = arith.constant dense<0.000000e+00> : vector<96x32xf32>
    %329 = tpu.matmul %0, %328, %cst_150 {dimension_numbers = #tpu.dot_dimension_numbers<[1], [0], [0], [1], [0, 0, 1, 1], [], []>} : vector<96x6xbf16>, vector<6x32xbf16>, vector<96x32xf32> -> vector<96x32xf32>
    %330 = arith.index_cast %c3_i32_147 : i32 to index
    %c0_151 = arith.constant 0 : index
    %c0_152 = arith.constant 0 : index
    %331 = vector.load %arg13[%330, %c0_151, %c0_152] : memref<4x1x32xf32, #tpu.memory_space<vmem>>, vector<1x1x32xf32>
    %332 = vector.shape_cast %331 : vector<1x1x32xf32> to vector<1x32xf32>
    %333 = vector.broadcast %332 : vector<1x32xf32> to vector<96x32xf32>
    %334 = arith.addf %329, %333 : vector<96x32xf32>
    %cst_153 = arith.constant 0.000000e+00 : f32
    %335 = vector.broadcast %cst_153 : f32 to vector<96x32xf32>
    %336 = arith.maximumf %334, %335 : vector<96x32xf32>
    %337 = arith.truncf %336 : vector<96x32xf32> to vector<96x32xbf16>
    %338 = arith.index_cast %c3_i32_147 : i32 to index
    %c0_154 = arith.constant 0 : index
    %c0_155 = arith.constant 0 : index
    %339 = vector.load %arg14[%338, %c0_154, %c0_155] : memref<4x32x64xbf16, #tpu.memory_space<vmem>>, vector<1x32x64xbf16>
    %340 = vector.shape_cast %339 : vector<1x32x64xbf16> to vector<32x64xbf16>
    %cst_156 = arith.constant dense<0.000000e+00> : vector<96x64xf32>
    %341 = tpu.matmul %337, %340, %cst_156 {dimension_numbers = #tpu.dot_dimension_numbers<[1], [0], [0], [1], [0, 0, 1, 1], [], []>} : vector<96x32xbf16>, vector<32x64xbf16>, vector<96x64xf32> -> vector<96x64xf32>
    %342 = arith.index_cast %c3_i32_147 : i32 to index
    %c0_157 = arith.constant 0 : index
    %c0_158 = arith.constant 0 : index
    %343 = vector.load %arg15[%342, %c0_157, %c0_158] : memref<4x1x64xf32, #tpu.memory_space<vmem>>, vector<1x1x64xf32>
    %344 = vector.shape_cast %343 : vector<1x1x64xf32> to vector<1x64xf32>
    %345 = vector.broadcast %344 : vector<1x64xf32> to vector<96x64xf32>
    %346 = arith.addf %341, %345 : vector<96x64xf32>
    %cst_159 = arith.constant 0.000000e+00 : f32
    %347 = vector.broadcast %cst_159 : f32 to vector<96x64xf32>
    %348 = arith.maximumf %346, %347 : vector<96x64xf32>
    %349 = arith.truncf %348 : vector<96x64xf32> to vector<96x64xbf16>
    %350 = arith.index_cast %c3_i32_147 : i32 to index
    %c0_160 = arith.constant 0 : index
    %c0_161 = arith.constant 0 : index
    %351 = vector.load %arg16[%350, %c0_160, %c0_161] : memref<4x64x1024xbf16, #tpu.memory_space<vmem>>, vector<1x64x1024xbf16>
    %352 = vector.shape_cast %351 : vector<1x64x1024xbf16> to vector<64x1024xbf16>
    %cst_162 = arith.constant dense<0.000000e+00> : vector<96x1024xf32>
    %353 = tpu.matmul %349, %352, %cst_162 {dimension_numbers = #tpu.dot_dimension_numbers<[1], [0], [0], [1], [0, 0, 1, 1], [], []>} : vector<96x64xbf16>, vector<64x1024xbf16>, vector<96x1024xf32> -> vector<96x1024xf32>
    %354 = arith.index_cast %c3_i32_147 : i32 to index
    %c0_163 = arith.constant 0 : index
    %c0_164 = arith.constant 0 : index
    %355 = vector.load %arg17[%354, %c0_163, %c0_164] : memref<4x1x1024xf32, #tpu.memory_space<vmem>>, vector<1x1x1024xf32>
    %356 = vector.shape_cast %355 : vector<1x1x1024xf32> to vector<1x1024xf32>
    %357 = vector.broadcast %356 : vector<1x1024xf32> to vector<96x1024xf32>
    %358 = arith.addf %353, %357 : vector<96x1024xf32>
    %359 = arith.truncf %325 : vector<32x32xf32> to vector<32x32xbf16>
    %cst_165 = arith.constant dense<0.000000e+00> : vector<96x32xf32>
    %360 = tpu.matmul %1, %359, %cst_165 {dimension_numbers = #tpu.dot_dimension_numbers<[1], [0], [0], [1], [0, 0, 1, 1], [], []>} : vector<96x32xbf16>, vector<32x32xbf16>, vector<96x32xf32> -> vector<96x32xf32>
    %361 = arith.truncf %360 : vector<96x32xf32> to vector<96x32xbf16>
    %cst_166 = arith.constant dense<0.000000e+00> : vector<96x1024xf32>
    %362 = tpu.matmul %361, %3, %cst_166 {dimension_numbers = #tpu.dot_dimension_numbers<[1], [0], [0], [1], [0, 0, 1, 1], [], []>} : vector<96x32xbf16>, vector<32x1024xbf16>, vector<96x1024xf32> -> vector<96x1024xf32>
    %363 = arith.mulf %362, %358 : vector<96x1024xf32>
    %c512_i32_167 = arith.constant 512 : i32
    %364 = tpu.dynamic_rotate %363 by %c512_i32_167 dim 1 : vector<96x1024xf32>, i32 -> vector<96x1024xf32>
    %365 = arith.addf %363, %364 : vector<96x1024xf32>
    %c256_i32_168 = arith.constant 256 : i32
    %366 = tpu.dynamic_rotate %365 by %c256_i32_168 dim 1 : vector<96x1024xf32>, i32 -> vector<96x1024xf32>
    %367 = arith.addf %365, %366 : vector<96x1024xf32>
    %c128_i32_169 = arith.constant 128 : i32
    %368 = tpu.dynamic_rotate %367 by %c128_i32_169 dim 1 : vector<96x1024xf32>, i32 -> vector<96x1024xf32>
    %369 = arith.addf %367, %368 : vector<96x1024xf32>
    %c64_i32_170 = arith.constant 64 : i32
    %370 = tpu.dynamic_rotate %369 by %c64_i32_170 dim 1 : vector<96x1024xf32>, i32 -> vector<96x1024xf32>
    %371 = arith.addf %369, %370 : vector<96x1024xf32>
    %c32_i32_171 = arith.constant 32 : i32
    %372 = tpu.dynamic_rotate %371 by %c32_i32_171 dim 1 : vector<96x1024xf32>, i32 -> vector<96x1024xf32>
    %373 = arith.addf %371, %372 : vector<96x1024xf32>
    %374 = vector.extract_strided_slice %373 {offsets = [0, 0], sizes = [96, 32], strides = [1, 1]} : vector<96x1024xf32> to vector<96x32xf32>
    %375 = arith.truncf %374 : vector<96x32xf32> to vector<96x32xbf16>
    %cst_172 = arith.constant dense<0.000000e+00> : vector<32x32xf32>
    %376 = tpu.matmul %2, %375, %cst_172 {dimension_numbers = #tpu.dot_dimension_numbers<[1], [0], [0], [1], [0, 0, 1, 1], [], []>} : vector<32x96xbf16>, vector<96x32xbf16>, vector<32x32xf32> -> vector<32x32xf32>
    %377 = vector.broadcast %4 : vector<32x1xf32> to vector<32x32xf32>
    %378 = arith.mulf %376, %377 : vector<32x32xf32>
    %379 = arith.index_cast %c3_i32_147 : i32 to index
    %c0_173 = arith.constant 0 : index
    %c0_174 = arith.constant 0 : index
    %380 = vector.load %arg18[%379, %c0_173, %c0_174] : memref<4x32x32xbf16, #tpu.memory_space<vmem>>, vector<1x32x32xbf16>
    %381 = vector.shape_cast %380 : vector<1x32x32xbf16> to vector<32x32xbf16>
    %cst_175 = arith.constant dense<0.000000e+00> : vector<32x32xf32>
    %382 = tpu.matmul %359, %381, %cst_175 {dimension_numbers = #tpu.dot_dimension_numbers<[1], [0], [0], [1], [0, 0, 1, 1], [], []>} : vector<32x32xbf16>, vector<32x32xbf16>, vector<32x32xf32> -> vector<32x32xf32>
    %383 = arith.addf %378, %382 : vector<32x32xf32>
    %384 = arith.index_cast %c3_i32_147 : i32 to index
    %c0_176 = arith.constant 0 : index
    %c0_177 = arith.constant 0 : index
    %385 = vector.load %arg19[%384, %c0_176, %c0_177] : memref<4x1x32xf32, #tpu.memory_space<vmem>>, vector<1x1x32xf32>
    %386 = vector.shape_cast %385 : vector<1x1x32xf32> to vector<1x32xf32>
    %387 = vector.broadcast %386 : vector<1x32xf32> to vector<32x32xf32>
    %388 = arith.addf %383, %387 : vector<32x32xf32>
    %c3_i32_178 = arith.constant 3 : i32
    %389 = arith.cmpi eq, %c3_i32_147, %c3_i32_178 : i32
    %cst_179 = arith.constant 5.000000e-01 : f32
    %390 = vector.broadcast %cst_179 : f32 to vector<32x32xf32>
    %391 = arith.mulf %390, %388 : vector<32x32xf32>
    %cst_180 = arith.constant 0.707106769 : f32
    %392 = vector.broadcast %cst_180 : f32 to vector<32x32xf32>
    %393 = arith.mulf %388, %392 : vector<32x32xf32>
    %394 = math.absf %393 : vector<32x32xf32>
    %cst_181 = arith.constant 0.327591091 : f32
    %395 = vector.broadcast %cst_181 : f32 to vector<32x32xf32>
    %396 = arith.mulf %395, %394 : vector<32x32xf32>
    %cst_182 = arith.constant 1.000000e+00 : f32
    %397 = vector.broadcast %cst_182 : f32 to vector<32x32xf32>
    %398 = arith.addf %397, %396 : vector<32x32xf32>
    %cst_183 = arith.constant 1.000000e+00 : f32
    %399 = vector.broadcast %cst_183 : f32 to vector<32x32xf32>
    %400 = arith.divf %399, %398 : vector<32x32xf32>
    %cst_184 = arith.constant 1.06140542 : f32
    %401 = vector.broadcast %cst_184 : f32 to vector<32x32xf32>
    %402 = arith.mulf %401, %400 : vector<32x32xf32>
    %cst_185 = arith.constant -1.45315206 : f32
    %403 = vector.broadcast %cst_185 : f32 to vector<32x32xf32>
    %404 = arith.addf %402, %403 : vector<32x32xf32>
    %405 = arith.mulf %404, %400 : vector<32x32xf32>
    %cst_186 = arith.constant 1.42141378 : f32
    %406 = vector.broadcast %cst_186 : f32 to vector<32x32xf32>
    %407 = arith.addf %405, %406 : vector<32x32xf32>
    %408 = arith.mulf %407, %400 : vector<32x32xf32>
    %cst_187 = arith.constant -0.284496725 : f32
    %409 = vector.broadcast %cst_187 : f32 to vector<32x32xf32>
    %410 = arith.addf %408, %409 : vector<32x32xf32>
    %411 = arith.mulf %410, %400 : vector<32x32xf32>
    %cst_188 = arith.constant 0.254829586 : f32
    %412 = vector.broadcast %cst_188 : f32 to vector<32x32xf32>
    %413 = arith.addf %411, %412 : vector<32x32xf32>
    %414 = arith.mulf %413, %400 : vector<32x32xf32>
    %cst_189 = arith.constant 0.000000e+00 : f32
    %415 = vector.broadcast %cst_189 : f32 to vector<32x32xf32>
    %416 = arith.subf %415, %394 : vector<32x32xf32>
    %417 = arith.mulf %416, %394 : vector<32x32xf32>
    %418 = math.exp %417 : vector<32x32xf32>
    %419 = arith.mulf %414, %418 : vector<32x32xf32>
    %cst_190 = arith.constant 1.000000e+00 : f32
    %420 = vector.broadcast %cst_190 : f32 to vector<32x32xf32>
    %421 = arith.subf %420, %419 : vector<32x32xf32>
    %cst_191 = arith.constant 0.000000e+00 : f32
    %422 = vector.broadcast %cst_191 : f32 to vector<32x32xf32>
    %423 = arith.cmpf oge, %393, %422 : vector<32x32xf32>
    %cst_192 = arith.constant 0.000000e+00 : f32
    %424 = vector.broadcast %cst_192 : f32 to vector<32x32xf32>
    %425 = arith.subf %424, %421 : vector<32x32xf32>
    %426 = arith.select %423, %421, %425 : vector<32x32xi1>, vector<32x32xf32>
    %cst_193 = arith.constant 1.000000e+00 : f32
    %427 = vector.broadcast %cst_193 : f32 to vector<32x32xf32>
    %428 = arith.addf %427, %426 : vector<32x32xf32>
    %429 = arith.mulf %391, %428 : vector<32x32xf32>
    %430 = arith.select %389, %388, %429 : vector<32x32xf32>
    %c4_i32 = arith.constant 4 : i32
    %431 = arith.truncf %430 : vector<32x32xf32> to vector<32x32xbf16>
    %c0_194 = arith.constant 0 : index
    %c0_195 = arith.constant 0 : index
    %432 = vector.load %arg8[%c0_194, %c0_195] : memref<32x128xbf16, #tpu.memory_space<vmem>>, vector<32x128xbf16>
    %cst_196 = arith.constant dense<0.000000e+00> : vector<32x128xf32>
    %433 = tpu.matmul %431, %432, %cst_196 {dimension_numbers = #tpu.dot_dimension_numbers<[1], [0], [0], [1], [0, 0, 1, 1], [], []>} : vector<32x32xbf16>, vector<32x128xbf16>, vector<32x128xf32> -> vector<32x128xf32>
    %c0_197 = arith.constant 0 : index
    %c0_198 = arith.constant 0 : index
    %434 = vector.load %arg9[%c0_197, %c0_198] : memref<1x128xf32, #tpu.memory_space<vmem>>, vector<1x128xf32>
    %435 = vector.broadcast %434 : vector<1x128xf32> to vector<32x128xf32>
    %436 = arith.addf %433, %435 : vector<32x128xf32>
    %cst_199 = arith.constant 5.000000e-01 : f32
    %437 = vector.broadcast %cst_199 : f32 to vector<32x128xf32>
    %438 = arith.mulf %437, %436 : vector<32x128xf32>
    %cst_200 = arith.constant 0.707106769 : f32
    %439 = vector.broadcast %cst_200 : f32 to vector<32x128xf32>
    %440 = arith.mulf %436, %439 : vector<32x128xf32>
    %441 = math.absf %440 : vector<32x128xf32>
    %cst_201 = arith.constant 0.327591091 : f32
    %442 = vector.broadcast %cst_201 : f32 to vector<32x128xf32>
    %443 = arith.mulf %442, %441 : vector<32x128xf32>
    %cst_202 = arith.constant 1.000000e+00 : f32
    %444 = vector.broadcast %cst_202 : f32 to vector<32x128xf32>
    %445 = arith.addf %444, %443 : vector<32x128xf32>
    %cst_203 = arith.constant 1.000000e+00 : f32
    %446 = vector.broadcast %cst_203 : f32 to vector<32x128xf32>
    %447 = arith.divf %446, %445 : vector<32x128xf32>
    %cst_204 = arith.constant 1.06140542 : f32
    %448 = vector.broadcast %cst_204 : f32 to vector<32x128xf32>
    %449 = arith.mulf %448, %447 : vector<32x128xf32>
    %cst_205 = arith.constant -1.45315206 : f32
    %450 = vector.broadcast %cst_205 : f32 to vector<32x128xf32>
    %451 = arith.addf %449, %450 : vector<32x128xf32>
    %452 = arith.mulf %451, %447 : vector<32x128xf32>
    %cst_206 = arith.constant 1.42141378 : f32
    %453 = vector.broadcast %cst_206 : f32 to vector<32x128xf32>
    %454 = arith.addf %452, %453 : vector<32x128xf32>
    %455 = arith.mulf %454, %447 : vector<32x128xf32>
    %cst_207 = arith.constant -0.284496725 : f32
    %456 = vector.broadcast %cst_207 : f32 to vector<32x128xf32>
    %457 = arith.addf %455, %456 : vector<32x128xf32>
    %458 = arith.mulf %457, %447 : vector<32x128xf32>
    %cst_208 = arith.constant 0.254829586 : f32
    %459 = vector.broadcast %cst_208 : f32 to vector<32x128xf32>
    %460 = arith.addf %458, %459 : vector<32x128xf32>
    %461 = arith.mulf %460, %447 : vector<32x128xf32>
    %cst_209 = arith.constant 0.000000e+00 : f32
    %462 = vector.broadcast %cst_209 : f32 to vector<32x128xf32>
    %463 = arith.subf %462, %441 : vector<32x128xf32>
    %464 = arith.mulf %463, %441 : vector<32x128xf32>
    %465 = math.exp %464 : vector<32x128xf32>
    %466 = arith.mulf %461, %465 : vector<32x128xf32>
    %cst_210 = arith.constant 1.000000e+00 : f32
    %467 = vector.broadcast %cst_210 : f32 to vector<32x128xf32>
    %468 = arith.subf %467, %466 : vector<32x128xf32>
    %cst_211 = arith.constant 0.000000e+00 : f32
    %469 = vector.broadcast %cst_211 : f32 to vector<32x128xf32>
    %470 = arith.cmpf oge, %440, %469 : vector<32x128xf32>
    %cst_212 = arith.constant 0.000000e+00 : f32
    %471 = vector.broadcast %cst_212 : f32 to vector<32x128xf32>
    %472 = arith.subf %471, %468 : vector<32x128xf32>
    %473 = arith.select %470, %468, %472 : vector<32x128xi1>, vector<32x128xf32>
    %cst_213 = arith.constant 1.000000e+00 : f32
    %474 = vector.broadcast %cst_213 : f32 to vector<32x128xf32>
    %475 = arith.addf %474, %473 : vector<32x128xf32>
    %476 = arith.mulf %438, %475 : vector<32x128xf32>
    %477 = arith.truncf %476 : vector<32x128xf32> to vector<32x128xbf16>
    %c0_214 = arith.constant 0 : index
    %c0_215 = arith.constant 0 : index
    %478 = vector.load %arg10[%c0_214, %c0_215] : memref<128x1xbf16, #tpu.memory_space<vmem>>, vector<128x1xbf16>
    %cst_216 = arith.constant dense<0.000000e+00> : vector<32x1xf32>
    %479 = tpu.matmul %477, %478, %cst_216 {dimension_numbers = #tpu.dot_dimension_numbers<[1], [0], [0], [1], [0, 0, 1, 1], [], []>} : vector<32x128xbf16>, vector<128x1xbf16>, vector<32x1xf32> -> vector<32x1xf32>
    %c0_217 = arith.constant 0 : index
    %c0_218 = arith.constant 0 : index
    %480 = vector.load %arg11[%c0_217, %c0_218] : memref<1x1xf32, #tpu.memory_space<vmem>>, vector<1x1xf32>
    %481 = vector.broadcast %480 : vector<1x1xf32> to vector<32x1xf32>
    %482 = arith.addf %479, %481 : vector<32x1xf32>
    %c0_219 = arith.constant 0 : index
    %c0_220 = arith.constant 0 : index
    %483 = vector.load %arg20[%c0_219, %c0_220] : memref<32x1xf32, #tpu.memory_space<vmem>>, vector<32x1xf32>
    tpu.vector_store %arg20[%c0_219, %c0_220], %482 {strides = array<i32>} : memref<32x1xf32, #tpu.memory_space<vmem>>, vector<32x1xf32>,
    return
  }
}

</mosaic_0001>

<llo_original>
// kernel: kernelnn3_forward.1
$region0: #{kernelnn3_forward.1}
  #allocation0 [shape = 'u32[]', space=smem, size = 0x4, offset = 0x4, fixed_abs, tag = 'smem constant byte address 0x4 - core index']
  #allocation1 [shape = 'u32[72,128]{1,0:T(1,128)}', space=vmem, size = 0x9000, scoped, tag = 'internal scratch']
  #allocation2 [shape = 'f32[1,1]{1,0:T(1,128)S(1)}', space=vmem, size = 0x200, scoped, tag = 'scoped memory for kernelnn3_forward.1']
  %s0 = inlined_call_operand.vmem [shape: bf16[32,3], index: 0, kind: input, shape index: {}]
  %s1 = inlined_call_operand.vmem [shape: bf16[96,6], index: 1, kind: input, shape index: {}]
  %s2 = inlined_call_operand.vmem [shape: bf16[96,32], index: 2, kind: input, shape index: {}]
  %s3 = inlined_call_operand.vmem [shape: bf16[32,96], index: 3, kind: input, shape index: {}]
  %s4 = inlined_call_operand.vmem [shape: f32[32,1], index: 4, kind: input, shape index: {}]
  %s5 = inlined_call_operand.vmem [shape: bf16[32,1024], index: 5, kind: input, shape index: {}]
  %s6 = inlined_call_operand.vmem [shape: bf16[3,32], index: 6, kind: input, shape index: {}]
  %s7 = inlined_call_operand.vmem [shape: f32[1,32], index: 7, kind: input, shape index: {}]
  %s8 = inlined_call_operand.vmem [shape: bf16[32,128], index: 8, kind: input, shape index: {}]
  %s9 = inlined_call_operand.vmem [shape: f32[1,128], index: 9, kind: input, shape index: {}]
  %s10 = inlined_call_operand.vmem [shape: bf16[128,1], index: 10, kind: input, shape index: {}]
  %s11 = inlined_call_operand.<no memory space> [shape: f32[1,1], index: 11, kind: input, shape index: {}]
  %s12 = inlined_call_operand.vmem [shape: bf16[4,6,32], index: 12, kind: input, shape index: {}]
  %s13 = inlined_call_operand.vmem [shape: f32[4,1,32], index: 13, kind: input, shape index: {}]
  %s14 = inlined_call_operand.vmem [shape: bf16[4,32,64], index: 14, kind: input, shape index: {}]
  %s15 = inlined_call_operand.vmem [shape: f32[4,1,64], index: 15, kind: input, shape index: {}]
  %s16 = inlined_call_operand.vmem [shape: bf16[4,64,1024], index: 16, kind: input, shape index: {}]
  %s17 = inlined_call_operand.vmem [shape: f32[4,1,1024], index: 17, kind: input, shape index: {}]
  %s18 = inlined_call_operand.vmem [shape: bf16[4,32,32], index: 18, kind: input, shape index: {}]
  %s19 = inlined_call_operand.vmem [shape: f32[4,1,32], index: 19, kind: input, shape index: {}]
  %s20 = inlined_call_operand.vmem [shape: f32[32,1], index: 20, kind: output, shape index: {}]
  %s21 = sld [smem:[#allocation0]]
  $region90: #{kernelnn3_forward.1} parent=0
    _
  %s23 = ssub.s32 1, %s21
  %s24 = scalar_select 0, %s23, %s21
  %v25 = vstv %s11
  %26 = vst [vmem:[#allocation2] sm:$0x1] %v25
  // Predicated region
  $region2: #{kernelnn3_forward.1} parent=0 // pred_check
    _
  $region3: #{kernelnn3_forward.1} parent=0 // pred_check_branch
    %28 = sbr.rel (0) target = $region5
  $region4: #{kernelnn3_forward.1} parent=0 // pred_region
    _
  $region5: #{kernelnn3_forward.1} parent=0 // pred_fallthru
    _
  // Predicated region
  $region6: #{kernelnn3_forward.1} parent=0 // pred_check
    _
  $region7: #{kernelnn3_forward.1} parent=0 // pred_check_branch
    %30 = sbr.rel (0) target = $region9
  $region8: #{kernelnn3_forward.1} parent=0 // pred_region
    _
  $region9: #{kernelnn3_forward.1} parent=0 // pred_fallthru
    _
  // Predicated region
  $region10: #{kernelnn3_forward.1} parent=0 // pred_check
    _
  $region11: #{kernelnn3_forward.1} parent=0 // pred_check_branch
    %32 = sbr.rel (0) target = $region13
  $region12: #{kernelnn3_forward.1} parent=0 // pred_region
    _
  $region13: #{kernelnn3_forward.1} parent=0 // pred_fallthru
    _
  // Predicated region
  $region14: #{kernelnn3_forward.1} parent=0 // pred_check
    _
  $region15: #{kernelnn3_forward.1} parent=0 // pred_check_branch
    %34 = sbr.rel (0) target = $region17
  $region16: #{kernelnn3_forward.1} parent=0 // pred_region
    _
  $region17: #{kernelnn3_forward.1} parent=0 // pred_fallthru
    _
  // Predicated region
  $region18: #{kernelnn3_forward.1} parent=0 // pred_check
    _
  $region19: #{kernelnn3_forward.1} parent=0 // pred_check_branch
    %36 = sbr.rel (0) target = $region21
  $region20: #{kernelnn3_forward.1} parent=0 // pred_region
    _
  $region21: #{kernelnn3_forward.1} parent=0 // pred_fallthru
    _
  // Predicated region
  $region22: #{kernelnn3_forward.1} parent=0 // pred_check
    _
  $region23: #{kernelnn3_forward.1} parent=0 // pred_check_branch
    %38 = sbr.rel (0) target = $region25
  $region24: #{kernelnn3_forward.1} parent=0 // pred_region
    _
  $region25: #{kernelnn3_forward.1} parent=0 // pred_fallthru
    _
  // Predicated region
  $region26: #{kernelnn3_forward.1} parent=0 // pred_check
    _
  $region27: #{kernelnn3_forward.1} parent=0 // pred_check_branch
    %40 = sbr.rel (0) target = $region29
  $region28: #{kernelnn3_forward.1} parent=0 // pred_region
    _
  $region29: #{kernelnn3_forward.1} parent=0 // pred_fallthru
    _
  // Predicated region
  $region30: #{kernelnn3_forward.1} parent=0 // pred_check
    _
  $region31: #{kernelnn3_forward.1} parent=0 // pred_check_branch
    %42 = sbr.rel (0) target = $region33
  $region32: #{kernelnn3_forward.1} parent=0 // pred_region
    _
  $region33: #{kernelnn3_forward.1} parent=0 // pred_fallthru
    _
  // Predicated region
  $region34: #{kernelnn3_forward.1} parent=0 // pred_check
    _
  $region35: #{kernelnn3_forward.1} parent=0 // pred_check_branch
    %44 = sbr.rel (0) target = $region37
  $region36: #{kernelnn3_forward.1} parent=0 // pred_region
    _
  $region37: #{kernelnn3_forward.1} parent=0 // pred_fallthru
    _
  // Predicated region
  $region38: #{kernelnn3_forward.1} parent=0 // pred_check
    _
  $region39: #{kernelnn3_forward.1} parent=0 // pred_check_branch
    %46 = sbr.rel (0) target = $region41
  $region40: #{kernelnn3_forward.1} parent=0 // pred_region
    _
  $region41: #{kernelnn3_forward.1} parent=0 // pred_fallthru
    _
  // Predicated region
  $region42: #{kernelnn3_forward.1} parent=0 // pred_check
    _
  $region43: #{kernelnn3_forward.1} parent=0 // pred_check_branch
    %48 = sbr.rel (0) target = $region45
  $region44: #{kernelnn3_forward.1} parent=0 // pred_region
    _
  $region45: #{kernelnn3_forward.1} parent=0 // pred_fallthru
    _
  // Predicated region
  $region46: #{kernelnn3_forward.1} parent=0 // pred_check
    _
  $region47: #{kernelnn3_forward.1} parent=0 // pred_check_branch
    %50 = sbr.rel (0) target = $region49
  $region48: #{kernelnn3_forward.1} parent=0 // pred_region
    _
  $region49: #{kernelnn3_forward.1} parent=0 // pred_fallthru
    _
  // Predicated region
  $region50: #{kernelnn3_forward.1} parent=0 // pred_check
    _
  $region51: #{kernelnn3_forward.1} parent=0 // pred_check_branch
    %52 = sbr.rel (0) target = $region53
  $region52: #{kernelnn3_forward.1} parent=0 // pred_region
    _
  $region53: #{kernelnn3_forward.1} parent=0 // pred_fallthru
    _
  // Predicated region
  $region54: #{kernelnn3_forward.1} parent=0 // pred_check
    _
  $region55: #{kernelnn3_forward.1} parent=0 // pred_check_branch
    %54 = sbr.rel (0) target = $region57
  $region56: #{kernelnn3_forward.1} parent=0 // pred_region
    _
  $region57: #{kernelnn3_forward.1} parent=0 // pred_fallthru
    _
  // Predicated region
  $region58: #{kernelnn3_forward.1} parent=0 // pred_check
    _
  $region59: #{kernelnn3_forward.1} parent=0 // pred_check_branch
    %56 = sbr.rel (0) target = $region61
  $region60: #{kernelnn3_forward.1} parent=0 // pred_region
    _
  $region61: #{kernelnn3_forward.1} parent=0 // pred_fallthru
    _
  // Predicated region
  $region62: #{kernelnn3_forward.1} parent=0 // pred_check
    _
  $region63: #{kernelnn3_forward.1} parent=0 // pred_check_branch
    %58 = sbr.rel (0) target = $region65
  $region64: #{kernelnn3_forward.1} parent=0 // pred_region
    _
  $region65: #{kernelnn3_forward.1} parent=0 // pred_fallthru
    _
  // Predicated region
  $region66: #{kernelnn3_forward.1} parent=0 // pred_check
    _
  $region67: #{kernelnn3_forward.1} parent=0 // pred_check_branch
    %60 = sbr.rel (0) target = $region69
  $region68: #{kernelnn3_forward.1} parent=0 // pred_region
    _
  $region69: #{kernelnn3_forward.1} parent=0 // pred_fallthru
    _
  // Predicated region
  $region70: #{kernelnn3_forward.1} parent=0 // pred_check
    _
  $region71: #{kernelnn3_forward.1} parent=0 // pred_check_branch
    %62 = sbr.rel (0) target = $region73
  $region72: #{kernelnn3_forward.1} parent=0 // pred_region
    _
  $region73: #{kernelnn3_forward.1} parent=0 // pred_fallthru
    _
  // Predicated region
  $region74: #{kernelnn3_forward.1} parent=0 // pred_check
    _
  $region75: #{kernelnn3_forward.1} parent=0 // pred_check_branch
    %64 = sbr.rel (0) target = $region77
  $region76: #{kernelnn3_forward.1} parent=0 // pred_region
    _
  $region77: #{kernelnn3_forward.1} parent=0 // pred_fallthru
    _
  // Predicated region
  $region78: #{kernelnn3_forward.1} parent=0 // pred_check
    _
  $region79: #{kernelnn3_forward.1} parent=0 // pred_check_branch
    %66 = sbr.rel (0) target = $region81
  $region80: #{kernelnn3_forward.1} parent=0 // pred_region
    _
  $region81: #{kernelnn3_forward.1} parent=0 // pred_fallthru
    _
  %v68 = vld [vmem:[%s1] sm:$0xf]
  %v69 = vld [vmem:[%s1 + $0x4] sm:$0xf]
  %v70 = vld [vmem:[%s1 + $0x8] sm:$0xf]
  %v71 = vld [vmem:[%s1 + $0xc] sm:$0xf]
  %v72 = vld [vmem:[%s1 + $0x10] sm:$0xf]
  %v73 = vld [vmem:[%s1 + $0x14] sm:$0xf]
  %v74 = vld [vmem:[%s1 + $0x18] sm:$0xf]
  %v75 = vld [vmem:[%s1 + $0x1c] sm:$0xf]
  %v76 = vld [vmem:[%s1 + $0x20] sm:$0xf]
  %v77 = vld [vmem:[%s1 + $0x24] sm:$0xf]
  %v78 = vld [vmem:[%s1 + $0x28] sm:$0xf]
  %v79 = vld [vmem:[%s1 + $0x2c] sm:$0xf]
  %v80 = vld [vmem:[%s2] sm:$0xf]
  %v81 = vld [vmem:[%s2 + $0x4] sm:$0xf]
  %v82 = vld [vmem:[%s2 + $0x8] sm:$0xf]
  %v83 = vld [vmem:[%s2 + $0xc] sm:$0xf]
  %v84 = vld [vmem:[%s2 + $0x10] sm:$0xf]
  %v85 = vld [vmem:[%s2 + $0x14] sm:$0xf]
  %v86 = vld [vmem:[%s2 + $0x18] sm:$0xf]
  %v87 = vld [vmem:[%s2 + $0x1c] sm:$0xf]
  %v88 = vld [vmem:[%s2 + $0x20] sm:$0xf]
  %v89 = vld [vmem:[%s2 + $0x24] sm:$0xf]
  %v90 = vld [vmem:[%s2 + $0x28] sm:$0xf]
  %v91 = vld [vmem:[%s2 + $0x2c] sm:$0xf]
  %v92 = vld [vmem:[%s3] sm:$0xf]
  %v93 = vld [vmem:[%s3 + $0x4] sm:$0xf]
  %v94 = vld [vmem:[%s3 + $0x8] sm:$0xf]
  %v95 = vld [vmem:[%s3 + $0xc] sm:$0xf]
  %v96 = vld [vmem:[%s5] sm:$0xff]
  %v97 = vld [vmem:[%s5 + $0x8] sm:$0xff]
  %v98 = vld [vmem:[%s5 + $0x10] sm:$0xff]
  %v99 = vld [vmem:[%s5 + $0x18] sm:$0xff]
  %v100 = vld [vmem:[%s5 + $0x20] sm:$0xff]
  %v101 = vld [vmem:[%s5 + $0x28] sm:$0xff]
  %v102 = vld [vmem:[%s5 + $0x30] sm:$0xff]
  %v103 = vld [vmem:[%s5 + $0x38] sm:$0xff]
  %v104 = vld [vmem:[%s5 + $0x40] sm:$0xff]
  %v105 = vld [vmem:[%s5 + $0x48] sm:$0xff]
  %v106 = vld [vmem:[%s5 + $0x50] sm:$0xff]
  %v107 = vld [vmem:[%s5 + $0x58] sm:$0xff]
  %v108 = vld [vmem:[%s5 + $0x60] sm:$0xff]
  %v109 = vld [vmem:[%s5 + $0x68] sm:$0xff]
  %v110 = vld [vmem:[%s5 + $0x70] sm:$0xff]
  %v111 = vld [vmem:[%s5 + $0x78] sm:$0xff]
  %v112 = vld [vmem:[%s4] sm:$0xff]
  %v113 = vld [vmem:[%s4 + $0x8] sm:$0xff]
  %v114 = vld [vmem:[%s4 + $0x10] sm:$0xff]
  %v115 = vld [vmem:[%s4 + $0x18] sm:$0xff]
  %v116 = vld [vmem:[%s0] sm:$0xf]
  %v117 = vld [vmem:[%s0 + $0x4] sm:$0xf]
  %v118 = vld [vmem:[%s0 + $0x8] sm:$0xf]
  %v119 = vld [vmem:[%s0 + $0xc] sm:$0xf]
  %v120 = vld [vmem:[%s6] sm:$0x3]
  %v121 = vld [vmem:[%s7] sm:$0x1]
  %v123 = vperm.slane %v121, 0
  %v129 = vunpack.c.l.b16 %v116
  %v130 = vunpack.c.l.b16 %v117
  %v131 = vunpack.c.l.b16 %v118
  %v132 = vunpack.c.l.b16 %v119
  %v133 = vpack.c.b16 %v130, %v129
  %v134 = vpack.c.b16 %v132, %v131
  %vm135 = vcmask 23552
  %v137 = vsel %vm135, %v133, 0
  %v140 = vsel %vm135, %v134, 0
  %vm142 = vcmask 1040384
  %vm143 = vcmask 1041408
  %v144 = vsel %vm142, 4294967295, 65535
  %v145 = vsel %vm143, %v144, 0
  %v147 = vand.u32 %v120, %v145
  %149 = vmatpush.bf16.msra.mxu0 0
  %150 = vmatpush.bf16.msra.mxu0 0
  %151 = vmatpush.bf16.msra.mxu0 0
  %152 = vmatpush.bf16.msra.mxu0 0
  %153 = vmatpush.bf16.msra.mxu0 0
  %154 = vmatpush.bf16.msra.mxu0 0
  %155 = vmatpush.bf16.msra.mxu0 0
  %156 = vmatpush.bf16.msra.mxu0 %v147
  %157 = vmatmul.bf16.gmra.mxu0 %v137
  %v158 = vpop.f32.mrf.mxu0
  %v159 = vadd.f32 %v123, %v158
  %v160 = vpop.f32.mrf.mxu0
  %v161 = vadd.f32 %v123, %v160
  %162 = vmatmul.bf16.gmra.mxu0 %v140
  %v163 = vpop.f32.mrf.mxu0
  %v164 = vadd.f32 %v123, %v163
  %v165 = vpop.f32.mrf.mxu0
  %v166 = vadd.f32 %v123, %v165
  %167 = vdwg.mxu0
  %v168 = vld [vmem:[%s12] sm:$0x7]
  %v169 = vld [vmem:[%s13] sm:$0x1]
  %v171 = vperm.slane %v169, 0
  %v185 = vunpack.c.l.b16 %v68
  %v186 = vunpack.c.l.b16 %v69
  %v187 = vunpack.c.l.b16 %v70
  %v188 = vunpack.c.l.b16 %v71
  %v189 = vunpack.c.l.b16 %v72
  %v190 = vunpack.c.l.b16 %v73
  %v191 = vunpack.c.l.b16 %v74
  %v192 = vunpack.c.l.b16 %v75
  %v193 = vunpack.c.l.b16 %v76
  %v194 = vunpack.c.l.b16 %v77
  %v195 = vunpack.c.l.b16 %v78
  %v196 = vunpack.c.l.b16 %v79
  %v197 = vpack.c.b16 %v186, %v185
  %v198 = vpack.c.b16 %v188, %v187
  %v199 = vpack.c.b16 %v190, %v189
  %v200 = vpack.c.b16 %v192, %v191
  %v201 = vpack.c.b16 %v194, %v193
  %v202 = vpack.c.b16 %v196, %v195
  %vm203 = vcmask 48128
  %v205 = vsel %vm203, %v197, 0
  %v208 = vsel %vm203, %v198, 0
  %v211 = vsel %vm203, %v199, 0
  %v214 = vsel %vm203, %v200, 0
  %v217 = vsel %vm203, %v201, 0
  %v220 = vsel %vm203, %v202, 0
  %vm222 = vcmask 1042432
  %v224 = vsel %vm222, %v168, 0
  %226 = vmatpush.bf16.msra.mxu0 0
  %227 = vmatpush.bf16.msra.mxu0 0
  %228 = vmatpush.bf16.msra.mxu0 0
  %229 = vmatpush.bf16.msra.mxu0 0
  %230 = vmatpush.bf16.msra.mxu0 0
  %231 = vmatpush.bf16.msra.mxu0 0
  %232 = vmatpush.bf16.msra.mxu0 0
  %233 = vmatpush.bf16.msra.mxu0 %v224
  %234 = vmatmul.bf16.gmra.mxu0 %v205
  %v235 = vpop.f32.mrf.mxu0
  %v236 = vadd.f32 %v171, %v235
  %v237 = vpop.f32.mrf.mxu0
  %v238 = vadd.f32 %v171, %v237
  %239 = vmatmul.bf16.gmra.mxu0 %v208
  %v240 = vpop.f32.mrf.mxu0
  %v241 = vadd.f32 %v171, %v240
  %v242 = vpop.f32.mrf.mxu0
  %v243 = vadd.f32 %v171, %v242
  %244 = vmatmul.bf16.gmra.mxu0 %v211
  %v245 = vpop.f32.mrf.mxu0
  %v246 = vadd.f32 %v171, %v245
  %v247 = vpop.f32.mrf.mxu0
  %v248 = vadd.f32 %v171, %v247
  %249 = vmatmul.bf16.gmra.mxu0 %v214
  %v250 = vpop.f32.mrf.mxu0
  %v251 = vadd.f32 %v171, %v250
  %v252 = vpop.f32.mrf.mxu0
  %v253 = vadd.f32 %v171, %v252
  %254 = vmatmul.bf16.gmra.mxu0 %v217
  %v255 = vpop.f32.mrf.mxu0
  %v256 = vadd.f32 %v171, %v255
  %v257 = vpop.f32.mrf.mxu0
  %v258 = vadd.f32 %v171, %v257
  %259 = vmatmul.bf16.gmra.mxu0 %v220
  %v260 = vpop.f32.mrf.mxu0
  %v261 = vadd.f32 %v171, %v260
  %v262 = vpop.f32.mrf.mxu0
  %v263 = vadd.f32 %v171, %v262
  %264 = vdwg.mxu0
  %v265 = vmax.f32 %v236, 0.0
  %v266 = vmax.f32 %v238, 0.0
  %v267 = vmax.f32 %v241, 0.0
  %v268 = vmax.f32 %v243, 0.0
  %v269 = vmax.f32 %v246, 0.0
  %v270 = vmax.f32 %v248, 0.0
  %v271 = vmax.f32 %v251, 0.0
  %v272 = vmax.f32 %v253, 0.0
  %v273 = vmax.f32 %v256, 0.0
  %v274 = vmax.f32 %v258, 0.0
  %v275 = vmax.f32 %v261, 0.0
  %v276 = vmax.f32 %v263, 0.0
  %v277 = vpack.c.bf16 %v266, %v265
  %v278 = vpack.c.bf16 %v268, %v267
  %v279 = vpack.c.bf16 %v270, %v269
  %v280 = vpack.c.bf16 %v272, %v271
  %v281 = vpack.c.bf16 %v274, %v273
  %v282 = vpack.c.bf16 %v276, %v275
  %v283 = vld [vmem:[%s14] sm:$0xf]
  %v284 = vld [vmem:[%s14 + $0x4] sm:$0xf]
  %v285 = vld [vmem:[%s14 + $0x8] sm:$0xf]
  %v286 = vld [vmem:[%s14 + $0xc] sm:$0xf]
  %v287 = vld [vmem:[%s15] sm:$0x1]
  %v289 = vperm.slane %v287, 0
  %v295 = vunpack.c.l.b16 %v283
  %v296 = vunpack.c.l.b16 %v284
  %v297 = vunpack.c.l.b16 %v285
  %v298 = vunpack.c.l.b16 %v286
  %v299 = vpack.c.b16 %v296, %v295
  %v300 = vpack.c.b16 %v298, %v297
  %vm303 = vcmask 261120
  %v305 = vsel %vm303, %v277, 0
  %v308 = vsel %vm303, %v278, 0
  %v311 = vsel %vm303, %v279, 0
  %v314 = vsel %vm303, %v280, 0
  %v317 = vsel %vm303, %v281, 0
  %v320 = vsel %vm303, %v282, 0
  %322 = vmatpush.bf16.msra.mxu0 0
  %323 = vmatpush.bf16.msra.mxu0 0
  %324 = vmatpush.bf16.msra.mxu0 0
  %325 = vmatpush.bf16.msra.mxu0 0
  %326 = vmatpush.bf16.msra.mxu0 0
  %327 = vmatpush.bf16.msra.mxu0 0
  %328 = vmatpush.bf16.msra.mxu0 %v300
  %329 = vmatpush.bf16.msra.mxu0 %v299
  %330 = vmatmul.bf16.gmra.mxu0 %v305
  %v331 = vpop.f32.mrf.mxu0
  %v332 = vadd.f32 %v289, %v331
  %v333 = vpop.f32.mrf.mxu0
  %v334 = vadd.f32 %v289, %v333
  %335 = vmatmul.bf16.gmra.mxu0 %v308
  %v336 = vpop.f32.mrf.mxu0
  %v337 = vadd.f32 %v289, %v336
  %v338 = vpop.f32.mrf.mxu0
  %v339 = vadd.f32 %v289, %v338
  %340 = vmatmul.bf16.gmra.mxu0 %v311
  %v341 = vpop.f32.mrf.mxu0
  %v342 = vadd.f32 %v289, %v341
  %v343 = vpop.f32.mrf.mxu0
  %v344 = vadd.f32 %v289, %v343
  %345 = vmatmul.bf16.gmra.mxu0 %v314
  %v346 = vpop.f32.mrf.mxu0
  %v347 = vadd.f32 %v289, %v346
  %v348 = vpop.f32.mrf.mxu0
  %v349 = vadd.f32 %v289, %v348
  %350 = vmatmul.bf16.gmra.mxu0 %v317
  %v351 = vpop.f32.mrf.mxu0
  %v352 = vadd.f32 %v289, %v351
  %v353 = vpop.f32.mrf.mxu0
  %v354 = vadd.f32 %v289, %v353
  %355 = vmatmul.bf16.gmra.mxu0 %v320
  %v356 = vpop.f32.mrf.mxu0
  %v357 = vadd.f32 %v289, %v356
  %v358 = vpop.f32.mrf.mxu0
  %v359 = vadd.f32 %v289, %v358
  %360 = vdwg.mxu0
  %v361 = vmax.f32 %v332, 0.0
  %v362 = vmax.f32 %v334, 0.0
  %v363 = vmax.f32 %v337, 0.0
  %v364 = vmax.f32 %v339, 0.0
  %v365 = vmax.f32 %v342, 0.0
  %v366 = vmax.f32 %v344, 0.0
  %v367 = vmax.f32 %v347, 0.0
  %v368 = vmax.f32 %v349, 0.0
  %v369 = vmax.f32 %v352, 0.0
  %v370 = vmax.f32 %v354, 0.0
  %v371 = vmax.f32 %v357, 0.0
  %v372 = vmax.f32 %v359, 0.0
  %v373 = vpack.c.bf16 %v362, %v361
  %v374 = vpack.c.bf16 %v364, %v363
  %v375 = vpack.c.bf16 %v366, %v365
  %v376 = vpack.c.bf16 %v368, %v367
  %v377 = vpack.c.bf16 %v370, %v369
  %v378 = vpack.c.bf16 %v372, %v371
  %v379 = vld [vmem:[%s16] sm:$0xff]
  %v380 = vld [vmem:[%s16 + $0x8] sm:$0xff]
  %v381 = vld [vmem:[%s16 + $0x10] sm:$0xff]
  %v382 = vld [vmem:[%s16 + $0x18] sm:$0xff]
  %v383 = vld [vmem:[%s16 + $0x20] sm:$0xff]
  %v384 = vld [vmem:[%s16 + $0x28] sm:$0xff]
  %v385 = vld [vmem:[%s16 + $0x30] sm:$0xff]
  %v386 = vld [vmem:[%s16 + $0x38] sm:$0xff]
  %v387 = vld [vmem:[%s16 + $0x40] sm:$0xff]
  %v388 = vld [vmem:[%s16 + $0x48] sm:$0xff]
  %v389 = vld [vmem:[%s16 + $0x50] sm:$0xff]
  %v390 = vld [vmem:[%s16 + $0x58] sm:$0xff]
  %v391 = vld [vmem:[%s16 + $0x60] sm:$0xff]
  %v392 = vld [vmem:[%s16 + $0x68] sm:$0xff]
  %v393 = vld [vmem:[%s16 + $0x70] sm:$0xff]
  %v394 = vld [vmem:[%s16 + $0x78] sm:$0xff]
  %v395 = vld [vmem:[%s16 + $0x80] sm:$0xff]
  %v396 = vld [vmem:[%s16 + $0x88] sm:$0xff]
  %v397 = vld [vmem:[%s16 + $0x90] sm:$0xff]
  %v398 = vld [vmem:[%s16 + $0x98] sm:$0xff]
  %v399 = vld [vmem:[%s16 + $0xa0] sm:$0xff]
  %v400 = vld [vmem:[%s16 + $0xa8] sm:$0xff]
  %v401 = vld [vmem:[%s16 + $0xb0] sm:$0xff]
  %v402 = vld [vmem:[%s16 + $0xb8] sm:$0xff]
  %v403 = vld [vmem:[%s16 + $0xc0] sm:$0xff]
  %v404 = vld [vmem:[%s16 + $0xc8] sm:$0xff]
  %v405 = vld [vmem:[%s16 + $0xd0] sm:$0xff]
  %v406 = vld [vmem:[%s16 + $0xd8] sm:$0xff]
  %v407 = vld [vmem:[%s16 + $0xe0] sm:$0xff]
  %v408 = vld [vmem:[%s16 + $0xe8] sm:$0xff]
  %v409 = vld [vmem:[%s16 + $0xf0] sm:$0xff]
  %v410 = vld [vmem:[%s16 + $0xf8] sm:$0xff]
  %v411 = vld [vmem:[%s17] sm:$0xff]
  %v413 = vperm.slane %v411, 0
  %v414 = vperm.slane %v411, 1
  %v415 = vperm.slane %v411, 2
  %v416 = vperm.slane %v411, 3
  %v417 = vperm.slane %v411, 4
  %v418 = vperm.slane %v411, 5
  %v419 = vperm.slane %v411, 6
  %v420 = vperm.slane %v411, 7
  %v461 = vunpack.c.l.b16 %v379
  %v462 = vunpack.c.h.b16 %v379
  %v463 = vunpack.c.l.b16 %v380
  %v464 = vunpack.c.h.b16 %v380
  %v465 = vunpack.c.l.b16 %v381
  %v466 = vunpack.c.h.b16 %v381
  %v467 = vunpack.c.l.b16 %v382
  %v468 = vunpack.c.h.b16 %v382
  %v469 = vunpack.c.l.b16 %v383
  %v470 = vunpack.c.h.b16 %v383
  %v471 = vunpack.c.l.b16 %v384
  %v472 = vunpack.c.h.b16 %v384
  %v473 = vunpack.c.l.b16 %v385
  %v474 = vunpack.c.h.b16 %v385
  %v475 = vunpack.c.l.b16 %v386
  %v476 = vunpack.c.h.b16 %v386
  %v477 = vunpack.c.l.b16 %v387
  %v478 = vunpack.c.h.b16 %v387
  %v479 = vunpack.c.l.b16 %v388
  %v480 = vunpack.c.h.b16 %v388
  %v481 = vunpack.c.l.b16 %v389
  %v482 = vunpack.c.h.b16 %v389
  %v483 = vunpack.c.l.b16 %v390
  %v484 = vunpack.c.h.b16 %v390
  %v485 = vunpack.c.l.b16 %v391
  %v486 = vunpack.c.h.b16 %v391
  %v487 = vunpack.c.l.b16 %v392
  %v488 = vunpack.c.h.b16 %v392
  %v489 = vunpack.c.l.b16 %v393
  %v490 = vunpack.c.h.b16 %v393
  %v491 = vunpack.c.l.b16 %v394
  %v492 = vunpack.c.h.b16 %v394
  %v493 = vunpack.c.l.b16 %v395
  %v494 = vunpack.c.h.b16 %v395
  %v495 = vunpack.c.l.b16 %v396
  %v496 = vunpack.c.h.b16 %v396
  %v497 = vunpack.c.l.b16 %v397
  %v498 = vunpack.c.h.b16 %v397
  %v499 = vunpack.c.l.b16 %v398
  %v500 = vunpack.c.h.b16 %v398
  %v501 = vunpack.c.l.b16 %v399
  %v502 = vunpack.c.h.b16 %v399
  %v503 = vunpack.c.l.b16 %v400
  %v504 = vunpack.c.h.b16 %v400
  %v505 = vunpack.c.l.b16 %v401
  %v506 = vunpack.c.h.b16 %v401
  %v507 = vunpack.c.l.b16 %v402
  %v508 = vunpack.c.h.b16 %v402
  %v509 = vunpack.c.l.b16 %v403
  %v510 = vunpack.c.h.b16 %v403
  %v511 = vunpack.c.l.b16 %v404
  %v512 = vunpack.c.h.b16 %v404
  %v513 = vunpack.c.l.b16 %v405
  %v514 = vunpack.c.h.b16 %v405
  %v515 = vunpack.c.l.b16 %v406
  %v516 = vunpack.c.h.b16 %v406
  %v517 = vunpack.c.l.b16 %v407
  %v518 = vunpack.c.h.b16 %v407
  %v519 = vunpack.c.l.b16 %v408
  %v520 = vunpack.c.h.b16 %v408
  %v521 = vunpack.c.l.b16 %v409
  %v522 = vunpack.c.h.b16 %v409
  %v523 = vunpack.c.l.b16 %v410
  %v524 = vunpack.c.h.b16 %v410
  %v525 = vpack.c.b16 %v469, %v461
  %v526 = vpack.c.b16 %v470, %v462
  %v527 = vpack.c.b16 %v471, %v463
  %v528 = vpack.c.b16 %v472, %v464
  %v529 = vpack.c.b16 %v473, %v465
  %v530 = vpack.c.b16 %v474, %v466
  %v531 = vpack.c.b16 %v475, %v467
  %v532 = vpack.c.b16 %v476, %v468
  %v533 = vpack.c.b16 %v485, %v477
  %v534 = vpack.c.b16 %v486, %v478
  %v535 = vpack.c.b16 %v487, %v479
  %v536 = vpack.c.b16 %v488, %v480
  %v537 = vpack.c.b16 %v489, %v481
  %v538 = vpack.c.b16 %v490, %v482
  %v539 = vpack.c.b16 %v491, %v483
  %v540 = vpack.c.b16 %v492, %v484
  %v541 = vpack.c.b16 %v501, %v493
  %v542 = vpack.c.b16 %v502, %v494
  %v543 = vpack.c.b16 %v503, %v495
  %v544 = vpack.c.b16 %v504, %v496
  %v545 = vpack.c.b16 %v505, %v497
  %v546 = vpack.c.b16 %v506, %v498
  %v547 = vpack.c.b16 %v507, %v499
  %v548 = vpack.c.b16 %v508, %v500
  %v549 = vpack.c.b16 %v517, %v509
  %v550 = vpack.c.b16 %v518, %v510
  %v551 = vpack.c.b16 %v519, %v511
  %v552 = vpack.c.b16 %v520, %v512
  %v553 = vpack.c.b16 %v521, %v513
  %v554 = vpack.c.b16 %v522, %v514
  %v555 = vpack.c.b16 %v523, %v515
  %v556 = vpack.c.b16 %v524, %v516
  %vm589 = vcmask 523264
  %v591 = vsel %vm589, %v373, 0
  %v594 = vsel %vm589, %v374, 0
  %v597 = vsel %vm589, %v375, 0
  %v600 = vsel %vm589, %v376, 0
  %v603 = vsel %vm589, %v377, 0
  %v606 = vsel %vm589, %v378, 0
  %608 = vmatpush.bf16.msra.mxu0 0
  %609 = vmatpush.bf16.msra.mxu0 0
  %610 = vmatpush.bf16.msra.mxu0 0
  %611 = vmatpush.bf16.msra.mxu0 0
  %612 = vmatpush.bf16.msra.mxu0 %v549
  %613 = vmatpush.bf16.msra.mxu0 %v541
  %614 = vmatpush.bf16.msra.mxu0 %v533
  %615 = vmatpush.bf16.msra.mxu0 %v525
  %616 = vmatmul.bf16.gmra.mxu0 %v591
  %v617 = vpop.f32.mrf.mxu0
  %v618 = vadd.f32 %v413, %v617
  %v619 = vpop.f32.mrf.mxu0
  %v620 = vadd.f32 %v413, %v619
  %621 = vmatmul.bf16.gmra.mxu0 %v594
  %v622 = vpop.f32.mrf.mxu0
  %v623 = vadd.f32 %v413, %v622
  %v624 = vpop.f32.mrf.mxu0
  %v625 = vadd.f32 %v413, %v624
  %626 = vmatmul.bf16.gmra.mxu0 %v597
  %v627 = vpop.f32.mrf.mxu0
  %v628 = vadd.f32 %v413, %v627
  %v629 = vpop.f32.mrf.mxu0
  %v630 = vadd.f32 %v413, %v629
  %631 = vmatmul.bf16.gmra.mxu0 %v600
  %v632 = vpop.f32.mrf.mxu0
  %v633 = vadd.f32 %v413, %v632
  %v634 = vpop.f32.mrf.mxu0
  %v635 = vadd.f32 %v413, %v634
  %636 = vmatmul.bf16.gmra.mxu0 %v603
  %v637 = vpop.f32.mrf.mxu0
  %v638 = vadd.f32 %v413, %v637
  %v639 = vpop.f32.mrf.mxu0
  %v640 = vadd.f32 %v413, %v639
  %641 = vmatmul.bf16.gmra.mxu0 %v606
  %v642 = vpop.f32.mrf.mxu0
  %v643 = vadd.f32 %v413, %v642
  %v644 = vpop.f32.mrf.mxu0
  %v645 = vadd.f32 %v413, %v644
  %646 = vdwg.mxu0
  %647 = vmatpush.bf16.msra.mxu0 0
  %648 = vmatpush.bf16.msra.mxu0 0
  %649 = vmatpush.bf16.msra.mxu0 0
  %650 = vmatpush.bf16.msra.mxu0 0
  %651 = vmatpush.bf16.msra.mxu0 %v550
  %652 = vmatpush.bf16.msra.mxu0 %v542
  %653 = vmatpush.bf16.msra.mxu0 %v534
  %654 = vmatpush.bf16.msra.mxu0 %v526
  %655 = vmatmul.bf16.gmra.mxu0 %v591
  %v656 = vpop.f32.mrf.mxu0
  %v657 = vadd.f32 %v414, %v656
  %v658 = vpop.f32.mrf.mxu0
  %v659 = vadd.f32 %v414, %v658
  %660 = vmatmul.bf16.gmra.mxu0 %v594
  %v661 = vpop.f32.mrf.mxu0
  %v662 = vadd.f32 %v414, %v661
  %v663 = vpop.f32.mrf.mxu0
  %v664 = vadd.f32 %v414, %v663
  %665 = vmatmul.bf16.gmra.mxu0 %v597
  %v666 = vpop.f32.mrf.mxu0
  %v667 = vadd.f32 %v414, %v666
  %v668 = vpop.f32.mrf.mxu0
  %v669 = vadd.f32 %v414, %v668
  %670 = vmatmul.bf16.gmra.mxu0 %v600
  %v671 = vpop.f32.mrf.mxu0
  %v672 = vadd.f32 %v414, %v671
  %v673 = vpop.f32.mrf.mxu0
  %v674 = vadd.f32 %v414, %v673
  %675 = vmatmul.bf16.gmra.mxu0 %v603
  %v676 = vpop.f32.mrf.mxu0
  %v677 = vadd.f32 %v414, %v676
  %v678 = vpop.f32.mrf.mxu0
  %v679 = vadd.f32 %v414, %v678
  %680 = vmatmul.bf16.gmra.mxu0 %v606
  %v681 = vpop.f32.mrf.mxu0
  %v682 = vadd.f32 %v414, %v681
  %v683 = vpop.f32.mrf.mxu0
  %v684 = vadd.f32 %v414, %v683
  %685 = vdwg.mxu0
  %686 = vmatpush.bf16.msra.mxu0 0
  %687 = vmatpush.bf16.msra.mxu0 0
  %688 = vmatpush.bf16.msra.mxu0 0
  %689 = vmatpush.bf16.msra.mxu0 0
  %690 = vmatpush.bf16.msra.mxu0 %v551
  %691 = vmatpush.bf16.msra.mxu0 %v543
  %692 = vmatpush.bf16.msra.mxu0 %v535
  %693 = vmatpush.bf16.msra.mxu0 %v527
  %694 = vmatmul.bf16.gmra.mxu0 %v591
  %v695 = vpop.f32.mrf.mxu0
  %v696 = vadd.f32 %v415, %v695
  %v697 = vpop.f32.mrf.mxu0
  %v698 = vadd.f32 %v415, %v697
  %699 = vmatmul.bf16.gmra.mxu0 %v594
  %v700 = vpop.f32.mrf.mxu0
  %v701 = vadd.f32 %v415, %v700
  %v702 = vpop.f32.mrf.mxu0
  %v703 = vadd.f32 %v415, %v702
  %704 = vmatmul.bf16.gmra.mxu0 %v597
  %v705 = vpop.f32.mrf.mxu0
  %v706 = vadd.f32 %v415, %v705
  %v707 = vpop.f32.mrf.mxu0
  %v708 = vadd.f32 %v415, %v707
  %709 = vmatmul.bf16.gmra.mxu0 %v600
  %v710 = vpop.f32.mrf.mxu0
  %v711 = vadd.f32 %v415, %v710
  %v712 = vpop.f32.mrf.mxu0
  %v713 = vadd.f32 %v415, %v712
  %714 = vmatmul.bf16.gmra.mxu0 %v603
  %v715 = vpop.f32.mrf.mxu0
  %v716 = vadd.f32 %v415, %v715
  %v717 = vpop.f32.mrf.mxu0
  %v718 = vadd.f32 %v415, %v717
  %719 = vmatmul.bf16.gmra.mxu0 %v606
  %v720 = vpop.f32.mrf.mxu0
  %v721 = vadd.f32 %v415, %v720
  %v722 = vpop.f32.mrf.mxu0
  %v723 = vadd.f32 %v415, %v722
  %724 = vdwg.mxu0
  %725 = vmatpush.bf16.msra.mxu0 0
  %726 = vmatpush.bf16.msra.mxu0 0
  %727 = vmatpush.bf16.msra.mxu0 0
  %728 = vmatpush.bf16.msra.mxu0 0
  %729 = vmatpush.bf16.msra.mxu0 %v552
  %730 = vmatpush.bf16.msra.mxu0 %v544
  %731 = vmatpush.bf16.msra.mxu0 %v536
  %732 = vmatpush.bf16.msra.mxu0 %v528
  %733 = vmatmul.bf16.gmra.mxu0 %v591
  %v734 = vpop.f32.mrf.mxu0
  %v735 = vadd.f32 %v416, %v734
  %v736 = vpop.f32.mrf.mxu0
  %v737 = vadd.f32 %v416, %v736
  %738 = vmatmul.bf16.gmra.mxu0 %v594
  %v739 = vpop.f32.mrf.mxu0
  %v740 = vadd.f32 %v416, %v739
  %v741 = vpop.f32.mrf.mxu0
  %v742 = vadd.f32 %v416, %v741
  %743 = vmatmul.bf16.gmra.mxu0 %v597
  %v744 = vpop.f32.mrf.mxu0
  %v745 = vadd.f32 %v416, %v744
  %v746 = vpop.f32.mrf.mxu0
  %v747 = vadd.f32 %v416, %v746
  %748 = vmatmul.bf16.gmra.mxu0 %v600
  %v749 = vpop.f32.mrf.mxu0
  %v750 = vadd.f32 %v416, %v749
  %v751 = vpop.f32.mrf.mxu0
  %v752 = vadd.f32 %v416, %v751
  %753 = vmatmul.bf16.gmra.mxu0 %v603
  %v754 = vpop.f32.mrf.mxu0
  %v755 = vadd.f32 %v416, %v754
  %v756 = vpop.f32.mrf.mxu0
  %v757 = vadd.f32 %v416, %v756
  %758 = vmatmul.bf16.gmra.mxu0 %v606
  %v759 = vpop.f32.mrf.mxu0
  %v760 = vadd.f32 %v416, %v759
  %v761 = vpop.f32.mrf.mxu0
  %v762 = vadd.f32 %v416, %v761
  %763 = vdwg.mxu0
  %764 = vmatpush.bf16.msra.mxu0 0
  %765 = vmatpush.bf16.msra.mxu0 0
  %766 = vmatpush.bf16.msra.mxu0 0
  %767 = vmatpush.bf16.msra.mxu0 0
  %768 = vmatpush.bf16.msra.mxu0 %v553
  %769 = vmatpush.bf16.msra.mxu0 %v545
  %770 = vmatpush.bf16.msra.mxu0 %v537
  %771 = vmatpush.bf16.msra.mxu0 %v529
  %772 = vmatmul.bf16.gmra.mxu0 %v591
  %v773 = vpop.f32.mrf.mxu0
  %v774 = vadd.f32 %v417, %v773
  %v775 = vpop.f32.mrf.mxu0
  %v776 = vadd.f32 %v417, %v775
  %777 = vmatmul.bf16.gmra.mxu0 %v594
  %v778 = vpop.f32.mrf.mxu0
  %v779 = vadd.f32 %v417, %v778
  %v780 = vpop.f32.mrf.mxu0
  %v781 = vadd.f32 %v417, %v780
  %782 = vmatmul.bf16.gmra.mxu0 %v597
  %v783 = vpop.f32.mrf.mxu0
  %v784 = vadd.f32 %v417, %v783
  %v785 = vpop.f32.mrf.mxu0
  %v786 = vadd.f32 %v417, %v785
  %787 = vmatmul.bf16.gmra.mxu0 %v600
  %v788 = vpop.f32.mrf.mxu0
  %v789 = vadd.f32 %v417, %v788
  %v790 = vpop.f32.mrf.mxu0
  %v791 = vadd.f32 %v417, %v790
  %792 = vmatmul.bf16.gmra.mxu0 %v603
  %v793 = vpop.f32.mrf.mxu0
  %v794 = vadd.f32 %v417, %v793
  %v795 = vpop.f32.mrf.mxu0
  %v796 = vadd.f32 %v417, %v795
  %797 = vmatmul.bf16.gmra.mxu0 %v606
  %v798 = vpop.f32.mrf.mxu0
  %v799 = vadd.f32 %v417, %v798
  %v800 = vpop.f32.mrf.mxu0
  %v801 = vadd.f32 %v417, %v800
  %802 = vdwg.mxu0
  %803 = vmatpush.bf16.msra.mxu0 0
  %804 = vmatpush.bf16.msra.mxu0 0
  %805 = vmatpush.bf16.msra.mxu0 0
  %806 = vmatpush.bf16.msra.mxu0 0
  %807 = vmatpush.bf16.msra.mxu0 %v554
  %808 = vmatpush.bf16.msra.mxu0 %v546
  %809 = vmatpush.bf16.msra.mxu0 %v538
  %810 = vmatpush.bf16.msra.mxu0 %v530
  %811 = vmatmul.bf16.gmra.mxu0 %v591
  %v812 = vpop.f32.mrf.mxu0
  %v813 = vadd.f32 %v418, %v812
  %v814 = vpop.f32.mrf.mxu0
  %v815 = vadd.f32 %v418, %v814
  %816 = vmatmul.bf16.gmra.mxu0 %v594
  %v817 = vpop.f32.mrf.mxu0
  %v818 = vadd.f32 %v418, %v817
  %v819 = vpop.f32.mrf.mxu0
  %v820 = vadd.f32 %v418, %v819
  %821 = vmatmul.bf16.gmra.mxu0 %v597
  %v822 = vpop.f32.mrf.mxu0
  %v823 = vadd.f32 %v418, %v822
  %v824 = vpop.f32.mrf.mxu0
  %v825 = vadd.f32 %v418, %v824
  %826 = vmatmul.bf16.gmra.mxu0 %v600
  %v827 = vpop.f32.mrf.mxu0
  %v828 = vadd.f32 %v418, %v827
  %v829 = vpop.f32.mrf.mxu0
  %v830 = vadd.f32 %v418, %v829
  %831 = vmatmul.bf16.gmra.mxu0 %v603
  %v832 = vpop.f32.mrf.mxu0
  %v833 = vadd.f32 %v418, %v832
  %v834 = vpop.f32.mrf.mxu0
  %v835 = vadd.f32 %v418, %v834
  %836 = vmatmul.bf16.gmra.mxu0 %v606
  %v837 = vpop.f32.mrf.mxu0
  %v838 = vadd.f32 %v418, %v837
  %v839 = vpop.f32.mrf.mxu0
  %v840 = vadd.f32 %v418, %v839
  %841 = vdwg.mxu0
  %842 = vmatpush.bf16.msra.mxu0 0
  %843 = vmatpush.bf16.msra.mxu0 0
  %844 = vmatpush.bf16.msra.mxu0 0
  %845 = vmatpush.bf16.msra.mxu0 0
  %846 = vmatpush.bf16.msra.mxu0 %v555
  %847 = vmatpush.bf16.msra.mxu0 %v547
  %848 = vmatpush.bf16.msra.mxu0 %v539
  %849 = vmatpush.bf16.msra.mxu0 %v531
  %850 = vmatmul.bf16.gmra.mxu0 %v591
  %v851 = vpop.f32.mrf.mxu0
  %v852 = vadd.f32 %v419, %v851
  %v853 = vpop.f32.mrf.mxu0
  %v854 = vadd.f32 %v419, %v853
  %855 = vmatmul.bf16.gmra.mxu0 %v594
  %v856 = vpop.f32.mrf.mxu0
  %v857 = vadd.f32 %v419, %v856
  %v858 = vpop.f32.mrf.mxu0
  %v859 = vadd.f32 %v419, %v858
  %860 = vmatmul.bf16.gmra.mxu0 %v597
  %v861 = vpop.f32.mrf.mxu0
  %v862 = vadd.f32 %v419, %v861
  %v863 = vpop.f32.mrf.mxu0
  %v864 = vadd.f32 %v419, %v863
  %865 = vmatmul.bf16.gmra.mxu0 %v600
  %v866 = vpop.f32.mrf.mxu0
  %v867 = vadd.f32 %v419, %v866
  %v868 = vpop.f32.mrf.mxu0
  %v869 = vadd.f32 %v419, %v868
  %870 = vmatmul.bf16.gmra.mxu0 %v603
  %v871 = vpop.f32.mrf.mxu0
  %v872 = vadd.f32 %v419, %v871
  %v873 = vpop.f32.mrf.mxu0
  %v874 = vadd.f32 %v419, %v873
  %875 = vmatmul.bf16.gmra.mxu0 %v606
  %v876 = vpop.f32.mrf.mxu0
  %v877 = vadd.f32 %v419, %v876
  %v878 = vpop.f32.mrf.mxu0
  %v879 = vadd.f32 %v419, %v878
  %880 = vdwg.mxu0
  %881 = vmatpush.bf16.msra.mxu0 0
  %882 = vmatpush.bf16.msra.mxu0 0
  %883 = vmatpush.bf16.msra.mxu0 0
  %884 = vmatpush.bf16.msra.mxu0 0
  %885 = vmatpush.bf16.msra.mxu0 %v556
  %886 = vmatpush.bf16.msra.mxu0 %v548
  %887 = vmatpush.bf16.msra.mxu0 %v540
  %888 = vmatpush.bf16.msra.mxu0 %v532
  %889 = vmatmul.bf16.gmra.mxu0 %v591
  %v890 = vpop.f32.mrf.mxu0
  %v891 = vadd.f32 %v420, %v890
  %v892 = vpop.f32.mrf.mxu0
  %v893 = vadd.f32 %v420, %v892
  %894 = vmatmul.bf16.gmra.mxu0 %v594
  %v895 = vpop.f32.mrf.mxu0
  %v896 = vadd.f32 %v420, %v895
  %v897 = vpop.f32.mrf.mxu0
  %v898 = vadd.f32 %v420, %v897
  %899 = vmatmul.bf16.gmra.mxu0 %v597
  %v900 = vpop.f32.mrf.mxu0
  %v901 = vadd.f32 %v420, %v900
  %v902 = vpop.f32.mrf.mxu0
  %v903 = vadd.f32 %v420, %v902
  %904 = vmatmul.bf16.gmra.mxu0 %v600
  %v905 = vpop.f32.mrf.mxu0
  %v906 = vadd.f32 %v420, %v905
  %v907 = vpop.f32.mrf.mxu0
  %v908 = vadd.f32 %v420, %v907
  %909 = vmatmul.bf16.gmra.mxu0 %v603
  %v910 = vpop.f32.mrf.mxu0
  %v911 = vadd.f32 %v420, %v910
  %v912 = vpop.f32.mrf.mxu0
  %v913 = vadd.f32 %v420, %v912
  %914 = vmatmul.bf16.gmra.mxu0 %v606
  %v915 = vpop.f32.mrf.mxu0
  %v916 = vadd.f32 %v420, %v915
  %v917 = vpop.f32.mrf.mxu0
  %v918 = vadd.f32 %v420, %v917
  %919 = vdwg.mxu0
  %v920 = vpack.c.bf16 %v161, %v159
  %v921 = vpack.c.bf16 %v166, %v164
  %v934 = vunpack.c.l.b16 %v80
  %v935 = vunpack.c.l.b16 %v81
  %v936 = vunpack.c.l.b16 %v82
  %v937 = vunpack.c.l.b16 %v83
  %v938 = vunpack.c.l.b16 %v84
  %v939 = vunpack.c.l.b16 %v85
  %v940 = vunpack.c.l.b16 %v86
  %v941 = vunpack.c.l.b16 %v87
  %v942 = vunpack.c.l.b16 %v88
  %v943 = vunpack.c.l.b16 %v89
  %v944 = vunpack.c.l.b16 %v90
  %v945 = vunpack.c.l.b16 %v91
  %v946 = vpack.c.b16 %v935, %v934
  %v947 = vpack.c.b16 %v937, %v936
  %v948 = vpack.c.b16 %v939, %v938
  %v949 = vpack.c.b16 %v941, %v940
  %v950 = vpack.c.b16 %v943, %v942
  %v951 = vpack.c.b16 %v945, %v944
  %v953 = vsel %vm303, %v946, 0
  %v956 = vsel %vm303, %v947, 0
  %v959 = vsel %vm303, %v948, 0
  %v962 = vsel %vm303, %v949, 0
  %v965 = vsel %vm303, %v950, 0
  %v968 = vsel %vm303, %v951, 0
  %970 = vmatpush.bf16.msra.mxu0 0
  %971 = vmatpush.bf16.msra.mxu0 0
  %972 = vmatpush.bf16.msra.mxu0 0
  %973 = vmatpush.bf16.msra.mxu0 0
  %974 = vmatpush.bf16.msra.mxu0 0
  %975 = vmatpush.bf16.msra.mxu0 0
  %976 = vmatpush.bf16.msra.mxu0 %v921
  %977 = vmatpush.bf16.msra.mxu0 %v920
  %978 = vmatmul.bf16.gmra.mxu0 %v953
  %v979 = vpop.f32.mrf.mxu0
  %v980 = vadd.f32 0.0, %v979
  %v981 = vpop.f32.mrf.mxu0
  %v982 = vadd.f32 0.0, %v981
  %983 = vmatmul.bf16.gmra.mxu0 %v956
  %v984 = vpop.f32.mrf.mxu0
  %v985 = vadd.f32 0.0, %v984
  %v986 = vpop.f32.mrf.mxu0
  %v987 = vadd.f32 0.0, %v986
  %988 = vmatmul.bf16.gmra.mxu0 %v959
  %v989 = vpop.f32.mrf.mxu0
  %v990 = vadd.f32 0.0, %v989
  %v991 = vpop.f32.mrf.mxu0
  %v992 = vadd.f32 0.0, %v991
  %993 = vmatmul.bf16.gmra.mxu0 %v962
  %v994 = vpop.f32.mrf.mxu0
  %v995 = vadd.f32 0.0, %v994
  %v996 = vpop.f32.mrf.mxu0
  %v997 = vadd.f32 0.0, %v996
  %998 = vmatmul.bf16.gmra.mxu0 %v965
  %v999 = vpop.f32.mrf.mxu0
  %v1000 = vadd.f32 0.0, %v999
  %v1001 = vpop.f32.mrf.mxu0
  %v1002 = vadd.f32 0.0, %v1001
  %1003 = vmatmul.bf16.gmra.mxu0 %v968
  %v1004 = vpop.f32.mrf.mxu0
  %v1005 = vadd.f32 0.0, %v1004
  %v1006 = vpop.f32.mrf.mxu0
  %v1007 = vadd.f32 0.0, %v1006
  %1008 = vdwg.mxu0
  %v1009 = vpack.c.bf16 %v982, %v980
  %v1010 = vpack.c.bf16 %v987, %v985
  %v1011 = vpack.c.bf16 %v992, %v990
  %v1012 = vpack.c.bf16 %v997, %v995
  %v1013 = vpack.c.bf16 %v1002, %v1000
  %v1014 = vpack.c.bf16 %v1007, %v1005
  %v1031 = vunpack.c.l.b16 %v96
  %v1032 = vunpack.c.h.b16 %v96
  %v1033 = vunpack.c.l.b16 %v97
  %v1034 = vunpack.c.h.b16 %v97
  %v1035 = vunpack.c.l.b16 %v98
  %v1036 = vunpack.c.h.b16 %v98
  %v1037 = vunpack.c.l.b16 %v99
  %v1038 = vunpack.c.h.b16 %v99
  %v1039 = vunpack.c.l.b16 %v100
  %v1040 = vunpack.c.h.b16 %v100
  %v1041 = vunpack.c.l.b16 %v101
  %v1042 = vunpack.c.h.b16 %v101
  %v1043 = vunpack.c.l.b16 %v102
  %v1044 = vunpack.c.h.b16 %v102
  %v1045 = vunpack.c.l.b16 %v103
  %v1046 = vunpack.c.h.b16 %v103
  %v1047 = vunpack.c.l.b16 %v104
  %v1048 = vunpack.c.h.b16 %v104
  %v1049 = vunpack.c.l.b16 %v105
  %v1050 = vunpack.c.h.b16 %v105
  %v1051 = vunpack.c.l.b16 %v106
  %v1052 = vunpack.c.h.b16 %v106
  %v1053 = vunpack.c.l.b16 %v107
  %v1054 = vunpack.c.h.b16 %v107
  %v1055 = vunpack.c.l.b16 %v108
  %v1056 = vunpack.c.h.b16 %v108
  %v1057 = vunpack.c.l.b16 %v109
  %v1058 = vunpack.c.h.b16 %v109
  %v1059 = vunpack.c.l.b16 %v110
  %v1060 = vunpack.c.h.b16 %v110
  %v1061 = vunpack.c.l.b16 %v111
  %v1062 = vunpack.c.h.b16 %v111
  %v1063 = vpack.c.b16 %v1039, %v1031
  %v1064 = vpack.c.b16 %v1040, %v1032
  %v1065 = vpack.c.b16 %v1041, %v1033
  %v1066 = vpack.c.b16 %v1042, %v1034
  %v1067 = vpack.c.b16 %v1043, %v1035
  %v1068 = vpack.c.b16 %v1044, %v1036
  %v1069 = vpack.c.b16 %v1045, %v1037
  %v1070 = vpack.c.b16 %v1046, %v1038
  %v1071 = vpack.c.b16 %v1055, %v1047
  %v1072 = vpack.c.b16 %v1056, %v1048
  %v1073 = vpack.c.b16 %v1057, %v1049
  %v1074 = vpack.c.b16 %v1058, %v1050
  %v1075 = vpack.c.b16 %v1059, %v1051
  %v1076 = vpack.c.b16 %v1060, %v1052
  %v1077 = vpack.c.b16 %v1061, %v1053
  %v1078 = vpack.c.b16 %v1062, %v1054
  %v1096 = vsel %vm303, %v1009, 0
  %v1099 = vsel %vm303, %v1010, 0
  %v1102 = vsel %vm303, %v1011, 0
  %v1105 = vsel %vm303, %v1012, 0
  %v1108 = vsel %vm303, %v1013, 0
  %v1111 = vsel %vm303, %v1014, 0
  %1113 = vmatpush.bf16.msra.mxu0 0
  %1114 = vmatpush.bf16.msra.mxu0 0
  %1115 = vmatpush.bf16.msra.mxu0 0
  %1116 = vmatpush.bf16.msra.mxu0 0
  %1117 = vmatpush.bf16.msra.mxu0 0
  %1118 = vmatpush.bf16.msra.mxu0 0
  %1119 = vmatpush.bf16.msra.mxu0 %v1071
  %1120 = vmatpush.bf16.msra.mxu0 %v1063
  %1121 = vmatmul.bf16.gmra.mxu0 %v1096
  %v1122 = vpop.f32.mrf.mxu0
  %v1123 = vadd.f32 0.0, %v1122
  %v1124 = vpop.f32.mrf.mxu0
  %v1125 = vadd.f32 0.0, %v1124
  %1126 = vmatmul.bf16.gmra.mxu0 %v1099
  %v1127 = vpop.f32.mrf.mxu0
  %v1128 = vadd.f32 0.0, %v1127
  %v1129 = vpop.f32.mrf.mxu0
  %v1130 = vadd.f32 0.0, %v1129
  %1131 = vmatmul.bf16.gmra.mxu0 %v1102
  %v1132 = vpop.f32.mrf.mxu0
  %v1133 = vadd.f32 0.0, %v1132
  %v1134 = vpop.f32.mrf.mxu0
  %v1135 = vadd.f32 0.0, %v1134
  %1136 = vmatmul.bf16.gmra.mxu0 %v1105
  %v1137 = vpop.f32.mrf.mxu0
  %v1138 = vadd.f32 0.0, %v1137
  %v1139 = vpop.f32.mrf.mxu0
  %v1140 = vadd.f32 0.0, %v1139
  %1141 = vmatmul.bf16.gmra.mxu0 %v1108
  %v1142 = vpop.f32.mrf.mxu0
  %v1143 = vadd.f32 0.0, %v1142
  %v1144 = vpop.f32.mrf.mxu0
  %v1145 = vadd.f32 0.0, %v1144
  %1146 = vmatmul.bf16.gmra.mxu0 %v1111
  %v1147 = vpop.f32.mrf.mxu0
  %v1148 = vadd.f32 0.0, %v1147
  %v1149 = vpop.f32.mrf.mxu0
  %v1150 = vadd.f32 0.0, %v1149
  %1151 = vdwg.mxu0
  %1152 = vmatpush.bf16.msra.mxu0 0
  %1153 = vmatpush.bf16.msra.mxu0 0
  %1154 = vmatpush.bf16.msra.mxu0 0
  %1155 = vmatpush.bf16.msra.mxu0 0
  %1156 = vmatpush.bf16.msra.mxu0 0
  %1157 = vmatpush.bf16.msra.mxu0 0
  %1158 = vmatpush.bf16.msra.mxu0 %v1072
  %1159 = vmatpush.bf16.msra.mxu0 %v1064
  %1160 = vmatmul.bf16.gmra.mxu0 %v1096
  %v1161 = vpop.f32.mrf.mxu0
  %v1162 = vadd.f32 0.0, %v1161
  %v1163 = vpop.f32.mrf.mxu0
  %v1164 = vadd.f32 0.0, %v1163
  %1165 = vmatmul.bf16.gmra.mxu0 %v1099
  %v1166 = vpop.f32.mrf.mxu0
  %v1167 = vadd.f32 0.0, %v1166
  %v1168 = vpop.f32.mrf.mxu0
  %v1169 = vadd.f32 0.0, %v1168
  %1170 = vmatmul.bf16.gmra.mxu0 %v1102
  %v1171 = vpop.f32.mrf.mxu0
  %v1172 = vadd.f32 0.0, %v1171
  %v1173 = vpop.f32.mrf.mxu0
  %v1174 = vadd.f32 0.0, %v1173
  %1175 = vmatmul.bf16.gmra.mxu0 %v1105
  %v1176 = vpop.f32.mrf.mxu0
  %v1177 = vadd.f32 0.0, %v1176
  %v1178 = vpop.f32.mrf.mxu0
  %v1179 = vadd.f32 0.0, %v1178
  %1180 = vmatmul.bf16.gmra.mxu0 %v1108
  %v1181 = vpop.f32.mrf.mxu0
  %v1182 = vadd.f32 0.0, %v1181
  %v1183 = vpop.f32.mrf.mxu0
  %v1184 = vadd.f32 0.0, %v1183
  %1185 = vmatmul.bf16.gmra.mxu0 %v1111
  %v1186 = vpop.f32.mrf.mxu0
  %v1187 = vadd.f32 0.0, %v1186
  %v1188 = vpop.f32.mrf.mxu0
  %v1189 = vadd.f32 0.0, %v1188
  %1190 = vdwg.mxu0
  %1191 = vmatpush.bf16.msra.mxu0 0
  %1192 = vmatpush.bf16.msra.mxu0 0
  %1193 = vmatpush.bf16.msra.mxu0 0
  %1194 = vmatpush.bf16.msra.mxu0 0
  %1195 = vmatpush.bf16.msra.mxu0 0
  %1196 = vmatpush.bf16.msra.mxu0 0
  %1197 = vmatpush.bf16.msra.mxu0 %v1073
  %1198 = vmatpush.bf16.msra.mxu0 %v1065
  %1199 = vmatmul.bf16.gmra.mxu0 %v1096
  %v1200 = vpop.f32.mrf.mxu0
  %v1201 = vadd.f32 0.0, %v1200
  %v1202 = vpop.f32.mrf.mxu0
  %v1203 = vadd.f32 0.0, %v1202
  %1204 = vmatmul.bf16.gmra.mxu0 %v1099
  %v1205 = vpop.f32.mrf.mxu0
  %v1206 = vadd.f32 0.0, %v1205
  %v1207 = vpop.f32.mrf.mxu0
  %v1208 = vadd.f32 0.0, %v1207
  %1209 = vmatmul.bf16.gmra.mxu0 %v1102
  %v1210 = vpop.f32.mrf.mxu0
  %v1211 = vadd.f32 0.0, %v1210
  %v1212 = vpop.f32.mrf.mxu0
  %v1213 = vadd.f32 0.0, %v1212
  %1214 = vmatmul.bf16.gmra.mxu0 %v1105
  %v1215 = vpop.f32.mrf.mxu0
  %v1216 = vadd.f32 0.0, %v1215
  %v1217 = vpop.f32.mrf.mxu0
  %v1218 = vadd.f32 0.0, %v1217
  %1219 = vmatmul.bf16.gmra.mxu0 %v1108
  %v1220 = vpop.f32.mrf.mxu0
  %v1221 = vadd.f32 0.0, %v1220
  %v1222 = vpop.f32.mrf.mxu0
  %v1223 = vadd.f32 0.0, %v1222
  %1224 = vmatmul.bf16.gmra.mxu0 %v1111
  %v1225 = vpop.f32.mrf.mxu0
  %v1226 = vadd.f32 0.0, %v1225
  %v1227 = vpop.f32.mrf.mxu0
  %v1228 = vadd.f32 0.0, %v1227
  %1229 = vdwg.mxu0
  %1230 = vmatpush.bf16.msra.mxu0 0
  %1231 = vmatpush.bf16.msra.mxu0 0
  %1232 = vmatpush.bf16.msra.mxu0 0
  %1233 = vmatpush.bf16.msra.mxu0 0
  %1234 = vmatpush.bf16.msra.mxu0 0
  %1235 = vmatpush.bf16.msra.mxu0 0
  %1236 = vmatpush.bf16.msra.mxu0 %v1074
  %1237 = vmatpush.bf16.msra.mxu0 %v1066
  %1238 = vmatmul.bf16.gmra.mxu0 %v1096
  %v1239 = vpop.f32.mrf.mxu0
  %v1240 = vadd.f32 0.0, %v1239
  %v1241 = vpop.f32.mrf.mxu0
  %v1242 = vadd.f32 0.0, %v1241
  %1243 = vmatmul.bf16.gmra.mxu0 %v1099
  %v1244 = vpop.f32.mrf.mxu0
  %v1245 = vadd.f32 0.0, %v1244
  %v1246 = vpop.f32.mrf.mxu0
  %v1247 = vadd.f32 0.0, %v1246
  %1248 = vmatmul.bf16.gmra.mxu0 %v1102
  %v1249 = vpop.f32.mrf.mxu0
  %v1250 = vadd.f32 0.0, %v1249
  %v1251 = vpop.f32.mrf.mxu0
  %v1252 = vadd.f32 0.0, %v1251
  %1253 = vmatmul.bf16.gmra.mxu0 %v1105
  %v1254 = vpop.f32.mrf.mxu0
  %v1255 = vadd.f32 0.0, %v1254
  %v1256 = vpop.f32.mrf.mxu0
  %v1257 = vadd.f32 0.0, %v1256
  %1258 = vmatmul.bf16.gmra.mxu0 %v1108
  %v1259 = vpop.f32.mrf.mxu0
  %v1260 = vadd.f32 0.0, %v1259
  %v1261 = vpop.f32.mrf.mxu0
  %v1262 = vadd.f32 0.0, %v1261
  %1263 = vmatmul.bf16.gmra.mxu0 %v1111
  %v1264 = vpop.f32.mrf.mxu0
  %v1265 = vadd.f32 0.0, %v1264
  %v1266 = vpop.f32.mrf.mxu0
  %v1267 = vadd.f32 0.0, %v1266
  %1268 = vdwg.mxu0
  %1269 = vmatpush.bf16.msra.mxu0 0
  %1270 = vmatpush.bf16.msra.mxu0 0
  %1271 = vmatpush.bf16.msra.mxu0 0
  %1272 = vmatpush.bf16.msra.mxu0 0
  %1273 = vmatpush.bf16.msra.mxu0 0
  %1274 = vmatpush.bf16.msra.mxu0 0
  %1275 = vmatpush.bf16.msra.mxu0 %v1075
  %1276 = vmatpush.bf16.msra.mxu0 %v1067
  %1277 = vmatmul.bf16.gmra.mxu0 %v1096
  %v1278 = vpop.f32.mrf.mxu0
  %v1279 = vadd.f32 0.0, %v1278
  %v1280 = vpop.f32.mrf.mxu0
  %v1281 = vadd.f32 0.0, %v1280
  %1282 = vmatmul.bf16.gmra.mxu0 %v1099
  %v1283 = vpop.f32.mrf.mxu0
  %v1284 = vadd.f32 0.0, %v1283
  %v1285 = vpop.f32.mrf.mxu0
  %v1286 = vadd.f32 0.0, %v1285
  %1287 = vmatmul.bf16.gmra.mxu0 %v1102
  %v1288 = vpop.f32.mrf.mxu0
  %v1289 = vadd.f32 0.0, %v1288
  %v1290 = vpop.f32.mrf.mxu0
  %v1291 = vadd.f32 0.0, %v1290
  %1292 = vmatmul.bf16.gmra.mxu0 %v1105
  %v1293 = vpop.f32.mrf.mxu0
  %v1294 = vadd.f32 0.0, %v1293
  %v1295 = vpop.f32.mrf.mxu0
  %v1296 = vadd.f32 0.0, %v1295
  %1297 = vmatmul.bf16.gmra.mxu0 %v1108
  %v1298 = vpop.f32.mrf.mxu0
  %v1299 = vadd.f32 0.0, %v1298
  %v1300 = vpop.f32.mrf.mxu0
  %v1301 = vadd.f32 0.0, %v1300
  %1302 = vmatmul.bf16.gmra.mxu0 %v1111
  %v1303 = vpop.f32.mrf.mxu0
  %v1304 = vadd.f32 0.0, %v1303
  %v1305 = vpop.f32.mrf.mxu0
  %v1306 = vadd.f32 0.0, %v1305
  %1307 = vdwg.mxu0
  %1308 = vmatpush.bf16.msra.mxu0 0
  %1309 = vmatpush.bf16.msra.mxu0 0
  %1310 = vmatpush.bf16.msra.mxu0 0
  %1311 = vmatpush.bf16.msra.mxu0 0
  %1312 = vmatpush.bf16.msra.mxu0 0
  %1313 = vmatpush.bf16.msra.mxu0 0
  %1314 = vmatpush.bf16.msra.mxu0 %v1076
  %1315 = vmatpush.bf16.msra.mxu0 %v1068
  %1316 = vmatmul.bf16.gmra.mxu0 %v1096
  %v1317 = vpop.f32.mrf.mxu0
  %v1318 = vadd.f32 0.0, %v1317
  %v1319 = vpop.f32.mrf.mxu0
  %v1320 = vadd.f32 0.0, %v1319
  %1321 = vmatmul.bf16.gmra.mxu0 %v1099
  %v1322 = vpop.f32.mrf.mxu0
  %v1323 = vadd.f32 0.0, %v1322
  %v1324 = vpop.f32.mrf.mxu0
  %v1325 = vadd.f32 0.0, %v1324
  %1326 = vmatmul.bf16.gmra.mxu0 %v1102
  %v1327 = vpop.f32.mrf.mxu0
  %v1328 = vadd.f32 0.0, %v1327
  %v1329 = vpop.f32.mrf.mxu0
  %v1330 = vadd.f32 0.0, %v1329
  %1331 = vmatmul.bf16.gmra.mxu0 %v1105
  %v1332 = vpop.f32.mrf.mxu0
  %v1333 = vadd.f32 0.0, %v1332
  %v1334 = vpop.f32.mrf.mxu0
  %v1335 = vadd.f32 0.0, %v1334
  %1336 = vmatmul.bf16.gmra.mxu0 %v1108
  %v1337 = vpop.f32.mrf.mxu0
  %v1338 = vadd.f32 0.0, %v1337
  %v1339 = vpop.f32.mrf.mxu0
  %v1340 = vadd.f32 0.0, %v1339
  %1341 = vmatmul.bf16.gmra.mxu0 %v1111
  %v1342 = vpop.f32.mrf.mxu0
  %v1343 = vadd.f32 0.0, %v1342
  %v1344 = vpop.f32.mrf.mxu0
  %v1345 = vadd.f32 0.0, %v1344
  %1346 = vdwg.mxu0
  %1347 = vmatpush.bf16.msra.mxu0 0
  %1348 = vmatpush.bf16.msra.mxu0 0
  %1349 = vmatpush.bf16.msra.mxu0 0
  %1350 = vmatpush.bf16.msra.mxu0 0
  %1351 = vmatpush.bf16.msra.mxu0 0
  %1352 = vmatpush.bf16.msra.mxu0 0
  %1353 = vmatpush.bf16.msra.mxu0 %v1077
  %1354 = vmatpush.bf16.msra.mxu0 %v1069
  %1355 = vmatmul.bf16.gmra.mxu0 %v1096
  %v1356 = vpop.f32.mrf.mxu0
  %v1357 = vadd.f32 0.0, %v1356
  %v1358 = vpop.f32.mrf.mxu0
  %v1359 = vadd.f32 0.0, %v1358
  %1360 = vmatmul.bf16.gmra.mxu0 %v1099
  %v1361 = vpop.f32.mrf.mxu0
  %v1362 = vadd.f32 0.0, %v1361
  %v1363 = vpop.f32.mrf.mxu0
  %v1364 = vadd.f32 0.0, %v1363
  %1365 = vmatmul.bf16.gmra.mxu0 %v1102
  %v1366 = vpop.f32.mrf.mxu0
  %v1367 = vadd.f32 0.0, %v1366
  %v1368 = vpop.f32.mrf.mxu0
  %v1369 = vadd.f32 0.0, %v1368
  %1370 = vmatmul.bf16.gmra.mxu0 %v1105
  %v1371 = vpop.f32.mrf.mxu0
  %v1372 = vadd.f32 0.0, %v1371
  %v1373 = vpop.f32.mrf.mxu0
  %v1374 = vadd.f32 0.0, %v1373
  %1375 = vmatmul.bf16.gmra.mxu0 %v1108
  %v1376 = vpop.f32.mrf.mxu0
  %v1377 = vadd.f32 0.0, %v1376
  %v1378 = vpop.f32.mrf.mxu0
  %v1379 = vadd.f32 0.0, %v1378
  %1380 = vmatmul.bf16.gmra.mxu0 %v1111
  %v1381 = vpop.f32.mrf.mxu0
  %v1382 = vadd.f32 0.0, %v1381
  %v1383 = vpop.f32.mrf.mxu0
  %v1384 = vadd.f32 0.0, %v1383
  %1385 = vdwg.mxu0
  %1386 = vmatpush.bf16.msra.mxu0 0
  %1387 = vmatpush.bf16.msra.mxu0 0
  %1388 = vmatpush.bf16.msra.mxu0 0
  %1389 = vmatpush.bf16.msra.mxu0 0
  %1390 = vmatpush.bf16.msra.mxu0 0
  %1391 = vmatpush.bf16.msra.mxu0 0
  %1392 = vmatpush.bf16.msra.mxu0 %v1078
  %1393 = vmatpush.bf16.msra.mxu0 %v1070
  %1394 = vmatmul.bf16.gmra.mxu0 %v1096
  %v1395 = vpop.f32.mrf.mxu0
  %v1396 = vadd.f32 0.0, %v1395
  %v1397 = vpop.f32.mrf.mxu0
  %v1398 = vadd.f32 0.0, %v1397
  %1399 = vmatmul.bf16.gmra.mxu0 %v1099
  %v1400 = vpop.f32.mrf.mxu0
  %v1401 = vadd.f32 0.0, %v1400
  %v1402 = vpop.f32.mrf.mxu0
  %v1403 = vadd.f32 0.0, %v1402
  %1404 = vmatmul.bf16.gmra.mxu0 %v1102
  %v1405 = vpop.f32.mrf.mxu0
  %v1406 = vadd.f32 0.0, %v1405
  %v1407 = vpop.f32.mrf.mxu0
  %v1408 = vadd.f32 0.0, %v1407
  %1409 = vmatmul.bf16.gmra.mxu0 %v1105
  %v1410 = vpop.f32.mrf.mxu0
  %v1411 = vadd.f32 0.0, %v1410
  %v1412 = vpop.f32.mrf.mxu0
  %v1413 = vadd.f32 0.0, %v1412
  %1414 = vmatmul.bf16.gmra.mxu0 %v1108
  %v1415 = vpop.f32.mrf.mxu0
  %v1416 = vadd.f32 0.0, %v1415
  %v1417 = vpop.f32.mrf.mxu0
  %v1418 = vadd.f32 0.0, %v1417
  %1419 = vmatmul.bf16.gmra.mxu0 %v1111
  %v1420 = vpop.f32.mrf.mxu0
  %v1421 = vadd.f32 0.0, %v1420
  %v1422 = vpop.f32.mrf.mxu0
  %v1423 = vadd.f32 0.0, %v1422
  %1424 = vdwg.mxu0
  %v1425 = vmul.f32 %v1123, %v618
  %v1426 = vmul.f32 %v1162, %v657
  %v1427 = vmul.f32 %v1201, %v696
  %v1428 = vmul.f32 %v1240, %v735
  %v1429 = vmul.f32 %v1279, %v774
  %v1430 = vmul.f32 %v1318, %v813
  %v1431 = vmul.f32 %v1357, %v852
  %v1432 = vmul.f32 %v1396, %v891
  %v1433 = vmul.f32 %v1125, %v620
  %v1434 = vmul.f32 %v1164, %v659
  %v1435 = vmul.f32 %v1203, %v698
  %v1436 = vmul.f32 %v1242, %v737
  %v1437 = vmul.f32 %v1281, %v776
  %v1438 = vmul.f32 %v1320, %v815
  %v1439 = vmul.f32 %v1359, %v854
  %v1440 = vmul.f32 %v1398, %v893
  %v1441 = vmul.f32 %v1128, %v623
  %v1442 = vmul.f32 %v1167, %v662
  %v1443 = vmul.f32 %v1206, %v701
  %v1444 = vmul.f32 %v1245, %v740
  %v1445 = vmul.f32 %v1284, %v779
  %v1446 = vmul.f32 %v1323, %v818
  %v1447 = vmul.f32 %v1362, %v857
  %v1448 = vmul.f32 %v1401, %v896
  %v1449 = vmul.f32 %v1130, %v625
  %v1450 = vmul.f32 %v1169, %v664
  %v1451 = vmul.f32 %v1208, %v703
  %v1452 = vmul.f32 %v1247, %v742
  %v1453 = vmul.f32 %v1286, %v781
  %v1454 = vmul.f32 %v1325, %v820
  %v1455 = vmul.f32 %v1364, %v859
  %v1456 = vmul.f32 %v1403, %v898
  %v1457 = vmul.f32 %v1133, %v628
  %v1458 = vmul.f32 %v1172, %v667
  %v1459 = vmul.f32 %v1211, %v706
  %v1460 = vmul.f32 %v1250, %v745
  %v1461 = vmul.f32 %v1289, %v784
  %v1462 = vmul.f32 %v1328, %v823
  %v1463 = vmul.f32 %v1367, %v862
  %v1464 = vmul.f32 %v1406, %v901
  %v1465 = vmul.f32 %v1135, %v630
  %v1466 = vmul.f32 %v1174, %v669
  %v1467 = vmul.f32 %v1213, %v708
  %v1468 = vmul.f32 %v1252, %v747
  %v1469 = vmul.f32 %v1291, %v786
  %v1470 = vmul.f32 %v1330, %v825
  %v1471 = vmul.f32 %v1369, %v864
  %v1472 = vmul.f32 %v1408, %v903
  %v1473 = vmul.f32 %v1138, %v633
  %v1474 = vmul.f32 %v1177, %v672
  %v1475 = vmul.f32 %v1216, %v711
  %v1476 = vmul.f32 %v1255, %v750
  %v1477 = vmul.f32 %v1294, %v789
  %v1478 = vmul.f32 %v1333, %v828
  %v1479 = vmul.f32 %v1372, %v867
  %v1480 = vmul.f32 %v1411, %v906
  %v1481 = vmul.f32 %v1140, %v635
  %v1482 = vmul.f32 %v1179, %v674
  %v1483 = vmul.f32 %v1218, %v713
  %v1484 = vmul.f32 %v1257, %v752
  %v1485 = vmul.f32 %v1296, %v791
  %v1486 = vmul.f32 %v1335, %v830
  %v1487 = vmul.f32 %v1374, %v869
  %v1488 = vmul.f32 %v1413, %v908
  %v1489 = vmul.f32 %v1143, %v638
  %v1490 = vmul.f32 %v1182, %v677
  %v1491 = vmul.f32 %v1221, %v716
  %v1492 = vmul.f32 %v1260, %v755
  %v1493 = vmul.f32 %v1299, %v794
  %v1494 = vmul.f32 %v1338, %v833
  %v1495 = vmul.f32 %v1377, %v872
  %v1496 = vmul.f32 %v1416, %v911
  %v1497 = vmul.f32 %v1145, %v640
  %v1498 = vmul.f32 %v1184, %v679
  %v1499 = vmul.f32 %v1223, %v718
  %v1500 = vmul.f32 %v1262, %v757
  %v1501 = vmul.f32 %v1301, %v796
  %v1502 = vmul.f32 %v1340, %v835
  %v1503 = vmul.f32 %v1379, %v874
  %v1504 = vmul.f32 %v1418, %v913
  %v1505 = vmul.f32 %v1148, %v643
  %v1506 = vmul.f32 %v1187, %v682
  %v1507 = vmul.f32 %v1226, %v721
  %v1508 = vmul.f32 %v1265, %v760
  %v1509 = vmul.f32 %v1304, %v799
  %v1510 = vmul.f32 %v1343, %v838
  %v1511 = vmul.f32 %v1382, %v877
  %v1512 = vmul.f32 %v1421, %v916
  %v1513 = vmul.f32 %v1150, %v645
  %v1514 = vmul.f32 %v1189, %v684
  %v1515 = vmul.f32 %v1228, %v723
  %v1516 = vmul.f32 %v1267, %v762
  %v1517 = vmul.f32 %v1306, %v801
  %v1518 = vmul.f32 %v1345, %v840
  %v1519 = vmul.f32 %v1384, %v879
  %v1520 = vmul.f32 %v1423, %v918
  %v1521 = vadd.f32 %v1425, %v1429
  %v1522 = vadd.f32 %v1428, %v1432
  %v1523 = vadd.f32 %v1430, %v1426
  %v1524 = vadd.f32 %v1431, %v1427
  %v1525 = vadd.f32 %v1433, %v1437
  %v1526 = vadd.f32 %v1436, %v1440
  %v1527 = vadd.f32 %v1438, %v1434
  %v1528 = vadd.f32 %v1439, %v1435
  %v1529 = vadd.f32 %v1441, %v1445
  %v1530 = vadd.f32 %v1444, %v1448
  %v1531 = vadd.f32 %v1446, %v1442
  %v1532 = vadd.f32 %v1447, %v1443
  %v1533 = vadd.f32 %v1449, %v1453
  %v1534 = vadd.f32 %v1452, %v1456
  %v1535 = vadd.f32 %v1454, %v1450
  %v1536 = vadd.f32 %v1455, %v1451
  %v1537 = vadd.f32 %v1457, %v1461
  %v1538 = vadd.f32 %v1460, %v1464
  %v1539 = vadd.f32 %v1462, %v1458
  %v1540 = vadd.f32 %v1463, %v1459
  %v1541 = vadd.f32 %v1465, %v1469
  %v1542 = vadd.f32 %v1468, %v1472
  %v1543 = vadd.f32 %v1470, %v1466
  %v1544 = vadd.f32 %v1471, %v1467
  %v1545 = vadd.f32 %v1473, %v1477
  %v1546 = vadd.f32 %v1476, %v1480
  %v1547 = vadd.f32 %v1478, %v1474
  %v1548 = vadd.f32 %v1479, %v1475
  %v1549 = vadd.f32 %v1481, %v1485
  %v1550 = vadd.f32 %v1484, %v1488
  %v1551 = vadd.f32 %v1486, %v1482
  %v1552 = vadd.f32 %v1487, %v1483
  %v1553 = vadd.f32 %v1489, %v1493
  %v1554 = vadd.f32 %v1492, %v1496
  %v1555 = vadd.f32 %v1494, %v1490
  %v1556 = vadd.f32 %v1495, %v1491
  %v1557 = vadd.f32 %v1497, %v1501
  %v1558 = vadd.f32 %v1500, %v1504
  %v1559 = vadd.f32 %v1502, %v1498
  %v1560 = vadd.f32 %v1503, %v1499
  %v1561 = vadd.f32 %v1505, %v1509
  %v1562 = vadd.f32 %v1508, %v1512
  %v1563 = vadd.f32 %v1510, %v1506
  %v1564 = vadd.f32 %v1511, %v1507
  %v1565 = vadd.f32 %v1513, %v1517
  %v1566 = vadd.f32 %v1516, %v1520
  %v1567 = vadd.f32 %v1518, %v1514
  %v1568 = vadd.f32 %v1519, %v1515
  %v1569 = vadd.f32 %v1521, %v1524
  %v1570 = vadd.f32 %v1523, %v1522
  %v1571 = vadd.f32 %v1525, %v1528
  %v1572 = vadd.f32 %v1527, %v1526
  %v1573 = vadd.f32 %v1529, %v1532
  %v1574 = vadd.f32 %v1531, %v1530
  %v1575 = vadd.f32 %v1533, %v1536
  %v1576 = vadd.f32 %v1535, %v1534
  %v1577 = vadd.f32 %v1537, %v1540
  %v1578 = vadd.f32 %v1539, %v1538
  %v1579 = vadd.f32 %v1541, %v1544
  %v1580 = vadd.f32 %v1543, %v1542
  %v1581 = vadd.f32 %v1545, %v1548
  %v1582 = vadd.f32 %v1547, %v1546
  %v1583 = vadd.f32 %v1549, %v1552
  %v1584 = vadd.f32 %v1551, %v1550
  %v1585 = vadd.f32 %v1553, %v1556
  %v1586 = vadd.f32 %v1555, %v1554
  %v1587 = vadd.f32 %v1557, %v1560
  %v1588 = vadd.f32 %v1559, %v1558
  %v1589 = vadd.f32 %v1561, %v1564
  %v1590 = vadd.f32 %v1563, %v1562
  %v1591 = vadd.f32 %v1565, %v1568
  %v1592 = vadd.f32 %v1567, %v1566
  %v1593 = vadd.f32 %v1569, %v1570
  %v1594 = vadd.f32 %v1571, %v1572
  %v1595 = vadd.f32 %v1573, %v1574
  %v1596 = vadd.f32 %v1575, %v1576
  %v1597 = vadd.f32 %v1577, %v1578
  %v1598 = vadd.f32 %v1579, %v1580
  %v1599 = vadd.f32 %v1581, %v1582
  %v1600 = vadd.f32 %v1583, %v1584
  %v1601 = vadd.f32 %v1585, %v1586
  %v1602 = vadd.f32 %v1587, %v1588
  %v1603 = vadd.f32 %v1589, %v1590
  %v1604 = vadd.f32 %v1591, %v1592
  %1605 = vrot.lane.b32.xlu0 %v1593, 64
  %v1606 = vpop.permute.xlu0 %1605
  %1607 = vrot.lane.b32.xlu0 %v1594, 64
  %v1608 = vpop.permute.xlu0 %1607
  %1609 = vrot.lane.b32.xlu0 %v1595, 64
  %v1610 = vpop.permute.xlu0 %1609
  %1611 = vrot.lane.b32.xlu0 %v1596, 64
  %v1612 = vpop.permute.xlu0 %1611
  %1613 = vrot.lane.b32.xlu0 %v1597, 64
  %v1614 = vpop.permute.xlu0 %1613
  %1615 = vrot.lane.b32.xlu0 %v1598, 64
  %v1616 = vpop.permute.xlu0 %1615
  %1617 = vrot.lane.b32.xlu0 %v1599, 64
  %v1618 = vpop.permute.xlu0 %1617
  %1619 = vrot.lane.b32.xlu0 %v1600, 64
  %v1620 = vpop.permute.xlu0 %1619
  %1621 = vrot.lane.b32.xlu0 %v1601, 64
  %v1622 = vpop.permute.xlu0 %1621
  %1623 = vrot.lane.b32.xlu0 %v1602, 64
  %v1624 = vpop.permute.xlu0 %1623
  %1625 = vrot.lane.b32.xlu0 %v1603, 64
  %v1626 = vpop.permute.xlu0 %1625
  %1627 = vrot.lane.b32.xlu0 %v1604, 64
  %v1628 = vpop.permute.xlu0 %1627
  %v1629 = vlaneseq
  %v1630 = vand.u32 %v1629, 127
  %v1631 = vadd.f32 %v1593, %v1606
  %v1632 = vadd.f32 %v1594, %v1608
  %v1633 = vadd.f32 %v1595, %v1610
  %v1634 = vadd.f32 %v1596, %v1612
  %v1635 = vadd.f32 %v1597, %v1614
  %v1636 = vadd.f32 %v1598, %v1616
  %v1637 = vadd.f32 %v1599, %v1618
  %v1638 = vadd.f32 %v1600, %v1620
  %v1639 = vadd.f32 %v1601, %v1622
  %v1640 = vadd.f32 %v1602, %v1624
  %v1641 = vadd.f32 %v1603, %v1626
  %v1642 = vadd.f32 %v1604, %v1628
  %1643 = vrot.lane.b32.xlu0 %v1631, 32
  %v1644 = vpop.permute.xlu0 %1643
  %1645 = vrot.lane.b32.xlu0 %v1632, 32
  %v1646 = vpop.permute.xlu0 %1645
  %1647 = vrot.lane.b32.xlu0 %v1633, 32
  %v1648 = vpop.permute.xlu0 %1647
  %1649 = vrot.lane.b32.xlu0 %v1634, 32
  %v1650 = vpop.permute.xlu0 %1649
  %1651 = vrot.lane.b32.xlu0 %v1635, 32
  %v1652 = vpop.permute.xlu0 %1651
  %1653 = vrot.lane.b32.xlu0 %v1636, 32
  %v1654 = vpop.permute.xlu0 %1653
  %1655 = vrot.lane.b32.xlu0 %v1637, 32
  %v1656 = vpop.permute.xlu0 %1655
  %1657 = vrot.lane.b32.xlu0 %v1638, 32
  %v1658 = vpop.permute.xlu0 %1657
  %1659 = vrot.lane.b32.xlu0 %v1639, 32
  %v1660 = vpop.permute.xlu0 %1659
  %1661 = vrot.lane.b32.xlu0 %v1640, 32
  %v1662 = vpop.permute.xlu0 %1661
  %1663 = vrot.lane.b32.xlu0 %v1641, 32
  %v1664 = vpop.permute.xlu0 %1663
  %1665 = vrot.lane.b32.xlu0 %v1642, 32
  %v1666 = vpop.permute.xlu0 %1665
  %v1667 = vadd.f32 %v1631, %v1644
  %v1668 = vadd.f32 %v1632, %v1646
  %v1669 = vadd.f32 %v1633, %v1648
  %v1670 = vadd.f32 %v1634, %v1650
  %v1671 = vadd.f32 %v1635, %v1652
  %v1672 = vadd.f32 %v1636, %v1654
  %v1673 = vadd.f32 %v1637, %v1656
  %v1674 = vadd.f32 %v1638, %v1658
  %v1675 = vadd.f32 %v1639, %v1660
  %v1676 = vadd.f32 %v1640, %v1662
  %v1677 = vadd.f32 %v1641, %v1664
  %v1678 = vadd.f32 %v1642, %v1666
  %v1679 = vpack.c.bf16 %v1668, %v1667
  %v1680 = vpack.c.bf16 %v1670, %v1669
  %v1681 = vpack.c.bf16 %v1672, %v1671
  %v1682 = vpack.c.bf16 %v1674, %v1673
  %v1683 = vpack.c.bf16 %v1676, %v1675
  %v1684 = vpack.c.bf16 %v1678, %v1677
  %v1689 = vunpack.c.l.b16 %v92
  %v1690 = vunpack.c.l.b16 %v93
  %v1691 = vunpack.c.l.b16 %v94
  %v1692 = vunpack.c.l.b16 %v95
  %v1693 = vpack.c.b16 %v1690, %v1689
  %v1694 = vpack.c.b16 %v1692, %v1691
  %vm1695 = vcmask 785408
  %v1697 = vsel %vm1695, %v1693, 0
  %v1700 = vsel %vm1695, %v1694, 0
  %1702 = vmatpush.bf16.msra.mxu0 0
  %1703 = vmatpush.bf16.msra.mxu0 0
  %1704 = vmatpush.bf16.msra.mxu0 %v1684
  %1705 = vmatpush.bf16.msra.mxu0 %v1683
  %1706 = vmatpush.bf16.msra.mxu0 %v1682
  %1707 = vmatpush.bf16.msra.mxu0 %v1681
  %1708 = vmatpush.bf16.msra.mxu0 %v1680
  %1709 = vmatpush.bf16.msra.mxu0 %v1679
  %1710 = vmatmul.bf16.gmra.mxu0 %v1697
  %v1711 = vpop.f32.mrf.mxu0
  %v1712 = vadd.f32 0.0, %v1711
  %v1713 = vpop.f32.mrf.mxu0
  %v1714 = vadd.f32 0.0, %v1713
  %1715 = vmatmul.bf16.gmra.mxu0 %v1700
  %v1716 = vpop.f32.mrf.mxu0
  %v1717 = vadd.f32 0.0, %v1716
  %v1718 = vpop.f32.mrf.mxu0
  %v1719 = vadd.f32 0.0, %v1718
  %1720 = vdwg.mxu0
  %1722 = vset.pattern.permute.xlu0 0
  %1723 = vperm.xlu0 %1722, %v112
  %v1724 = vpop.permute.xlu0 %1723
  %1727 = vset.pattern.permute.xlu0 0
  %1728 = vperm.xlu0 %1727, %v113
  %v1729 = vpop.permute.xlu0 %1728
  %1732 = vset.pattern.permute.xlu0 0
  %1733 = vperm.xlu0 %1732, %v114
  %v1734 = vpop.permute.xlu0 %1733
  %1737 = vset.pattern.permute.xlu0 0
  %1738 = vperm.xlu0 %1737, %v115
  %v1739 = vpop.permute.xlu0 %1738
  %v1741 = vmul.f32 %v1712, %v1724
  %v1742 = vmul.f32 %v1714, %v1729
  %v1743 = vmul.f32 %v1717, %v1734
  %v1744 = vmul.f32 %v1719, %v1739
  %v1745 = vld [vmem:[%s18] sm:$0xf]
  %v1746 = vld [vmem:[%s18 + $0x4] sm:$0xf]
  %v1747 = vld [vmem:[%s18 + $0x8] sm:$0xf]
  %v1748 = vld [vmem:[%s18 + $0xc] sm:$0xf]
  %v1753 = vunpack.c.l.b16 %v1745
  %v1754 = vunpack.c.l.b16 %v1746
  %v1755 = vunpack.c.l.b16 %v1747
  %v1756 = vunpack.c.l.b16 %v1748
  %v1757 = vpack.c.b16 %v1754, %v1753
  %v1758 = vpack.c.b16 %v1756, %v1755
  %v1762 = vsel %vm303, %v920, 0
  %v1765 = vsel %vm303, %v921, 0
  %1767 = vmatpush.bf16.msra.mxu0 0
  %1768 = vmatpush.bf16.msra.mxu0 0
  %1769 = vmatpush.bf16.msra.mxu0 0
  %1770 = vmatpush.bf16.msra.mxu0 0
  %1771 = vmatpush.bf16.msra.mxu0 0
  %1772 = vmatpush.bf16.msra.mxu0 0
  %1773 = vmatpush.bf16.msra.mxu0 %v1758
  %1774 = vmatpush.bf16.msra.mxu0 %v1757
  %1775 = vmatmul.bf16.gmra.mxu0 %v1762
  %v1776 = vpop.f32.mrf.mxu0
  %v1777 = vadd.f32 0.0, %v1776
  %v1778 = vpop.f32.mrf.mxu0
  %v1779 = vadd.f32 0.0, %v1778
  %1780 = vmatmul.bf16.gmra.mxu0 %v1765
  %v1781 = vpop.f32.mrf.mxu0
  %v1782 = vadd.f32 0.0, %v1781
  %v1783 = vpop.f32.mrf.mxu0
  %v1784 = vadd.f32 0.0, %v1783
  %1785 = vdwg.mxu0
  %v1786 = vadd.f32 %v1741, %v1777
  %v1787 = vadd.f32 %v1742, %v1779
  %v1788 = vadd.f32 %v1743, %v1782
  %v1789 = vadd.f32 %v1744, %v1784
  %v1790 = vld [vmem:[%s19] sm:$0x1]
  %v1792 = vperm.slane %v1790, 0
  %v1794 = vadd.f32 %v1786, %v1792
  %v1795 = vadd.f32 %v1787, %v1792
  %v1796 = vadd.f32 %v1788, %v1792
  %v1797 = vadd.f32 %v1789, %v1792
  %v1798 = vmul.f32 %v1794, 0.5
  %v1799 = vmul.f32 %v1795, 0.5
  %v1800 = vmul.f32 %v1796, 0.5
  %v1801 = vmul.f32 %v1797, 0.5
  %v1802 = vmul.f32 %v1794, 0.70710677
  %v1803 = vmul.f32 %v1795, 0.70710677
  %v1804 = vmul.f32 %v1796, 0.70710677
  %v1805 = vmul.f32 %v1797, 0.70710677
  %v1806 = vand.u32 2147483647, %v1802
  %v1807 = vand.u32 2147483647, %v1803
  %v1808 = vand.u32 2147483647, %v1804
  %v1809 = vand.u32 2147483647, %v1805
  %v1810 = vmul.f32 %v1806, 0.3275911
  %v1811 = vmul.f32 %v1807, 0.3275911
  %v1812 = vmul.f32 %v1808, 0.3275911
  %v1813 = vmul.f32 %v1809, 0.3275911
  %v1814 = vadd.f32 %v1810, 1.0
  %v1815 = vadd.f32 %v1811, 1.0
  %v1816 = vadd.f32 %v1812, 1.0
  %v1817 = vadd.f32 %v1813, 1.0
  %v1818 = vrcp.pop %v1814
  %v1819 = vmul.f32 %v1814, %v1818
  %v1820 = vsub.f32 1.0, %v1819
  %v1821 = vmul.f32 %v1818, %v1820
  %v1822 = vadd.f32 %v1818, %v1821
  %vm1823 = vweird.f32 %v1814
  %vm1824 = vweird.f32 %v1818
  %vm1825 = vmor %vm1823, %vm1824
  %v1826 = vsel %vm1825, %v1818, %v1822
  %v1827 = vand.u32 2147483647, %v1814
  %vm1828 = vcmp.eq.f32.partialorder %v1827, 8.507059e+37
  %v1829 = vand.u32 %v1814, 2147483648
  %v1830 = vor.u32 1.1754944e-38, %v1829
  %v1831 = vsel %vm1828, %v1830, %v1826
  %v1832 = vmul.f32 1.0, %v1831
  %v1833 = vrcp.pop %v1815
  %v1834 = vmul.f32 %v1815, %v1833
  %v1835 = vsub.f32 1.0, %v1834
  %v1836 = vmul.f32 %v1833, %v1835
  %v1837 = vadd.f32 %v1833, %v1836
  %vm1838 = vweird.f32 %v1815
  %vm1839 = vweird.f32 %v1833
  %vm1840 = vmor %vm1838, %vm1839
  %v1841 = vsel %vm1840, %v1833, %v1837
  %v1842 = vand.u32 2147483647, %v1815
  %vm1843 = vcmp.eq.f32.partialorder %v1842, 8.507059e+37
  %v1844 = vand.u32 %v1815, 2147483648
  %v1845 = vor.u32 1.1754944e-38, %v1844
  %v1846 = vsel %vm1843, %v1845, %v1841
  %v1847 = vmul.f32 1.0, %v1846
  %v1848 = vrcp.pop %v1816
  %v1849 = vmul.f32 %v1816, %v1848
  %v1850 = vsub.f32 1.0, %v1849
  %v1851 = vmul.f32 %v1848, %v1850
  %v1852 = vadd.f32 %v1848, %v1851
  %vm1853 = vweird.f32 %v1816
  %vm1854 = vweird.f32 %v1848
  %vm1855 = vmor %vm1853, %vm1854
  %v1856 = vsel %vm1855, %v1848, %v1852
  %v1857 = vand.u32 2147483647, %v1816
  %vm1858 = vcmp.eq.f32.partialorder %v1857, 8.507059e+37
  %v1859 = vand.u32 %v1816, 2147483648
  %v1860 = vor.u32 1.1754944e-38, %v1859
  %v1861 = vsel %vm1858, %v1860, %v1856
  %v1862 = vmul.f32 1.0, %v1861
  %v1863 = vrcp.pop %v1817
  %v1864 = vmul.f32 %v1817, %v1863
  %v1865 = vsub.f32 1.0, %v1864
  %v1866 = vmul.f32 %v1863, %v1865
  %v1867 = vadd.f32 %v1863, %v1866
  %vm1868 = vweird.f32 %v1817
  %vm1869 = vweird.f32 %v1863
  %vm1870 = vmor %vm1868, %vm1869
  %v1871 = vsel %vm1870, %v1863, %v1867
  %v1872 = vand.u32 2147483647, %v1817
  %vm1873 = vcmp.eq.f32.partialorder %v1872, 8.507059e+37
  %v1874 = vand.u32 %v1817, 2147483648
  %v1875 = vor.u32 1.1754944e-38, %v1874
  %v1876 = vsel %vm1873, %v1875, %v1871
  %v1877 = vmul.f32 1.0, %v1876
  %v1878 = vmul.f32 %v1832, 1.0614054
  %v1879 = vmul.f32 %v1847, 1.0614054
  %v1880 = vmul.f32 %v1862, 1.0614054
  %v1881 = vmul.f32 %v1877, 1.0614054
  %v1882 = vadd.f32 %v1878, -1.4531521
  %v1883 = vadd.f32 %v1879, -1.4531521
  %v1884 = vadd.f32 %v1880, -1.4531521
  %v1885 = vadd.f32 %v1881, -1.4531521
  %v1886 = vmul.f32 %v1882, %v1832
  %v1887 = vmul.f32 %v1883, %v1847
  %v1888 = vmul.f32 %v1884, %v1862
  %v1889 = vmul.f32 %v1885, %v1877
  %v1890 = vadd.f32 %v1886, 1.4214138
  %v1891 = vadd.f32 %v1887, 1.4214138
  %v1892 = vadd.f32 %v1888, 1.4214138
  %v1893 = vadd.f32 %v1889, 1.4214138
  %v1894 = vmul.f32 %v1890, %v1832
  %v1895 = vmul.f32 %v1891, %v1847
  %v1896 = vmul.f32 %v1892, %v1862
  %v1897 = vmul.f32 %v1893, %v1877
  %v1898 = vadd.f32 %v1894, -0.28449672
  %v1899 = vadd.f32 %v1895, -0.28449672
  %v1900 = vadd.f32 %v1896, -0.28449672
  %v1901 = vadd.f32 %v1897, -0.28449672
  %v1902 = vmul.f32 %v1898, %v1832
  %v1903 = vmul.f32 %v1899, %v1847
  %v1904 = vmul.f32 %v1900, %v1862
  %v1905 = vmul.f32 %v1901, %v1877
  %v1906 = vadd.f32 %v1902, 0.2548296
  %v1907 = vadd.f32 %v1903, 0.2548296
  %v1908 = vadd.f32 %v1904, 0.2548296
  %v1909 = vadd.f32 %v1905, 0.2548296
  %v1910 = vmul.f32 %v1906, %v1832
  %v1911 = vmul.f32 %v1907, %v1847
  %v1912 = vmul.f32 %v1908, %v1862
  %v1913 = vmul.f32 %v1909, %v1877
  %v1914 = vsub.f32 0.0, %v1806
  %v1915 = vsub.f32 0.0, %v1807
  %v1916 = vsub.f32 0.0, %v1808
  %v1917 = vsub.f32 0.0, %v1809
  %v1918 = vmul.f32 %v1914, %v1806
  %v1919 = vmul.f32 %v1915, %v1807
  %v1920 = vmul.f32 %v1916, %v1808
  %v1921 = vmul.f32 %v1917, %v1809
  %v1922 = vmul.f32 %v1918, 1.442695
  %v1923 = vpow.pop %v1922
  %v1924 = vmul.f32 %v1919, 1.442695
  %v1925 = vpow.pop %v1924
  %v1926 = vmul.f32 %v1920, 1.442695
  %v1927 = vpow.pop %v1926
  %v1928 = vmul.f32 %v1921, 1.442695
  %v1929 = vpow.pop %v1928
  %v1930 = vmul.f32 %v1910, %v1923
  %v1931 = vmul.f32 %v1911, %v1925
  %v1932 = vmul.f32 %v1912, %v1927
  %v1933 = vmul.f32 %v1913, %v1929
  %v1934 = vsub.f32 1.0, %v1930
  %v1935 = vsub.f32 1.0, %v1931
  %v1936 = vsub.f32 1.0, %v1932
  %v1937 = vsub.f32 1.0, %v1933
  %vm1938 = vcmp.ge.f32.partialorder %v1802, 0.0
  %vm1939 = vcmp.ge.f32.partialorder %v1803, 0.0
  %vm1940 = vcmp.ge.f32.partialorder %v1804, 0.0
  %vm1941 = vcmp.ge.f32.partialorder %v1805, 0.0
  %v1942 = vsub.f32 0.0, %v1934
  %v1943 = vsub.f32 0.0, %v1935
  %v1944 = vsub.f32 0.0, %v1936
  %v1945 = vsub.f32 0.0, %v1937
  %v1946 = vsel %vm1938, %v1934, %v1942
  %v1947 = vsel %vm1939, %v1935, %v1943
  %v1948 = vsel %vm1940, %v1936, %v1944
  %v1949 = vsel %vm1941, %v1937, %v1945
  %v1950 = vadd.f32 %v1946, 1.0
  %v1951 = vadd.f32 %v1947, 1.0
  %v1952 = vadd.f32 %v1948, 1.0
  %v1953 = vadd.f32 %v1949, 1.0
  %v1954 = vmul.f32 %v1798, %v1950
  %v1955 = vmul.f32 %v1799, %v1951
  %v1956 = vmul.f32 %v1800, %v1952
  %v1957 = vmul.f32 %v1801, %v1953
  %s1958 = scalar_lea.vmem %s12, 4
  %v1959 = vld [vmem:[%s1958] sm:$0x7]
  %s1960 = scalar_lea.vmem %s13, 1
  %v1961 = vld [vmem:[%s1960] sm:$0x1]
  %v1963 = vperm.slane %v1961, 0
  %v1966 = vsel %vm222, %v1959, 0
  %1968 = vmatpush.bf16.msra.mxu0 0
  %1969 = vmatpush.bf16.msra.mxu0 0
  %1970 = vmatpush.bf16.msra.mxu0 0
  %1971 = vmatpush.bf16.msra.mxu0 0
  %1972 = vmatpush.bf16.msra.mxu0 0
  %1973 = vmatpush.bf16.msra.mxu0 0
  %1974 = vmatpush.bf16.msra.mxu0 0
  %1975 = vmatpush.bf16.msra.mxu0 %v1966
  %1976 = vmatmul.bf16.gmra.mxu0 %v205
  %v1977 = vpop.f32.mrf.mxu0
  %v1978 = vadd.f32 %v1963, %v1977
  %v1979 = vpop.f32.mrf.mxu0
  %v1980 = vadd.f32 %v1963, %v1979
  %1981 = vmatmul.bf16.gmra.mxu0 %v208
  %v1982 = vpop.f32.mrf.mxu0
  %v1983 = vadd.f32 %v1963, %v1982
  %v1984 = vpop.f32.mrf.mxu0
  %v1985 = vadd.f32 %v1963, %v1984
  %1986 = vmatmul.bf16.gmra.mxu0 %v211
  %v1987 = vpop.f32.mrf.mxu0
  %v1988 = vadd.f32 %v1963, %v1987
  %v1989 = vpop.f32.mrf.mxu0
  %v1990 = vadd.f32 %v1963, %v1989
  %1991 = vmatmul.bf16.gmra.mxu0 %v214
  %v1992 = vpop.f32.mrf.mxu0
  %v1993 = vadd.f32 %v1963, %v1992
  %v1994 = vpop.f32.mrf.mxu0
  %v1995 = vadd.f32 %v1963, %v1994
  %1996 = vmatmul.bf16.gmra.mxu0 %v217
  %v1997 = vpop.f32.mrf.mxu0
  %v1998 = vadd.f32 %v1963, %v1997
  %v1999 = vpop.f32.mrf.mxu0
  %v2000 = vadd.f32 %v1963, %v1999
  %2001 = vmatmul.bf16.gmra.mxu0 %v220
  %v2002 = vpop.f32.mrf.mxu0
  %v2003 = vadd.f32 %v1963, %v2002
  %v2004 = vpop.f32.mrf.mxu0
  %v2005 = vadd.f32 %v1963, %v2004
  %2006 = vdwg.mxu0
  %v2007 = vmax.f32 %v1978, 0.0
  %v2008 = vmax.f32 %v1980, 0.0
  %v2009 = vmax.f32 %v1983, 0.0
  %v2010 = vmax.f32 %v1985, 0.0
  %v2011 = vmax.f32 %v1988, 0.0
  %v2012 = vmax.f32 %v1990, 0.0
  %v2013 = vmax.f32 %v1993, 0.0
  %v2014 = vmax.f32 %v1995, 0.0
  %v2015 = vmax.f32 %v1998, 0.0
  %v2016 = vmax.f32 %v2000, 0.0
  %v2017 = vmax.f32 %v2003, 0.0
  %v2018 = vmax.f32 %v2005, 0.0
  %v2019 = vpack.c.bf16 %v2008, %v2007
  %v2020 = vpack.c.bf16 %v2010, %v2009
  %v2021 = vpack.c.bf16 %v2012, %v2011
  %v2022 = vpack.c.bf16 %v2014, %v2013
  %v2023 = vpack.c.bf16 %v2016, %v2015
  %v2024 = vpack.c.bf16 %v2018, %v2017
  %s2025 = scalar_lea.vmem %s14, 16
  %v2026 = vld [vmem:[%s2025] sm:$0xf]
  %v2027 = vld [vmem:[%s2025 + $0x4] sm:$0xf]
  %v2028 = vld [vmem:[%s2025 + $0x8] sm:$0xf]
  %v2029 = vld [vmem:[%s2025 + $0xc] sm:$0xf]
  %s2030 = scalar_lea.vmem %s15, 1
  %v2031 = vld [vmem:[%s2030] sm:$0x1]
  %v2033 = vperm.slane %v2031, 0
  %v2039 = vunpack.c.l.b16 %v2026
  %v2040 = vunpack.c.l.b16 %v2027
  %v2041 = vunpack.c.l.b16 %v2028
  %v2042 = vunpack.c.l.b16 %v2029
  %v2043 = vpack.c.b16 %v2040, %v2039
  %v2044 = vpack.c.b16 %v2042, %v2041
  %v2048 = vsel %vm303, %v2019, 0
  %v2051 = vsel %vm303, %v2020, 0
  %v2054 = vsel %vm303, %v2021, 0
  %v2057 = vsel %vm303, %v2022, 0
  %v2060 = vsel %vm303, %v2023, 0
  %v2063 = vsel %vm303, %v2024, 0
  %2065 = vmatpush.bf16.msra.mxu0 0
  %2066 = vmatpush.bf16.msra.mxu0 0
  %2067 = vmatpush.bf16.msra.mxu0 0
  %2068 = vmatpush.bf16.msra.mxu0 0
  %2069 = vmatpush.bf16.msra.mxu0 0
  %2070 = vmatpush.bf16.msra.mxu0 0
  %2071 = vmatpush.bf16.msra.mxu0 %v2044
  %2072 = vmatpush.bf16.msra.mxu0 %v2043
  %2073 = vmatmul.bf16.gmra.mxu0 %v2048
  %v2074 = vpop.f32.mrf.mxu0
  %v2075 = vadd.f32 %v2033, %v2074
  %v2076 = vpop.f32.mrf.mxu0
  %v2077 = vadd.f32 %v2033, %v2076
  %2078 = vmatmul.bf16.gmra.mxu0 %v2051
  %v2079 = vpop.f32.mrf.mxu0
  %v2080 = vadd.f32 %v2033, %v2079
  %v2081 = vpop.f32.mrf.mxu0
  %v2082 = vadd.f32 %v2033, %v2081
  %2083 = vmatmul.bf16.gmra.mxu0 %v2054
  %v2084 = vpop.f32.mrf.mxu0
  %v2085 = vadd.f32 %v2033, %v2084
  %v2086 = vpop.f32.mrf.mxu0
  %v2087 = vadd.f32 %v2033, %v2086
  %2088 = vmatmul.bf16.gmra.mxu0 %v2057
  %v2089 = vpop.f32.mrf.mxu0
  %v2090 = vadd.f32 %v2033, %v2089
  %v2091 = vpop.f32.mrf.mxu0
  %v2092 = vadd.f32 %v2033, %v2091
  %2093 = vmatmul.bf16.gmra.mxu0 %v2060
  %v2094 = vpop.f32.mrf.mxu0
  %v2095 = vadd.f32 %v2033, %v2094
  %v2096 = vpop.f32.mrf.mxu0
  %v2097 = vadd.f32 %v2033, %v2096
  %2098 = vmatmul.bf16.gmra.mxu0 %v2063
  %v2099 = vpop.f32.mrf.mxu0
  %v2100 = vadd.f32 %v2033, %v2099
  %v2101 = vpop.f32.mrf.mxu0
  %v2102 = vadd.f32 %v2033, %v2101
  %2103 = vdwg.mxu0
  %v2104 = vmax.f32 %v2075, 0.0
  %v2105 = vmax.f32 %v2077, 0.0
  %v2106 = vmax.f32 %v2080, 0.0
  %v2107 = vmax.f32 %v2082, 0.0
  %v2108 = vmax.f32 %v2085, 0.0
  %v2109 = vmax.f32 %v2087, 0.0
  %v2110 = vmax.f32 %v2090, 0.0
  %v2111 = vmax.f32 %v2092, 0.0
  %v2112 = vmax.f32 %v2095, 0.0
  %v2113 = vmax.f32 %v2097, 0.0
  %v2114 = vmax.f32 %v2100, 0.0
  %v2115 = vmax.f32 %v2102, 0.0
  %v2116 = vpack.c.bf16 %v2105, %v2104
  %v2117 = vpack.c.bf16 %v2107, %v2106
  %v2118 = vpack.c.bf16 %v2109, %v2108
  %v2119 = vpack.c.bf16 %v2111, %v2110
  %v2120 = vpack.c.bf16 %v2113, %v2112
  %v2121 = vpack.c.bf16 %v2115, %v2114
  %s2122 = scalar_lea.vmem %s16, 256
  %v2123 = vld [vmem:[%s2122] sm:$0xff]
  %v2124 = vld [vmem:[%s2122 + $0x8] sm:$0xff]
  %v2125 = vld [vmem:[%s2122 + $0x10] sm:$0xff]
  %v2126 = vld [vmem:[%s2122 + $0x18] sm:$0xff]
  %v2127 = vld [vmem:[%s2122 + $0x20] sm:$0xff]
  %v2128 = vld [vmem:[%s2122 + $0x28] sm:$0xff]
  %v2129 = vld [vmem:[%s2122 + $0x30] sm:$0xff]
  %v2130 = vld [vmem:[%s2122 + $0x38] sm:$0xff]
  %v2131 = vld [vmem:[%s2122 + $0x40] sm:$0xff]
  %v2132 = vld [vmem:[%s2122 + $0x48] sm:$0xff]
  %v2133 = vld [vmem:[%s2122 + $0x50] sm:$0xff]
  %v2134 = vld [vmem:[%s2122 + $0x58] sm:$0xff]
  %v2135 = vld [vmem:[%s2122 + $0x60] sm:$0xff]
  %v2136 = vld [vmem:[%s2122 + $0x68] sm:$0xff]
  %v2137 = vld [vmem:[%s2122 + $0x70] sm:$0xff]
  %v2138 = vld [vmem:[%s2122 + $0x78] sm:$0xff]
  %v2139 = vld [vmem:[%s2122 + $0x80] sm:$0xff]
  %v2140 = vld [vmem:[%s2122 + $0x88] sm:$0xff]
  %v2141 = vld [vmem:[%s2122 + $0x90] sm:$0xff]
  %v2142 = vld [vmem:[%s2122 + $0x98] sm:$0xff]
  %v2143 = vld [vmem:[%s2122 + $0xa0] sm:$0xff]
  %v2144 = vld [vmem:[%s2122 + $0xa8] sm:$0xff]
  %v2145 = vld [vmem:[%s2122 + $0xb0] sm:$0xff]
  %v2146 = vld [vmem:[%s2122 + $0xb8] sm:$0xff]
  %v2147 = vld [vmem:[%s2122 + $0xc0] sm:$0xff]
  %v2148 = vld [vmem:[%s2122 + $0xc8] sm:$0xff]
  %v2149 = vld [vmem:[%s2122 + $0xd0] sm:$0xff]
  %v2150 = vld [vmem:[%s2122 + $0xd8] sm:$0xff]
  %v2151 = vld [vmem:[%s2122 + $0xe0] sm:$0xff]
  %v2152 = vld [vmem:[%s2122 + $0xe8] sm:$0xff]
  %v2153 = vld [vmem:[%s2122 + $0xf0] sm:$0xff]
  %v2154 = vld [vmem:[%s2122 + $0xf8] sm:$0xff]
  %s2155 = scalar_lea.vmem %s17, 8
  %v2156 = vld [vmem:[%s2155] sm:$0xff]
  %v2158 = vperm.slane %v2156, 0
  %v2159 = vperm.slane %v2156, 1
  %v2160 = vperm.slane %v2156, 2
  %v2161 = vperm.slane %v2156, 3
  %v2162 = vperm.slane %v2156, 4
  %v2163 = vperm.slane %v2156, 5
  %v2164 = vperm.slane %v2156, 6
  %v2165 = vperm.slane %v2156, 7
  %v2206 = vunpack.c.l.b16 %v2123
  %v2207 = vunpack.c.h.b16 %v2123
  %v2208 = vunpack.c.l.b16 %v2124
  %v2209 = vunpack.c.h.b16 %v2124
  %v2210 = vunpack.c.l.b16 %v2125
  %v2211 = vunpack.c.h.b16 %v2125
  %v2212 = vunpack.c.l.b16 %v2126
  %v2213 = vunpack.c.h.b16 %v2126
  %v2214 = vunpack.c.l.b16 %v2127
  %v2215 = vunpack.c.h.b16 %v2127
  %v2216 = vunpack.c.l.b16 %v2128
  %v2217 = vunpack.c.h.b16 %v2128
  %v2218 = vunpack.c.l.b16 %v2129
  %v2219 = vunpack.c.h.b16 %v2129
  %v2220 = vunpack.c.l.b16 %v2130
  %v2221 = vunpack.c.h.b16 %v2130
  %v2222 = vunpack.c.l.b16 %v2131
  %v2223 = vunpack.c.h.b16 %v2131
  %v2224 = vunpack.c.l.b16 %v2132
  %v2225 = vunpack.c.h.b16 %v2132
  %v2226 = vunpack.c.l.b16 %v2133
  %v2227 = vunpack.c.h.b16 %v2133
  %v2228 = vunpack.c.l.b16 %v2134
  %v2229 = vunpack.c.h.b16 %v2134
  %v2230 = vunpack.c.l.b16 %v2135
  %v2231 = vunpack.c.h.b16 %v2135
  %v2232 = vunpack.c.l.b16 %v2136
  %v2233 = vunpack.c.h.b16 %v2136
  %v2234 = vunpack.c.l.b16 %v2137
  %v2235 = vunpack.c.h.b16 %v2137
  %v2236 = vunpack.c.l.b16 %v2138
  %v2237 = vunpack.c.h.b16 %v2138
  %v2238 = vunpack.c.l.b16 %v2139
  %v2239 = vunpack.c.h.b16 %v2139
  %v2240 = vunpack.c.l.b16 %v2140
  %v2241 = vunpack.c.h.b16 %v2140
  %v2242 = vunpack.c.l.b16 %v2141
  %v2243 = vunpack.c.h.b16 %v2141
  %v2244 = vunpack.c.l.b16 %v2142
  %v2245 = vunpack.c.h.b16 %v2142
  %v2246 = vunpack.c.l.b16 %v2143
  %v2247 = vunpack.c.h.b16 %v2143
  %v2248 = vunpack.c.l.b16 %v2144
  %v2249 = vunpack.c.h.b16 %v2144
  %v2250 = vunpack.c.l.b16 %v2145
  %v2251 = vunpack.c.h.b16 %v2145
  %v2252 = vunpack.c.l.b16 %v2146
  %v2253 = vunpack.c.h.b16 %v2146
  %v2254 = vunpack.c.l.b16 %v2147
  %v2255 = vunpack.c.h.b16 %v2147
  %v2256 = vunpack.c.l.b16 %v2148
  %v2257 = vunpack.c.h.b16 %v2148
  %v2258 = vunpack.c.l.b16 %v2149
  %v2259 = vunpack.c.h.b16 %v2149
  %v2260 = vunpack.c.l.b16 %v2150
  %v2261 = vunpack.c.h.b16 %v2150
  %v2262 = vunpack.c.l.b16 %v2151
  %v2263 = vunpack.c.h.b16 %v2151
  %v2264 = vunpack.c.l.b16 %v2152
  %v2265 = vunpack.c.h.b16 %v2152
  %v2266 = vunpack.c.l.b16 %v2153
  %v2267 = vunpack.c.h.b16 %v2153
  %v2268 = vunpack.c.l.b16 %v2154
  %v2269 = vunpack.c.h.b16 %v2154
  %v2270 = vpack.c.b16 %v2214, %v2206
  %v2271 = vpack.c.b16 %v2215, %v2207
  %v2272 = vpack.c.b16 %v2216, %v2208
  %v2273 = vpack.c.b16 %v2217, %v2209
  %v2274 = vpack.c.b16 %v2218, %v2210
  %v2275 = vpack.c.b16 %v2219, %v2211
  %v2276 = vpack.c.b16 %v2220, %v2212
  %v2277 = vpack.c.b16 %v2221, %v2213
  %v2278 = vpack.c.b16 %v2230, %v2222
  %v2279 = vpack.c.b16 %v2231, %v2223
  %v2280 = vpack.c.b16 %v2232, %v2224
  %v2281 = vpack.c.b16 %v2233, %v2225
  %v2282 = vpack.c.b16 %v2234, %v2226
  %v2283 = vpack.c.b16 %v2235, %v2227
  %v2284 = vpack.c.b16 %v2236, %v2228
  %v2285 = vpack.c.b16 %v2237, %v2229
  %v2286 = vpack.c.b16 %v2246, %v2238
  %v2287 = vpack.c.b16 %v2247, %v2239
  %v2288 = vpack.c.b16 %v2248, %v2240
  %v2289 = vpack.c.b16 %v2249, %v2241
  %v2290 = vpack.c.b16 %v2250, %v2242
  %v2291 = vpack.c.b16 %v2251, %v2243
  %v2292 = vpack.c.b16 %v2252, %v2244
  %v2293 = vpack.c.b16 %v2253, %v2245
  %v2294 = vpack.c.b16 %v2262, %v2254
  %v2295 = vpack.c.b16 %v2263, %v2255
  %v2296 = vpack.c.b16 %v2264, %v2256
  %v2297 = vpack.c.b16 %v2265, %v2257
  %v2298 = vpack.c.b16 %v2266, %v2258
  %v2299 = vpack.c.b16 %v2267, %v2259
  %v2300 = vpack.c.b16 %v2268, %v2260
  %v2301 = vpack.c.b16 %v2269, %v2261
  %v2335 = vsel %vm589, %v2116, 0
  %v2338 = vsel %vm589, %v2117, 0
  %v2341 = vsel %vm589, %v2118, 0
  %v2344 = vsel %vm589, %v2119, 0
  %v2347 = vsel %vm589, %v2120, 0
  %v2350 = vsel %vm589, %v2121, 0
  %2352 = vmatpush.bf16.msra.mxu0 0
  %2353 = vmatpush.bf16.msra.mxu0 0
  %2354 = vmatpush.bf16.msra.mxu0 0
  %2355 = vmatpush.bf16.msra.mxu0 0
  %2356 = vmatpush.bf16.msra.mxu0 %v2294
  %2357 = vmatpush.bf16.msra.mxu0 %v2286
  %2358 = vmatpush.bf16.msra.mxu0 %v2278
  %2359 = vmatpush.bf16.msra.mxu0 %v2270
  %2360 = vmatmul.bf16.gmra.mxu0 %v2335
  %v2361 = vpop.f32.mrf.mxu0
  %v2362 = vadd.f32 %v2158, %v2361
  %v2363 = vpop.f32.mrf.mxu0
  %v2364 = vadd.f32 %v2158, %v2363
  %2365 = vmatmul.bf16.gmra.mxu0 %v2338
  %v2366 = vpop.f32.mrf.mxu0
  %v2367 = vadd.f32 %v2158, %v2366
  %v2368 = vpop.f32.mrf.mxu0
  %v2369 = vadd.f32 %v2158, %v2368
  %2370 = vmatmul.bf16.gmra.mxu0 %v2341
  %v2371 = vpop.f32.mrf.mxu0
  %v2372 = vadd.f32 %v2158, %v2371
  %v2373 = vpop.f32.mrf.mxu0
  %v2374 = vadd.f32 %v2158, %v2373
  %2375 = vmatmul.bf16.gmra.mxu0 %v2344
  %v2376 = vpop.f32.mrf.mxu0
  %v2377 = vadd.f32 %v2158, %v2376
  %v2378 = vpop.f32.mrf.mxu0
  %v2379 = vadd.f32 %v2158, %v2378
  %2380 = vmatmul.bf16.gmra.mxu0 %v2347
  %v2381 = vpop.f32.mrf.mxu0
  %v2382 = vadd.f32 %v2158, %v2381
  %v2383 = vpop.f32.mrf.mxu0
  %v2384 = vadd.f32 %v2158, %v2383
  %2385 = vmatmul.bf16.gmra.mxu0 %v2350
  %v2386 = vpop.f32.mrf.mxu0
  %v2387 = vadd.f32 %v2158, %v2386
  %v2388 = vpop.f32.mrf.mxu0
  %v2389 = vadd.f32 %v2158, %v2388
  %2390 = vdwg.mxu0
  %2391 = vmatpush.bf16.msra.mxu0 0
  %2392 = vmatpush.bf16.msra.mxu0 0
  %2393 = vmatpush.bf16.msra.mxu0 0
  %2394 = vmatpush.bf16.msra.mxu0 0
  %2395 = vmatpush.bf16.msra.mxu0 %v2295
  %2396 = vmatpush.bf16.msra.mxu0 %v2287
  %2397 = vmatpush.bf16.msra.mxu0 %v2279
  %2398 = vmatpush.bf16.msra.mxu0 %v2271
  %2399 = vmatmul.bf16.gmra.mxu0 %v2335
  %v2400 = vpop.f32.mrf.mxu0
  %v2401 = vadd.f32 %v2159, %v2400
  %v2402 = vpop.f32.mrf.mxu0
  %v2403 = vadd.f32 %v2159, %v2402
  %2404 = vmatmul.bf16.gmra.mxu0 %v2338
  %v2405 = vpop.f32.mrf.mxu0
  %v2406 = vadd.f32 %v2159, %v2405
  %v2407 = vpop.f32.mrf.mxu0
  %v2408 = vadd.f32 %v2159, %v2407
  %2409 = vmatmul.bf16.gmra.mxu0 %v2341
  %v2410 = vpop.f32.mrf.mxu0
  %v2411 = vadd.f32 %v2159, %v2410
  %v2412 = vpop.f32.mrf.mxu0
  %v2413 = vadd.f32 %v2159, %v2412
  %2414 = vmatmul.bf16.gmra.mxu0 %v2344
  %v2415 = vpop.f32.mrf.mxu0
  %v2416 = vadd.f32 %v2159, %v2415
  %v2417 = vpop.f32.mrf.mxu0
  %v2418 = vadd.f32 %v2159, %v2417
  %2419 = vmatmul.bf16.gmra.mxu0 %v2347
  %v2420 = vpop.f32.mrf.mxu0
  %v2421 = vadd.f32 %v2159, %v2420
  %v2422 = vpop.f32.mrf.mxu0
  %v2423 = vadd.f32 %v2159, %v2422
  %2424 = vmatmul.bf16.gmra.mxu0 %v2350
  %v2425 = vpop.f32.mrf.mxu0
  %v2426 = vadd.f32 %v2159, %v2425
  %v2427 = vpop.f32.mrf.mxu0
  %v2428 = vadd.f32 %v2159, %v2427
  %2429 = vdwg.mxu0
  %2430 = vmatpush.bf16.msra.mxu0 0
  %2431 = vmatpush.bf16.msra.mxu0 0
  %2432 = vmatpush.bf16.msra.mxu0 0
  %2433 = vmatpush.bf16.msra.mxu0 0
  %2434 = vmatpush.bf16.msra.mxu0 %v2296
  %2435 = vmatpush.bf16.msra.mxu0 %v2288
  %2436 = vmatpush.bf16.msra.mxu0 %v2280
  %2437 = vmatpush.bf16.msra.mxu0 %v2272
  %2438 = vmatmul.bf16.gmra.mxu0 %v2335
  %v2439 = vpop.f32.mrf.mxu0
  %v2440 = vadd.f32 %v2160, %v2439
  %v2441 = vpop.f32.mrf.mxu0
  %v2442 = vadd.f32 %v2160, %v2441
  %2443 = vmatmul.bf16.gmra.mxu0 %v2338
  %v2444 = vpop.f32.mrf.mxu0
  %v2445 = vadd.f32 %v2160, %v2444
  %v2446 = vpop.f32.mrf.mxu0
  %v2447 = vadd.f32 %v2160, %v2446
  %2448 = vmatmul.bf16.gmra.mxu0 %v2341
  %v2449 = vpop.f32.mrf.mxu0
  %v2450 = vadd.f32 %v2160, %v2449
  %v2451 = vpop.f32.mrf.mxu0
  %v2452 = vadd.f32 %v2160, %v2451
  %2453 = vmatmul.bf16.gmra.mxu0 %v2344
  %v2454 = vpop.f32.mrf.mxu0
  %v2455 = vadd.f32 %v2160, %v2454
  %v2456 = vpop.f32.mrf.mxu0
  %v2457 = vadd.f32 %v2160, %v2456
  %2458 = vmatmul.bf16.gmra.mxu0 %v2347
  %v2459 = vpop.f32.mrf.mxu0
  %v2460 = vadd.f32 %v2160, %v2459
  %v2461 = vpop.f32.mrf.mxu0
  %v2462 = vadd.f32 %v2160, %v2461
  %2463 = vmatmul.bf16.gmra.mxu0 %v2350
  %v2464 = vpop.f32.mrf.mxu0
  %v2465 = vadd.f32 %v2160, %v2464
  %v2466 = vpop.f32.mrf.mxu0
  %v2467 = vadd.f32 %v2160, %v2466
  %2468 = vdwg.mxu0
  %2469 = vmatpush.bf16.msra.mxu0 0
  %2470 = vmatpush.bf16.msra.mxu0 0
  %2471 = vmatpush.bf16.msra.mxu0 0
  %2472 = vmatpush.bf16.msra.mxu0 0
  %2473 = vmatpush.bf16.msra.mxu0 %v2297
  %2474 = vmatpush.bf16.msra.mxu0 %v2289
  %2475 = vmatpush.bf16.msra.mxu0 %v2281
  %2476 = vmatpush.bf16.msra.mxu0 %v2273
  %2477 = vmatmul.bf16.gmra.mxu0 %v2335
  %v2478 = vpop.f32.mrf.mxu0
  %v2479 = vadd.f32 %v2161, %v2478
  %v2480 = vpop.f32.mrf.mxu0
  %v2481 = vadd.f32 %v2161, %v2480
  %2482 = vmatmul.bf16.gmra.mxu0 %v2338
  %v2483 = vpop.f32.mrf.mxu0
  %v2484 = vadd.f32 %v2161, %v2483
  %v2485 = vpop.f32.mrf.mxu0
  %v2486 = vadd.f32 %v2161, %v2485
  %2487 = vmatmul.bf16.gmra.mxu0 %v2341
  %v2488 = vpop.f32.mrf.mxu0
  %v2489 = vadd.f32 %v2161, %v2488
  %v2490 = vpop.f32.mrf.mxu0
  %v2491 = vadd.f32 %v2161, %v2490
  %2492 = vmatmul.bf16.gmra.mxu0 %v2344
  %v2493 = vpop.f32.mrf.mxu0
  %v2494 = vadd.f32 %v2161, %v2493
  %v2495 = vpop.f32.mrf.mxu0
  %v2496 = vadd.f32 %v2161, %v2495
  %2497 = vmatmul.bf16.gmra.mxu0 %v2347
  %v2498 = vpop.f32.mrf.mxu0
  %v2499 = vadd.f32 %v2161, %v2498
  %v2500 = vpop.f32.mrf.mxu0
  %v2501 = vadd.f32 %v2161, %v2500
  %2502 = vmatmul.bf16.gmra.mxu0 %v2350
  %v2503 = vpop.f32.mrf.mxu0
  %v2504 = vadd.f32 %v2161, %v2503
  %v2505 = vpop.f32.mrf.mxu0
  %v2506 = vadd.f32 %v2161, %v2505
  %2507 = vdwg.mxu0
  %2508 = vmatpush.bf16.msra.mxu0 0
  %2509 = vmatpush.bf16.msra.mxu0 0
  %2510 = vmatpush.bf16.msra.mxu0 0
  %2511 = vmatpush.bf16.msra.mxu0 0
  %2512 = vmatpush.bf16.msra.mxu0 %v2298
  %2513 = vmatpush.bf16.msra.mxu0 %v2290
  %2514 = vmatpush.bf16.msra.mxu0 %v2282
  %2515 = vmatpush.bf16.msra.mxu0 %v2274
  %2516 = vmatmul.bf16.gmra.mxu0 %v2335
  %v2517 = vpop.f32.mrf.mxu0
  %v2518 = vadd.f32 %v2162, %v2517
  %v2519 = vpop.f32.mrf.mxu0
  %v2520 = vadd.f32 %v2162, %v2519
  %2521 = vmatmul.bf16.gmra.mxu0 %v2338
  %v2522 = vpop.f32.mrf.mxu0
  %v2523 = vadd.f32 %v2162, %v2522
  %v2524 = vpop.f32.mrf.mxu0
  %v2525 = vadd.f32 %v2162, %v2524
  %2526 = vmatmul.bf16.gmra.mxu0 %v2341
  %v2527 = vpop.f32.mrf.mxu0
  %v2528 = vadd.f32 %v2162, %v2527
  %v2529 = vpop.f32.mrf.mxu0
  %v2530 = vadd.f32 %v2162, %v2529
  %2531 = vmatmul.bf16.gmra.mxu0 %v2344
  %v2532 = vpop.f32.mrf.mxu0
  %v2533 = vadd.f32 %v2162, %v2532
  %v2534 = vpop.f32.mrf.mxu0
  %v2535 = vadd.f32 %v2162, %v2534
  %2536 = vmatmul.bf16.gmra.mxu0 %v2347
  %v2537 = vpop.f32.mrf.mxu0
  %v2538 = vadd.f32 %v2162, %v2537
  %v2539 = vpop.f32.mrf.mxu0
  %v2540 = vadd.f32 %v2162, %v2539
  %2541 = vmatmul.bf16.gmra.mxu0 %v2350
  %v2542 = vpop.f32.mrf.mxu0
  %v2543 = vadd.f32 %v2162, %v2542
  %v2544 = vpop.f32.mrf.mxu0
  %v2545 = vadd.f32 %v2162, %v2544
  %2546 = vdwg.mxu0
  %2547 = vmatpush.bf16.msra.mxu0 0
  %2548 = vmatpush.bf16.msra.mxu0 0
  %2549 = vmatpush.bf16.msra.mxu0 0
  %2550 = vmatpush.bf16.msra.mxu0 0
  %2551 = vmatpush.bf16.msra.mxu0 %v2299
  %2552 = vmatpush.bf16.msra.mxu0 %v2291
  %2553 = vmatpush.bf16.msra.mxu0 %v2283
  %2554 = vmatpush.bf16.msra.mxu0 %v2275
  %2555 = vmatmul.bf16.gmra.mxu0 %v2335
  %v2556 = vpop.f32.mrf.mxu0
  %v2557 = vadd.f32 %v2163, %v2556
  %v2558 = vpop.f32.mrf.mxu0
  %v2559 = vadd.f32 %v2163, %v2558
  %2560 = vmatmul.bf16.gmra.mxu0 %v2338
  %v2561 = vpop.f32.mrf.mxu0
  %v2562 = vadd.f32 %v2163, %v2561
  %v2563 = vpop.f32.mrf.mxu0
  %v2564 = vadd.f32 %v2163, %v2563
  %2565 = vmatmul.bf16.gmra.mxu0 %v2341
  %v2566 = vpop.f32.mrf.mxu0
  %v2567 = vadd.f32 %v2163, %v2566
  %v2568 = vpop.f32.mrf.mxu0
  %v2569 = vadd.f32 %v2163, %v2568
  %2570 = vmatmul.bf16.gmra.mxu0 %v2344
  %v2571 = vpop.f32.mrf.mxu0
  %v2572 = vadd.f32 %v2163, %v2571
  %v2573 = vpop.f32.mrf.mxu0
  %v2574 = vadd.f32 %v2163, %v2573
  %2575 = vmatmul.bf16.gmra.mxu0 %v2347
  %v2576 = vpop.f32.mrf.mxu0
  %v2577 = vadd.f32 %v2163, %v2576
  %v2578 = vpop.f32.mrf.mxu0
  %v2579 = vadd.f32 %v2163, %v2578
  %2580 = vmatmul.bf16.gmra.mxu0 %v2350
  %v2581 = vpop.f32.mrf.mxu0
  %v2582 = vadd.f32 %v2163, %v2581
  %v2583 = vpop.f32.mrf.mxu0
  %v2584 = vadd.f32 %v2163, %v2583
  %2585 = vdwg.mxu0
  %2586 = vmatpush.bf16.msra.mxu0 0
  %2587 = vmatpush.bf16.msra.mxu0 0
  %2588 = vmatpush.bf16.msra.mxu0 0
  %2589 = vmatpush.bf16.msra.mxu0 0
  %2590 = vmatpush.bf16.msra.mxu0 %v2300
  %2591 = vmatpush.bf16.msra.mxu0 %v2292
  %2592 = vmatpush.bf16.msra.mxu0 %v2284
  %2593 = vmatpush.bf16.msra.mxu0 %v2276
  %2594 = vmatmul.bf16.gmra.mxu0 %v2335
  %v2595 = vpop.f32.mrf.mxu0
  %v2596 = vadd.f32 %v2164, %v2595
  %v2597 = vpop.f32.mrf.mxu0
  %v2598 = vadd.f32 %v2164, %v2597
  %2599 = vmatmul.bf16.gmra.mxu0 %v2338
  %v2600 = vpop.f32.mrf.mxu0
  %v2601 = vadd.f32 %v2164, %v2600
  %v2602 = vpop.f32.mrf.mxu0
  %v2603 = vadd.f32 %v2164, %v2602
  %2604 = vmatmul.bf16.gmra.mxu0 %v2341
  %v2605 = vpop.f32.mrf.mxu0
  %v2606 = vadd.f32 %v2164, %v2605
  %v2607 = vpop.f32.mrf.mxu0
  %v2608 = vadd.f32 %v2164, %v2607
  %2609 = vmatmul.bf16.gmra.mxu0 %v2344
  %v2610 = vpop.f32.mrf.mxu0
  %v2611 = vadd.f32 %v2164, %v2610
  %v2612 = vpop.f32.mrf.mxu0
  %v2613 = vadd.f32 %v2164, %v2612
  %2614 = vmatmul.bf16.gmra.mxu0 %v2347
  %v2615 = vpop.f32.mrf.mxu0
  %v2616 = vadd.f32 %v2164, %v2615
  %v2617 = vpop.f32.mrf.mxu0
  %v2618 = vadd.f32 %v2164, %v2617
  %2619 = vmatmul.bf16.gmra.mxu0 %v2350
  %v2620 = vpop.f32.mrf.mxu0
  %v2621 = vadd.f32 %v2164, %v2620
  %v2622 = vpop.f32.mrf.mxu0
  %v2623 = vadd.f32 %v2164, %v2622
  %2624 = vdwg.mxu0
  %2625 = vmatpush.bf16.msra.mxu0 0
  %2626 = vmatpush.bf16.msra.mxu0 0
  %2627 = vmatpush.bf16.msra.mxu0 0
  %2628 = vmatpush.bf16.msra.mxu0 0
  %2629 = vmatpush.bf16.msra.mxu0 %v2301
  %2630 = vmatpush.bf16.msra.mxu0 %v2293
  %2631 = vmatpush.bf16.msra.mxu0 %v2285
  %2632 = vmatpush.bf16.msra.mxu0 %v2277
  %2633 = vmatmul.bf16.gmra.mxu0 %v2335
  %v2634 = vpop.f32.mrf.mxu0
  %v2635 = vadd.f32 %v2165, %v2634
  %v2636 = vpop.f32.mrf.mxu0
  %v2637 = vadd.f32 %v2165, %v2636
  %2638 = vmatmul.bf16.gmra.mxu0 %v2338
  %v2639 = vpop.f32.mrf.mxu0
  %v2640 = vadd.f32 %v2165, %v2639
  %v2641 = vpop.f32.mrf.mxu0
  %v2642 = vadd.f32 %v2165, %v2641
  %2643 = vmatmul.bf16.gmra.mxu0 %v2341
  %v2644 = vpop.f32.mrf.mxu0
  %v2645 = vadd.f32 %v2165, %v2644
  %v2646 = vpop.f32.mrf.mxu0
  %v2647 = vadd.f32 %v2165, %v2646
  %2648 = vmatmul.bf16.gmra.mxu0 %v2344
  %v2649 = vpop.f32.mrf.mxu0
  %v2650 = vadd.f32 %v2165, %v2649
  %v2651 = vpop.f32.mrf.mxu0
  %v2652 = vadd.f32 %v2165, %v2651
  %2653 = vmatmul.bf16.gmra.mxu0 %v2347
  %v2654 = vpop.f32.mrf.mxu0
  %v2655 = vadd.f32 %v2165, %v2654
  %v2656 = vpop.f32.mrf.mxu0
  %v2657 = vadd.f32 %v2165, %v2656
  %2658 = vmatmul.bf16.gmra.mxu0 %v2350
  %v2659 = vpop.f32.mrf.mxu0
  %v2660 = vadd.f32 %v2165, %v2659
  %v2661 = vpop.f32.mrf.mxu0
  %v2662 = vadd.f32 %v2165, %v2661
  %2663 = vdwg.mxu0
  %v2664 = vpack.c.bf16 %v1955, %v1954
  %v2665 = vpack.c.bf16 %v1957, %v1956
  %2666 = vmatpush.bf16.msra.mxu0 0
  %2667 = vmatpush.bf16.msra.mxu0 0
  %2668 = vmatpush.bf16.msra.mxu0 0
  %2669 = vmatpush.bf16.msra.mxu0 0
  %2670 = vmatpush.bf16.msra.mxu0 0
  %2671 = vmatpush.bf16.msra.mxu0 0
  %2672 = vmatpush.bf16.msra.mxu0 %v2665
  %2673 = vmatpush.bf16.msra.mxu0 %v2664
  %2674 = vmatmul.bf16.gmra.mxu0 %v953
  %v2675 = vpop.f32.mrf.mxu0
  %v2676 = vadd.f32 0.0, %v2675
  %v2677 = vpop.f32.mrf.mxu0
  %v2678 = vadd.f32 0.0, %v2677
  %2679 = vmatmul.bf16.gmra.mxu0 %v956
  %v2680 = vpop.f32.mrf.mxu0
  %v2681 = vadd.f32 0.0, %v2680
  %v2682 = vpop.f32.mrf.mxu0
  %v2683 = vadd.f32 0.0, %v2682
  %2684 = vmatmul.bf16.gmra.mxu0 %v959
  %v2685 = vpop.f32.mrf.mxu0
  %v2686 = vadd.f32 0.0, %v2685
  %v2687 = vpop.f32.mrf.mxu0
  %v2688 = vadd.f32 0.0, %v2687
  %2689 = vmatmul.bf16.gmra.mxu0 %v962
  %v2690 = vpop.f32.mrf.mxu0
  %v2691 = vadd.f32 0.0, %v2690
  %v2692 = vpop.f32.mrf.mxu0
  %v2693 = vadd.f32 0.0, %v2692
  %2694 = vmatmul.bf16.gmra.mxu0 %v965
  %v2695 = vpop.f32.mrf.mxu0
  %v2696 = vadd.f32 0.0, %v2695
  %v2697 = vpop.f32.mrf.mxu0
  %v2698 = vadd.f32 0.0, %v2697
  %2699 = vmatmul.bf16.gmra.mxu0 %v968
  %v2700 = vpop.f32.mrf.mxu0
  %v2701 = vadd.f32 0.0, %v2700
  %v2702 = vpop.f32.mrf.mxu0
  %v2703 = vadd.f32 0.0, %v2702
  %2704 = vdwg.mxu0
  %v2705 = vpack.c.bf16 %v2678, %v2676
  %v2706 = vpack.c.bf16 %v2683, %v2681
  %v2707 = vpack.c.bf16 %v2688, %v2686
  %v2708 = vpack.c.bf16 %v2693, %v2691
  %v2709 = vpack.c.bf16 %v2698, %v2696
  %v2710 = vpack.c.bf16 %v2703, %v2701
  %v2712 = vsel %vm303, %v2705, 0
  %v2715 = vsel %vm303, %v2706, 0
  %v2718 = vsel %vm303, %v2707, 0
  %v2721 = vsel %vm303, %v2708, 0
  %v2724 = vsel %vm303, %v2709, 0
  %v2727 = vsel %vm303, %v2710, 0
  %2729 = vmatpush.bf16.msra.mxu0 0
  %2730 = vmatpush.bf16.msra.mxu0 0
  %2731 = vmatpush.bf16.msra.mxu0 0
  %2732 = vmatpush.bf16.msra.mxu0 0
  %2733 = vmatpush.bf16.msra.mxu0 0
  %2734 = vmatpush.bf16.msra.mxu0 0
  %2735 = vmatpush.bf16.msra.mxu0 %v1071
  %2736 = vmatpush.bf16.msra.mxu0 %v1063
  %2737 = vmatmul.bf16.gmra.mxu0 %v2712
  %v2738 = vpop.f32.mrf.mxu0
  %v2739 = vadd.f32 0.0, %v2738
  %v2740 = vpop.f32.mrf.mxu0
  %v2741 = vadd.f32 0.0, %v2740
  %2742 = vmatmul.bf16.gmra.mxu0 %v2715
  %v2743 = vpop.f32.mrf.mxu0
  %v2744 = vadd.f32 0.0, %v2743
  %v2745 = vpop.f32.mrf.mxu0
  %v2746 = vadd.f32 0.0, %v2745
  %2747 = vmatmul.bf16.gmra.mxu0 %v2718
  %v2748 = vpop.f32.mrf.mxu0
  %v2749 = vadd.f32 0.0, %v2748
  %v2750 = vpop.f32.mrf.mxu0
  %v2751 = vadd.f32 0.0, %v2750
  %2752 = vmatmul.bf16.gmra.mxu0 %v2721
  %v2753 = vpop.f32.mrf.mxu0
  %v2754 = vadd.f32 0.0, %v2753
  %v2755 = vpop.f32.mrf.mxu0
  %v2756 = vadd.f32 0.0, %v2755
  %2757 = vmatmul.bf16.gmra.mxu0 %v2724
  %v2758 = vpop.f32.mrf.mxu0
  %v2759 = vadd.f32 0.0, %v2758
  %v2760 = vpop.f32.mrf.mxu0
  %v2761 = vadd.f32 0.0, %v2760
  %2762 = vmatmul.bf16.gmra.mxu0 %v2727
  %v2763 = vpop.f32.mrf.mxu0
  %v2764 = vadd.f32 0.0, %v2763
  %v2765 = vpop.f32.mrf.mxu0
  %v2766 = vadd.f32 0.0, %v2765
  %2767 = vdwg.mxu0
  %2768 = vmatpush.bf16.msra.mxu0 0
  %2769 = vmatpush.bf16.msra.mxu0 0
  %2770 = vmatpush.bf16.msra.mxu0 0
  %2771 = vmatpush.bf16.msra.mxu0 0
  %2772 = vmatpush.bf16.msra.mxu0 0
  %2773 = vmatpush.bf16.msra.mxu0 0
  %2774 = vmatpush.bf16.msra.mxu0 %v1072
  %2775 = vmatpush.bf16.msra.mxu0 %v1064
  %2776 = vmatmul.bf16.gmra.mxu0 %v2712
  %v2777 = vpop.f32.mrf.mxu0
  %v2778 = vadd.f32 0.0, %v2777
  %v2779 = vpop.f32.mrf.mxu0
  %v2780 = vadd.f32 0.0, %v2779
  %2781 = vmatmul.bf16.gmra.mxu0 %v2715
  %v2782 = vpop.f32.mrf.mxu0
  %v2783 = vadd.f32 0.0, %v2782
  %v2784 = vpop.f32.mrf.mxu0
  %v2785 = vadd.f32 0.0, %v2784
  %2786 = vmatmul.bf16.gmra.mxu0 %v2718
  %v2787 = vpop.f32.mrf.mxu0
  %v2788 = vadd.f32 0.0, %v2787
  %v2789 = vpop.f32.mrf.mxu0
  %v2790 = vadd.f32 0.0, %v2789
  %2791 = vmatmul.bf16.gmra.mxu0 %v2721
  %v2792 = vpop.f32.mrf.mxu0
  %v2793 = vadd.f32 0.0, %v2792
  %v2794 = vpop.f32.mrf.mxu0
  %v2795 = vadd.f32 0.0, %v2794
  %2796 = vmatmul.bf16.gmra.mxu0 %v2724
  %v2797 = vpop.f32.mrf.mxu0
  %v2798 = vadd.f32 0.0, %v2797
  %v2799 = vpop.f32.mrf.mxu0
  %v2800 = vadd.f32 0.0, %v2799
  %2801 = vmatmul.bf16.gmra.mxu0 %v2727
  %v2802 = vpop.f32.mrf.mxu0
  %v2803 = vadd.f32 0.0, %v2802
  %v2804 = vpop.f32.mrf.mxu0
  %v2805 = vadd.f32 0.0, %v2804
  %2806 = vdwg.mxu0
  %2807 = vmatpush.bf16.msra.mxu0 0
  %2808 = vmatpush.bf16.msra.mxu0 0
  %2809 = vmatpush.bf16.msra.mxu0 0
  %2810 = vmatpush.bf16.msra.mxu0 0
  %2811 = vmatpush.bf16.msra.mxu0 0
  %2812 = vmatpush.bf16.msra.mxu0 0
  %2813 = vmatpush.bf16.msra.mxu0 %v1073
  %2814 = vmatpush.bf16.msra.mxu0 %v1065
  %2815 = vmatmul.bf16.gmra.mxu0 %v2712
  %v2816 = vpop.f32.mrf.mxu0
  %v2817 = vadd.f32 0.0, %v2816
  %v2818 = vpop.f32.mrf.mxu0
  %v2819 = vadd.f32 0.0, %v2818
  %2820 = vmatmul.bf16.gmra.mxu0 %v2715
  %v2821 = vpop.f32.mrf.mxu0
  %v2822 = vadd.f32 0.0, %v2821
  %v2823 = vpop.f32.mrf.mxu0
  %v2824 = vadd.f32 0.0, %v2823
  %2825 = vmatmul.bf16.gmra.mxu0 %v2718
  %v2826 = vpop.f32.mrf.mxu0
  %v2827 = vadd.f32 0.0, %v2826
  %v2828 = vpop.f32.mrf.mxu0
  %v2829 = vadd.f32 0.0, %v2828
  %2830 = vmatmul.bf16.gmra.mxu0 %v2721
  %v2831 = vpop.f32.mrf.mxu0
  %v2832 = vadd.f32 0.0, %v2831
  %v2833 = vpop.f32.mrf.mxu0
  %v2834 = vadd.f32 0.0, %v2833
  %2835 = vmatmul.bf16.gmra.mxu0 %v2724
  %v2836 = vpop.f32.mrf.mxu0
  %v2837 = vadd.f32 0.0, %v2836
  %v2838 = vpop.f32.mrf.mxu0
  %v2839 = vadd.f32 0.0, %v2838
  %2840 = vmatmul.bf16.gmra.mxu0 %v2727
  %v2841 = vpop.f32.mrf.mxu0
  %v2842 = vadd.f32 0.0, %v2841
  %v2843 = vpop.f32.mrf.mxu0
  %v2844 = vadd.f32 0.0, %v2843
  %2845 = vdwg.mxu0
  %2846 = vmatpush.bf16.msra.mxu0 0
  %2847 = vmatpush.bf16.msra.mxu0 0
  %2848 = vmatpush.bf16.msra.mxu0 0
  %2849 = vmatpush.bf16.msra.mxu0 0
  %2850 = vmatpush.bf16.msra.mxu0 0
  %2851 = vmatpush.bf16.msra.mxu0 0
  %2852 = vmatpush.bf16.msra.mxu0 %v1074
  %2853 = vmatpush.bf16.msra.mxu0 %v1066
  %2854 = vmatmul.bf16.gmra.mxu0 %v2712
  %v2855 = vpop.f32.mrf.mxu0
  %v2856 = vadd.f32 0.0, %v2855
  %v2857 = vpop.f32.mrf.mxu0
  %v2858 = vadd.f32 0.0, %v2857
  %2859 = vmatmul.bf16.gmra.mxu0 %v2715
  %v2860 = vpop.f32.mrf.mxu0
  %v2861 = vadd.f32 0.0, %v2860
  %v2862 = vpop.f32.mrf.mxu0
  %v2863 = vadd.f32 0.0, %v2862
  %2864 = vmatmul.bf16.gmra.mxu0 %v2718
  %v2865 = vpop.f32.mrf.mxu0
  %v2866 = vadd.f32 0.0, %v2865
  %v2867 = vpop.f32.mrf.mxu0
  %v2868 = vadd.f32 0.0, %v2867
  %2869 = vmatmul.bf16.gmra.mxu0 %v2721
  %v2870 = vpop.f32.mrf.mxu0
  %v2871 = vadd.f32 0.0, %v2870
  %v2872 = vpop.f32.mrf.mxu0
  %v2873 = vadd.f32 0.0, %v2872
  %2874 = vmatmul.bf16.gmra.mxu0 %v2724
  %v2875 = vpop.f32.mrf.mxu0
  %v2876 = vadd.f32 0.0, %v2875
  %v2877 = vpop.f32.mrf.mxu0
  %v2878 = vadd.f32 0.0, %v2877
  %2879 = vmatmul.bf16.gmra.mxu0 %v2727
  %v2880 = vpop.f32.mrf.mxu0
  %v2881 = vadd.f32 0.0, %v2880
  %v2882 = vpop.f32.mrf.mxu0
  %v2883 = vadd.f32 0.0, %v2882
  %2884 = vdwg.mxu0
  %2885 = vmatpush.bf16.msra.mxu0 0
  %2886 = vmatpush.bf16.msra.mxu0 0
  %2887 = vmatpush.bf16.msra.mxu0 0
  %2888 = vmatpush.bf16.msra.mxu0 0
  %2889 = vmatpush.bf16.msra.mxu0 0
  %2890 = vmatpush.bf16.msra.mxu0 0
  %2891 = vmatpush.bf16.msra.mxu0 %v1075
  %2892 = vmatpush.bf16.msra.mxu0 %v1067
  %2893 = vmatmul.bf16.gmra.mxu0 %v2712
  %v2894 = vpop.f32.mrf.mxu0
  %v2895 = vadd.f32 0.0, %v2894
  %v2896 = vpop.f32.mrf.mxu0
  %v2897 = vadd.f32 0.0, %v2896
  %2898 = vmatmul.bf16.gmra.mxu0 %v2715
  %v2899 = vpop.f32.mrf.mxu0
  %v2900 = vadd.f32 0.0, %v2899
  %v2901 = vpop.f32.mrf.mxu0
  %v2902 = vadd.f32 0.0, %v2901
  %2903 = vmatmul.bf16.gmra.mxu0 %v2718
  %v2904 = vpop.f32.mrf.mxu0
  %v2905 = vadd.f32 0.0, %v2904
  %v2906 = vpop.f32.mrf.mxu0
  %v2907 = vadd.f32 0.0, %v2906
  %2908 = vmatmul.bf16.gmra.mxu0 %v2721
  %v2909 = vpop.f32.mrf.mxu0
  %v2910 = vadd.f32 0.0, %v2909
  %v2911 = vpop.f32.mrf.mxu0
  %v2912 = vadd.f32 0.0, %v2911
  %2913 = vmatmul.bf16.gmra.mxu0 %v2724
  %v2914 = vpop.f32.mrf.mxu0
  %v2915 = vadd.f32 0.0, %v2914
  %v2916 = vpop.f32.mrf.mxu0
  %v2917 = vadd.f32 0.0, %v2916
  %2918 = vmatmul.bf16.gmra.mxu0 %v2727
  %v2919 = vpop.f32.mrf.mxu0
  %v2920 = vadd.f32 0.0, %v2919
  %v2921 = vpop.f32.mrf.mxu0
  %v2922 = vadd.f32 0.0, %v2921
  %2923 = vdwg.mxu0
  %2924 = vmatpush.bf16.msra.mxu0 0
  %2925 = vmatpush.bf16.msra.mxu0 0
  %2926 = vmatpush.bf16.msra.mxu0 0
  %2927 = vmatpush.bf16.msra.mxu0 0
  %2928 = vmatpush.bf16.msra.mxu0 0
  %2929 = vmatpush.bf16.msra.mxu0 0
  %2930 = vmatpush.bf16.msra.mxu0 %v1076
  %2931 = vmatpush.bf16.msra.mxu0 %v1068
  %2932 = vmatmul.bf16.gmra.mxu0 %v2712
  %v2933 = vpop.f32.mrf.mxu0
  %v2934 = vadd.f32 0.0, %v2933
  %v2935 = vpop.f32.mrf.mxu0
  %v2936 = vadd.f32 0.0, %v2935
  %2937 = vmatmul.bf16.gmra.mxu0 %v2715
  %v2938 = vpop.f32.mrf.mxu0
  %v2939 = vadd.f32 0.0, %v2938
  %v2940 = vpop.f32.mrf.mxu0
  %v2941 = vadd.f32 0.0, %v2940
  %2942 = vmatmul.bf16.gmra.mxu0 %v2718
  %v2943 = vpop.f32.mrf.mxu0
  %v2944 = vadd.f32 0.0, %v2943
  %v2945 = vpop.f32.mrf.mxu0
  %v2946 = vadd.f32 0.0, %v2945
  %2947 = vmatmul.bf16.gmra.mxu0 %v2721
  %v2948 = vpop.f32.mrf.mxu0
  %v2949 = vadd.f32 0.0, %v2948
  %v2950 = vpop.f32.mrf.mxu0
  %v2951 = vadd.f32 0.0, %v2950
  %2952 = vmatmul.bf16.gmra.mxu0 %v2724
  %v2953 = vpop.f32.mrf.mxu0
  %v2954 = vadd.f32 0.0, %v2953
  %v2955 = vpop.f32.mrf.mxu0
  %v2956 = vadd.f32 0.0, %v2955
  %2957 = vmatmul.bf16.gmra.mxu0 %v2727
  %v2958 = vpop.f32.mrf.mxu0
  %v2959 = vadd.f32 0.0, %v2958
  %v2960 = vpop.f32.mrf.mxu0
  %v2961 = vadd.f32 0.0, %v2960
  %2962 = vdwg.mxu0
  %2963 = vmatpush.bf16.msra.mxu0 0
  %2964 = vmatpush.bf16.msra.mxu0 0
  %2965 = vmatpush.bf16.msra.mxu0 0
  %2966 = vmatpush.bf16.msra.mxu0 0
  %2967 = vmatpush.bf16.msra.mxu0 0
  %2968 = vmatpush.bf16.msra.mxu0 0
  %2969 = vmatpush.bf16.msra.mxu0 %v1077
  %2970 = vmatpush.bf16.msra.mxu0 %v1069
  %2971 = vmatmul.bf16.gmra.mxu0 %v2712
  %v2972 = vpop.f32.mrf.mxu0
  %v2973 = vadd.f32 0.0, %v2972
  %v2974 = vpop.f32.mrf.mxu0
  %v2975 = vadd.f32 0.0, %v2974
  %2976 = vmatmul.bf16.gmra.mxu0 %v2715
  %v2977 = vpop.f32.mrf.mxu0
  %v2978 = vadd.f32 0.0, %v2977
  %v2979 = vpop.f32.mrf.mxu0
  %v2980 = vadd.f32 0.0, %v2979
  %2981 = vmatmul.bf16.gmra.mxu0 %v2718
  %v2982 = vpop.f32.mrf.mxu0
  %v2983 = vadd.f32 0.0, %v2982
  %v2984 = vpop.f32.mrf.mxu0
  %v2985 = vadd.f32 0.0, %v2984
  %2986 = vmatmul.bf16.gmra.mxu0 %v2721
  %v2987 = vpop.f32.mrf.mxu0
  %v2988 = vadd.f32 0.0, %v2987
  %v2989 = vpop.f32.mrf.mxu0
  %v2990 = vadd.f32 0.0, %v2989
  %2991 = vmatmul.bf16.gmra.mxu0 %v2724
  %v2992 = vpop.f32.mrf.mxu0
  %v2993 = vadd.f32 0.0, %v2992
  %v2994 = vpop.f32.mrf.mxu0
  %v2995 = vadd.f32 0.0, %v2994
  %2996 = vmatmul.bf16.gmra.mxu0 %v2727
  %v2997 = vpop.f32.mrf.mxu0
  %v2998 = vadd.f32 0.0, %v2997
  %v2999 = vpop.f32.mrf.mxu0
  %v3000 = vadd.f32 0.0, %v2999
  %3001 = vdwg.mxu0
  %3002 = vmatpush.bf16.msra.mxu0 0
  %3003 = vmatpush.bf16.msra.mxu0 0
  %3004 = vmatpush.bf16.msra.mxu0 0
  %3005 = vmatpush.bf16.msra.mxu0 0
  %3006 = vmatpush.bf16.msra.mxu0 0
  %3007 = vmatpush.bf16.msra.mxu0 0
  %3008 = vmatpush.bf16.msra.mxu0 %v1078
  %3009 = vmatpush.bf16.msra.mxu0 %v1070
  %3010 = vmatmul.bf16.gmra.mxu0 %v2712
  %v3011 = vpop.f32.mrf.mxu0
  %v3012 = vadd.f32 0.0, %v3011
  %v3013 = vpop.f32.mrf.mxu0
  %v3014 = vadd.f32 0.0, %v3013
  %3015 = vmatmul.bf16.gmra.mxu0 %v2715
  %v3016 = vpop.f32.mrf.mxu0
  %v3017 = vadd.f32 0.0, %v3016
  %v3018 = vpop.f32.mrf.mxu0
  %v3019 = vadd.f32 0.0, %v3018
  %3020 = vmatmul.bf16.gmra.mxu0 %v2718
  %v3021 = vpop.f32.mrf.mxu0
  %v3022 = vadd.f32 0.0, %v3021
  %v3023 = vpop.f32.mrf.mxu0
  %v3024 = vadd.f32 0.0, %v3023
  %3025 = vmatmul.bf16.gmra.mxu0 %v2721
  %v3026 = vpop.f32.mrf.mxu0
  %v3027 = vadd.f32 0.0, %v3026
  %v3028 = vpop.f32.mrf.mxu0
  %v3029 = vadd.f32 0.0, %v3028
  %3030 = vmatmul.bf16.gmra.mxu0 %v2724
  %v3031 = vpop.f32.mrf.mxu0
  %v3032 = vadd.f32 0.0, %v3031
  %v3033 = vpop.f32.mrf.mxu0
  %v3034 = vadd.f32 0.0, %v3033
  %3035 = vmatmul.bf16.gmra.mxu0 %v2727
  %v3036 = vpop.f32.mrf.mxu0
  %v3037 = vadd.f32 0.0, %v3036
  %v3038 = vpop.f32.mrf.mxu0
  %v3039 = vadd.f32 0.0, %v3038
  %3040 = vdwg.mxu0
  %v3041 = vmul.f32 %v2739, %v2362
  %v3042 = vmul.f32 %v2778, %v2401
  %v3043 = vmul.f32 %v2817, %v2440
  %v3044 = vmul.f32 %v2856, %v2479
  %v3045 = vmul.f32 %v2895, %v2518
  %v3046 = vmul.f32 %v2934, %v2557
  %v3047 = vmul.f32 %v2973, %v2596
  %v3048 = vmul.f32 %v3012, %v2635
  %v3049 = vmul.f32 %v2741, %v2364
  %v3050 = vmul.f32 %v2780, %v2403
  %v3051 = vmul.f32 %v2819, %v2442
  %v3052 = vmul.f32 %v2858, %v2481
  %v3053 = vmul.f32 %v2897, %v2520
  %v3054 = vmul.f32 %v2936, %v2559
  %v3055 = vmul.f32 %v2975, %v2598
  %v3056 = vmul.f32 %v3014, %v2637
  %v3057 = vmul.f32 %v2744, %v2367
  %v3058 = vmul.f32 %v2783, %v2406
  %v3059 = vmul.f32 %v2822, %v2445
  %v3060 = vmul.f32 %v2861, %v2484
  %v3061 = vmul.f32 %v2900, %v2523
  %v3062 = vmul.f32 %v2939, %v2562
  %v3063 = vmul.f32 %v2978, %v2601
  %v3064 = vmul.f32 %v3017, %v2640
  %v3065 = vmul.f32 %v2746, %v2369
  %v3066 = vmul.f32 %v2785, %v2408
  %v3067 = vmul.f32 %v2824, %v2447
  %v3068 = vmul.f32 %v2863, %v2486
  %v3069 = vmul.f32 %v2902, %v2525
  %v3070 = vmul.f32 %v2941, %v2564
  %v3071 = vmul.f32 %v2980, %v2603
  %v3072 = vmul.f32 %v3019, %v2642
  %v3073 = vmul.f32 %v2749, %v2372
  %v3074 = vmul.f32 %v2788, %v2411
  %v3075 = vmul.f32 %v2827, %v2450
  %v3076 = vmul.f32 %v2866, %v2489
  %v3077 = vmul.f32 %v2905, %v2528
  %v3078 = vmul.f32 %v2944, %v2567
  %v3079 = vmul.f32 %v2983, %v2606
  %v3080 = vmul.f32 %v3022, %v2645
  %v3081 = vmul.f32 %v2751, %v2374
  %v3082 = vmul.f32 %v2790, %v2413
  %v3083 = vmul.f32 %v2829, %v2452
  %v3084 = vmul.f32 %v2868, %v2491
  %v3085 = vmul.f32 %v2907, %v2530
  %v3086 = vmul.f32 %v2946, %v2569
  %v3087 = vmul.f32 %v2985, %v2608
  %v3088 = vmul.f32 %v3024, %v2647
  %v3089 = vmul.f32 %v2754, %v2377
  %v3090 = vmul.f32 %v2793, %v2416
  %v3091 = vmul.f32 %v2832, %v2455
  %v3092 = vmul.f32 %v2871, %v2494
  %v3093 = vmul.f32 %v2910, %v2533
  %v3094 = vmul.f32 %v2949, %v2572
  %v3095 = vmul.f32 %v2988, %v2611
  %v3096 = vmul.f32 %v3027, %v2650
  %v3097 = vmul.f32 %v2756, %v2379
  %v3098 = vmul.f32 %v2795, %v2418
  %v3099 = vmul.f32 %v2834, %v2457
  %v3100 = vmul.f32 %v2873, %v2496
  %v3101 = vmul.f32 %v2912, %v2535
  %v3102 = vmul.f32 %v2951, %v2574
  %v3103 = vmul.f32 %v2990, %v2613
  %v3104 = vmul.f32 %v3029, %v2652
  %v3105 = vmul.f32 %v2759, %v2382
  %v3106 = vmul.f32 %v2798, %v2421
  %v3107 = vmul.f32 %v2837, %v2460
  %v3108 = vmul.f32 %v2876, %v2499
  %v3109 = vmul.f32 %v2915, %v2538
  %v3110 = vmul.f32 %v2954, %v2577
  %v3111 = vmul.f32 %v2993, %v2616
  %v3112 = vmul.f32 %v3032, %v2655
  %v3113 = vmul.f32 %v2761, %v2384
  %v3114 = vmul.f32 %v2800, %v2423
  %v3115 = vmul.f32 %v2839, %v2462
  %v3116 = vmul.f32 %v2878, %v2501
  %v3117 = vmul.f32 %v2917, %v2540
  %v3118 = vmul.f32 %v2956, %v2579
  %v3119 = vmul.f32 %v2995, %v2618
  %v3120 = vmul.f32 %v3034, %v2657
  %v3121 = vmul.f32 %v2764, %v2387
  %v3122 = vmul.f32 %v2803, %v2426
  %v3123 = vmul.f32 %v2842, %v2465
  %v3124 = vmul.f32 %v2881, %v2504
  %v3125 = vmul.f32 %v2920, %v2543
  %v3126 = vmul.f32 %v2959, %v2582
  %v3127 = vmul.f32 %v2998, %v2621
  %v3128 = vmul.f32 %v3037, %v2660
  %v3129 = vmul.f32 %v2766, %v2389
  %v3130 = vmul.f32 %v2805, %v2428
  %v3131 = vmul.f32 %v2844, %v2467
  %v3132 = vmul.f32 %v2883, %v2506
  %v3133 = vmul.f32 %v2922, %v2545
  %v3134 = vmul.f32 %v2961, %v2584
  %v3135 = vmul.f32 %v3000, %v2623
  %v3136 = vmul.f32 %v3039, %v2662
  %v3137 = vadd.f32 %v3041, %v3045
  %v3138 = vadd.f32 %v3044, %v3048
  %v3139 = vadd.f32 %v3046, %v3042
  %v3140 = vadd.f32 %v3047, %v3043
  %v3141 = vadd.f32 %v3049, %v3053
  %v3142 = vadd.f32 %v3052, %v3056
  %v3143 = vadd.f32 %v3054, %v3050
  %v3144 = vadd.f32 %v3055, %v3051
  %v3145 = vadd.f32 %v3057, %v3061
  %v3146 = vadd.f32 %v3060, %v3064
  %v3147 = vadd.f32 %v3062, %v3058
  %v3148 = vadd.f32 %v3063, %v3059
  %v3149 = vadd.f32 %v3065, %v3069
  %v3150 = vadd.f32 %v3068, %v3072
  %v3151 = vadd.f32 %v3070, %v3066
  %v3152 = vadd.f32 %v3071, %v3067
  %v3153 = vadd.f32 %v3073, %v3077
  %v3154 = vadd.f32 %v3076, %v3080
  %v3155 = vadd.f32 %v3078, %v3074
  %v3156 = vadd.f32 %v3079, %v3075
  %v3157 = vadd.f32 %v3081, %v3085
  %v3158 = vadd.f32 %v3084, %v3088
  %v3159 = vadd.f32 %v3086, %v3082
  %v3160 = vadd.f32 %v3087, %v3083
  %v3161 = vadd.f32 %v3089, %v3093
  %v3162 = vadd.f32 %v3092, %v3096
  %v3163 = vadd.f32 %v3094, %v3090
  %v3164 = vadd.f32 %v3095, %v3091
  %v3165 = vadd.f32 %v3097, %v3101
  %v3166 = vadd.f32 %v3100, %v3104
  %v3167 = vadd.f32 %v3102, %v3098
  %v3168 = vadd.f32 %v3103, %v3099
  %v3169 = vadd.f32 %v3105, %v3109
  %v3170 = vadd.f32 %v3108, %v3112
  %v3171 = vadd.f32 %v3110, %v3106
  %v3172 = vadd.f32 %v3111, %v3107
  %v3173 = vadd.f32 %v3113, %v3117
  %v3174 = vadd.f32 %v3116, %v3120
  %v3175 = vadd.f32 %v3118, %v3114
  %v3176 = vadd.f32 %v3119, %v3115
  %v3177 = vadd.f32 %v3121, %v3125
  %v3178 = vadd.f32 %v3124, %v3128
  %v3179 = vadd.f32 %v3126, %v3122
  %v3180 = vadd.f32 %v3127, %v3123
  %v3181 = vadd.f32 %v3129, %v3133
  %v3182 = vadd.f32 %v3132, %v3136
  %v3183 = vadd.f32 %v3134, %v3130
  %v3184 = vadd.f32 %v3135, %v3131
  %v3185 = vadd.f32 %v3137, %v3140
  %v3186 = vadd.f32 %v3139, %v3138
  %v3187 = vadd.f32 %v3141, %v3144
  %v3188 = vadd.f32 %v3143, %v3142
  %v3189 = vadd.f32 %v3145, %v3148
  %v3190 = vadd.f32 %v3147, %v3146
  %v3191 = vadd.f32 %v3149, %v3152
  %v3192 = vadd.f32 %v3151, %v3150
  %v3193 = vadd.f32 %v3153, %v3156
  %v3194 = vadd.f32 %v3155, %v3154
  %v3195 = vadd.f32 %v3157, %v3160
  %v3196 = vadd.f32 %v3159, %v3158
  %v3197 = vadd.f32 %v3161, %v3164
  %v3198 = vadd.f32 %v3163, %v3162
  %v3199 = vadd.f32 %v3165, %v3168
  %v3200 = vadd.f32 %v3167, %v3166
  %v3201 = vadd.f32 %v3169, %v3172
  %v3202 = vadd.f32 %v3171, %v3170
  %v3203 = vadd.f32 %v3173, %v3176
  %v3204 = vadd.f32 %v3175, %v3174
  %v3205 = vadd.f32 %v3177, %v3180
  %v3206 = vadd.f32 %v3179, %v3178
  %v3207 = vadd.f32 %v3181, %v3184
  %v3208 = vadd.f32 %v3183, %v3182
  %v3209 = vadd.f32 %v3185, %v3186
  %v3210 = vadd.f32 %v3187, %v3188
  %v3211 = vadd.f32 %v3189, %v3190
  %v3212 = vadd.f32 %v3191, %v3192
  %v3213 = vadd.f32 %v3193, %v3194
  %v3214 = vadd.f32 %v3195, %v3196
  %v3215 = vadd.f32 %v3197, %v3198
  %v3216 = vadd.f32 %v3199, %v3200
  %v3217 = vadd.f32 %v3201, %v3202
  %v3218 = vadd.f32 %v3203, %v3204
  %v3219 = vadd.f32 %v3205, %v3206
  %v3220 = vadd.f32 %v3207, %v3208
  %3221 = vrot.lane.b32.xlu0 %v3209, 64
  %v3222 = vpop.permute.xlu0 %3221
  %3223 = vrot.lane.b32.xlu0 %v3210, 64
  %v3224 = vpop.permute.xlu0 %3223
  %3225 = vrot.lane.b32.xlu0 %v3211, 64
  %v3226 = vpop.permute.xlu0 %3225
  %3227 = vrot.lane.b32.xlu0 %v3212, 64
  %v3228 = vpop.permute.xlu0 %3227
  %3229 = vrot.lane.b32.xlu0 %v3213, 64
  %v3230 = vpop.permute.xlu0 %3229
  %3231 = vrot.lane.b32.xlu0 %v3214, 64
  %v3232 = vpop.permute.xlu0 %3231
  %3233 = vrot.lane.b32.xlu0 %v3215, 64
  %v3234 = vpop.permute.xlu0 %3233
  %3235 = vrot.lane.b32.xlu0 %v3216, 64
  %v3236 = vpop.permute.xlu0 %3235
  %3237 = vrot.lane.b32.xlu0 %v3217, 64
  %v3238 = vpop.permute.xlu0 %3237
  %3239 = vrot.lane.b32.xlu0 %v3218, 64
  %v3240 = vpop.permute.xlu0 %3239
  %3241 = vrot.lane.b32.xlu0 %v3219, 64
  %v3242 = vpop.permute.xlu0 %3241
  %3243 = vrot.lane.b32.xlu0 %v3220, 64
  %v3244 = vpop.permute.xlu0 %3243
  %v3245 = vadd.f32 %v3209, %v3222
  %v3246 = vadd.f32 %v3210, %v3224
  %v3247 = vadd.f32 %v3211, %v3226
  %v3248 = vadd.f32 %v3212, %v3228
  %v3249 = vadd.f32 %v3213, %v3230
  %v3250 = vadd.f32 %v3214, %v3232
  %v3251 = vadd.f32 %v3215, %v3234
  %v3252 = vadd.f32 %v3216, %v3236
  %v3253 = vadd.f32 %v3217, %v3238
  %v3254 = vadd.f32 %v3218, %v3240
  %v3255 = vadd.f32 %v3219, %v3242
  %v3256 = vadd.f32 %v3220, %v3244
  %3257 = vrot.lane.b32.xlu0 %v3245, 32
  %v3258 = vpop.permute.xlu0 %3257
  %3259 = vrot.lane.b32.xlu0 %v3246, 32
  %v3260 = vpop.permute.xlu0 %3259
  %3261 = vrot.lane.b32.xlu0 %v3247, 32
  %v3262 = vpop.permute.xlu0 %3261
  %3263 = vrot.lane.b32.xlu0 %v3248, 32
  %v3264 = vpop.permute.xlu0 %3263
  %3265 = vrot.lane.b32.xlu0 %v3249, 32
  %v3266 = vpop.permute.xlu0 %3265
  %3267 = vrot.lane.b32.xlu0 %v3250, 32
  %v3268 = vpop.permute.xlu0 %3267
  %3269 = vrot.lane.b32.xlu0 %v3251, 32
  %v3270 = vpop.permute.xlu0 %3269
  %3271 = vrot.lane.b32.xlu0 %v3252, 32
  %v3272 = vpop.permute.xlu0 %3271
  %3273 = vrot.lane.b32.xlu0 %v3253, 32
  %v3274 = vpop.permute.xlu0 %3273
  %3275 = vrot.lane.b32.xlu0 %v3254, 32
  %v3276 = vpop.permute.xlu0 %3275
  %3277 = vrot.lane.b32.xlu0 %v3255, 32
  %v3278 = vpop.permute.xlu0 %3277
  %3279 = vrot.lane.b32.xlu0 %v3256, 32
  %v3280 = vpop.permute.xlu0 %3279
  %v3281 = vadd.f32 %v3245, %v3258
  %v3282 = vadd.f32 %v3246, %v3260
  %v3283 = vadd.f32 %v3247, %v3262
  %v3284 = vadd.f32 %v3248, %v3264
  %v3285 = vadd.f32 %v3249, %v3266
  %v3286 = vadd.f32 %v3250, %v3268
  %v3287 = vadd.f32 %v3251, %v3270
  %v3288 = vadd.f32 %v3252, %v3272
  %v3289 = vadd.f32 %v3253, %v3274
  %v3290 = vadd.f32 %v3254, %v3276
  %v3291 = vadd.f32 %v3255, %v3278
  %v3292 = vadd.f32 %v3256, %v3280
  %v3293 = vpack.c.bf16 %v3282, %v3281
  %v3294 = vpack.c.bf16 %v3284, %v3283
  %v3295 = vpack.c.bf16 %v3286, %v3285
  %v3296 = vpack.c.bf16 %v3288, %v3287
  %v3297 = vpack.c.bf16 %v3290, %v3289
  %v3298 = vpack.c.bf16 %v3292, %v3291
  %3299 = vmatpush.bf16.msra.mxu0 0
  %3300 = vmatpush.bf16.msra.mxu0 0
  %3301 = vmatpush.bf16.msra.mxu0 %v3298
  %3302 = vmatpush.bf16.msra.mxu0 %v3297
  %3303 = vmatpush.bf16.msra.mxu0 %v3296
  %3304 = vmatpush.bf16.msra.mxu0 %v3295
  %3305 = vmatpush.bf16.msra.mxu0 %v3294
  %3306 = vmatpush.bf16.msra.mxu0 %v3293
  %3307 = vmatmul.bf16.gmra.mxu0 %v1697
  %v3308 = vpop.f32.mrf.mxu0
  %v3309 = vadd.f32 0.0, %v3308
  %v3310 = vpop.f32.mrf.mxu0
  %v3311 = vadd.f32 0.0, %v3310
  %3312 = vmatmul.bf16.gmra.mxu0 %v1700
  %v3313 = vpop.f32.mrf.mxu0
  %v3314 = vadd.f32 0.0, %v3313
  %v3315 = vpop.f32.mrf.mxu0
  %v3316 = vadd.f32 0.0, %v3315
  %3317 = vdwg.mxu0
  %v3318 = vmul.f32 %v3309, %v1724
  %v3319 = vmul.f32 %v3311, %v1729
  %v3320 = vmul.f32 %v3314, %v1734
  %v3321 = vmul.f32 %v3316, %v1739
  %s3322 = scalar_lea.vmem %s18, 16
  %v3323 = vld [vmem:[%s3322] sm:$0xf]
  %v3324 = vld [vmem:[%s3322 + $0x4] sm:$0xf]
  %v3325 = vld [vmem:[%s3322 + $0x8] sm:$0xf]
  %v3326 = vld [vmem:[%s3322 + $0xc] sm:$0xf]
  %v3331 = vunpack.c.l.b16 %v3323
  %v3332 = vunpack.c.l.b16 %v3324
  %v3333 = vunpack.c.l.b16 %v3325
  %v3334 = vunpack.c.l.b16 %v3326
  %v3335 = vpack.c.b16 %v3332, %v3331
  %v3336 = vpack.c.b16 %v3334, %v3333
  %v3340 = vsel %vm303, %v2664, 0
  %v3343 = vsel %vm303, %v2665, 0
  %3345 = vmatpush.bf16.msra.mxu0 0
  %3346 = vmatpush.bf16.msra.mxu0 0
  %3347 = vmatpush.bf16.msra.mxu0 0
  %3348 = vmatpush.bf16.msra.mxu0 0
  %3349 = vmatpush.bf16.msra.mxu0 0
  %3350 = vmatpush.bf16.msra.mxu0 0
  %3351 = vmatpush.bf16.msra.mxu0 %v3336
  %3352 = vmatpush.bf16.msra.mxu0 %v3335
  %3353 = vmatmul.bf16.gmra.mxu0 %v3340
  %v3354 = vpop.f32.mrf.mxu0
  %v3355 = vadd.f32 0.0, %v3354
  %v3356 = vpop.f32.mrf.mxu0
  %v3357 = vadd.f32 0.0, %v3356
  %3358 = vmatmul.bf16.gmra.mxu0 %v3343
  %v3359 = vpop.f32.mrf.mxu0
  %v3360 = vadd.f32 0.0, %v3359
  %v3361 = vpop.f32.mrf.mxu0
  %v3362 = vadd.f32 0.0, %v3361
  %3363 = vdwg.mxu0
  %v3364 = vadd.f32 %v3318, %v3355
  %v3365 = vadd.f32 %v3319, %v3357
  %v3366 = vadd.f32 %v3320, %v3360
  %v3367 = vadd.f32 %v3321, %v3362
  %s3368 = scalar_lea.vmem %s19, 1
  %v3369 = vld [vmem:[%s3368] sm:$0x1]
  %v3371 = vperm.slane %v3369, 0
  %v3373 = vadd.f32 %v3364, %v3371
  %v3374 = vadd.f32 %v3365, %v3371
  %v3375 = vadd.f32 %v3366, %v3371
  %v3376 = vadd.f32 %v3367, %v3371
  %v3377 = vmul.f32 %v3373, 0.5
  %v3378 = vmul.f32 %v3374, 0.5
  %v3379 = vmul.f32 %v3375, 0.5
  %v3380 = vmul.f32 %v3376, 0.5
  %v3381 = vmul.f32 %v3373, 0.70710677
  %v3382 = vmul.f32 %v3374, 0.70710677
  %v3383 = vmul.f32 %v3375, 0.70710677
  %v3384 = vmul.f32 %v3376, 0.70710677
  %v3385 = vand.u32 2147483647, %v3381
  %v3386 = vand.u32 2147483647, %v3382
  %v3387 = vand.u32 2147483647, %v3383
  %v3388 = vand.u32 2147483647, %v3384
  %v3389 = vmul.f32 %v3385, 0.3275911
  %v3390 = vmul.f32 %v3386, 0.3275911
  %v3391 = vmul.f32 %v3387, 0.3275911
  %v3392 = vmul.f32 %v3388, 0.3275911
  %v3393 = vadd.f32 %v3389, 1.0
  %v3394 = vadd.f32 %v3390, 1.0
  %v3395 = vadd.f32 %v3391, 1.0
  %v3396 = vadd.f32 %v3392, 1.0
  %v3397 = vrcp.pop %v3393
  %v3398 = vmul.f32 %v3393, %v3397
  %v3399 = vsub.f32 1.0, %v3398
  %v3400 = vmul.f32 %v3397, %v3399
  %v3401 = vadd.f32 %v3397, %v3400
  %vm3402 = vweird.f32 %v3393
  %vm3403 = vweird.f32 %v3397
  %vm3404 = vmor %vm3402, %vm3403
  %v3405 = vsel %vm3404, %v3397, %v3401
  %v3406 = vand.u32 2147483647, %v3393
  %vm3407 = vcmp.eq.f32.partialorder %v3406, 8.507059e+37
  %v3408 = vand.u32 %v3393, 2147483648
  %v3409 = vor.u32 1.1754944e-38, %v3408
  %v3410 = vsel %vm3407, %v3409, %v3405
  %v3411 = vmul.f32 1.0, %v3410
  %v3412 = vrcp.pop %v3394
  %v3413 = vmul.f32 %v3394, %v3412
  %v3414 = vsub.f32 1.0, %v3413
  %v3415 = vmul.f32 %v3412, %v3414
  %v3416 = vadd.f32 %v3412, %v3415
  %vm3417 = vweird.f32 %v3394
  %vm3418 = vweird.f32 %v3412
  %vm3419 = vmor %vm3417, %vm3418
  %v3420 = vsel %vm3419, %v3412, %v3416
  %v3421 = vand.u32 2147483647, %v3394
  %vm3422 = vcmp.eq.f32.partialorder %v3421, 8.507059e+37
  %v3423 = vand.u32 %v3394, 2147483648
  %v3424 = vor.u32 1.1754944e-38, %v3423
  %v3425 = vsel %vm3422, %v3424, %v3420
  %v3426 = vmul.f32 1.0, %v3425
  %v3427 = vrcp.pop %v3395
  %v3428 = vmul.f32 %v3395, %v3427
  %v3429 = vsub.f32 1.0, %v3428
  %v3430 = vmul.f32 %v3427, %v3429
  %v3431 = vadd.f32 %v3427, %v3430
  %vm3432 = vweird.f32 %v3395
  %vm3433 = vweird.f32 %v3427
  %vm3434 = vmor %vm3432, %vm3433
  %v3435 = vsel %vm3434, %v3427, %v3431
  %v3436 = vand.u32 2147483647, %v3395
  %vm3437 = vcmp.eq.f32.partialorder %v3436, 8.507059e+37
  %v3438 = vand.u32 %v3395, 2147483648
  %v3439 = vor.u32 1.1754944e-38, %v3438
  %v3440 = vsel %vm3437, %v3439, %v3435
  %v3441 = vmul.f32 1.0, %v3440
  %v3442 = vrcp.pop %v3396
  %v3443 = vmul.f32 %v3396, %v3442
  %v3444 = vsub.f32 1.0, %v3443
  %v3445 = vmul.f32 %v3442, %v3444
  %v3446 = vadd.f32 %v3442, %v3445
  %vm3447 = vweird.f32 %v3396
  %vm3448 = vweird.f32 %v3442
  %vm3449 = vmor %vm3447, %vm3448
  %v3450 = vsel %vm3449, %v3442, %v3446
  %v3451 = vand.u32 2147483647, %v3396
  %vm3452 = vcmp.eq.f32.partialorder %v3451, 8.507059e+37
  %v3453 = vand.u32 %v3396, 2147483648
  %v3454 = vor.u32 1.1754944e-38, %v3453
  %v3455 = vsel %vm3452, %v3454, %v3450
  %v3456 = vmul.f32 1.0, %v3455
  %v3457 = vmul.f32 %v3411, 1.0614054
  %v3458 = vmul.f32 %v3426, 1.0614054
  %v3459 = vmul.f32 %v3441, 1.0614054
  %v3460 = vmul.f32 %v3456, 1.0614054
  %v3461 = vadd.f32 %v3457, -1.4531521
  %v3462 = vadd.f32 %v3458, -1.4531521
  %v3463 = vadd.f32 %v3459, -1.4531521
  %v3464 = vadd.f32 %v3460, -1.4531521
  %v3465 = vmul.f32 %v3461, %v3411
  %v3466 = vmul.f32 %v3462, %v3426
  %v3467 = vmul.f32 %v3463, %v3441
  %v3468 = vmul.f32 %v3464, %v3456
  %v3469 = vadd.f32 %v3465, 1.4214138
  %v3470 = vadd.f32 %v3466, 1.4214138
  %v3471 = vadd.f32 %v3467, 1.4214138
  %v3472 = vadd.f32 %v3468, 1.4214138
  %v3473 = vmul.f32 %v3469, %v3411
  %v3474 = vmul.f32 %v3470, %v3426
  %v3475 = vmul.f32 %v3471, %v3441
  %v3476 = vmul.f32 %v3472, %v3456
  %v3477 = vadd.f32 %v3473, -0.28449672
  %v3478 = vadd.f32 %v3474, -0.28449672
  %v3479 = vadd.f32 %v3475, -0.28449672
  %v3480 = vadd.f32 %v3476, -0.28449672
  %v3481 = vmul.f32 %v3477, %v3411
  %v3482 = vmul.f32 %v3478, %v3426
  %v3483 = vmul.f32 %v3479, %v3441
  %v3484 = vmul.f32 %v3480, %v3456
  %v3485 = vadd.f32 %v3481, 0.2548296
  %v3486 = vadd.f32 %v3482, 0.2548296
  %v3487 = vadd.f32 %v3483, 0.2548296
  %v3488 = vadd.f32 %v3484, 0.2548296
  %v3489 = vmul.f32 %v3485, %v3411
  %v3490 = vmul.f32 %v3486, %v3426
  %v3491 = vmul.f32 %v3487, %v3441
  %v3492 = vmul.f32 %v3488, %v3456
  %v3493 = vsub.f32 0.0, %v3385
  %v3494 = vsub.f32 0.0, %v3386
  %v3495 = vsub.f32 0.0, %v3387
  %v3496 = vsub.f32 0.0, %v3388
  %v3497 = vmul.f32 %v3493, %v3385
  %v3498 = vmul.f32 %v3494, %v3386
  %v3499 = vmul.f32 %v3495, %v3387
  %v3500 = vmul.f32 %v3496, %v3388
  %v3501 = vmul.f32 %v3497, 1.442695
  %v3502 = vpow.pop %v3501
  %v3503 = vmul.f32 %v3498, 1.442695
  %v3504 = vpow.pop %v3503
  %v3505 = vmul.f32 %v3499, 1.442695
  %v3506 = vpow.pop %v3505
  %v3507 = vmul.f32 %v3500, 1.442695
  %v3508 = vpow.pop %v3507
  %v3509 = vmul.f32 %v3489, %v3502
  %v3510 = vmul.f32 %v3490, %v3504
  %v3511 = vmul.f32 %v3491, %v3506
  %v3512 = vmul.f32 %v3492, %v3508
  %v3513 = vsub.f32 1.0, %v3509
  %v3514 = vsub.f32 1.0, %v3510
  %v3515 = vsub.f32 1.0, %v3511
  %v3516 = vsub.f32 1.0, %v3512
  %vm3517 = vcmp.ge.f32.partialorder %v3381, 0.0
  %vm3518 = vcmp.ge.f32.partialorder %v3382, 0.0
  %vm3519 = vcmp.ge.f32.partialorder %v3383, 0.0
  %vm3520 = vcmp.ge.f32.partialorder %v3384, 0.0
  %v3521 = vsub.f32 0.0, %v3513
  %v3522 = vsub.f32 0.0, %v3514
  %v3523 = vsub.f32 0.0, %v3515
  %v3524 = vsub.f32 0.0, %v3516
  %v3525 = vsel %vm3517, %v3513, %v3521
  %v3526 = vsel %vm3518, %v3514, %v3522
  %v3527 = vsel %vm3519, %v3515, %v3523
  %v3528 = vsel %vm3520, %v3516, %v3524
  %v3529 = vadd.f32 %v3525, 1.0
  %v3530 = vadd.f32 %v3526, 1.0
  %v3531 = vadd.f32 %v3527, 1.0
  %v3532 = vadd.f32 %v3528, 1.0
  %v3533 = vmul.f32 %v3377, %v3529
  %v3534 = vmul.f32 %v3378, %v3530
  %v3535 = vmul.f32 %v3379, %v3531
  %v3536 = vmul.f32 %v3380, %v3532
  %s3537 = scalar_lea.vmem %s12, 8
  %v3538 = vld [vmem:[%s3537] sm:$0x7]
  %s3539 = scalar_lea.vmem %s13, 2
  %v3540 = vld [vmem:[%s3539] sm:$0x1]
  %v3542 = vperm.slane %v3540, 0
  %v3545 = vsel %vm222, %v3538, 0
  %3547 = vmatpush.bf16.msra.mxu0 0
  %3548 = vmatpush.bf16.msra.mxu0 0
  %3549 = vmatpush.bf16.msra.mxu0 0
  %3550 = vmatpush.bf16.msra.mxu0 0
  %3551 = vmatpush.bf16.msra.mxu0 0
  %3552 = vmatpush.bf16.msra.mxu0 0
  %3553 = vmatpush.bf16.msra.mxu0 0
  %3554 = vmatpush.bf16.msra.mxu0 %v3545
  %3555 = vmatmul.bf16.gmra.mxu0 %v205
  %v3556 = vpop.f32.mrf.mxu0
  %v3557 = vadd.f32 %v3542, %v3556
  %v3558 = vpop.f32.mrf.mxu0
  %v3559 = vadd.f32 %v3542, %v3558
  %3560 = vmatmul.bf16.gmra.mxu0 %v208
  %v3561 = vpop.f32.mrf.mxu0
  %v3562 = vadd.f32 %v3542, %v3561
  %v3563 = vpop.f32.mrf.mxu0
  %v3564 = vadd.f32 %v3542, %v3563
  %3565 = vmatmul.bf16.gmra.mxu0 %v211
  %v3566 = vpop.f32.mrf.mxu0
  %v3567 = vadd.f32 %v3542, %v3566
  %v3568 = vpop.f32.mrf.mxu0
  %v3569 = vadd.f32 %v3542, %v3568
  %3570 = vmatmul.bf16.gmra.mxu0 %v214
  %v3571 = vpop.f32.mrf.mxu0
  %v3572 = vadd.f32 %v3542, %v3571
  %v3573 = vpop.f32.mrf.mxu0
  %v3574 = vadd.f32 %v3542, %v3573
  %3575 = vmatmul.bf16.gmra.mxu0 %v217
  %v3576 = vpop.f32.mrf.mxu0
  %v3577 = vadd.f32 %v3542, %v3576
  %v3578 = vpop.f32.mrf.mxu0
  %v3579 = vadd.f32 %v3542, %v3578
  %3580 = vmatmul.bf16.gmra.mxu0 %v220
  %v3581 = vpop.f32.mrf.mxu0
  %v3582 = vadd.f32 %v3542, %v3581
  %v3583 = vpop.f32.mrf.mxu0
  %v3584 = vadd.f32 %v3542, %v3583
  %3585 = vdwg.mxu0
  %v3586 = vmax.f32 %v3557, 0.0
  %v3587 = vmax.f32 %v3559, 0.0
  %v3588 = vmax.f32 %v3562, 0.0
  %v3589 = vmax.f32 %v3564, 0.0
  %v3590 = vmax.f32 %v3567, 0.0
  %v3591 = vmax.f32 %v3569, 0.0
  %v3592 = vmax.f32 %v3572, 0.0
  %v3593 = vmax.f32 %v3574, 0.0
  %v3594 = vmax.f32 %v3577, 0.0
  %v3595 = vmax.f32 %v3579, 0.0
  %v3596 = vmax.f32 %v3582, 0.0
  %v3597 = vmax.f32 %v3584, 0.0
  %v3598 = vpack.c.bf16 %v3587, %v3586
  %v3599 = vpack.c.bf16 %v3589, %v3588
  %v3600 = vpack.c.bf16 %v3591, %v3590
  %v3601 = vpack.c.bf16 %v3593, %v3592
  %v3602 = vpack.c.bf16 %v3595, %v3594
  %v3603 = vpack.c.bf16 %v3597, %v3596
  %s3604 = scalar_lea.vmem %s14, 32
  %v3605 = vld [vmem:[%s3604] sm:$0xf]
  %v3606 = vld [vmem:[%s3604 + $0x4] sm:$0xf]
  %v3607 = vld [vmem:[%s3604 + $0x8] sm:$0xf]
  %v3608 = vld [vmem:[%s3604 + $0xc] sm:$0xf]
  %s3609 = scalar_lea.vmem %s15, 2
  %v3610 = vld [vmem:[%s3609] sm:$0x1]
  %v3612 = vperm.slane %v3610, 0
  %v3618 = vunpack.c.l.b16 %v3605
  %v3619 = vunpack.c.l.b16 %v3606
  %v3620 = vunpack.c.l.b16 %v3607
  %v3621 = vunpack.c.l.b16 %v3608
  %v3622 = vpack.c.b16 %v3619, %v3618
  %v3623 = vpack.c.b16 %v3621, %v3620
  %v3627 = vsel %vm303, %v3598, 0
  %v3630 = vsel %vm303, %v3599, 0
  %v3633 = vsel %vm303, %v3600, 0
  %v3636 = vsel %vm303, %v3601, 0
  %v3639 = vsel %vm303, %v3602, 0
  %v3642 = vsel %vm303, %v3603, 0
  %3644 = vmatpush.bf16.msra.mxu0 0
  %3645 = vmatpush.bf16.msra.mxu0 0
  %3646 = vmatpush.bf16.msra.mxu0 0
  %3647 = vmatpush.bf16.msra.mxu0 0
  %3648 = vmatpush.bf16.msra.mxu0 0
  %3649 = vmatpush.bf16.msra.mxu0 0
  %3650 = vmatpush.bf16.msra.mxu0 %v3623
  %3651 = vmatpush.bf16.msra.mxu0 %v3622
  %3652 = vmatmul.bf16.gmra.mxu0 %v3627
  %v3653 = vpop.f32.mrf.mxu0
  %v3654 = vadd.f32 %v3612, %v3653
  %v3655 = vpop.f32.mrf.mxu0
  %v3656 = vadd.f32 %v3612, %v3655
  %3657 = vmatmul.bf16.gmra.mxu0 %v3630
  %v3658 = vpop.f32.mrf.mxu0
  %v3659 = vadd.f32 %v3612, %v3658
  %v3660 = vpop.f32.mrf.mxu0
  %v3661 = vadd.f32 %v3612, %v3660
  %3662 = vmatmul.bf16.gmra.mxu0 %v3633
  %v3663 = vpop.f32.mrf.mxu0
  %v3664 = vadd.f32 %v3612, %v3663
  %v3665 = vpop.f32.mrf.mxu0
  %v3666 = vadd.f32 %v3612, %v3665
  %3667 = vmatmul.bf16.gmra.mxu0 %v3636
  %v3668 = vpop.f32.mrf.mxu0
  %v3669 = vadd.f32 %v3612, %v3668
  %v3670 = vpop.f32.mrf.mxu0
  %v3671 = vadd.f32 %v3612, %v3670
  %3672 = vmatmul.bf16.gmra.mxu0 %v3639
  %v3673 = vpop.f32.mrf.mxu0
  %v3674 = vadd.f32 %v3612, %v3673
  %v3675 = vpop.f32.mrf.mxu0
  %v3676 = vadd.f32 %v3612, %v3675
  %3677 = vmatmul.bf16.gmra.mxu0 %v3642
  %v3678 = vpop.f32.mrf.mxu0
  %v3679 = vadd.f32 %v3612, %v3678
  %v3680 = vpop.f32.mrf.mxu0
  %v3681 = vadd.f32 %v3612, %v3680
  %3682 = vdwg.mxu0
  %v3683 = vmax.f32 %v3654, 0.0
  %v3684 = vmax.f32 %v3656, 0.0
  %v3685 = vmax.f32 %v3659, 0.0
  %v3686 = vmax.f32 %v3661, 0.0
  %v3687 = vmax.f32 %v3664, 0.0
  %v3688 = vmax.f32 %v3666, 0.0
  %v3689 = vmax.f32 %v3669, 0.0
  %v3690 = vmax.f32 %v3671, 0.0
  %v3691 = vmax.f32 %v3674, 0.0
  %v3692 = vmax.f32 %v3676, 0.0
  %v3693 = vmax.f32 %v3679, 0.0
  %v3694 = vmax.f32 %v3681, 0.0
  %v3695 = vpack.c.bf16 %v3684, %v3683
  %v3696 = vpack.c.bf16 %v3686, %v3685
  %v3697 = vpack.c.bf16 %v3688, %v3687
  %v3698 = vpack.c.bf16 %v3690, %v3689
  %v3699 = vpack.c.bf16 %v3692, %v3691
  %v3700 = vpack.c.bf16 %v3694, %v3693
  %s3701 = scalar_lea.vmem %s16, 512
  %v3702 = vld [vmem:[%s3701] sm:$0xff]
  %v3703 = vld [vmem:[%s3701 + $0x8] sm:$0xff]
  %v3704 = vld [vmem:[%s3701 + $0x10] sm:$0xff]
  %v3705 = vld [vmem:[%s3701 + $0x18] sm:$0xff]
  %v3706 = vld [vmem:[%s3701 + $0x20] sm:$0xff]
  %v3707 = vld [vmem:[%s3701 + $0x28] sm:$0xff]
  %v3708 = vld [vmem:[%s3701 + $0x30] sm:$0xff]
  %v3709 = vld [vmem:[%s3701 + $0x38] sm:$0xff]
  %v3710 = vld [vmem:[%s3701 + $0x40] sm:$0xff]
  %v3711 = vld [vmem:[%s3701 + $0x48] sm:$0xff]
  %v3712 = vld [vmem:[%s3701 + $0x50] sm:$0xff]
  %v3713 = vld [vmem:[%s3701 + $0x58] sm:$0xff]
  %v3714 = vld [vmem:[%s3701 + $0x60] sm:$0xff]
  %v3715 = vld [vmem:[%s3701 + $0x68] sm:$0xff]
  %v3716 = vld [vmem:[%s3701 + $0x70] sm:$0xff]
  %v3717 = vld [vmem:[%s3701 + $0x78] sm:$0xff]
  %v3718 = vld [vmem:[%s3701 + $0x80] sm:$0xff]
  %v3719 = vld [vmem:[%s3701 + $0x88] sm:$0xff]
  %v3720 = vld [vmem:[%s3701 + $0x90] sm:$0xff]
  %v3721 = vld [vmem:[%s3701 + $0x98] sm:$0xff]
  %v3722 = vld [vmem:[%s3701 + $0xa0] sm:$0xff]
  %v3723 = vld [vmem:[%s3701 + $0xa8] sm:$0xff]
  %v3724 = vld [vmem:[%s3701 + $0xb0] sm:$0xff]
  %v3725 = vld [vmem:[%s3701 + $0xb8] sm:$0xff]
  %v3726 = vld [vmem:[%s3701 + $0xc0] sm:$0xff]
  %v3727 = vld [vmem:[%s3701 + $0xc8] sm:$0xff]
  %v3728 = vld [vmem:[%s3701 + $0xd0] sm:$0xff]
  %v3729 = vld [vmem:[%s3701 + $0xd8] sm:$0xff]
  %v3730 = vld [vmem:[%s3701 + $0xe0] sm:$0xff]
  %v3731 = vld [vmem:[%s3701 + $0xe8] sm:$0xff]
  %v3732 = vld [vmem:[%s3701 + $0xf0] sm:$0xff]
  %v3733 = vld [vmem:[%s3701 + $0xf8] sm:$0xff]
  %s3734 = scalar_lea.vmem %s17, 16
  %v3735 = vld [vmem:[%s3734] sm:$0xff]
  %v3737 = vperm.slane %v3735, 0
  %v3738 = vperm.slane %v3735, 1
  %v3739 = vperm.slane %v3735, 2
  %v3740 = vperm.slane %v3735, 3
  %v3741 = vperm.slane %v3735, 4
  %v3742 = vperm.slane %v3735, 5
  %v3743 = vperm.slane %v3735, 6
  %v3744 = vperm.slane %v3735, 7
  %v3785 = vunpack.c.l.b16 %v3702
  %v3786 = vunpack.c.h.b16 %v3702
  %v3787 = vunpack.c.l.b16 %v3703
  %v3788 = vunpack.c.h.b16 %v3703
  %v3789 = vunpack.c.l.b16 %v3704
  %v3790 = vunpack.c.h.b16 %v3704
  %v3791 = vunpack.c.l.b16 %v3705
  %v3792 = vunpack.c.h.b16 %v3705
  %v3793 = vunpack.c.l.b16 %v3706
  %v3794 = vunpack.c.h.b16 %v3706
  %v3795 = vunpack.c.l.b16 %v3707
  %v3796 = vunpack.c.h.b16 %v3707
  %v3797 = vunpack.c.l.b16 %v3708
  %v3798 = vunpack.c.h.b16 %v3708
  %v3799 = vunpack.c.l.b16 %v3709
  %v3800 = vunpack.c.h.b16 %v3709
  %v3801 = vunpack.c.l.b16 %v3710
  %v3802 = vunpack.c.h.b16 %v3710
  %v3803 = vunpack.c.l.b16 %v3711
  %v3804 = vunpack.c.h.b16 %v3711
  %v3805 = vunpack.c.l.b16 %v3712
  %v3806 = vunpack.c.h.b16 %v3712
  %v3807 = vunpack.c.l.b16 %v3713
  %v3808 = vunpack.c.h.b16 %v3713
  %v3809 = vunpack.c.l.b16 %v3714
  %v3810 = vunpack.c.h.b16 %v3714
  %v3811 = vunpack.c.l.b16 %v3715
  %v3812 = vunpack.c.h.b16 %v3715
  %v3813 = vunpack.c.l.b16 %v3716
  %v3814 = vunpack.c.h.b16 %v3716
  %v3815 = vunpack.c.l.b16 %v3717
  %v3816 = vunpack.c.h.b16 %v3717
  %v3817 = vunpack.c.l.b16 %v3718
  %v3818 = vunpack.c.h.b16 %v3718
  %v3819 = vunpack.c.l.b16 %v3719
  %v3820 = vunpack.c.h.b16 %v3719
  %v3821 = vunpack.c.l.b16 %v3720
  %v3822 = vunpack.c.h.b16 %v3720
  %v3823 = vunpack.c.l.b16 %v3721
  %v3824 = vunpack.c.h.b16 %v3721
  %v3825 = vunpack.c.l.b16 %v3722
  %v3826 = vunpack.c.h.b16 %v3722
  %v3827 = vunpack.c.l.b16 %v3723
  %v3828 = vunpack.c.h.b16 %v3723
  %v3829 = vunpack.c.l.b16 %v3724
  %v3830 = vunpack.c.h.b16 %v3724
  %v3831 = vunpack.c.l.b16 %v3725
  %v3832 = vunpack.c.h.b16 %v3725
  %v3833 = vunpack.c.l.b16 %v3726
  %v3834 = vunpack.c.h.b16 %v3726
  %v3835 = vunpack.c.l.b16 %v3727
  %v3836 = vunpack.c.h.b16 %v3727
  %v3837 = vunpack.c.l.b16 %v3728
  %v3838 = vunpack.c.h.b16 %v3728
  %v3839 = vunpack.c.l.b16 %v3729
  %v3840 = vunpack.c.h.b16 %v3729
  %v3841 = vunpack.c.l.b16 %v3730
  %v3842 = vunpack.c.h.b16 %v3730
  %v3843 = vunpack.c.l.b16 %v3731
  %v3844 = vunpack.c.h.b16 %v3731
  %v3845 = vunpack.c.l.b16 %v3732
  %v3846 = vunpack.c.h.b16 %v3732
  %v3847 = vunpack.c.l.b16 %v3733
  %v3848 = vunpack.c.h.b16 %v3733
  %v3849 = vpack.c.b16 %v3793, %v3785
  %v3850 = vpack.c.b16 %v3794, %v3786
  %v3851 = vpack.c.b16 %v3795, %v3787
  %v3852 = vpack.c.b16 %v3796, %v3788
  %v3853 = vpack.c.b16 %v3797, %v3789
  %v3854 = vpack.c.b16 %v3798, %v3790
  %v3855 = vpack.c.b16 %v3799, %v3791
  %v3856 = vpack.c.b16 %v3800, %v3792
  %v3857 = vpack.c.b16 %v3809, %v3801
  %v3858 = vpack.c.b16 %v3810, %v3802
  %v3859 = vpack.c.b16 %v3811, %v3803
  %v3860 = vpack.c.b16 %v3812, %v3804
  %v3861 = vpack.c.b16 %v3813, %v3805
  %v3862 = vpack.c.b16 %v3814, %v3806
  %v3863 = vpack.c.b16 %v3815, %v3807
  %v3864 = vpack.c.b16 %v3816, %v3808
  %v3865 = vpack.c.b16 %v3825, %v3817
  %v3866 = vpack.c.b16 %v3826, %v3818
  %v3867 = vpack.c.b16 %v3827, %v3819
  %v3868 = vpack.c.b16 %v3828, %v3820
  %v3869 = vpack.c.b16 %v3829, %v3821
  %v3870 = vpack.c.b16 %v3830, %v3822
  %v3871 = vpack.c.b16 %v3831, %v3823
  %v3872 = vpack.c.b16 %v3832, %v3824
  %v3873 = vpack.c.b16 %v3841, %v3833
  %v3874 = vpack.c.b16 %v3842, %v3834
  %v3875 = vpack.c.b16 %v3843, %v3835
  %v3876 = vpack.c.b16 %v3844, %v3836
  %v3877 = vpack.c.b16 %v3845, %v3837
  %v3878 = vpack.c.b16 %v3846, %v3838
  %v3879 = vpack.c.b16 %v3847, %v3839
  %v3880 = vpack.c.b16 %v3848, %v3840
  %v3914 = vsel %vm589, %v3695, 0
  %v3917 = vsel %vm589, %v3696, 0
  %v3920 = vsel %vm589, %v3697, 0
  %v3923 = vsel %vm589, %v3698, 0
  %v3926 = vsel %vm589, %v3699, 0
  %v3929 = vsel %vm589, %v3700, 0
  %3931 = vmatpush.bf16.msra.mxu0 0
  %3932 = vmatpush.bf16.msra.mxu0 0
  %3933 = vmatpush.bf16.msra.mxu0 0
  %3934 = vmatpush.bf16.msra.mxu0 0
  %3935 = vmatpush.bf16.msra.mxu0 %v3873
  %3936 = vmatpush.bf16.msra.mxu0 %v3865
  %3937 = vmatpush.bf16.msra.mxu0 %v3857
  %3938 = vmatpush.bf16.msra.mxu0 %v3849
  %3939 = vmatmul.bf16.gmra.mxu0 %v3914
  %v3940 = vpop.f32.mrf.mxu0
  %v3941 = vadd.f32 %v3737, %v3940
  %v3942 = vpop.f32.mrf.mxu0
  %v3943 = vadd.f32 %v3737, %v3942
  %3944 = vmatmul.bf16.gmra.mxu0 %v3917
  %v3945 = vpop.f32.mrf.mxu0
  %v3946 = vadd.f32 %v3737, %v3945
  %v3947 = vpop.f32.mrf.mxu0
  %v3948 = vadd.f32 %v3737, %v3947
  %3949 = vmatmul.bf16.gmra.mxu0 %v3920
  %v3950 = vpop.f32.mrf.mxu0
  %v3951 = vadd.f32 %v3737, %v3950
  %v3952 = vpop.f32.mrf.mxu0
  %v3953 = vadd.f32 %v3737, %v3952
  %3954 = vmatmul.bf16.gmra.mxu0 %v3923
  %v3955 = vpop.f32.mrf.mxu0
  %v3956 = vadd.f32 %v3737, %v3955
  %v3957 = vpop.f32.mrf.mxu0
  %v3958 = vadd.f32 %v3737, %v3957
  %3959 = vmatmul.bf16.gmra.mxu0 %v3926
  %v3960 = vpop.f32.mrf.mxu0
  %v3961 = vadd.f32 %v3737, %v3960
  %v3962 = vpop.f32.mrf.mxu0
  %v3963 = vadd.f32 %v3737, %v3962
  %3964 = vmatmul.bf16.gmra.mxu0 %v3929
  %v3965 = vpop.f32.mrf.mxu0
  %v3966 = vadd.f32 %v3737, %v3965
  %v3967 = vpop.f32.mrf.mxu0
  %v3968 = vadd.f32 %v3737, %v3967
  %3969 = vdwg.mxu0
  %3970 = vmatpush.bf16.msra.mxu0 0
  %3971 = vmatpush.bf16.msra.mxu0 0
  %3972 = vmatpush.bf16.msra.mxu0 0
  %3973 = vmatpush.bf16.msra.mxu0 0
  %3974 = vmatpush.bf16.msra.mxu0 %v3874
  %3975 = vmatpush.bf16.msra.mxu0 %v3866
  %3976 = vmatpush.bf16.msra.mxu0 %v3858
  %3977 = vmatpush.bf16.msra.mxu0 %v3850
  %3978 = vmatmul.bf16.gmra.mxu0 %v3914
  %v3979 = vpop.f32.mrf.mxu0
  %v3980 = vadd.f32 %v3738, %v3979
  %v3981 = vpop.f32.mrf.mxu0
  %v3982 = vadd.f32 %v3738, %v3981
  %3983 = vmatmul.bf16.gmra.mxu0 %v3917
  %v3984 = vpop.f32.mrf.mxu0
  %v3985 = vadd.f32 %v3738, %v3984
  %v3986 = vpop.f32.mrf.mxu0
  %v3987 = vadd.f32 %v3738, %v3986
  %3988 = vmatmul.bf16.gmra.mxu0 %v3920
  %v3989 = vpop.f32.mrf.mxu0
  %v3990 = vadd.f32 %v3738, %v3989
  %v3991 = vpop.f32.mrf.mxu0
  %v3992 = vadd.f32 %v3738, %v3991
  %3993 = vmatmul.bf16.gmra.mxu0 %v3923
  %v3994 = vpop.f32.mrf.mxu0
  %v3995 = vadd.f32 %v3738, %v3994
  %v3996 = vpop.f32.mrf.mxu0
  %v3997 = vadd.f32 %v3738, %v3996
  %3998 = vmatmul.bf16.gmra.mxu0 %v3926
  %v3999 = vpop.f32.mrf.mxu0
  %v4000 = vadd.f32 %v3738, %v3999
  %v4001 = vpop.f32.mrf.mxu0
  %v4002 = vadd.f32 %v3738, %v4001
  %4003 = vmatmul.bf16.gmra.mxu0 %v3929
  %v4004 = vpop.f32.mrf.mxu0
  %v4005 = vadd.f32 %v3738, %v4004
  %v4006 = vpop.f32.mrf.mxu0
  %v4007 = vadd.f32 %v3738, %v4006
  %4008 = vdwg.mxu0
  %4009 = vmatpush.bf16.msra.mxu0 0
  %4010 = vmatpush.bf16.msra.mxu0 0
  %4011 = vmatpush.bf16.msra.mxu0 0
  %4012 = vmatpush.bf16.msra.mxu0 0
  %4013 = vmatpush.bf16.msra.mxu0 %v3875
  %4014 = vmatpush.bf16.msra.mxu0 %v3867
  %4015 = vmatpush.bf16.msra.mxu0 %v3859
  %4016 = vmatpush.bf16.msra.mxu0 %v3851
  %4017 = vmatmul.bf16.gmra.mxu0 %v3914
  %v4018 = vpop.f32.mrf.mxu0
  %v4019 = vadd.f32 %v3739, %v4018
  %v4020 = vpop.f32.mrf.mxu0
  %v4021 = vadd.f32 %v3739, %v4020
  %4022 = vmatmul.bf16.gmra.mxu0 %v3917
  %v4023 = vpop.f32.mrf.mxu0
  %v4024 = vadd.f32 %v3739, %v4023
  %v4025 = vpop.f32.mrf.mxu0
  %v4026 = vadd.f32 %v3739, %v4025
  %4027 = vmatmul.bf16.gmra.mxu0 %v3920
  %v4028 = vpop.f32.mrf.mxu0
  %v4029 = vadd.f32 %v3739, %v4028
  %v4030 = vpop.f32.mrf.mxu0
  %v4031 = vadd.f32 %v3739, %v4030
  %4032 = vmatmul.bf16.gmra.mxu0 %v3923
  %v4033 = vpop.f32.mrf.mxu0
  %v4034 = vadd.f32 %v3739, %v4033
  %v4035 = vpop.f32.mrf.mxu0
  %v4036 = vadd.f32 %v3739, %v4035
  %4037 = vmatmul.bf16.gmra.mxu0 %v3926
  %v4038 = vpop.f32.mrf.mxu0
  %v4039 = vadd.f32 %v3739, %v4038
  %v4040 = vpop.f32.mrf.mxu0
  %v4041 = vadd.f32 %v3739, %v4040
  %4042 = vmatmul.bf16.gmra.mxu0 %v3929
  %v4043 = vpop.f32.mrf.mxu0
  %v4044 = vadd.f32 %v3739, %v4043
  %v4045 = vpop.f32.mrf.mxu0
  %v4046 = vadd.f32 %v3739, %v4045
  %4047 = vdwg.mxu0
  %4048 = vmatpush.bf16.msra.mxu0 0
  %4049 = vmatpush.bf16.msra.mxu0 0
  %4050 = vmatpush.bf16.msra.mxu0 0
  %4051 = vmatpush.bf16.msra.mxu0 0
  %4052 = vmatpush.bf16.msra.mxu0 %v3876
  %4053 = vmatpush.bf16.msra.mxu0 %v3868
  %4054 = vmatpush.bf16.msra.mxu0 %v3860
  %4055 = vmatpush.bf16.msra.mxu0 %v3852
  %4056 = vmatmul.bf16.gmra.mxu0 %v3914
  %v4057 = vpop.f32.mrf.mxu0
  %v4058 = vadd.f32 %v3740, %v4057
  %v4059 = vpop.f32.mrf.mxu0
  %v4060 = vadd.f32 %v3740, %v4059
  %4061 = vmatmul.bf16.gmra.mxu0 %v3917
  %v4062 = vpop.f32.mrf.mxu0
  %v4063 = vadd.f32 %v3740, %v4062
  %v4064 = vpop.f32.mrf.mxu0
  %v4065 = vadd.f32 %v3740, %v4064
  %4066 = vmatmul.bf16.gmra.mxu0 %v3920
  %v4067 = vpop.f32.mrf.mxu0
  %v4068 = vadd.f32 %v3740, %v4067
  %v4069 = vpop.f32.mrf.mxu0
  %v4070 = vadd.f32 %v3740, %v4069
  %4071 = vmatmul.bf16.gmra.mxu0 %v3923
  %v4072 = vpop.f32.mrf.mxu0
  %v4073 = vadd.f32 %v3740, %v4072
  %v4074 = vpop.f32.mrf.mxu0
  %v4075 = vadd.f32 %v3740, %v4074
  %4076 = vmatmul.bf16.gmra.mxu0 %v3926
  %v4077 = vpop.f32.mrf.mxu0
  %v4078 = vadd.f32 %v3740, %v4077
  %v4079 = vpop.f32.mrf.mxu0
  %v4080 = vadd.f32 %v3740, %v4079
  %4081 = vmatmul.bf16.gmra.mxu0 %v3929
  %v4082 = vpop.f32.mrf.mxu0
  %v4083 = vadd.f32 %v3740, %v4082
  %v4084 = vpop.f32.mrf.mxu0
  %v4085 = vadd.f32 %v3740, %v4084
  %4086 = vdwg.mxu0
  %4087 = vmatpush.bf16.msra.mxu0 0
  %4088 = vmatpush.bf16.msra.mxu0 0
  %4089 = vmatpush.bf16.msra.mxu0 0
  %4090 = vmatpush.bf16.msra.mxu0 0
  %4091 = vmatpush.bf16.msra.mxu0 %v3877
  %4092 = vmatpush.bf16.msra.mxu0 %v3869
  %4093 = vmatpush.bf16.msra.mxu0 %v3861
  %4094 = vmatpush.bf16.msra.mxu0 %v3853
  %4095 = vmatmul.bf16.gmra.mxu0 %v3914
  %v4096 = vpop.f32.mrf.mxu0
  %v4097 = vadd.f32 %v3741, %v4096
  %v4098 = vpop.f32.mrf.mxu0
  %v4099 = vadd.f32 %v3741, %v4098
  %4100 = vmatmul.bf16.gmra.mxu0 %v3917
  %v4101 = vpop.f32.mrf.mxu0
  %v4102 = vadd.f32 %v3741, %v4101
  %v4103 = vpop.f32.mrf.mxu0
  %v4104 = vadd.f32 %v3741, %v4103
  %4105 = vmatmul.bf16.gmra.mxu0 %v3920
  %v4106 = vpop.f32.mrf.mxu0
  %v4107 = vadd.f32 %v3741, %v4106
  %v4108 = vpop.f32.mrf.mxu0
  %v4109 = vadd.f32 %v3741, %v4108
  %4110 = vmatmul.bf16.gmra.mxu0 %v3923
  %v4111 = vpop.f32.mrf.mxu0
  %v4112 = vadd.f32 %v3741, %v4111
  %v4113 = vpop.f32.mrf.mxu0
  %v4114 = vadd.f32 %v3741, %v4113
  %4115 = vmatmul.bf16.gmra.mxu0 %v3926
  %v4116 = vpop.f32.mrf.mxu0
  %v4117 = vadd.f32 %v3741, %v4116
  %v4118 = vpop.f32.mrf.mxu0
  %v4119 = vadd.f32 %v3741, %v4118
  %4120 = vmatmul.bf16.gmra.mxu0 %v3929
  %v4121 = vpop.f32.mrf.mxu0
  %v4122 = vadd.f32 %v3741, %v4121
  %v4123 = vpop.f32.mrf.mxu0
  %v4124 = vadd.f32 %v3741, %v4123
  %4125 = vdwg.mxu0
  %4126 = vmatpush.bf16.msra.mxu0 0
  %4127 = vmatpush.bf16.msra.mxu0 0
  %4128 = vmatpush.bf16.msra.mxu0 0
  %4129 = vmatpush.bf16.msra.mxu0 0
  %4130 = vmatpush.bf16.msra.mxu0 %v3878
  %4131 = vmatpush.bf16.msra.mxu0 %v3870
  %4132 = vmatpush.bf16.msra.mxu0 %v3862
  %4133 = vmatpush.bf16.msra.mxu0 %v3854
  %4134 = vmatmul.bf16.gmra.mxu0 %v3914
  %v4135 = vpop.f32.mrf.mxu0
  %v4136 = vadd.f32 %v3742, %v4135
  %v4137 = vpop.f32.mrf.mxu0
  %v4138 = vadd.f32 %v3742, %v4137
  %4139 = vmatmul.bf16.gmra.mxu0 %v3917
  %v4140 = vpop.f32.mrf.mxu0
  %v4141 = vadd.f32 %v3742, %v4140
  %v4142 = vpop.f32.mrf.mxu0
  %v4143 = vadd.f32 %v3742, %v4142
  %4144 = vmatmul.bf16.gmra.mxu0 %v3920
  %v4145 = vpop.f32.mrf.mxu0
  %v4146 = vadd.f32 %v3742, %v4145
  %v4147 = vpop.f32.mrf.mxu0
  %v4148 = vadd.f32 %v3742, %v4147
  %4149 = vmatmul.bf16.gmra.mxu0 %v3923
  %v4150 = vpop.f32.mrf.mxu0
  %v4151 = vadd.f32 %v3742, %v4150
  %v4152 = vpop.f32.mrf.mxu0
  %v4153 = vadd.f32 %v3742, %v4152
  %4154 = vmatmul.bf16.gmra.mxu0 %v3926
  %v4155 = vpop.f32.mrf.mxu0
  %v4156 = vadd.f32 %v3742, %v4155
  %v4157 = vpop.f32.mrf.mxu0
  %v4158 = vadd.f32 %v3742, %v4157
  %4159 = vmatmul.bf16.gmra.mxu0 %v3929
  %v4160 = vpop.f32.mrf.mxu0
  %v4161 = vadd.f32 %v3742, %v4160
  %v4162 = vpop.f32.mrf.mxu0
  %v4163 = vadd.f32 %v3742, %v4162
  %4164 = vdwg.mxu0
  %4165 = vmatpush.bf16.msra.mxu0 0
  %4166 = vmatpush.bf16.msra.mxu0 0
  %4167 = vmatpush.bf16.msra.mxu0 0
  %4168 = vmatpush.bf16.msra.mxu0 0
  %4169 = vmatpush.bf16.msra.mxu0 %v3879
  %4170 = vmatpush.bf16.msra.mxu0 %v3871
  %4171 = vmatpush.bf16.msra.mxu0 %v3863
  %4172 = vmatpush.bf16.msra.mxu0 %v3855
  %4173 = vmatmul.bf16.gmra.mxu0 %v3914
  %v4174 = vpop.f32.mrf.mxu0
  %v4175 = vadd.f32 %v3743, %v4174
  %v4176 = vpop.f32.mrf.mxu0
  %v4177 = vadd.f32 %v3743, %v4176
  %4178 = vmatmul.bf16.gmra.mxu0 %v3917
  %v4179 = vpop.f32.mrf.mxu0
  %v4180 = vadd.f32 %v3743, %v4179
  %v4181 = vpop.f32.mrf.mxu0
  %v4182 = vadd.f32 %v3743, %v4181
  %4183 = vmatmul.bf16.gmra.mxu0 %v3920
  %v4184 = vpop.f32.mrf.mxu0
  %v4185 = vadd.f32 %v3743, %v4184
  %v4186 = vpop.f32.mrf.mxu0
  %v4187 = vadd.f32 %v3743, %v4186
  %4188 = vmatmul.bf16.gmra.mxu0 %v3923
  %v4189 = vpop.f32.mrf.mxu0
  %v4190 = vadd.f32 %v3743, %v4189
  %v4191 = vpop.f32.mrf.mxu0
  %v4192 = vadd.f32 %v3743, %v4191
  %4193 = vmatmul.bf16.gmra.mxu0 %v3926
  %v4194 = vpop.f32.mrf.mxu0
  %v4195 = vadd.f32 %v3743, %v4194
  %v4196 = vpop.f32.mrf.mxu0
  %v4197 = vadd.f32 %v3743, %v4196
  %4198 = vmatmul.bf16.gmra.mxu0 %v3929
  %v4199 = vpop.f32.mrf.mxu0
  %v4200 = vadd.f32 %v3743, %v4199
  %v4201 = vpop.f32.mrf.mxu0
  %v4202 = vadd.f32 %v3743, %v4201
  %4203 = vdwg.mxu0
  %4204 = vmatpush.bf16.msra.mxu0 0
  %4205 = vmatpush.bf16.msra.mxu0 0
  %4206 = vmatpush.bf16.msra.mxu0 0
  %4207 = vmatpush.bf16.msra.mxu0 0
  %4208 = vmatpush.bf16.msra.mxu0 %v3880
  %4209 = vmatpush.bf16.msra.mxu0 %v3872
  %4210 = vmatpush.bf16.msra.mxu0 %v3864
  %4211 = vmatpush.bf16.msra.mxu0 %v3856
  %4212 = vmatmul.bf16.gmra.mxu0 %v3914
  %v4213 = vpop.f32.mrf.mxu0
  %v4214 = vadd.f32 %v3744, %v4213
  %v4215 = vpop.f32.mrf.mxu0
  %v4216 = vadd.f32 %v3744, %v4215
  %4217 = vmatmul.bf16.gmra.mxu0 %v3917
  %v4218 = vpop.f32.mrf.mxu0
  %v4219 = vadd.f32 %v3744, %v4218
  %v4220 = vpop.f32.mrf.mxu0
  %v4221 = vadd.f32 %v3744, %v4220
  %4222 = vmatmul.bf16.gmra.mxu0 %v3920
  %v4223 = vpop.f32.mrf.mxu0
  %v4224 = vadd.f32 %v3744, %v4223
  %v4225 = vpop.f32.mrf.mxu0
  %v4226 = vadd.f32 %v3744, %v4225
  %4227 = vmatmul.bf16.gmra.mxu0 %v3923
  %v4228 = vpop.f32.mrf.mxu0
  %v4229 = vadd.f32 %v3744, %v4228
  %v4230 = vpop.f32.mrf.mxu0
  %v4231 = vadd.f32 %v3744, %v4230
  %4232 = vmatmul.bf16.gmra.mxu0 %v3926
  %v4233 = vpop.f32.mrf.mxu0
  %v4234 = vadd.f32 %v3744, %v4233
  %v4235 = vpop.f32.mrf.mxu0
  %v4236 = vadd.f32 %v3744, %v4235
  %4237 = vmatmul.bf16.gmra.mxu0 %v3929
  %v4238 = vpop.f32.mrf.mxu0
  %v4239 = vadd.f32 %v3744, %v4238
  %v4240 = vpop.f32.mrf.mxu0
  %v4241 = vadd.f32 %v3744, %v4240
  %4242 = vdwg.mxu0
  %v4243 = vpack.c.bf16 %v3534, %v3533
  %v4244 = vpack.c.bf16 %v3536, %v3535
  %4245 = vmatpush.bf16.msra.mxu0 0
  %4246 = vmatpush.bf16.msra.mxu0 0
  %4247 = vmatpush.bf16.msra.mxu0 0
  %4248 = vmatpush.bf16.msra.mxu0 0
  %4249 = vmatpush.bf16.msra.mxu0 0
  %4250 = vmatpush.bf16.msra.mxu0 0
  %4251 = vmatpush.bf16.msra.mxu0 %v4244
  %4252 = vmatpush.bf16.msra.mxu0 %v4243
  %4253 = vmatmul.bf16.gmra.mxu0 %v953
  %v4254 = vpop.f32.mrf.mxu0
  %v4255 = vadd.f32 0.0, %v4254
  %v4256 = vpop.f32.mrf.mxu0
  %v4257 = vadd.f32 0.0, %v4256
  %4258 = vmatmul.bf16.gmra.mxu0 %v956
  %v4259 = vpop.f32.mrf.mxu0
  %v4260 = vadd.f32 0.0, %v4259
  %v4261 = vpop.f32.mrf.mxu0
  %v4262 = vadd.f32 0.0, %v4261
  %4263 = vmatmul.bf16.gmra.mxu0 %v959
  %v4264 = vpop.f32.mrf.mxu0
  %v4265 = vadd.f32 0.0, %v4264
  %v4266 = vpop.f32.mrf.mxu0
  %v4267 = vadd.f32 0.0, %v4266
  %4268 = vmatmul.bf16.gmra.mxu0 %v962
  %v4269 = vpop.f32.mrf.mxu0
  %v4270 = vadd.f32 0.0, %v4269
  %v4271 = vpop.f32.mrf.mxu0
  %v4272 = vadd.f32 0.0, %v4271
  %4273 = vmatmul.bf16.gmra.mxu0 %v965
  %v4274 = vpop.f32.mrf.mxu0
  %v4275 = vadd.f32 0.0, %v4274
  %v4276 = vpop.f32.mrf.mxu0
  %v4277 = vadd.f32 0.0, %v4276
  %4278 = vmatmul.bf16.gmra.mxu0 %v968
  %v4279 = vpop.f32.mrf.mxu0
  %v4280 = vadd.f32 0.0, %v4279
  %v4281 = vpop.f32.mrf.mxu0
  %v4282 = vadd.f32 0.0, %v4281
  %4283 = vdwg.mxu0
  %v4284 = vpack.c.bf16 %v4257, %v4255
  %v4285 = vpack.c.bf16 %v4262, %v4260
  %v4286 = vpack.c.bf16 %v4267, %v4265
  %v4287 = vpack.c.bf16 %v4272, %v4270
  %v4288 = vpack.c.bf16 %v4277, %v4275
  %v4289 = vpack.c.bf16 %v4282, %v4280
  %v4291 = vsel %vm303, %v4284, 0
  %v4294 = vsel %vm303, %v4285, 0
  %v4297 = vsel %vm303, %v4286, 0
  %v4300 = vsel %vm303, %v4287, 0
  %v4303 = vsel %vm303, %v4288, 0
  %v4306 = vsel %vm303, %v4289, 0
  %4308 = vmatpush.bf16.msra.mxu0 0
  %4309 = vmatpush.bf16.msra.mxu0 0
  %4310 = vmatpush.bf16.msra.mxu0 0
  %4311 = vmatpush.bf16.msra.mxu0 0
  %4312 = vmatpush.bf16.msra.mxu0 0
  %4313 = vmatpush.bf16.msra.mxu0 0
  %4314 = vmatpush.bf16.msra.mxu0 %v1071
  %4315 = vmatpush.bf16.msra.mxu0 %v1063
  %4316 = vmatmul.bf16.gmra.mxu0 %v4291
  %v4317 = vpop.f32.mrf.mxu0
  %v4318 = vadd.f32 0.0, %v4317
  %v4319 = vpop.f32.mrf.mxu0
  %v4320 = vadd.f32 0.0, %v4319
  %4321 = vmatmul.bf16.gmra.mxu0 %v4294
  %v4322 = vpop.f32.mrf.mxu0
  %v4323 = vadd.f32 0.0, %v4322
  %v4324 = vpop.f32.mrf.mxu0
  %v4325 = vadd.f32 0.0, %v4324
  %4326 = vmatmul.bf16.gmra.mxu0 %v4297
  %v4327 = vpop.f32.mrf.mxu0
  %v4328 = vadd.f32 0.0, %v4327
  %v4329 = vpop.f32.mrf.mxu0
  %v4330 = vadd.f32 0.0, %v4329
  %4331 = vmatmul.bf16.gmra.mxu0 %v4300
  %v4332 = vpop.f32.mrf.mxu0
  %v4333 = vadd.f32 0.0, %v4332
  %v4334 = vpop.f32.mrf.mxu0
  %v4335 = vadd.f32 0.0, %v4334
  %4336 = vmatmul.bf16.gmra.mxu0 %v4303
  %v4337 = vpop.f32.mrf.mxu0
  %v4338 = vadd.f32 0.0, %v4337
  %v4339 = vpop.f32.mrf.mxu0
  %v4340 = vadd.f32 0.0, %v4339
  %4341 = vmatmul.bf16.gmra.mxu0 %v4306
  %v4342 = vpop.f32.mrf.mxu0
  %v4343 = vadd.f32 0.0, %v4342
  %v4344 = vpop.f32.mrf.mxu0
  %v4345 = vadd.f32 0.0, %v4344
  %4346 = vdwg.mxu0
  %4347 = vmatpush.bf16.msra.mxu0 0
  %4348 = vmatpush.bf16.msra.mxu0 0
  %4349 = vmatpush.bf16.msra.mxu0 0
  %4350 = vmatpush.bf16.msra.mxu0 0
  %4351 = vmatpush.bf16.msra.mxu0 0
  %4352 = vmatpush.bf16.msra.mxu0 0
  %4353 = vmatpush.bf16.msra.mxu0 %v1072
  %4354 = vmatpush.bf16.msra.mxu0 %v1064
  %4355 = vmatmul.bf16.gmra.mxu0 %v4291
  %v4356 = vpop.f32.mrf.mxu0
  %v4357 = vadd.f32 0.0, %v4356
  %v4358 = vpop.f32.mrf.mxu0
  %v4359 = vadd.f32 0.0, %v4358
  %4360 = vmatmul.bf16.gmra.mxu0 %v4294
  %v4361 = vpop.f32.mrf.mxu0
  %v4362 = vadd.f32 0.0, %v4361
  %v4363 = vpop.f32.mrf.mxu0
  %v4364 = vadd.f32 0.0, %v4363
  %4365 = vmatmul.bf16.gmra.mxu0 %v4297
  %v4366 = vpop.f32.mrf.mxu0
  %v4367 = vadd.f32 0.0, %v4366
  %v4368 = vpop.f32.mrf.mxu0
  %v4369 = vadd.f32 0.0, %v4368
  %4370 = vmatmul.bf16.gmra.mxu0 %v4300
  %v4371 = vpop.f32.mrf.mxu0
  %v4372 = vadd.f32 0.0, %v4371
  %v4373 = vpop.f32.mrf.mxu0
  %v4374 = vadd.f32 0.0, %v4373
  %4375 = vmatmul.bf16.gmra.mxu0 %v4303
  %v4376 = vpop.f32.mrf.mxu0
  %v4377 = vadd.f32 0.0, %v4376
  %v4378 = vpop.f32.mrf.mxu0
  %v4379 = vadd.f32 0.0, %v4378
  %4380 = vmatmul.bf16.gmra.mxu0 %v4306
  %v4381 = vpop.f32.mrf.mxu0
  %v4382 = vadd.f32 0.0, %v4381
  %v4383 = vpop.f32.mrf.mxu0
  %v4384 = vadd.f32 0.0, %v4383
  %4385 = vdwg.mxu0
  %4386 = vmatpush.bf16.msra.mxu0 0
  %4387 = vmatpush.bf16.msra.mxu0 0
  %4388 = vmatpush.bf16.msra.mxu0 0
  %4389 = vmatpush.bf16.msra.mxu0 0
  %4390 = vmatpush.bf16.msra.mxu0 0
  %4391 = vmatpush.bf16.msra.mxu0 0
  %4392 = vmatpush.bf16.msra.mxu0 %v1073
  %4393 = vmatpush.bf16.msra.mxu0 %v1065
  %4394 = vmatmul.bf16.gmra.mxu0 %v4291
  %v4395 = vpop.f32.mrf.mxu0
  %v4396 = vadd.f32 0.0, %v4395
  %v4397 = vpop.f32.mrf.mxu0
  %v4398 = vadd.f32 0.0, %v4397
  %4399 = vmatmul.bf16.gmra.mxu0 %v4294
  %v4400 = vpop.f32.mrf.mxu0
  %v4401 = vadd.f32 0.0, %v4400
  %v4402 = vpop.f32.mrf.mxu0
  %v4403 = vadd.f32 0.0, %v4402
  %4404 = vmatmul.bf16.gmra.mxu0 %v4297
  %v4405 = vpop.f32.mrf.mxu0
  %v4406 = vadd.f32 0.0, %v4405
  %v4407 = vpop.f32.mrf.mxu0
  %v4408 = vadd.f32 0.0, %v4407
  %4409 = vmatmul.bf16.gmra.mxu0 %v4300
  %v4410 = vpop.f32.mrf.mxu0
  %v4411 = vadd.f32 0.0, %v4410
  %v4412 = vpop.f32.mrf.mxu0
  %v4413 = vadd.f32 0.0, %v4412
  %4414 = vmatmul.bf16.gmra.mxu0 %v4303
  %v4415 = vpop.f32.mrf.mxu0
  %v4416 = vadd.f32 0.0, %v4415
  %v4417 = vpop.f32.mrf.mxu0
  %v4418 = vadd.f32 0.0, %v4417
  %4419 = vmatmul.bf16.gmra.mxu0 %v4306
  %v4420 = vpop.f32.mrf.mxu0
  %v4421 = vadd.f32 0.0, %v4420
  %v4422 = vpop.f32.mrf.mxu0
  %v4423 = vadd.f32 0.0, %v4422
  %4424 = vdwg.mxu0
  %4425 = vmatpush.bf16.msra.mxu0 0
  %4426 = vmatpush.bf16.msra.mxu0 0
  %4427 = vmatpush.bf16.msra.mxu0 0
  %4428 = vmatpush.bf16.msra.mxu0 0
  %4429 = vmatpush.bf16.msra.mxu0 0
  %4430 = vmatpush.bf16.msra.mxu0 0
  %4431 = vmatpush.bf16.msra.mxu0 %v1074
  %4432 = vmatpush.bf16.msra.mxu0 %v1066
  %4433 = vmatmul.bf16.gmra.mxu0 %v4291
  %v4434 = vpop.f32.mrf.mxu0
  %v4435 = vadd.f32 0.0, %v4434
  %v4436 = vpop.f32.mrf.mxu0
  %v4437 = vadd.f32 0.0, %v4436
  %4438 = vmatmul.bf16.gmra.mxu0 %v4294
  %v4439 = vpop.f32.mrf.mxu0
  %v4440 = vadd.f32 0.0, %v4439
  %v4441 = vpop.f32.mrf.mxu0
  %v4442 = vadd.f32 0.0, %v4441
  %4443 = vmatmul.bf16.gmra.mxu0 %v4297
  %v4444 = vpop.f32.mrf.mxu0
  %v4445 = vadd.f32 0.0, %v4444
  %v4446 = vpop.f32.mrf.mxu0
  %v4447 = vadd.f32 0.0, %v4446
  %4448 = vmatmul.bf16.gmra.mxu0 %v4300
  %v4449 = vpop.f32.mrf.mxu0
  %v4450 = vadd.f32 0.0, %v4449
  %v4451 = vpop.f32.mrf.mxu0
  %v4452 = vadd.f32 0.0, %v4451
  %4453 = vmatmul.bf16.gmra.mxu0 %v4303
  %v4454 = vpop.f32.mrf.mxu0
  %v4455 = vadd.f32 0.0, %v4454
  %v4456 = vpop.f32.mrf.mxu0
  %v4457 = vadd.f32 0.0, %v4456
  %4458 = vmatmul.bf16.gmra.mxu0 %v4306
  %v4459 = vpop.f32.mrf.mxu0
  %v4460 = vadd.f32 0.0, %v4459
  %v4461 = vpop.f32.mrf.mxu0
  %v4462 = vadd.f32 0.0, %v4461
  %4463 = vdwg.mxu0
  %4464 = vmatpush.bf16.msra.mxu0 0
  %4465 = vmatpush.bf16.msra.mxu0 0
  %4466 = vmatpush.bf16.msra.mxu0 0
  %4467 = vmatpush.bf16.msra.mxu0 0
  %4468 = vmatpush.bf16.msra.mxu0 0
  %4469 = vmatpush.bf16.msra.mxu0 0
  %4470 = vmatpush.bf16.msra.mxu0 %v1075
  %4471 = vmatpush.bf16.msra.mxu0 %v1067
  %4472 = vmatmul.bf16.gmra.mxu0 %v4291
  %v4473 = vpop.f32.mrf.mxu0
  %v4474 = vadd.f32 0.0, %v4473
  %v4475 = vpop.f32.mrf.mxu0
  %v4476 = vadd.f32 0.0, %v4475
  %4477 = vmatmul.bf16.gmra.mxu0 %v4294
  %v4478 = vpop.f32.mrf.mxu0
  %v4479 = vadd.f32 0.0, %v4478
  %v4480 = vpop.f32.mrf.mxu0
  %v4481 = vadd.f32 0.0, %v4480
  %4482 = vmatmul.bf16.gmra.mxu0 %v4297
  %v4483 = vpop.f32.mrf.mxu0
  %v4484 = vadd.f32 0.0, %v4483
  %v4485 = vpop.f32.mrf.mxu0
  %v4486 = vadd.f32 0.0, %v4485
  %4487 = vmatmul.bf16.gmra.mxu0 %v4300
  %v4488 = vpop.f32.mrf.mxu0
  %v4489 = vadd.f32 0.0, %v4488
  %v4490 = vpop.f32.mrf.mxu0
  %v4491 = vadd.f32 0.0, %v4490
  %4492 = vmatmul.bf16.gmra.mxu0 %v4303
  %v4493 = vpop.f32.mrf.mxu0
  %v4494 = vadd.f32 0.0, %v4493
  %v4495 = vpop.f32.mrf.mxu0
  %v4496 = vadd.f32 0.0, %v4495
  %4497 = vmatmul.bf16.gmra.mxu0 %v4306
  %v4498 = vpop.f32.mrf.mxu0
  %v4499 = vadd.f32 0.0, %v4498
  %v4500 = vpop.f32.mrf.mxu0
  %v4501 = vadd.f32 0.0, %v4500
  %4502 = vdwg.mxu0
  %4503 = vmatpush.bf16.msra.mxu0 0
  %4504 = vmatpush.bf16.msra.mxu0 0
  %4505 = vmatpush.bf16.msra.mxu0 0
  %4506 = vmatpush.bf16.msra.mxu0 0
  %4507 = vmatpush.bf16.msra.mxu0 0
  %4508 = vmatpush.bf16.msra.mxu0 0
  %4509 = vmatpush.bf16.msra.mxu0 %v1076
  %4510 = vmatpush.bf16.msra.mxu0 %v1068
  %4511 = vmatmul.bf16.gmra.mxu0 %v4291
  %v4512 = vpop.f32.mrf.mxu0
  %v4513 = vadd.f32 0.0, %v4512
  %v4514 = vpop.f32.mrf.mxu0
  %v4515 = vadd.f32 0.0, %v4514
  %4516 = vmatmul.bf16.gmra.mxu0 %v4294
  %v4517 = vpop.f32.mrf.mxu0
  %v4518 = vadd.f32 0.0, %v4517
  %v4519 = vpop.f32.mrf.mxu0
  %v4520 = vadd.f32 0.0, %v4519
  %4521 = vmatmul.bf16.gmra.mxu0 %v4297
  %v4522 = vpop.f32.mrf.mxu0
  %v4523 = vadd.f32 0.0, %v4522
  %v4524 = vpop.f32.mrf.mxu0
  %v4525 = vadd.f32 0.0, %v4524
  %4526 = vmatmul.bf16.gmra.mxu0 %v4300
  %v4527 = vpop.f32.mrf.mxu0
  %v4528 = vadd.f32 0.0, %v4527
  %v4529 = vpop.f32.mrf.mxu0
  %v4530 = vadd.f32 0.0, %v4529
  %4531 = vmatmul.bf16.gmra.mxu0 %v4303
  %v4532 = vpop.f32.mrf.mxu0
  %v4533 = vadd.f32 0.0, %v4532
  %v4534 = vpop.f32.mrf.mxu0
  %v4535 = vadd.f32 0.0, %v4534
  %4536 = vmatmul.bf16.gmra.mxu0 %v4306
  %v4537 = vpop.f32.mrf.mxu0
  %v4538 = vadd.f32 0.0, %v4537
  %v4539 = vpop.f32.mrf.mxu0
  %v4540 = vadd.f32 0.0, %v4539
  %4541 = vdwg.mxu0
  %4542 = vmatpush.bf16.msra.mxu0 0
  %4543 = vmatpush.bf16.msra.mxu0 0
  %4544 = vmatpush.bf16.msra.mxu0 0
  %4545 = vmatpush.bf16.msra.mxu0 0
  %4546 = vmatpush.bf16.msra.mxu0 0
  %4547 = vmatpush.bf16.msra.mxu0 0
  %4548 = vmatpush.bf16.msra.mxu0 %v1077
  %4549 = vmatpush.bf16.msra.mxu0 %v1069
  %4550 = vmatmul.bf16.gmra.mxu0 %v4291
  %v4551 = vpop.f32.mrf.mxu0
  %v4552 = vadd.f32 0.0, %v4551
  %v4553 = vpop.f32.mrf.mxu0
  %v4554 = vadd.f32 0.0, %v4553
  %4555 = vmatmul.bf16.gmra.mxu0 %v4294
  %v4556 = vpop.f32.mrf.mxu0
  %v4557 = vadd.f32 0.0, %v4556
  %v4558 = vpop.f32.mrf.mxu0
  %v4559 = vadd.f32 0.0, %v4558
  %4560 = vmatmul.bf16.gmra.mxu0 %v4297
  %v4561 = vpop.f32.mrf.mxu0
  %v4562 = vadd.f32 0.0, %v4561
  %v4563 = vpop.f32.mrf.mxu0
  %v4564 = vadd.f32 0.0, %v4563
  %4565 = vmatmul.bf16.gmra.mxu0 %v4300
  %v4566 = vpop.f32.mrf.mxu0
  %v4567 = vadd.f32 0.0, %v4566
  %v4568 = vpop.f32.mrf.mxu0
  %v4569 = vadd.f32 0.0, %v4568
  %4570 = vmatmul.bf16.gmra.mxu0 %v4303
  %v4571 = vpop.f32.mrf.mxu0
  %v4572 = vadd.f32 0.0, %v4571
  %v4573 = vpop.f32.mrf.mxu0
  %v4574 = vadd.f32 0.0, %v4573
  %4575 = vmatmul.bf16.gmra.mxu0 %v4306
  %v4576 = vpop.f32.mrf.mxu0
  %v4577 = vadd.f32 0.0, %v4576
  %v4578 = vpop.f32.mrf.mxu0
  %v4579 = vadd.f32 0.0, %v4578
  %4580 = vdwg.mxu0
  %4581 = vmatpush.bf16.msra.mxu0 0
  %4582 = vmatpush.bf16.msra.mxu0 0
  %4583 = vmatpush.bf16.msra.mxu0 0
  %4584 = vmatpush.bf16.msra.mxu0 0
  %4585 = vmatpush.bf16.msra.mxu0 0
  %4586 = vmatpush.bf16.msra.mxu0 0
  %4587 = vmatpush.bf16.msra.mxu0 %v1078
  %4588 = vmatpush.bf16.msra.mxu0 %v1070
  %4589 = vmatmul.bf16.gmra.mxu0 %v4291
  %v4590 = vpop.f32.mrf.mxu0
  %v4591 = vadd.f32 0.0, %v4590
  %v4592 = vpop.f32.mrf.mxu0
  %v4593 = vadd.f32 0.0, %v4592
  %4594 = vmatmul.bf16.gmra.mxu0 %v4294
  %v4595 = vpop.f32.mrf.mxu0
  %v4596 = vadd.f32 0.0, %v4595
  %v4597 = vpop.f32.mrf.mxu0
  %v4598 = vadd.f32 0.0, %v4597
  %4599 = vmatmul.bf16.gmra.mxu0 %v4297
  %v4600 = vpop.f32.mrf.mxu0
  %v4601 = vadd.f32 0.0, %v4600
  %v4602 = vpop.f32.mrf.mxu0
  %v4603 = vadd.f32 0.0, %v4602
  %4604 = vmatmul.bf16.gmra.mxu0 %v4300
  %v4605 = vpop.f32.mrf.mxu0
  %v4606 = vadd.f32 0.0, %v4605
  %v4607 = vpop.f32.mrf.mxu0
  %v4608 = vadd.f32 0.0, %v4607
  %4609 = vmatmul.bf16.gmra.mxu0 %v4303
  %v4610 = vpop.f32.mrf.mxu0
  %v4611 = vadd.f32 0.0, %v4610
  %v4612 = vpop.f32.mrf.mxu0
  %v4613 = vadd.f32 0.0, %v4612
  %4614 = vmatmul.bf16.gmra.mxu0 %v4306
  %v4615 = vpop.f32.mrf.mxu0
  %v4616 = vadd.f32 0.0, %v4615
  %v4617 = vpop.f32.mrf.mxu0
  %v4618 = vadd.f32 0.0, %v4617
  %4619 = vdwg.mxu0
  %v4620 = vmul.f32 %v4318, %v3941
  %v4621 = vmul.f32 %v4357, %v3980
  %v4622 = vmul.f32 %v4396, %v4019
  %v4623 = vmul.f32 %v4435, %v4058
  %v4624 = vmul.f32 %v4474, %v4097
  %v4625 = vmul.f32 %v4513, %v4136
  %v4626 = vmul.f32 %v4552, %v4175
  %v4627 = vmul.f32 %v4591, %v4214
  %v4628 = vmul.f32 %v4320, %v3943
  %v4629 = vmul.f32 %v4359, %v3982
  %v4630 = vmul.f32 %v4398, %v4021
  %v4631 = vmul.f32 %v4437, %v4060
  %v4632 = vmul.f32 %v4476, %v4099
  %v4633 = vmul.f32 %v4515, %v4138
  %v4634 = vmul.f32 %v4554, %v4177
  %v4635 = vmul.f32 %v4593, %v4216
  %v4636 = vmul.f32 %v4323, %v3946
  %v4637 = vmul.f32 %v4362, %v3985
  %v4638 = vmul.f32 %v4401, %v4024
  %v4639 = vmul.f32 %v4440, %v4063
  %v4640 = vmul.f32 %v4479, %v4102
  %v4641 = vmul.f32 %v4518, %v4141
  %v4642 = vmul.f32 %v4557, %v4180
  %v4643 = vmul.f32 %v4596, %v4219
  %v4644 = vmul.f32 %v4325, %v3948
  %v4645 = vmul.f32 %v4364, %v3987
  %v4646 = vmul.f32 %v4403, %v4026
  %v4647 = vmul.f32 %v4442, %v4065
  %v4648 = vmul.f32 %v4481, %v4104
  %v4649 = vmul.f32 %v4520, %v4143
  %v4650 = vmul.f32 %v4559, %v4182
  %v4651 = vmul.f32 %v4598, %v4221
  %v4652 = vmul.f32 %v4328, %v3951
  %v4653 = vmul.f32 %v4367, %v3990
  %v4654 = vmul.f32 %v4406, %v4029
  %v4655 = vmul.f32 %v4445, %v4068
  %v4656 = vmul.f32 %v4484, %v4107
  %v4657 = vmul.f32 %v4523, %v4146
  %v4658 = vmul.f32 %v4562, %v4185
  %v4659 = vmul.f32 %v4601, %v4224
  %v4660 = vmul.f32 %v4330, %v3953
  %v4661 = vmul.f32 %v4369, %v3992
  %v4662 = vmul.f32 %v4408, %v4031
  %v4663 = vmul.f32 %v4447, %v4070
  %v4664 = vmul.f32 %v4486, %v4109
  %v4665 = vmul.f32 %v4525, %v4148
  %v4666 = vmul.f32 %v4564, %v4187
  %v4667 = vmul.f32 %v4603, %v4226
  %v4668 = vmul.f32 %v4333, %v3956
  %v4669 = vmul.f32 %v4372, %v3995
  %v4670 = vmul.f32 %v4411, %v4034
  %v4671 = vmul.f32 %v4450, %v4073
  %v4672 = vmul.f32 %v4489, %v4112
  %v4673 = vmul.f32 %v4528, %v4151
  %v4674 = vmul.f32 %v4567, %v4190
  %v4675 = vmul.f32 %v4606, %v4229
  %v4676 = vmul.f32 %v4335, %v3958
  %v4677 = vmul.f32 %v4374, %v3997
  %v4678 = vmul.f32 %v4413, %v4036
  %v4679 = vmul.f32 %v4452, %v4075
  %v4680 = vmul.f32 %v4491, %v4114
  %v4681 = vmul.f32 %v4530, %v4153
  %v4682 = vmul.f32 %v4569, %v4192
  %v4683 = vmul.f32 %v4608, %v4231
  %v4684 = vmul.f32 %v4338, %v3961
  %v4685 = vmul.f32 %v4377, %v4000
  %v4686 = vmul.f32 %v4416, %v4039
  %v4687 = vmul.f32 %v4455, %v4078
  %v4688 = vmul.f32 %v4494, %v4117
  %v4689 = vmul.f32 %v4533, %v4156
  %v4690 = vmul.f32 %v4572, %v4195
  %v4691 = vmul.f32 %v4611, %v4234
  %v4692 = vmul.f32 %v4340, %v3963
  %v4693 = vmul.f32 %v4379, %v4002
  %v4694 = vmul.f32 %v4418, %v4041
  %v4695 = vmul.f32 %v4457, %v4080
  %v4696 = vmul.f32 %v4496, %v4119
  %v4697 = vmul.f32 %v4535, %v4158
  %v4698 = vmul.f32 %v4574, %v4197
  %v4699 = vmul.f32 %v4613, %v4236
  %v4700 = vmul.f32 %v4343, %v3966
  %v4701 = vmul.f32 %v4382, %v4005
  %v4702 = vmul.f32 %v4421, %v4044
  %v4703 = vmul.f32 %v4460, %v4083
  %v4704 = vmul.f32 %v4499, %v4122
  %v4705 = vmul.f32 %v4538, %v4161
  %v4706 = vmul.f32 %v4577, %v4200
  %v4707 = vmul.f32 %v4616, %v4239
  %v4708 = vmul.f32 %v4345, %v3968
  %v4709 = vmul.f32 %v4384, %v4007
  %v4710 = vmul.f32 %v4423, %v4046
  %v4711 = vmul.f32 %v4462, %v4085
  %v4712 = vmul.f32 %v4501, %v4124
  %v4713 = vmul.f32 %v4540, %v4163
  %v4714 = vmul.f32 %v4579, %v4202
  %v4715 = vmul.f32 %v4618, %v4241
  %v4716 = vadd.f32 %v4620, %v4624
  %v4717 = vadd.f32 %v4623, %v4627
  %v4718 = vadd.f32 %v4625, %v4621
  %v4719 = vadd.f32 %v4626, %v4622
  %v4720 = vadd.f32 %v4628, %v4632
  %v4721 = vadd.f32 %v4631, %v4635
  %v4722 = vadd.f32 %v4633, %v4629
  %v4723 = vadd.f32 %v4634, %v4630
  %v4724 = vadd.f32 %v4636, %v4640
  %v4725 = vadd.f32 %v4639, %v4643
  %v4726 = vadd.f32 %v4641, %v4637
  %v4727 = vadd.f32 %v4642, %v4638
  %v4728 = vadd.f32 %v4644, %v4648
  %v4729 = vadd.f32 %v4647, %v4651
  %v4730 = vadd.f32 %v4649, %v4645
  %v4731 = vadd.f32 %v4650, %v4646
  %v4732 = vadd.f32 %v4652, %v4656
  %v4733 = vadd.f32 %v4655, %v4659
  %v4734 = vadd.f32 %v4657, %v4653
  %v4735 = vadd.f32 %v4658, %v4654
  %v4736 = vadd.f32 %v4660, %v4664
  %v4737 = vadd.f32 %v4663, %v4667
  %v4738 = vadd.f32 %v4665, %v4661
  %v4739 = vadd.f32 %v4666, %v4662
  %v4740 = vadd.f32 %v4668, %v4672
  %v4741 = vadd.f32 %v4671, %v4675
  %v4742 = vadd.f32 %v4673, %v4669
  %v4743 = vadd.f32 %v4674, %v4670
  %v4744 = vadd.f32 %v4676, %v4680
  %v4745 = vadd.f32 %v4679, %v4683
  %v4746 = vadd.f32 %v4681, %v4677
  %v4747 = vadd.f32 %v4682, %v4678
  %v4748 = vadd.f32 %v4684, %v4688
  %v4749 = vadd.f32 %v4687, %v4691
  %v4750 = vadd.f32 %v4689, %v4685
  %v4751 = vadd.f32 %v4690, %v4686
  %v4752 = vadd.f32 %v4692, %v4696
  %v4753 = vadd.f32 %v4695, %v4699
  %v4754 = vadd.f32 %v4697, %v4693
  %v4755 = vadd.f32 %v4698, %v4694
  %v4756 = vadd.f32 %v4700, %v4704
  %v4757 = vadd.f32 %v4703, %v4707
  %v4758 = vadd.f32 %v4705, %v4701
  %v4759 = vadd.f32 %v4706, %v4702
  %v4760 = vadd.f32 %v4708, %v4712
  %v4761 = vadd.f32 %v4711, %v4715
  %v4762 = vadd.f32 %v4713, %v4709
  %v4763 = vadd.f32 %v4714, %v4710
  %v4764 = vadd.f32 %v4716, %v4719
  %v4765 = vadd.f32 %v4718, %v4717
  %v4766 = vadd.f32 %v4720, %v4723
  %v4767 = vadd.f32 %v4722, %v4721
  %v4768 = vadd.f32 %v4724, %v4727
  %v4769 = vadd.f32 %v4726, %v4725
  %v4770 = vadd.f32 %v4728, %v4731
  %v4771 = vadd.f32 %v4730, %v4729
  %v4772 = vadd.f32 %v4732, %v4735
  %v4773 = vadd.f32 %v4734, %v4733
  %v4774 = vadd.f32 %v4736, %v4739
  %v4775 = vadd.f32 %v4738, %v4737
  %v4776 = vadd.f32 %v4740, %v4743
  %v4777 = vadd.f32 %v4742, %v4741
  %v4778 = vadd.f32 %v4744, %v4747
  %v4779 = vadd.f32 %v4746, %v4745
  %v4780 = vadd.f32 %v4748, %v4751
  %v4781 = vadd.f32 %v4750, %v4749
  %v4782 = vadd.f32 %v4752, %v4755
  %v4783 = vadd.f32 %v4754, %v4753
  %v4784 = vadd.f32 %v4756, %v4759
  %v4785 = vadd.f32 %v4758, %v4757
  %v4786 = vadd.f32 %v4760, %v4763
  %v4787 = vadd.f32 %v4762, %v4761
  %v4788 = vadd.f32 %v4764, %v4765
  %v4789 = vadd.f32 %v4766, %v4767
  %v4790 = vadd.f32 %v4768, %v4769
  %v4791 = vadd.f32 %v4770, %v4771
  %v4792 = vadd.f32 %v4772, %v4773
  %v4793 = vadd.f32 %v4774, %v4775
  %v4794 = vadd.f32 %v4776, %v4777
  %v4795 = vadd.f32 %v4778, %v4779
  %v4796 = vadd.f32 %v4780, %v4781
  %v4797 = vadd.f32 %v4782, %v4783
  %v4798 = vadd.f32 %v4784, %v4785
  %v4799 = vadd.f32 %v4786, %v4787
  %4800 = vrot.lane.b32.xlu0 %v4788, 64
  %v4801 = vpop.permute.xlu0 %4800
  %4802 = vrot.lane.b32.xlu0 %v4789, 64
  %v4803 = vpop.permute.xlu0 %4802
  %4804 = vrot.lane.b32.xlu0 %v4790, 64
  %v4805 = vpop.permute.xlu0 %4804
  %4806 = vrot.lane.b32.xlu0 %v4791, 64
  %v4807 = vpop.permute.xlu0 %4806
  %4808 = vrot.lane.b32.xlu0 %v4792, 64
  %v4809 = vpop.permute.xlu0 %4808
  %4810 = vrot.lane.b32.xlu0 %v4793, 64
  %v4811 = vpop.permute.xlu0 %4810
  %4812 = vrot.lane.b32.xlu0 %v4794, 64
  %v4813 = vpop.permute.xlu0 %4812
  %4814 = vrot.lane.b32.xlu0 %v4795, 64
  %v4815 = vpop.permute.xlu0 %4814
  %4816 = vrot.lane.b32.xlu0 %v4796, 64
  %v4817 = vpop.permute.xlu0 %4816
  %4818 = vrot.lane.b32.xlu0 %v4797, 64
  %v4819 = vpop.permute.xlu0 %4818
  %4820 = vrot.lane.b32.xlu0 %v4798, 64
  %v4821 = vpop.permute.xlu0 %4820
  %4822 = vrot.lane.b32.xlu0 %v4799, 64
  %v4823 = vpop.permute.xlu0 %4822
  %v4824 = vadd.f32 %v4788, %v4801
  %v4825 = vadd.f32 %v4789, %v4803
  %v4826 = vadd.f32 %v4790, %v4805
  %v4827 = vadd.f32 %v4791, %v4807
  %v4828 = vadd.f32 %v4792, %v4809
  %v4829 = vadd.f32 %v4793, %v4811
  %v4830 = vadd.f32 %v4794, %v4813
  %v4831 = vadd.f32 %v4795, %v4815
  %v4832 = vadd.f32 %v4796, %v4817
  %v4833 = vadd.f32 %v4797, %v4819
  %v4834 = vadd.f32 %v4798, %v4821
  %v4835 = vadd.f32 %v4799, %v4823
  %4836 = vrot.lane.b32.xlu0 %v4824, 32
  %v4837 = vpop.permute.xlu0 %4836
  %4838 = vrot.lane.b32.xlu0 %v4825, 32
  %v4839 = vpop.permute.xlu0 %4838
  %4840 = vrot.lane.b32.xlu0 %v4826, 32
  %v4841 = vpop.permute.xlu0 %4840
  %4842 = vrot.lane.b32.xlu0 %v4827, 32
  %v4843 = vpop.permute.xlu0 %4842
  %4844 = vrot.lane.b32.xlu0 %v4828, 32
  %v4845 = vpop.permute.xlu0 %4844
  %4846 = vrot.lane.b32.xlu0 %v4829, 32
  %v4847 = vpop.permute.xlu0 %4846
  %4848 = vrot.lane.b32.xlu0 %v4830, 32
  %v4849 = vpop.permute.xlu0 %4848
  %4850 = vrot.lane.b32.xlu0 %v4831, 32
  %v4851 = vpop.permute.xlu0 %4850
  %4852 = vrot.lane.b32.xlu0 %v4832, 32
  %v4853 = vpop.permute.xlu0 %4852
  %4854 = vrot.lane.b32.xlu0 %v4833, 32
  %v4855 = vpop.permute.xlu0 %4854
  %4856 = vrot.lane.b32.xlu0 %v4834, 32
  %v4857 = vpop.permute.xlu0 %4856
  %4858 = vrot.lane.b32.xlu0 %v4835, 32
  %v4859 = vpop.permute.xlu0 %4858
  %v4860 = vadd.f32 %v4824, %v4837
  %v4861 = vadd.f32 %v4825, %v4839
  %v4862 = vadd.f32 %v4826, %v4841
  %v4863 = vadd.f32 %v4827, %v4843
  %v4864 = vadd.f32 %v4828, %v4845
  %v4865 = vadd.f32 %v4829, %v4847
  %v4866 = vadd.f32 %v4830, %v4849
  %v4867 = vadd.f32 %v4831, %v4851
  %v4868 = vadd.f32 %v4832, %v4853
  %v4869 = vadd.f32 %v4833, %v4855
  %v4870 = vadd.f32 %v4834, %v4857
  %v4871 = vadd.f32 %v4835, %v4859
  %v4872 = vpack.c.bf16 %v4861, %v4860
  %v4873 = vpack.c.bf16 %v4863, %v4862
  %v4874 = vpack.c.bf16 %v4865, %v4864
  %v4875 = vpack.c.bf16 %v4867, %v4866
  %v4876 = vpack.c.bf16 %v4869, %v4868
  %v4877 = vpack.c.bf16 %v4871, %v4870
  %4878 = vmatpush.bf16.msra.mxu0 0
  %4879 = vmatpush.bf16.msra.mxu0 0
  %4880 = vmatpush.bf16.msra.mxu0 %v4877
  %4881 = vmatpush.bf16.msra.mxu0 %v4876
  %4882 = vmatpush.bf16.msra.mxu0 %v4875
  %4883 = vmatpush.bf16.msra.mxu0 %v4874
  %4884 = vmatpush.bf16.msra.mxu0 %v4873
  %4885 = vmatpush.bf16.msra.mxu0 %v4872
  %4886 = vmatmul.bf16.gmra.mxu0 %v1697
  %v4887 = vpop.f32.mrf.mxu0
  %v4888 = vadd.f32 0.0, %v4887
  %v4889 = vpop.f32.mrf.mxu0
  %v4890 = vadd.f32 0.0, %v4889
  %4891 = vmatmul.bf16.gmra.mxu0 %v1700
  %v4892 = vpop.f32.mrf.mxu0
  %v4893 = vadd.f32 0.0, %v4892
  %v4894 = vpop.f32.mrf.mxu0
  %v4895 = vadd.f32 0.0, %v4894
  %4896 = vdwg.mxu0
  %v4897 = vmul.f32 %v4888, %v1724
  %v4898 = vmul.f32 %v4890, %v1729
  %v4899 = vmul.f32 %v4893, %v1734
  %v4900 = vmul.f32 %v4895, %v1739
  %s4901 = scalar_lea.vmem %s18, 32
  %v4902 = vld [vmem:[%s4901] sm:$0xf]
  %v4903 = vld [vmem:[%s4901 + $0x4] sm:$0xf]
  %v4904 = vld [vmem:[%s4901 + $0x8] sm:$0xf]
  %v4905 = vld [vmem:[%s4901 + $0xc] sm:$0xf]
  %v4910 = vunpack.c.l.b16 %v4902
  %v4911 = vunpack.c.l.b16 %v4903
  %v4912 = vunpack.c.l.b16 %v4904
  %v4913 = vunpack.c.l.b16 %v4905
  %v4914 = vpack.c.b16 %v4911, %v4910
  %v4915 = vpack.c.b16 %v4913, %v4912
  %v4919 = vsel %vm303, %v4243, 0
  %v4922 = vsel %vm303, %v4244, 0
  %4924 = vmatpush.bf16.msra.mxu0 0
  %4925 = vmatpush.bf16.msra.mxu0 0
  %4926 = vmatpush.bf16.msra.mxu0 0
  %4927 = vmatpush.bf16.msra.mxu0 0
  %4928 = vmatpush.bf16.msra.mxu0 0
  %4929 = vmatpush.bf16.msra.mxu0 0
  %4930 = vmatpush.bf16.msra.mxu0 %v4915
  %4931 = vmatpush.bf16.msra.mxu0 %v4914
  %4932 = vmatmul.bf16.gmra.mxu0 %v4919
  %v4933 = vpop.f32.mrf.mxu0
  %v4934 = vadd.f32 0.0, %v4933
  %v4935 = vpop.f32.mrf.mxu0
  %v4936 = vadd.f32 0.0, %v4935
  %4937 = vmatmul.bf16.gmra.mxu0 %v4922
  %v4938 = vpop.f32.mrf.mxu0
  %v4939 = vadd.f32 0.0, %v4938
  %v4940 = vpop.f32.mrf.mxu0
  %v4941 = vadd.f32 0.0, %v4940
  %4942 = vdwg.mxu0
  %v4943 = vadd.f32 %v4897, %v4934
  %v4944 = vadd.f32 %v4898, %v4936
  %v4945 = vadd.f32 %v4899, %v4939
  %v4946 = vadd.f32 %v4900, %v4941
  %s4947 = scalar_lea.vmem %s19, 2
  %v4948 = vld [vmem:[%s4947] sm:$0x1]
  %v4950 = vperm.slane %v4948, 0
  %v4952 = vadd.f32 %v4943, %v4950
  %v4953 = vadd.f32 %v4944, %v4950
  %v4954 = vadd.f32 %v4945, %v4950
  %v4955 = vadd.f32 %v4946, %v4950
  %v4956 = vmul.f32 %v4952, 0.5
  %v4957 = vmul.f32 %v4953, 0.5
  %v4958 = vmul.f32 %v4954, 0.5
  %v4959 = vmul.f32 %v4955, 0.5
  %v4960 = vmul.f32 %v4952, 0.70710677
  %v4961 = vmul.f32 %v4953, 0.70710677
  %v4962 = vmul.f32 %v4954, 0.70710677
  %v4963 = vmul.f32 %v4955, 0.70710677
  %v4964 = vand.u32 2147483647, %v4960
  %v4965 = vand.u32 2147483647, %v4961
  %v4966 = vand.u32 2147483647, %v4962
  %v4967 = vand.u32 2147483647, %v4963
  %v4968 = vmul.f32 %v4964, 0.3275911
  %v4969 = vmul.f32 %v4965, 0.3275911
  %v4970 = vmul.f32 %v4966, 0.3275911
  %v4971 = vmul.f32 %v4967, 0.3275911
  %v4972 = vadd.f32 %v4968, 1.0
  %v4973 = vadd.f32 %v4969, 1.0
  %v4974 = vadd.f32 %v4970, 1.0
  %v4975 = vadd.f32 %v4971, 1.0
  %v4976 = vrcp.pop %v4972
  %v4977 = vmul.f32 %v4972, %v4976
  %v4978 = vsub.f32 1.0, %v4977
  %v4979 = vmul.f32 %v4976, %v4978
  %v4980 = vadd.f32 %v4976, %v4979
  %vm4981 = vweird.f32 %v4972
  %vm4982 = vweird.f32 %v4976
  %vm4983 = vmor %vm4981, %vm4982
  %v4984 = vsel %vm4983, %v4976, %v4980
  %v4985 = vand.u32 2147483647, %v4972
  %vm4986 = vcmp.eq.f32.partialorder %v4985, 8.507059e+37
  %v4987 = vand.u32 %v4972, 2147483648
  %v4988 = vor.u32 1.1754944e-38, %v4987
  %v4989 = vsel %vm4986, %v4988, %v4984
  %v4990 = vmul.f32 1.0, %v4989
  %v4991 = vrcp.pop %v4973
  %v4992 = vmul.f32 %v4973, %v4991
  %v4993 = vsub.f32 1.0, %v4992
  %v4994 = vmul.f32 %v4991, %v4993
  %v4995 = vadd.f32 %v4991, %v4994
  %vm4996 = vweird.f32 %v4973
  %vm4997 = vweird.f32 %v4991
  %vm4998 = vmor %vm4996, %vm4997
  %v4999 = vsel %vm4998, %v4991, %v4995
  %v5000 = vand.u32 2147483647, %v4973
  %vm5001 = vcmp.eq.f32.partialorder %v5000, 8.507059e+37
  %v5002 = vand.u32 %v4973, 2147483648
  %v5003 = vor.u32 1.1754944e-38, %v5002
  %v5004 = vsel %vm5001, %v5003, %v4999
  %v5005 = vmul.f32 1.0, %v5004
  %v5006 = vrcp.pop %v4974
  %v5007 = vmul.f32 %v4974, %v5006
  %v5008 = vsub.f32 1.0, %v5007
  %v5009 = vmul.f32 %v5006, %v5008
  %v5010 = vadd.f32 %v5006, %v5009
  %vm5011 = vweird.f32 %v4974
  %vm5012 = vweird.f32 %v5006
  %vm5013 = vmor %vm5011, %vm5012
  %v5014 = vsel %vm5013, %v5006, %v5010
  %v5015 = vand.u32 2147483647, %v4974
  %vm5016 = vcmp.eq.f32.partialorder %v5015, 8.507059e+37
  %v5017 = vand.u32 %v4974, 2147483648
  %v5018 = vor.u32 1.1754944e-38, %v5017
  %v5019 = vsel %vm5016, %v5018, %v5014
  %v5020 = vmul.f32 1.0, %v5019
  %v5021 = vrcp.pop %v4975
  %v5022 = vmul.f32 %v4975, %v5021
  %v5023 = vsub.f32 1.0, %v5022
  %v5024 = vmul.f32 %v5021, %v5023
  %v5025 = vadd.f32 %v5021, %v5024
  %vm5026 = vweird.f32 %v4975
  %vm5027 = vweird.f32 %v5021
  %vm5028 = vmor %vm5026, %vm5027
  %v5029 = vsel %vm5028, %v5021, %v5025
  %v5030 = vand.u32 2147483647, %v4975
  %vm5031 = vcmp.eq.f32.partialorder %v5030, 8.507059e+37
  %v5032 = vand.u32 %v4975, 2147483648
  %v5033 = vor.u32 1.1754944e-38, %v5032
  %v5034 = vsel %vm5031, %v5033, %v5029
  %v5035 = vmul.f32 1.0, %v5034
  %v5036 = vmul.f32 %v4990, 1.0614054
  %v5037 = vmul.f32 %v5005, 1.0614054
  %v5038 = vmul.f32 %v5020, 1.0614054
  %v5039 = vmul.f32 %v5035, 1.0614054
  %v5040 = vadd.f32 %v5036, -1.4531521
  %v5041 = vadd.f32 %v5037, -1.4531521
  %v5042 = vadd.f32 %v5038, -1.4531521
  %v5043 = vadd.f32 %v5039, -1.4531521
  %v5044 = vmul.f32 %v5040, %v4990
  %v5045 = vmul.f32 %v5041, %v5005
  %v5046 = vmul.f32 %v5042, %v5020
  %v5047 = vmul.f32 %v5043, %v5035
  %v5048 = vadd.f32 %v5044, 1.4214138
  %v5049 = vadd.f32 %v5045, 1.4214138
  %v5050 = vadd.f32 %v5046, 1.4214138
  %v5051 = vadd.f32 %v5047, 1.4214138
  %v5052 = vmul.f32 %v5048, %v4990
  %v5053 = vmul.f32 %v5049, %v5005
  %v5054 = vmul.f32 %v5050, %v5020
  %v5055 = vmul.f32 %v5051, %v5035
  %v5056 = vadd.f32 %v5052, -0.28449672
  %v5057 = vadd.f32 %v5053, -0.28449672
  %v5058 = vadd.f32 %v5054, -0.28449672
  %v5059 = vadd.f32 %v5055, -0.28449672
  %v5060 = vmul.f32 %v5056, %v4990
  %v5061 = vmul.f32 %v5057, %v5005
  %v5062 = vmul.f32 %v5058, %v5020
  %v5063 = vmul.f32 %v5059, %v5035
  %v5064 = vadd.f32 %v5060, 0.2548296
  %v5065 = vadd.f32 %v5061, 0.2548296
  %v5066 = vadd.f32 %v5062, 0.2548296
  %v5067 = vadd.f32 %v5063, 0.2548296
  %v5068 = vmul.f32 %v5064, %v4990
  %v5069 = vmul.f32 %v5065, %v5005
  %v5070 = vmul.f32 %v5066, %v5020
  %v5071 = vmul.f32 %v5067, %v5035
  %v5072 = vsub.f32 0.0, %v4964
  %v5073 = vsub.f32 0.0, %v4965
  %v5074 = vsub.f32 0.0, %v4966
  %v5075 = vsub.f32 0.0, %v4967
  %v5076 = vmul.f32 %v5072, %v4964
  %v5077 = vmul.f32 %v5073, %v4965
  %v5078 = vmul.f32 %v5074, %v4966
  %v5079 = vmul.f32 %v5075, %v4967
  %v5080 = vmul.f32 %v5076, 1.442695
  %v5081 = vpow.pop %v5080
  %v5082 = vmul.f32 %v5077, 1.442695
  %v5083 = vpow.pop %v5082
  %v5084 = vmul.f32 %v5078, 1.442695
  %v5085 = vpow.pop %v5084
  %v5086 = vmul.f32 %v5079, 1.442695
  %v5087 = vpow.pop %v5086
  %v5088 = vmul.f32 %v5068, %v5081
  %v5089 = vmul.f32 %v5069, %v5083
  %v5090 = vmul.f32 %v5070, %v5085
  %v5091 = vmul.f32 %v5071, %v5087
  %v5092 = vsub.f32 1.0, %v5088
  %v5093 = vsub.f32 1.0, %v5089
  %v5094 = vsub.f32 1.0, %v5090
  %v5095 = vsub.f32 1.0, %v5091
  %vm5096 = vcmp.ge.f32.partialorder %v4960, 0.0
  %vm5097 = vcmp.ge.f32.partialorder %v4961, 0.0
  %vm5098 = vcmp.ge.f32.partialorder %v4962, 0.0
  %vm5099 = vcmp.ge.f32.partialorder %v4963, 0.0
  %v5100 = vsub.f32 0.0, %v5092
  %v5101 = vsub.f32 0.0, %v5093
  %v5102 = vsub.f32 0.0, %v5094
  %v5103 = vsub.f32 0.0, %v5095
  %v5104 = vsel %vm5096, %v5092, %v5100
  %v5105 = vsel %vm5097, %v5093, %v5101
  %v5106 = vsel %vm5098, %v5094, %v5102
  %v5107 = vsel %vm5099, %v5095, %v5103
  %v5108 = vadd.f32 %v5104, 1.0
  %v5109 = vadd.f32 %v5105, 1.0
  %v5110 = vadd.f32 %v5106, 1.0
  %v5111 = vadd.f32 %v5107, 1.0
  %v5112 = vmul.f32 %v4956, %v5108
  %v5113 = vmul.f32 %v4957, %v5109
  %v5114 = vmul.f32 %v4958, %v5110
  %v5115 = vmul.f32 %v4959, %v5111
  %s5116 = scalar_lea.vmem %s12, 12
  %v5117 = vld [vmem:[%s5116] sm:$0x7]
  %s5118 = scalar_lea.vmem %s13, 3
  %v5119 = vld [vmem:[%s5118] sm:$0x1]
  %v5121 = vperm.slane %v5119, 0
  %v5124 = vsel %vm222, %v5117, 0
  %5126 = vmatpush.bf16.msra.mxu0 0
  %5127 = vmatpush.bf16.msra.mxu0 0
  %5128 = vmatpush.bf16.msra.mxu0 0
  %5129 = vmatpush.bf16.msra.mxu0 0
  %5130 = vmatpush.bf16.msra.mxu0 0
  %5131 = vmatpush.bf16.msra.mxu0 0
  %5132 = vmatpush.bf16.msra.mxu0 0
  %5133 = vmatpush.bf16.msra.mxu0 %v5124
  %5134 = vmatmul.bf16.gmra.mxu0 %v205
  %v5135 = vpop.f32.mrf.mxu0
  %v5136 = vadd.f32 %v5121, %v5135
  %v5137 = vpop.f32.mrf.mxu0
  %v5138 = vadd.f32 %v5121, %v5137
  %5139 = vmatmul.bf16.gmra.mxu0 %v208
  %v5140 = vpop.f32.mrf.mxu0
  %v5141 = vadd.f32 %v5121, %v5140
  %v5142 = vpop.f32.mrf.mxu0
  %v5143 = vadd.f32 %v5121, %v5142
  %5144 = vmatmul.bf16.gmra.mxu0 %v211
  %v5145 = vpop.f32.mrf.mxu0
  %v5146 = vadd.f32 %v5121, %v5145
  %v5147 = vpop.f32.mrf.mxu0
  %v5148 = vadd.f32 %v5121, %v5147
  %5149 = vmatmul.bf16.gmra.mxu0 %v214
  %v5150 = vpop.f32.mrf.mxu0
  %v5151 = vadd.f32 %v5121, %v5150
  %v5152 = vpop.f32.mrf.mxu0
  %v5153 = vadd.f32 %v5121, %v5152
  %5154 = vmatmul.bf16.gmra.mxu0 %v217
  %v5155 = vpop.f32.mrf.mxu0
  %v5156 = vadd.f32 %v5121, %v5155
  %v5157 = vpop.f32.mrf.mxu0
  %v5158 = vadd.f32 %v5121, %v5157
  %5159 = vmatmul.bf16.gmra.mxu0 %v220
  %v5160 = vpop.f32.mrf.mxu0
  %v5161 = vadd.f32 %v5121, %v5160
  %v5162 = vpop.f32.mrf.mxu0
  %v5163 = vadd.f32 %v5121, %v5162
  %5164 = vdwg.mxu0
  %v5165 = vmax.f32 %v5136, 0.0
  %v5166 = vmax.f32 %v5138, 0.0
  %v5167 = vmax.f32 %v5141, 0.0
  %v5168 = vmax.f32 %v5143, 0.0
  %v5169 = vmax.f32 %v5146, 0.0
  %v5170 = vmax.f32 %v5148, 0.0
  %v5171 = vmax.f32 %v5151, 0.0
  %v5172 = vmax.f32 %v5153, 0.0
  %v5173 = vmax.f32 %v5156, 0.0
  %v5174 = vmax.f32 %v5158, 0.0
  %v5175 = vmax.f32 %v5161, 0.0
  %v5176 = vmax.f32 %v5163, 0.0
  %v5177 = vpack.c.bf16 %v5166, %v5165
  %v5178 = vpack.c.bf16 %v5168, %v5167
  %v5179 = vpack.c.bf16 %v5170, %v5169
  %v5180 = vpack.c.bf16 %v5172, %v5171
  %v5181 = vpack.c.bf16 %v5174, %v5173
  %v5182 = vpack.c.bf16 %v5176, %v5175
  %s5183 = scalar_lea.vmem %s14, 48
  %v5184 = vld [vmem:[%s5183] sm:$0xf]
  %v5185 = vld [vmem:[%s5183 + $0x4] sm:$0xf]
  %v5186 = vld [vmem:[%s5183 + $0x8] sm:$0xf]
  %v5187 = vld [vmem:[%s5183 + $0xc] sm:$0xf]
  %s5188 = scalar_lea.vmem %s15, 3
  %v5189 = vld [vmem:[%s5188] sm:$0x1]
  %v5191 = vperm.slane %v5189, 0
  %v5197 = vunpack.c.l.b16 %v5184
  %v5198 = vunpack.c.l.b16 %v5185
  %v5199 = vunpack.c.l.b16 %v5186
  %v5200 = vunpack.c.l.b16 %v5187
  %v5201 = vpack.c.b16 %v5198, %v5197
  %v5202 = vpack.c.b16 %v5200, %v5199
  %v5206 = vsel %vm303, %v5177, 0
  %v5209 = vsel %vm303, %v5178, 0
  %v5212 = vsel %vm303, %v5179, 0
  %v5215 = vsel %vm303, %v5180, 0
  %v5218 = vsel %vm303, %v5181, 0
  %v5221 = vsel %vm303, %v5182, 0
  %5223 = vmatpush.bf16.msra.mxu0 0
  %5224 = vmatpush.bf16.msra.mxu0 0
  %5225 = vmatpush.bf16.msra.mxu0 0
  %5226 = vmatpush.bf16.msra.mxu0 0
  %5227 = vmatpush.bf16.msra.mxu0 0
  %5228 = vmatpush.bf16.msra.mxu0 0
  %5229 = vmatpush.bf16.msra.mxu0 %v5202
  %5230 = vmatpush.bf16.msra.mxu0 %v5201
  %5231 = vmatmul.bf16.gmra.mxu0 %v5206
  %v5232 = vpop.f32.mrf.mxu0
  %v5233 = vadd.f32 %v5191, %v5232
  %v5234 = vpop.f32.mrf.mxu0
  %v5235 = vadd.f32 %v5191, %v5234
  %5236 = vmatmul.bf16.gmra.mxu0 %v5209
  %v5237 = vpop.f32.mrf.mxu0
  %v5238 = vadd.f32 %v5191, %v5237
  %v5239 = vpop.f32.mrf.mxu0
  %v5240 = vadd.f32 %v5191, %v5239
  %5241 = vmatmul.bf16.gmra.mxu0 %v5212
  %v5242 = vpop.f32.mrf.mxu0
  %v5243 = vadd.f32 %v5191, %v5242
  %v5244 = vpop.f32.mrf.mxu0
  %v5245 = vadd.f32 %v5191, %v5244
  %5246 = vmatmul.bf16.gmra.mxu0 %v5215
  %v5247 = vpop.f32.mrf.mxu0
  %v5248 = vadd.f32 %v5191, %v5247
  %v5249 = vpop.f32.mrf.mxu0
  %v5250 = vadd.f32 %v5191, %v5249
  %5251 = vmatmul.bf16.gmra.mxu0 %v5218
  %v5252 = vpop.f32.mrf.mxu0
  %v5253 = vadd.f32 %v5191, %v5252
  %v5254 = vpop.f32.mrf.mxu0
  %v5255 = vadd.f32 %v5191, %v5254
  %5256 = vmatmul.bf16.gmra.mxu0 %v5221
  %v5257 = vpop.f32.mrf.mxu0
  %v5258 = vadd.f32 %v5191, %v5257
  %v5259 = vpop.f32.mrf.mxu0
  %v5260 = vadd.f32 %v5191, %v5259
  %5261 = vdwg.mxu0
  %v5262 = vmax.f32 %v5233, 0.0
  %v5263 = vmax.f32 %v5235, 0.0
  %v5264 = vmax.f32 %v5238, 0.0
  %v5265 = vmax.f32 %v5240, 0.0
  %v5266 = vmax.f32 %v5243, 0.0
  %v5267 = vmax.f32 %v5245, 0.0
  %v5268 = vmax.f32 %v5248, 0.0
  %v5269 = vmax.f32 %v5250, 0.0
  %v5270 = vmax.f32 %v5253, 0.0
  %v5271 = vmax.f32 %v5255, 0.0
  %v5272 = vmax.f32 %v5258, 0.0
  %v5273 = vmax.f32 %v5260, 0.0
  %v5274 = vpack.c.bf16 %v5263, %v5262
  %v5275 = vpack.c.bf16 %v5265, %v5264
  %v5276 = vpack.c.bf16 %v5267, %v5266
  %v5277 = vpack.c.bf16 %v5269, %v5268
  %v5278 = vpack.c.bf16 %v5271, %v5270
  %v5279 = vpack.c.bf16 %v5273, %v5272
  %s5280 = scalar_lea.vmem %s16, 768
  %v5281 = vld [vmem:[%s5280] sm:$0xff]
  %v5282 = vld [vmem:[%s5280 + $0x8] sm:$0xff]
  %v5283 = vld [vmem:[%s5280 + $0x10] sm:$0xff]
  %v5284 = vld [vmem:[%s5280 + $0x18] sm:$0xff]
  %v5285 = vld [vmem:[%s5280 + $0x20] sm:$0xff]
  %v5286 = vld [vmem:[%s5280 + $0x28] sm:$0xff]
  %v5287 = vld [vmem:[%s5280 + $0x30] sm:$0xff]
  %v5288 = vld [vmem:[%s5280 + $0x38] sm:$0xff]
  %v5289 = vld [vmem:[%s5280 + $0x40] sm:$0xff]
  %v5290 = vld [vmem:[%s5280 + $0x48] sm:$0xff]
  %v5291 = vld [vmem:[%s5280 + $0x50] sm:$0xff]
  %v5292 = vld [vmem:[%s5280 + $0x58] sm:$0xff]
  %v5293 = vld [vmem:[%s5280 + $0x60] sm:$0xff]
  %v5294 = vld [vmem:[%s5280 + $0x68] sm:$0xff]
  %v5295 = vld [vmem:[%s5280 + $0x70] sm:$0xff]
  %v5296 = vld [vmem:[%s5280 + $0x78] sm:$0xff]
  %v5297 = vld [vmem:[%s5280 + $0x80] sm:$0xff]
  %v5298 = vld [vmem:[%s5280 + $0x88] sm:$0xff]
  %v5299 = vld [vmem:[%s5280 + $0x90] sm:$0xff]
  %v5300 = vld [vmem:[%s5280 + $0x98] sm:$0xff]
  %v5301 = vld [vmem:[%s5280 + $0xa0] sm:$0xff]
  %v5302 = vld [vmem:[%s5280 + $0xa8] sm:$0xff]
  %v5303 = vld [vmem:[%s5280 + $0xb0] sm:$0xff]
  %v5304 = vld [vmem:[%s5280 + $0xb8] sm:$0xff]
  %v5305 = vld [vmem:[%s5280 + $0xc0] sm:$0xff]
  %v5306 = vld [vmem:[%s5280 + $0xc8] sm:$0xff]
  %v5307 = vld [vmem:[%s5280 + $0xd0] sm:$0xff]
  %v5308 = vld [vmem:[%s5280 + $0xd8] sm:$0xff]
  %v5309 = vld [vmem:[%s5280 + $0xe0] sm:$0xff]
  %v5310 = vld [vmem:[%s5280 + $0xe8] sm:$0xff]
  %v5311 = vld [vmem:[%s5280 + $0xf0] sm:$0xff]
  %v5312 = vld [vmem:[%s5280 + $0xf8] sm:$0xff]
  %s5313 = scalar_lea.vmem %s17, 24
  %v5314 = vld [vmem:[%s5313] sm:$0xff]
  %v5316 = vperm.slane %v5314, 0
  %v5317 = vperm.slane %v5314, 1
  %v5318 = vperm.slane %v5314, 2
  %v5319 = vperm.slane %v5314, 3
  %v5320 = vperm.slane %v5314, 4
  %v5321 = vperm.slane %v5314, 5
  %v5322 = vperm.slane %v5314, 6
  %v5323 = vperm.slane %v5314, 7
  %v5364 = vunpack.c.l.b16 %v5281
  %v5365 = vunpack.c.h.b16 %v5281
  %v5366 = vunpack.c.l.b16 %v5282
  %v5367 = vunpack.c.h.b16 %v5282
  %v5368 = vunpack.c.l.b16 %v5283
  %v5369 = vunpack.c.h.b16 %v5283
  %v5370 = vunpack.c.l.b16 %v5284
  %v5371 = vunpack.c.h.b16 %v5284
  %v5372 = vunpack.c.l.b16 %v5285
  %v5373 = vunpack.c.h.b16 %v5285
  %v5374 = vunpack.c.l.b16 %v5286
  %v5375 = vunpack.c.h.b16 %v5286
  %v5376 = vunpack.c.l.b16 %v5287
  %v5377 = vunpack.c.h.b16 %v5287
  %v5378 = vunpack.c.l.b16 %v5288
  %v5379 = vunpack.c.h.b16 %v5288
  %v5380 = vunpack.c.l.b16 %v5289
  %v5381 = vunpack.c.h.b16 %v5289
  %v5382 = vunpack.c.l.b16 %v5290
  %v5383 = vunpack.c.h.b16 %v5290
  %v5384 = vunpack.c.l.b16 %v5291
  %v5385 = vunpack.c.h.b16 %v5291
  %v5386 = vunpack.c.l.b16 %v5292
  %v5387 = vunpack.c.h.b16 %v5292
  %v5388 = vunpack.c.l.b16 %v5293
  %v5389 = vunpack.c.h.b16 %v5293
  %v5390 = vunpack.c.l.b16 %v5294
  %v5391 = vunpack.c.h.b16 %v5294
  %v5392 = vunpack.c.l.b16 %v5295
  %v5393 = vunpack.c.h.b16 %v5295
  %v5394 = vunpack.c.l.b16 %v5296
  %v5395 = vunpack.c.h.b16 %v5296
  %v5396 = vunpack.c.l.b16 %v5297
  %v5397 = vunpack.c.h.b16 %v5297
  %v5398 = vunpack.c.l.b16 %v5298
  %v5399 = vunpack.c.h.b16 %v5298
  %v5400 = vunpack.c.l.b16 %v5299
  %v5401 = vunpack.c.h.b16 %v5299
  %v5402 = vunpack.c.l.b16 %v5300
  %v5403 = vunpack.c.h.b16 %v5300
  %v5404 = vunpack.c.l.b16 %v5301
  %v5405 = vunpack.c.h.b16 %v5301
  %v5406 = vunpack.c.l.b16 %v5302
  %v5407 = vunpack.c.h.b16 %v5302
  %v5408 = vunpack.c.l.b16 %v5303
  %v5409 = vunpack.c.h.b16 %v5303
  %v5410 = vunpack.c.l.b16 %v5304
  %v5411 = vunpack.c.h.b16 %v5304
  %v5412 = vunpack.c.l.b16 %v5305
  %v5413 = vunpack.c.h.b16 %v5305
  %v5414 = vunpack.c.l.b16 %v5306
  %v5415 = vunpack.c.h.b16 %v5306
  %v5416 = vunpack.c.l.b16 %v5307
  %v5417 = vunpack.c.h.b16 %v5307
  %v5418 = vunpack.c.l.b16 %v5308
  %v5419 = vunpack.c.h.b16 %v5308
  %v5420 = vunpack.c.l.b16 %v5309
  %v5421 = vunpack.c.h.b16 %v5309
  %v5422 = vunpack.c.l.b16 %v5310
  %v5423 = vunpack.c.h.b16 %v5310
  %v5424 = vunpack.c.l.b16 %v5311
  %v5425 = vunpack.c.h.b16 %v5311
  %v5426 = vunpack.c.l.b16 %v5312
  %v5427 = vunpack.c.h.b16 %v5312
  %v5428 = vpack.c.b16 %v5372, %v5364
  %v5429 = vpack.c.b16 %v5373, %v5365
  %v5430 = vpack.c.b16 %v5374, %v5366
  %v5431 = vpack.c.b16 %v5375, %v5367
  %v5432 = vpack.c.b16 %v5376, %v5368
  %v5433 = vpack.c.b16 %v5377, %v5369
  %v5434 = vpack.c.b16 %v5378, %v5370
  %v5435 = vpack.c.b16 %v5379, %v5371
  %v5436 = vpack.c.b16 %v5388, %v5380
  %v5437 = vpack.c.b16 %v5389, %v5381
  %v5438 = vpack.c.b16 %v5390, %v5382
  %v5439 = vpack.c.b16 %v5391, %v5383
  %v5440 = vpack.c.b16 %v5392, %v5384
  %v5441 = vpack.c.b16 %v5393, %v5385
  %v5442 = vpack.c.b16 %v5394, %v5386
  %v5443 = vpack.c.b16 %v5395, %v5387
  %v5444 = vpack.c.b16 %v5404, %v5396
  %v5445 = vpack.c.b16 %v5405, %v5397
  %v5446 = vpack.c.b16 %v5406, %v5398
  %v5447 = vpack.c.b16 %v5407, %v5399
  %v5448 = vpack.c.b16 %v5408, %v5400
  %v5449 = vpack.c.b16 %v5409, %v5401
  %v5450 = vpack.c.b16 %v5410, %v5402
  %v5451 = vpack.c.b16 %v5411, %v5403
  %v5452 = vpack.c.b16 %v5420, %v5412
  %v5453 = vpack.c.b16 %v5421, %v5413
  %v5454 = vpack.c.b16 %v5422, %v5414
  %v5455 = vpack.c.b16 %v5423, %v5415
  %v5456 = vpack.c.b16 %v5424, %v5416
  %v5457 = vpack.c.b16 %v5425, %v5417
  %v5458 = vpack.c.b16 %v5426, %v5418
  %v5459 = vpack.c.b16 %v5427, %v5419
  %v5493 = vsel %vm589, %v5274, 0
  %v5496 = vsel %vm589, %v5275, 0
  %v5499 = vsel %vm589, %v5276, 0
  %v5502 = vsel %vm589, %v5277, 0
  %v5505 = vsel %vm589, %v5278, 0
  %v5508 = vsel %vm589, %v5279, 0
  %5510 = vmatpush.bf16.msra.mxu0 0
  %5511 = vmatpush.bf16.msra.mxu0 0
  %5512 = vmatpush.bf16.msra.mxu0 0
  %5513 = vmatpush.bf16.msra.mxu0 0
  %5514 = vmatpush.bf16.msra.mxu0 %v5452
  %5515 = vmatpush.bf16.msra.mxu0 %v5444
  %5516 = vmatpush.bf16.msra.mxu0 %v5436
  %5517 = vmatpush.bf16.msra.mxu0 %v5428
  %5518 = vmatmul.bf16.gmra.mxu0 %v5493
  %v5519 = vpop.f32.mrf.mxu0
  %v5520 = vadd.f32 %v5316, %v5519
  %v5521 = vpop.f32.mrf.mxu0
  %v5522 = vadd.f32 %v5316, %v5521
  %5523 = vmatmul.bf16.gmra.mxu0 %v5496
  %v5524 = vpop.f32.mrf.mxu0
  %v5525 = vadd.f32 %v5316, %v5524
  %v5526 = vpop.f32.mrf.mxu0
  %v5527 = vadd.f32 %v5316, %v5526
  %5528 = vmatmul.bf16.gmra.mxu0 %v5499
  %v5529 = vpop.f32.mrf.mxu0
  %v5530 = vadd.f32 %v5316, %v5529
  %v5531 = vpop.f32.mrf.mxu0
  %v5532 = vadd.f32 %v5316, %v5531
  %5533 = vmatmul.bf16.gmra.mxu0 %v5502
  %v5534 = vpop.f32.mrf.mxu0
  %v5535 = vadd.f32 %v5316, %v5534
  %v5536 = vpop.f32.mrf.mxu0
  %v5537 = vadd.f32 %v5316, %v5536
  %5538 = vmatmul.bf16.gmra.mxu0 %v5505
  %v5539 = vpop.f32.mrf.mxu0
  %v5540 = vadd.f32 %v5316, %v5539
  %v5541 = vpop.f32.mrf.mxu0
  %v5542 = vadd.f32 %v5316, %v5541
  %5543 = vmatmul.bf16.gmra.mxu0 %v5508
  %v5544 = vpop.f32.mrf.mxu0
  %v5545 = vadd.f32 %v5316, %v5544
  %v5546 = vpop.f32.mrf.mxu0
  %v5547 = vadd.f32 %v5316, %v5546
  %5548 = vdwg.mxu0
  %5549 = vmatpush.bf16.msra.mxu0 0
  %5550 = vmatpush.bf16.msra.mxu0 0
  %5551 = vmatpush.bf16.msra.mxu0 0
  %5552 = vmatpush.bf16.msra.mxu0 0
  %5553 = vmatpush.bf16.msra.mxu0 %v5453
  %5554 = vmatpush.bf16.msra.mxu0 %v5445
  %5555 = vmatpush.bf16.msra.mxu0 %v5437
  %5556 = vmatpush.bf16.msra.mxu0 %v5429
  %5557 = vmatmul.bf16.gmra.mxu0 %v5493
  %v5558 = vpop.f32.mrf.mxu0
  %v5559 = vadd.f32 %v5317, %v5558
  %v5560 = vpop.f32.mrf.mxu0
  %v5561 = vadd.f32 %v5317, %v5560
  %5562 = vmatmul.bf16.gmra.mxu0 %v5496
  %v5563 = vpop.f32.mrf.mxu0
  %v5564 = vadd.f32 %v5317, %v5563
  %v5565 = vpop.f32.mrf.mxu0
  %v5566 = vadd.f32 %v5317, %v5565
  %5567 = vmatmul.bf16.gmra.mxu0 %v5499
  %v5568 = vpop.f32.mrf.mxu0
  %v5569 = vadd.f32 %v5317, %v5568
  %v5570 = vpop.f32.mrf.mxu0
  %v5571 = vadd.f32 %v5317, %v5570
  %5572 = vmatmul.bf16.gmra.mxu0 %v5502
  %v5573 = vpop.f32.mrf.mxu0
  %v5574 = vadd.f32 %v5317, %v5573
  %v5575 = vpop.f32.mrf.mxu0
  %v5576 = vadd.f32 %v5317, %v5575
  %5577 = vmatmul.bf16.gmra.mxu0 %v5505
  %v5578 = vpop.f32.mrf.mxu0
  %v5579 = vadd.f32 %v5317, %v5578
  %v5580 = vpop.f32.mrf.mxu0
  %v5581 = vadd.f32 %v5317, %v5580
  %5582 = vmatmul.bf16.gmra.mxu0 %v5508
  %v5583 = vpop.f32.mrf.mxu0
  %v5584 = vadd.f32 %v5317, %v5583
  %v5585 = vpop.f32.mrf.mxu0
  %v5586 = vadd.f32 %v5317, %v5585
  %5587 = vdwg.mxu0
  %5588 = vmatpush.bf16.msra.mxu0 0
  %5589 = vmatpush.bf16.msra.mxu0 0
  %5590 = vmatpush.bf16.msra.mxu0 0
  %5591 = vmatpush.bf16.msra.mxu0 0
  %5592 = vmatpush.bf16.msra.mxu0 %v5454
  %5593 = vmatpush.bf16.msra.mxu0 %v5446
  %5594 = vmatpush.bf16.msra.mxu0 %v5438
  %5595 = vmatpush.bf16.msra.mxu0 %v5430
  %5596 = vmatmul.bf16.gmra.mxu0 %v5493
  %v5597 = vpop.f32.mrf.mxu0
  %v5598 = vadd.f32 %v5318, %v5597
  %v5599 = vpop.f32.mrf.mxu0
  %v5600 = vadd.f32 %v5318, %v5599
  %5601 = vmatmul.bf16.gmra.mxu0 %v5496
  %v5602 = vpop.f32.mrf.mxu0
  %v5603 = vadd.f32 %v5318, %v5602
  %v5604 = vpop.f32.mrf.mxu0
  %v5605 = vadd.f32 %v5318, %v5604
  %5606 = vmatmul.bf16.gmra.mxu0 %v5499
  %v5607 = vpop.f32.mrf.mxu0
  %v5608 = vadd.f32 %v5318, %v5607
  %v5609 = vpop.f32.mrf.mxu0
  %v5610 = vadd.f32 %v5318, %v5609
  %5611 = vmatmul.bf16.gmra.mxu0 %v5502
  %v5612 = vpop.f32.mrf.mxu0
  %v5613 = vadd.f32 %v5318, %v5612
  %v5614 = vpop.f32.mrf.mxu0
  %v5615 = vadd.f32 %v5318, %v5614
  %5616 = vmatmul.bf16.gmra.mxu0 %v5505
  %v5617 = vpop.f32.mrf.mxu0
  %v5618 = vadd.f32 %v5318, %v5617
  %v5619 = vpop.f32.mrf.mxu0
  %v5620 = vadd.f32 %v5318, %v5619
  %5621 = vmatmul.bf16.gmra.mxu0 %v5508
  %v5622 = vpop.f32.mrf.mxu0
  %v5623 = vadd.f32 %v5318, %v5622
  %v5624 = vpop.f32.mrf.mxu0
  %v5625 = vadd.f32 %v5318, %v5624
  %5626 = vdwg.mxu0
  %5627 = vmatpush.bf16.msra.mxu0 0
  %5628 = vmatpush.bf16.msra.mxu0 0
  %5629 = vmatpush.bf16.msra.mxu0 0
  %5630 = vmatpush.bf16.msra.mxu0 0
  %5631 = vmatpush.bf16.msra.mxu0 %v5455
  %5632 = vmatpush.bf16.msra.mxu0 %v5447
  %5633 = vmatpush.bf16.msra.mxu0 %v5439
  %5634 = vmatpush.bf16.msra.mxu0 %v5431
  %5635 = vmatmul.bf16.gmra.mxu0 %v5493
  %v5636 = vpop.f32.mrf.mxu0
  %v5637 = vadd.f32 %v5319, %v5636
  %v5638 = vpop.f32.mrf.mxu0
  %v5639 = vadd.f32 %v5319, %v5638
  %5640 = vmatmul.bf16.gmra.mxu0 %v5496
  %v5641 = vpop.f32.mrf.mxu0
  %v5642 = vadd.f32 %v5319, %v5641
  %v5643 = vpop.f32.mrf.mxu0
  %v5644 = vadd.f32 %v5319, %v5643
  %5645 = vmatmul.bf16.gmra.mxu0 %v5499
  %v5646 = vpop.f32.mrf.mxu0
  %v5647 = vadd.f32 %v5319, %v5646
  %v5648 = vpop.f32.mrf.mxu0
  %v5649 = vadd.f32 %v5319, %v5648
  %5650 = vmatmul.bf16.gmra.mxu0 %v5502
  %v5651 = vpop.f32.mrf.mxu0
  %v5652 = vadd.f32 %v5319, %v5651
  %v5653 = vpop.f32.mrf.mxu0
  %v5654 = vadd.f32 %v5319, %v5653
  %5655 = vmatmul.bf16.gmra.mxu0 %v5505
  %v5656 = vpop.f32.mrf.mxu0
  %v5657 = vadd.f32 %v5319, %v5656
  %v5658 = vpop.f32.mrf.mxu0
  %v5659 = vadd.f32 %v5319, %v5658
  %5660 = vmatmul.bf16.gmra.mxu0 %v5508
  %v5661 = vpop.f32.mrf.mxu0
  %v5662 = vadd.f32 %v5319, %v5661
  %v5663 = vpop.f32.mrf.mxu0
  %v5664 = vadd.f32 %v5319, %v5663
  %5665 = vdwg.mxu0
  %5666 = vmatpush.bf16.msra.mxu0 0
  %5667 = vmatpush.bf16.msra.mxu0 0
  %5668 = vmatpush.bf16.msra.mxu0 0
  %5669 = vmatpush.bf16.msra.mxu0 0
  %5670 = vmatpush.bf16.msra.mxu0 %v5456
  %5671 = vmatpush.bf16.msra.mxu0 %v5448
  %5672 = vmatpush.bf16.msra.mxu0 %v5440
  %5673 = vmatpush.bf16.msra.mxu0 %v5432
  %5674 = vmatmul.bf16.gmra.mxu0 %v5493
  %v5675 = vpop.f32.mrf.mxu0
  %v5676 = vadd.f32 %v5320, %v5675
  %v5677 = vpop.f32.mrf.mxu0
  %v5678 = vadd.f32 %v5320, %v5677
  %5679 = vmatmul.bf16.gmra.mxu0 %v5496
  %v5680 = vpop.f32.mrf.mxu0
  %v5681 = vadd.f32 %v5320, %v5680
  %v5682 = vpop.f32.mrf.mxu0
  %v5683 = vadd.f32 %v5320, %v5682
  %5684 = vmatmul.bf16.gmra.mxu0 %v5499
  %v5685 = vpop.f32.mrf.mxu0
  %v5686 = vadd.f32 %v5320, %v5685
  %v5687 = vpop.f32.mrf.mxu0
  %v5688 = vadd.f32 %v5320, %v5687
  %5689 = vmatmul.bf16.gmra.mxu0 %v5502
  %v5690 = vpop.f32.mrf.mxu0
  %v5691 = vadd.f32 %v5320, %v5690
  %v5692 = vpop.f32.mrf.mxu0
  %v5693 = vadd.f32 %v5320, %v5692
  %5694 = vmatmul.bf16.gmra.mxu0 %v5505
  %v5695 = vpop.f32.mrf.mxu0
  %v5696 = vadd.f32 %v5320, %v5695
  %v5697 = vpop.f32.mrf.mxu0
  %v5698 = vadd.f32 %v5320, %v5697
  %5699 = vmatmul.bf16.gmra.mxu0 %v5508
  %v5700 = vpop.f32.mrf.mxu0
  %v5701 = vadd.f32 %v5320, %v5700
  %v5702 = vpop.f32.mrf.mxu0
  %v5703 = vadd.f32 %v5320, %v5702
  %5704 = vdwg.mxu0
  %5705 = vmatpush.bf16.msra.mxu0 0
  %5706 = vmatpush.bf16.msra.mxu0 0
  %5707 = vmatpush.bf16.msra.mxu0 0
  %5708 = vmatpush.bf16.msra.mxu0 0
  %5709 = vmatpush.bf16.msra.mxu0 %v5457
  %5710 = vmatpush.bf16.msra.mxu0 %v5449
  %5711 = vmatpush.bf16.msra.mxu0 %v5441
  %5712 = vmatpush.bf16.msra.mxu0 %v5433
  %5713 = vmatmul.bf16.gmra.mxu0 %v5493
  %v5714 = vpop.f32.mrf.mxu0
  %v5715 = vadd.f32 %v5321, %v5714
  %v5716 = vpop.f32.mrf.mxu0
  %v5717 = vadd.f32 %v5321, %v5716
  %5718 = vmatmul.bf16.gmra.mxu0 %v5496
  %v5719 = vpop.f32.mrf.mxu0
  %v5720 = vadd.f32 %v5321, %v5719
  %v5721 = vpop.f32.mrf.mxu0
  %v5722 = vadd.f32 %v5321, %v5721
  %5723 = vmatmul.bf16.gmra.mxu0 %v5499
  %v5724 = vpop.f32.mrf.mxu0
  %v5725 = vadd.f32 %v5321, %v5724
  %v5726 = vpop.f32.mrf.mxu0
  %v5727 = vadd.f32 %v5321, %v5726
  %5728 = vmatmul.bf16.gmra.mxu0 %v5502
  %v5729 = vpop.f32.mrf.mxu0
  %v5730 = vadd.f32 %v5321, %v5729
  %v5731 = vpop.f32.mrf.mxu0
  %v5732 = vadd.f32 %v5321, %v5731
  %5733 = vmatmul.bf16.gmra.mxu0 %v5505
  %v5734 = vpop.f32.mrf.mxu0
  %v5735 = vadd.f32 %v5321, %v5734
  %v5736 = vpop.f32.mrf.mxu0
  %v5737 = vadd.f32 %v5321, %v5736
  %5738 = vmatmul.bf16.gmra.mxu0 %v5508
  %v5739 = vpop.f32.mrf.mxu0
  %v5740 = vadd.f32 %v5321, %v5739
  %v5741 = vpop.f32.mrf.mxu0
  %v5742 = vadd.f32 %v5321, %v5741
  %5743 = vdwg.mxu0
  %5744 = vmatpush.bf16.msra.mxu0 0
  %5745 = vmatpush.bf16.msra.mxu0 0
  %5746 = vmatpush.bf16.msra.mxu0 0
  %5747 = vmatpush.bf16.msra.mxu0 0
  %5748 = vmatpush.bf16.msra.mxu0 %v5458
  %5749 = vmatpush.bf16.msra.mxu0 %v5450
  %5750 = vmatpush.bf16.msra.mxu0 %v5442
  %5751 = vmatpush.bf16.msra.mxu0 %v5434
  %5752 = vmatmul.bf16.gmra.mxu0 %v5493
  %v5753 = vpop.f32.mrf.mxu0
  %v5754 = vadd.f32 %v5322, %v5753
  %v5755 = vpop.f32.mrf.mxu0
  %v5756 = vadd.f32 %v5322, %v5755
  %5757 = vmatmul.bf16.gmra.mxu0 %v5496
  %v5758 = vpop.f32.mrf.mxu0
  %v5759 = vadd.f32 %v5322, %v5758
  %v5760 = vpop.f32.mrf.mxu0
  %v5761 = vadd.f32 %v5322, %v5760
  %5762 = vmatmul.bf16.gmra.mxu0 %v5499
  %v5763 = vpop.f32.mrf.mxu0
  %v5764 = vadd.f32 %v5322, %v5763
  %v5765 = vpop.f32.mrf.mxu0
  %v5766 = vadd.f32 %v5322, %v5765
  %5767 = vmatmul.bf16.gmra.mxu0 %v5502
  %v5768 = vpop.f32.mrf.mxu0
  %v5769 = vadd.f32 %v5322, %v5768
  %v5770 = vpop.f32.mrf.mxu0
  %v5771 = vadd.f32 %v5322, %v5770
  %5772 = vmatmul.bf16.gmra.mxu0 %v5505
  %v5773 = vpop.f32.mrf.mxu0
  %v5774 = vadd.f32 %v5322, %v5773
  %v5775 = vpop.f32.mrf.mxu0
  %v5776 = vadd.f32 %v5322, %v5775
  %5777 = vmatmul.bf16.gmra.mxu0 %v5508
  %v5778 = vpop.f32.mrf.mxu0
  %v5779 = vadd.f32 %v5322, %v5778
  %v5780 = vpop.f32.mrf.mxu0
  %v5781 = vadd.f32 %v5322, %v5780
  %5782 = vdwg.mxu0
  %5783 = vmatpush.bf16.msra.mxu0 0
  %5784 = vmatpush.bf16.msra.mxu0 0
  %5785 = vmatpush.bf16.msra.mxu0 0
  %5786 = vmatpush.bf16.msra.mxu0 0
  %5787 = vmatpush.bf16.msra.mxu0 %v5459
  %5788 = vmatpush.bf16.msra.mxu0 %v5451
  %5789 = vmatpush.bf16.msra.mxu0 %v5443
  %5790 = vmatpush.bf16.msra.mxu0 %v5435
  %5791 = vmatmul.bf16.gmra.mxu0 %v5493
  %v5792 = vpop.f32.mrf.mxu0
  %v5793 = vadd.f32 %v5323, %v5792
  %v5794 = vpop.f32.mrf.mxu0
  %v5795 = vadd.f32 %v5323, %v5794
  %5796 = vmatmul.bf16.gmra.mxu0 %v5496
  %v5797 = vpop.f32.mrf.mxu0
  %v5798 = vadd.f32 %v5323, %v5797
  %v5799 = vpop.f32.mrf.mxu0
  %v5800 = vadd.f32 %v5323, %v5799
  %5801 = vmatmul.bf16.gmra.mxu0 %v5499
  %v5802 = vpop.f32.mrf.mxu0
  %v5803 = vadd.f32 %v5323, %v5802
  %v5804 = vpop.f32.mrf.mxu0
  %v5805 = vadd.f32 %v5323, %v5804
  %5806 = vmatmul.bf16.gmra.mxu0 %v5502
  %v5807 = vpop.f32.mrf.mxu0
  %v5808 = vadd.f32 %v5323, %v5807
  %v5809 = vpop.f32.mrf.mxu0
  %v5810 = vadd.f32 %v5323, %v5809
  %5811 = vmatmul.bf16.gmra.mxu0 %v5505
  %v5812 = vpop.f32.mrf.mxu0
  %v5813 = vadd.f32 %v5323, %v5812
  %v5814 = vpop.f32.mrf.mxu0
  %v5815 = vadd.f32 %v5323, %v5814
  %5816 = vmatmul.bf16.gmra.mxu0 %v5508
  %v5817 = vpop.f32.mrf.mxu0
  %v5818 = vadd.f32 %v5323, %v5817
  %v5819 = vpop.f32.mrf.mxu0
  %v5820 = vadd.f32 %v5323, %v5819
  %5821 = vdwg.mxu0
  %v5822 = vpack.c.bf16 %v5113, %v5112
  %v5823 = vpack.c.bf16 %v5115, %v5114
  %5824 = vmatpush.bf16.msra.mxu0 0
  %5825 = vmatpush.bf16.msra.mxu0 0
  %5826 = vmatpush.bf16.msra.mxu0 0
  %5827 = vmatpush.bf16.msra.mxu0 0
  %5828 = vmatpush.bf16.msra.mxu0 0
  %5829 = vmatpush.bf16.msra.mxu0 0
  %5830 = vmatpush.bf16.msra.mxu0 %v5823
  %5831 = vmatpush.bf16.msra.mxu0 %v5822
  %5832 = vmatmul.bf16.gmra.mxu0 %v953
  %v5833 = vpop.f32.mrf.mxu0
  %v5834 = vadd.f32 0.0, %v5833
  %v5835 = vpop.f32.mrf.mxu0
  %v5836 = vadd.f32 0.0, %v5835
  %5837 = vmatmul.bf16.gmra.mxu0 %v956
  %v5838 = vpop.f32.mrf.mxu0
  %v5839 = vadd.f32 0.0, %v5838
  %v5840 = vpop.f32.mrf.mxu0
  %v5841 = vadd.f32 0.0, %v5840
  %5842 = vmatmul.bf16.gmra.mxu0 %v959
  %v5843 = vpop.f32.mrf.mxu0
  %v5844 = vadd.f32 0.0, %v5843
  %v5845 = vpop.f32.mrf.mxu0
  %v5846 = vadd.f32 0.0, %v5845
  %5847 = vmatmul.bf16.gmra.mxu0 %v962
  %v5848 = vpop.f32.mrf.mxu0
  %v5849 = vadd.f32 0.0, %v5848
  %v5850 = vpop.f32.mrf.mxu0
  %v5851 = vadd.f32 0.0, %v5850
  %5852 = vmatmul.bf16.gmra.mxu0 %v965
  %v5853 = vpop.f32.mrf.mxu0
  %v5854 = vadd.f32 0.0, %v5853
  %v5855 = vpop.f32.mrf.mxu0
  %v5856 = vadd.f32 0.0, %v5855
  %5857 = vmatmul.bf16.gmra.mxu0 %v968
  %v5858 = vpop.f32.mrf.mxu0
  %v5859 = vadd.f32 0.0, %v5858
  %v5860 = vpop.f32.mrf.mxu0
  %v5861 = vadd.f32 0.0, %v5860
  %5862 = vdwg.mxu0
  %v5863 = vpack.c.bf16 %v5836, %v5834
  %v5864 = vpack.c.bf16 %v5841, %v5839
  %v5865 = vpack.c.bf16 %v5846, %v5844
  %v5866 = vpack.c.bf16 %v5851, %v5849
  %v5867 = vpack.c.bf16 %v5856, %v5854
  %v5868 = vpack.c.bf16 %v5861, %v5859
  %v5870 = vsel %vm303, %v5863, 0
  %v5873 = vsel %vm303, %v5864, 0
  %v5876 = vsel %vm303, %v5865, 0
  %v5879 = vsel %vm303, %v5866, 0
  %v5882 = vsel %vm303, %v5867, 0
  %v5885 = vsel %vm303, %v5868, 0
  %5887 = vmatpush.bf16.msra.mxu0 0
  %5888 = vmatpush.bf16.msra.mxu0 0
  %5889 = vmatpush.bf16.msra.mxu0 0
  %5890 = vmatpush.bf16.msra.mxu0 0
  %5891 = vmatpush.bf16.msra.mxu0 0
  %5892 = vmatpush.bf16.msra.mxu0 0
  %5893 = vmatpush.bf16.msra.mxu0 %v1071
  %5894 = vmatpush.bf16.msra.mxu0 %v1063
  %5895 = vmatmul.bf16.gmra.mxu0 %v5870
  %v5896 = vpop.f32.mrf.mxu0
  %v5897 = vadd.f32 0.0, %v5896
  %v5898 = vpop.f32.mrf.mxu0
  %v5899 = vadd.f32 0.0, %v5898
  %5900 = vmatmul.bf16.gmra.mxu0 %v5873
  %v5901 = vpop.f32.mrf.mxu0
  %v5902 = vadd.f32 0.0, %v5901
  %v5903 = vpop.f32.mrf.mxu0
  %v5904 = vadd.f32 0.0, %v5903
  %5905 = vmatmul.bf16.gmra.mxu0 %v5876
  %v5906 = vpop.f32.mrf.mxu0
  %v5907 = vadd.f32 0.0, %v5906
  %v5908 = vpop.f32.mrf.mxu0
  %v5909 = vadd.f32 0.0, %v5908
  %5910 = vmatmul.bf16.gmra.mxu0 %v5879
  %v5911 = vpop.f32.mrf.mxu0
  %v5912 = vadd.f32 0.0, %v5911
  %v5913 = vpop.f32.mrf.mxu0
  %v5914 = vadd.f32 0.0, %v5913
  %5915 = vmatmul.bf16.gmra.mxu0 %v5882
  %v5916 = vpop.f32.mrf.mxu0
  %v5917 = vadd.f32 0.0, %v5916
  %v5918 = vpop.f32.mrf.mxu0
  %v5919 = vadd.f32 0.0, %v5918
  %5920 = vmatmul.bf16.gmra.mxu0 %v5885
  %v5921 = vpop.f32.mrf.mxu0
  %v5922 = vadd.f32 0.0, %v5921
  %v5923 = vpop.f32.mrf.mxu0
  %v5924 = vadd.f32 0.0, %v5923
  %5925 = vdwg.mxu0
  %5926 = vmatpush.bf16.msra.mxu0 0
  %5927 = vmatpush.bf16.msra.mxu0 0
  %5928 = vmatpush.bf16.msra.mxu0 0
  %5929 = vmatpush.bf16.msra.mxu0 0
  %5930 = vmatpush.bf16.msra.mxu0 0
  %5931 = vmatpush.bf16.msra.mxu0 0
  %5932 = vmatpush.bf16.msra.mxu0 %v1072
  %5933 = vmatpush.bf16.msra.mxu0 %v1064
  %5934 = vmatmul.bf16.gmra.mxu0 %v5870
  %v5935 = vpop.f32.mrf.mxu0
  %v5936 = vadd.f32 0.0, %v5935
  %v5937 = vpop.f32.mrf.mxu0
  %v5938 = vadd.f32 0.0, %v5937
  %5939 = vmatmul.bf16.gmra.mxu0 %v5873
  %v5940 = vpop.f32.mrf.mxu0
  %v5941 = vadd.f32 0.0, %v5940
  %v5942 = vpop.f32.mrf.mxu0
  %v5943 = vadd.f32 0.0, %v5942
  %5944 = vmatmul.bf16.gmra.mxu0 %v5876
  %v5945 = vpop.f32.mrf.mxu0
  %v5946 = vadd.f32 0.0, %v5945
  %v5947 = vpop.f32.mrf.mxu0
  %v5948 = vadd.f32 0.0, %v5947
  %5949 = vmatmul.bf16.gmra.mxu0 %v5879
  %v5950 = vpop.f32.mrf.mxu0
  %v5951 = vadd.f32 0.0, %v5950
  %v5952 = vpop.f32.mrf.mxu0
  %v5953 = vadd.f32 0.0, %v5952
  %5954 = vmatmul.bf16.gmra.mxu0 %v5882
  %v5955 = vpop.f32.mrf.mxu0
  %v5956 = vadd.f32 0.0, %v5955
  %v5957 = vpop.f32.mrf.mxu0
  %v5958 = vadd.f32 0.0, %v5957
  %5959 = vmatmul.bf16.gmra.mxu0 %v5885
  %v5960 = vpop.f32.mrf.mxu0
  %v5961 = vadd.f32 0.0, %v5960
  %v5962 = vpop.f32.mrf.mxu0
  %v5963 = vadd.f32 0.0, %v5962
  %5964 = vdwg.mxu0
  %5965 = vmatpush.bf16.msra.mxu0 0
  %5966 = vmatpush.bf16.msra.mxu0 0
  %5967 = vmatpush.bf16.msra.mxu0 0
  %5968 = vmatpush.bf16.msra.mxu0 0
  %5969 = vmatpush.bf16.msra.mxu0 0
  %5970 = vmatpush.bf16.msra.mxu0 0
  %5971 = vmatpush.bf16.msra.mxu0 %v1073
  %5972 = vmatpush.bf16.msra.mxu0 %v1065
  %5973 = vmatmul.bf16.gmra.mxu0 %v5870
  %v5974 = vpop.f32.mrf.mxu0
  %v5975 = vadd.f32 0.0, %v5974
  %v5976 = vpop.f32.mrf.mxu0
  %v5977 = vadd.f32 0.0, %v5976
  %5978 = vmatmul.bf16.gmra.mxu0 %v5873
  %v5979 = vpop.f32.mrf.mxu0
  %v5980 = vadd.f32 0.0, %v5979
  %v5981 = vpop.f32.mrf.mxu0
  %v5982 = vadd.f32 0.0, %v5981
  %5983 = vmatmul.bf16.gmra.mxu0 %v5876
  %v5984 = vpop.f32.mrf.mxu0
  %v5985 = vadd.f32 0.0, %v5984
  %v5986 = vpop.f32.mrf.mxu0
  %v5987 = vadd.f32 0.0, %v5986
  %5988 = vmatmul.bf16.gmra.mxu0 %v5879
  %v5989 = vpop.f32.mrf.mxu0
  %v5990 = vadd.f32 0.0, %v5989
  %v5991 = vpop.f32.mrf.mxu0
  %v5992 = vadd.f32 0.0, %v5991
  %5993 = vmatmul.bf16.gmra.mxu0 %v5882
  %v5994 = vpop.f32.mrf.mxu0
  %v5995 = vadd.f32 0.0, %v5994
  %v5996 = vpop.f32.mrf.mxu0
  %v5997 = vadd.f32 0.0, %v5996
  %5998 = vmatmul.bf16.gmra.mxu0 %v5885
  %v5999 = vpop.f32.mrf.mxu0
  %v6000 = vadd.f32 0.0, %v5999
  %v6001 = vpop.f32.mrf.mxu0
  %v6002 = vadd.f32 0.0, %v6001
  %6003 = vdwg.mxu0
  %6004 = vmatpush.bf16.msra.mxu0 0
  %6005 = vmatpush.bf16.msra.mxu0 0
  %6006 = vmatpush.bf16.msra.mxu0 0
  %6007 = vmatpush.bf16.msra.mxu0 0
  %6008 = vmatpush.bf16.msra.mxu0 0
  %6009 = vmatpush.bf16.msra.mxu0 0
  %6010 = vmatpush.bf16.msra.mxu0 %v1074
  %6011 = vmatpush.bf16.msra.mxu0 %v1066
  %6012 = vmatmul.bf16.gmra.mxu0 %v5870
  %v6013 = vpop.f32.mrf.mxu0
  %v6014 = vadd.f32 0.0, %v6013
  %v6015 = vpop.f32.mrf.mxu0
  %v6016 = vadd.f32 0.0, %v6015
  %6017 = vmatmul.bf16.gmra.mxu0 %v5873
  %v6018 = vpop.f32.mrf.mxu0
  %v6019 = vadd.f32 0.0, %v6018
  %v6020 = vpop.f32.mrf.mxu0
  %v6021 = vadd.f32 0.0, %v6020
  %6022 = vmatmul.bf16.gmra.mxu0 %v5876
  %v6023 = vpop.f32.mrf.mxu0
  %v6024 = vadd.f32 0.0, %v6023
  %v6025 = vpop.f32.mrf.mxu0
  %v6026 = vadd.f32 0.0, %v6025
  %6027 = vmatmul.bf16.gmra.mxu0 %v5879
  %v6028 = vpop.f32.mrf.mxu0
  %v6029 = vadd.f32 0.0, %v6028
  %v6030 = vpop.f32.mrf.mxu0
  %v6031 = vadd.f32 0.0, %v6030
  %6032 = vmatmul.bf16.gmra.mxu0 %v5882
  %v6033 = vpop.f32.mrf.mxu0
  %v6034 = vadd.f32 0.0, %v6033
  %v6035 = vpop.f32.mrf.mxu0
  %v6036 = vadd.f32 0.0, %v6035
  %6037 = vmatmul.bf16.gmra.mxu0 %v5885
  %v6038 = vpop.f32.mrf.mxu0
  %v6039 = vadd.f32 0.0, %v6038
  %v6040 = vpop.f32.mrf.mxu0
  %v6041 = vadd.f32 0.0, %v6040
  %6042 = vdwg.mxu0
  %6043 = vmatpush.bf16.msra.mxu0 0
  %6044 = vmatpush.bf16.msra.mxu0 0
  %6045 = vmatpush.bf16.msra.mxu0 0
  %6046 = vmatpush.bf16.msra.mxu0 0
  %6047 = vmatpush.bf16.msra.mxu0 0
  %6048 = vmatpush.bf16.msra.mxu0 0
  %6049 = vmatpush.bf16.msra.mxu0 %v1075
  %6050 = vmatpush.bf16.msra.mxu0 %v1067
  %6051 = vmatmul.bf16.gmra.mxu0 %v5870
  %v6052 = vpop.f32.mrf.mxu0
  %v6053 = vadd.f32 0.0, %v6052
  %v6054 = vpop.f32.mrf.mxu0
  %v6055 = vadd.f32 0.0, %v6054
  %6056 = vmatmul.bf16.gmra.mxu0 %v5873
  %v6057 = vpop.f32.mrf.mxu0
  %v6058 = vadd.f32 0.0, %v6057
  %v6059 = vpop.f32.mrf.mxu0
  %v6060 = vadd.f32 0.0, %v6059
  %6061 = vmatmul.bf16.gmra.mxu0 %v5876
  %v6062 = vpop.f32.mrf.mxu0
  %v6063 = vadd.f32 0.0, %v6062
  %v6064 = vpop.f32.mrf.mxu0
  %v6065 = vadd.f32 0.0, %v6064
  %6066 = vmatmul.bf16.gmra.mxu0 %v5879
  %v6067 = vpop.f32.mrf.mxu0
  %v6068 = vadd.f32 0.0, %v6067
  %v6069 = vpop.f32.mrf.mxu0
  %v6070 = vadd.f32 0.0, %v6069
  %6071 = vmatmul.bf16.gmra.mxu0 %v5882
  %v6072 = vpop.f32.mrf.mxu0
  %v6073 = vadd.f32 0.0, %v6072
  %v6074 = vpop.f32.mrf.mxu0
  %v6075 = vadd.f32 0.0, %v6074
  %6076 = vmatmul.bf16.gmra.mxu0 %v5885
  %v6077 = vpop.f32.mrf.mxu0
  %v6078 = vadd.f32 0.0, %v6077
  %v6079 = vpop.f32.mrf.mxu0
  %v6080 = vadd.f32 0.0, %v6079
  %6081 = vdwg.mxu0
  %6082 = vmatpush.bf16.msra.mxu0 0
  %6083 = vmatpush.bf16.msra.mxu0 0
  %6084 = vmatpush.bf16.msra.mxu0 0
  %6085 = vmatpush.bf16.msra.mxu0 0
  %6086 = vmatpush.bf16.msra.mxu0 0
  %6087 = vmatpush.bf16.msra.mxu0 0
  %6088 = vmatpush.bf16.msra.mxu0 %v1076
  %6089 = vmatpush.bf16.msra.mxu0 %v1068
  %6090 = vmatmul.bf16.gmra.mxu0 %v5870
  %v6091 = vpop.f32.mrf.mxu0
  %v6092 = vadd.f32 0.0, %v6091
  %v6093 = vpop.f32.mrf.mxu0
  %v6094 = vadd.f32 0.0, %v6093
  %6095 = vmatmul.bf16.gmra.mxu0 %v5873
  %v6096 = vpop.f32.mrf.mxu0
  %v6097 = vadd.f32 0.0, %v6096
  %v6098 = vpop.f32.mrf.mxu0
  %v6099 = vadd.f32 0.0, %v6098
  %6100 = vmatmul.bf16.gmra.mxu0 %v5876
  %v6101 = vpop.f32.mrf.mxu0
  %v6102 = vadd.f32 0.0, %v6101
  %v6103 = vpop.f32.mrf.mxu0
  %v6104 = vadd.f32 0.0, %v6103
  %6105 = vmatmul.bf16.gmra.mxu0 %v5879
  %v6106 = vpop.f32.mrf.mxu0
  %v6107 = vadd.f32 0.0, %v6106
  %v6108 = vpop.f32.mrf.mxu0
  %v6109 = vadd.f32 0.0, %v6108
  %6110 = vmatmul.bf16.gmra.mxu0 %v5882
  %v6111 = vpop.f32.mrf.mxu0
  %v6112 = vadd.f32 0.0, %v6111
  %v6113 = vpop.f32.mrf.mxu0
  %v6114 = vadd.f32 0.0, %v6113
  %6115 = vmatmul.bf16.gmra.mxu0 %v5885
  %v6116 = vpop.f32.mrf.mxu0
  %v6117 = vadd.f32 0.0, %v6116
  %v6118 = vpop.f32.mrf.mxu0
  %v6119 = vadd.f32 0.0, %v6118
  %6120 = vdwg.mxu0
  %6121 = vmatpush.bf16.msra.mxu0 0
  %6122 = vmatpush.bf16.msra.mxu0 0
  %6123 = vmatpush.bf16.msra.mxu0 0
  %6124 = vmatpush.bf16.msra.mxu0 0
  %6125 = vmatpush.bf16.msra.mxu0 0
  %6126 = vmatpush.bf16.msra.mxu0 0
  %6127 = vmatpush.bf16.msra.mxu0 %v1077
  %6128 = vmatpush.bf16.msra.mxu0 %v1069
  %6129 = vmatmul.bf16.gmra.mxu0 %v5870
  %v6130 = vpop.f32.mrf.mxu0
  %v6131 = vadd.f32 0.0, %v6130
  %v6132 = vpop.f32.mrf.mxu0
  %v6133 = vadd.f32 0.0, %v6132
  %6134 = vmatmul.bf16.gmra.mxu0 %v5873
  %v6135 = vpop.f32.mrf.mxu0
  %v6136 = vadd.f32 0.0, %v6135
  %v6137 = vpop.f32.mrf.mxu0
  %v6138 = vadd.f32 0.0, %v6137
  %6139 = vmatmul.bf16.gmra.mxu0 %v5876
  %v6140 = vpop.f32.mrf.mxu0
  %v6141 = vadd.f32 0.0, %v6140
  %v6142 = vpop.f32.mrf.mxu0
  %v6143 = vadd.f32 0.0, %v6142
  %6144 = vmatmul.bf16.gmra.mxu0 %v5879
  %v6145 = vpop.f32.mrf.mxu0
  %v6146 = vadd.f32 0.0, %v6145
  %v6147 = vpop.f32.mrf.mxu0
  %v6148 = vadd.f32 0.0, %v6147
  %6149 = vmatmul.bf16.gmra.mxu0 %v5882
  %v6150 = vpop.f32.mrf.mxu0
  %v6151 = vadd.f32 0.0, %v6150
  %v6152 = vpop.f32.mrf.mxu0
  %v6153 = vadd.f32 0.0, %v6152
  %6154 = vmatmul.bf16.gmra.mxu0 %v5885
  %v6155 = vpop.f32.mrf.mxu0
  %v6156 = vadd.f32 0.0, %v6155
  %v6157 = vpop.f32.mrf.mxu0
  %v6158 = vadd.f32 0.0, %v6157
  %6159 = vdwg.mxu0
  %6160 = vmatpush.bf16.msra.mxu0 0
  %6161 = vmatpush.bf16.msra.mxu0 0
  %6162 = vmatpush.bf16.msra.mxu0 0
  %6163 = vmatpush.bf16.msra.mxu0 0
  %6164 = vmatpush.bf16.msra.mxu0 0
  %6165 = vmatpush.bf16.msra.mxu0 0
  %6166 = vmatpush.bf16.msra.mxu0 %v1078
  %6167 = vmatpush.bf16.msra.mxu0 %v1070
  %6168 = vmatmul.bf16.gmra.mxu0 %v5870
  %v6169 = vpop.f32.mrf.mxu0
  %v6170 = vadd.f32 0.0, %v6169
  %v6171 = vpop.f32.mrf.mxu0
  %v6172 = vadd.f32 0.0, %v6171
  %6173 = vmatmul.bf16.gmra.mxu0 %v5873
  %v6174 = vpop.f32.mrf.mxu0
  %v6175 = vadd.f32 0.0, %v6174
  %v6176 = vpop.f32.mrf.mxu0
  %v6177 = vadd.f32 0.0, %v6176
  %6178 = vmatmul.bf16.gmra.mxu0 %v5876
  %v6179 = vpop.f32.mrf.mxu0
  %v6180 = vadd.f32 0.0, %v6179
  %v6181 = vpop.f32.mrf.mxu0
  %v6182 = vadd.f32 0.0, %v6181
  %6183 = vmatmul.bf16.gmra.mxu0 %v5879
  %v6184 = vpop.f32.mrf.mxu0
  %v6185 = vadd.f32 0.0, %v6184
  %v6186 = vpop.f32.mrf.mxu0
  %v6187 = vadd.f32 0.0, %v6186
  %6188 = vmatmul.bf16.gmra.mxu0 %v5882
  %v6189 = vpop.f32.mrf.mxu0
  %v6190 = vadd.f32 0.0, %v6189
  %v6191 = vpop.f32.mrf.mxu0
  %v6192 = vadd.f32 0.0, %v6191
  %6193 = vmatmul.bf16.gmra.mxu0 %v5885
  %v6194 = vpop.f32.mrf.mxu0
  %v6195 = vadd.f32 0.0, %v6194
  %v6196 = vpop.f32.mrf.mxu0
  %v6197 = vadd.f32 0.0, %v6196
  %6198 = vdwg.mxu0
  %v6199 = vmul.f32 %v5897, %v5520
  %v6200 = vmul.f32 %v5936, %v5559
  %v6201 = vmul.f32 %v5975, %v5598
  %v6202 = vmul.f32 %v6014, %v5637
  %v6203 = vmul.f32 %v6053, %v5676
  %v6204 = vmul.f32 %v6092, %v5715
  %v6205 = vmul.f32 %v6131, %v5754
  %v6206 = vmul.f32 %v6170, %v5793
  %v6207 = vmul.f32 %v5899, %v5522
  %v6208 = vmul.f32 %v5938, %v5561
  %v6209 = vmul.f32 %v5977, %v5600
  %v6210 = vmul.f32 %v6016, %v5639
  %v6211 = vmul.f32 %v6055, %v5678
  %v6212 = vmul.f32 %v6094, %v5717
  %v6213 = vmul.f32 %v6133, %v5756
  %v6214 = vmul.f32 %v6172, %v5795
  %v6215 = vmul.f32 %v5902, %v5525
  %v6216 = vmul.f32 %v5941, %v5564
  %v6217 = vmul.f32 %v5980, %v5603
  %v6218 = vmul.f32 %v6019, %v5642
  %v6219 = vmul.f32 %v6058, %v5681
  %v6220 = vmul.f32 %v6097, %v5720
  %v6221 = vmul.f32 %v6136, %v5759
  %v6222 = vmul.f32 %v6175, %v5798
  %v6223 = vmul.f32 %v5904, %v5527
  %v6224 = vmul.f32 %v5943, %v5566
  %v6225 = vmul.f32 %v5982, %v5605
  %v6226 = vmul.f32 %v6021, %v5644
  %v6227 = vmul.f32 %v6060, %v5683
  %v6228 = vmul.f32 %v6099, %v5722
  %v6229 = vmul.f32 %v6138, %v5761
  %v6230 = vmul.f32 %v6177, %v5800
  %v6231 = vmul.f32 %v5907, %v5530
  %v6232 = vmul.f32 %v5946, %v5569
  %v6233 = vmul.f32 %v5985, %v5608
  %v6234 = vmul.f32 %v6024, %v5647
  %v6235 = vmul.f32 %v6063, %v5686
  %v6236 = vmul.f32 %v6102, %v5725
  %v6237 = vmul.f32 %v6141, %v5764
  %v6238 = vmul.f32 %v6180, %v5803
  %v6239 = vmul.f32 %v5909, %v5532
  %v6240 = vmul.f32 %v5948, %v5571
  %v6241 = vmul.f32 %v5987, %v5610
  %v6242 = vmul.f32 %v6026, %v5649
  %v6243 = vmul.f32 %v6065, %v5688
  %v6244 = vmul.f32 %v6104, %v5727
  %v6245 = vmul.f32 %v6143, %v5766
  %v6246 = vmul.f32 %v6182, %v5805
  %v6247 = vmul.f32 %v5912, %v5535
  %v6248 = vmul.f32 %v5951, %v5574
  %v6249 = vmul.f32 %v5990, %v5613
  %v6250 = vmul.f32 %v6029, %v5652
  %v6251 = vmul.f32 %v6068, %v5691
  %v6252 = vmul.f32 %v6107, %v5730
  %v6253 = vmul.f32 %v6146, %v5769
  %v6254 = vmul.f32 %v6185, %v5808
  %v6255 = vmul.f32 %v5914, %v5537
  %v6256 = vmul.f32 %v5953, %v5576
  %v6257 = vmul.f32 %v5992, %v5615
  %v6258 = vmul.f32 %v6031, %v5654
  %v6259 = vmul.f32 %v6070, %v5693
  %v6260 = vmul.f32 %v6109, %v5732
  %v6261 = vmul.f32 %v6148, %v5771
  %v6262 = vmul.f32 %v6187, %v5810
  %v6263 = vmul.f32 %v5917, %v5540
  %v6264 = vmul.f32 %v5956, %v5579
  %v6265 = vmul.f32 %v5995, %v5618
  %v6266 = vmul.f32 %v6034, %v5657
  %v6267 = vmul.f32 %v6073, %v5696
  %v6268 = vmul.f32 %v6112, %v5735
  %v6269 = vmul.f32 %v6151, %v5774
  %v6270 = vmul.f32 %v6190, %v5813
  %v6271 = vmul.f32 %v5919, %v5542
  %v6272 = vmul.f32 %v5958, %v5581
  %v6273 = vmul.f32 %v5997, %v5620
  %v6274 = vmul.f32 %v6036, %v5659
  %v6275 = vmul.f32 %v6075, %v5698
  %v6276 = vmul.f32 %v6114, %v5737
  %v6277 = vmul.f32 %v6153, %v5776
  %v6278 = vmul.f32 %v6192, %v5815
  %v6279 = vmul.f32 %v5922, %v5545
  %v6280 = vmul.f32 %v5961, %v5584
  %v6281 = vmul.f32 %v6000, %v5623
  %v6282 = vmul.f32 %v6039, %v5662
  %v6283 = vmul.f32 %v6078, %v5701
  %v6284 = vmul.f32 %v6117, %v5740
  %v6285 = vmul.f32 %v6156, %v5779
  %v6286 = vmul.f32 %v6195, %v5818
  %v6287 = vmul.f32 %v5924, %v5547
  %v6288 = vmul.f32 %v5963, %v5586
  %v6289 = vmul.f32 %v6002, %v5625
  %v6290 = vmul.f32 %v6041, %v5664
  %v6291 = vmul.f32 %v6080, %v5703
  %v6292 = vmul.f32 %v6119, %v5742
  %v6293 = vmul.f32 %v6158, %v5781
  %v6294 = vmul.f32 %v6197, %v5820
  %v6295 = vadd.f32 %v6199, %v6203
  %v6296 = vadd.f32 %v6202, %v6206
  %v6297 = vadd.f32 %v6204, %v6200
  %v6298 = vadd.f32 %v6205, %v6201
  %v6299 = vadd.f32 %v6207, %v6211
  %v6300 = vadd.f32 %v6210, %v6214
  %v6301 = vadd.f32 %v6212, %v6208
  %v6302 = vadd.f32 %v6213, %v6209
  %v6303 = vadd.f32 %v6215, %v6219
  %v6304 = vadd.f32 %v6218, %v6222
  %v6305 = vadd.f32 %v6220, %v6216
  %v6306 = vadd.f32 %v6221, %v6217
  %v6307 = vadd.f32 %v6223, %v6227
  %v6308 = vadd.f32 %v6226, %v6230
  %v6309 = vadd.f32 %v6228, %v6224
  %v6310 = vadd.f32 %v6229, %v6225
  %v6311 = vadd.f32 %v6231, %v6235
  %v6312 = vadd.f32 %v6234, %v6238
  %v6313 = vadd.f32 %v6236, %v6232
  %v6314 = vadd.f32 %v6237, %v6233
  %v6315 = vadd.f32 %v6239, %v6243
  %v6316 = vadd.f32 %v6242, %v6246
  %v6317 = vadd.f32 %v6244, %v6240
  %v6318 = vadd.f32 %v6245, %v6241
  %v6319 = vadd.f32 %v6247, %v6251
  %v6320 = vadd.f32 %v6250, %v6254
  %v6321 = vadd.f32 %v6252, %v6248
  %v6322 = vadd.f32 %v6253, %v6249
  %v6323 = vadd.f32 %v6255, %v6259
  %v6324 = vadd.f32 %v6258, %v6262
  %v6325 = vadd.f32 %v6260, %v6256
  %v6326 = vadd.f32 %v6261, %v6257
  %v6327 = vadd.f32 %v6263, %v6267
  %v6328 = vadd.f32 %v6266, %v6270
  %v6329 = vadd.f32 %v6268, %v6264
  %v6330 = vadd.f32 %v6269, %v6265
  %v6331 = vadd.f32 %v6271, %v6275
  %v6332 = vadd.f32 %v6274, %v6278
  %v6333 = vadd.f32 %v6276, %v6272
  %v6334 = vadd.f32 %v6277, %v6273
  %v6335 = vadd.f32 %v6279, %v6283
  %v6336 = vadd.f32 %v6282, %v6286
  %v6337 = vadd.f32 %v6284, %v6280
  %v6338 = vadd.f32 %v6285, %v6281
  %v6339 = vadd.f32 %v6287, %v6291
  %v6340 = vadd.f32 %v6290, %v6294
  %v6341 = vadd.f32 %v6292, %v6288
  %v6342 = vadd.f32 %v6293, %v6289
  %v6343 = vadd.f32 %v6295, %v6298
  %v6344 = vadd.f32 %v6297, %v6296
  %v6345 = vadd.f32 %v6299, %v6302
  %v6346 = vadd.f32 %v6301, %v6300
  %v6347 = vadd.f32 %v6303, %v6306
  %v6348 = vadd.f32 %v6305, %v6304
  %v6349 = vadd.f32 %v6307, %v6310
  %v6350 = vadd.f32 %v6309, %v6308
  %v6351 = vadd.f32 %v6311, %v6314
  %v6352 = vadd.f32 %v6313, %v6312
  %v6353 = vadd.f32 %v6315, %v6318
  %v6354 = vadd.f32 %v6317, %v6316
  %v6355 = vadd.f32 %v6319, %v6322
  %v6356 = vadd.f32 %v6321, %v6320
  %v6357 = vadd.f32 %v6323, %v6326
  %v6358 = vadd.f32 %v6325, %v6324
  %v6359 = vadd.f32 %v6327, %v6330
  %v6360 = vadd.f32 %v6329, %v6328
  %v6361 = vadd.f32 %v6331, %v6334
  %v6362 = vadd.f32 %v6333, %v6332
  %v6363 = vadd.f32 %v6335, %v6338
  %v6364 = vadd.f32 %v6337, %v6336
  %v6365 = vadd.f32 %v6339, %v6342
  %v6366 = vadd.f32 %v6341, %v6340
  %v6367 = vadd.f32 %v6343, %v6344
  %v6368 = vadd.f32 %v6345, %v6346
  %v6369 = vadd.f32 %v6347, %v6348
  %v6370 = vadd.f32 %v6349, %v6350
  %v6371 = vadd.f32 %v6351, %v6352
  %v6372 = vadd.f32 %v6353, %v6354
  %v6373 = vadd.f32 %v6355, %v6356
  %v6374 = vadd.f32 %v6357, %v6358
  %v6375 = vadd.f32 %v6359, %v6360
  %v6376 = vadd.f32 %v6361, %v6362
  %v6377 = vadd.f32 %v6363, %v6364
  %v6378 = vadd.f32 %v6365, %v6366
  %6379 = vrot.lane.b32.xlu0 %v6367, 64
  %v6380 = vpop.permute.xlu0 %6379
  %6381 = vrot.lane.b32.xlu0 %v6368, 64
  %v6382 = vpop.permute.xlu0 %6381
  %6383 = vrot.lane.b32.xlu0 %v6369, 64
  %v6384 = vpop.permute.xlu0 %6383
  %6385 = vrot.lane.b32.xlu0 %v6370, 64
  %v6386 = vpop.permute.xlu0 %6385
  %6387 = vrot.lane.b32.xlu0 %v6371, 64
  %v6388 = vpop.permute.xlu0 %6387
  %6389 = vrot.lane.b32.xlu0 %v6372, 64
  %v6390 = vpop.permute.xlu0 %6389
  %6391 = vrot.lane.b32.xlu0 %v6373, 64
  %v6392 = vpop.permute.xlu0 %6391
  %6393 = vrot.lane.b32.xlu0 %v6374, 64
  %v6394 = vpop.permute.xlu0 %6393
  %6395 = vrot.lane.b32.xlu0 %v6375, 64
  %v6396 = vpop.permute.xlu0 %6395
  %6397 = vrot.lane.b32.xlu0 %v6376, 64
  %v6398 = vpop.permute.xlu0 %6397
  %6399 = vrot.lane.b32.xlu0 %v6377, 64
  %v6400 = vpop.permute.xlu0 %6399
  %6401 = vrot.lane.b32.xlu0 %v6378, 64
  %v6402 = vpop.permute.xlu0 %6401
  %v6403 = vadd.f32 %v6367, %v6380
  %v6404 = vadd.f32 %v6368, %v6382
  %v6405 = vadd.f32 %v6369, %v6384
  %v6406 = vadd.f32 %v6370, %v6386
  %v6407 = vadd.f32 %v6371, %v6388
  %v6408 = vadd.f32 %v6372, %v6390
  %v6409 = vadd.f32 %v6373, %v6392
  %v6410 = vadd.f32 %v6374, %v6394
  %v6411 = vadd.f32 %v6375, %v6396
  %v6412 = vadd.f32 %v6376, %v6398
  %v6413 = vadd.f32 %v6377, %v6400
  %v6414 = vadd.f32 %v6378, %v6402
  %6415 = vrot.lane.b32.xlu0 %v6403, 32
  %v6416 = vpop.permute.xlu0 %6415
  %6417 = vrot.lane.b32.xlu0 %v6404, 32
  %v6418 = vpop.permute.xlu0 %6417
  %6419 = vrot.lane.b32.xlu0 %v6405, 32
  %v6420 = vpop.permute.xlu0 %6419
  %6421 = vrot.lane.b32.xlu0 %v6406, 32
  %v6422 = vpop.permute.xlu0 %6421
  %6423 = vrot.lane.b32.xlu0 %v6407, 32
  %v6424 = vpop.permute.xlu0 %6423
  %6425 = vrot.lane.b32.xlu0 %v6408, 32
  %v6426 = vpop.permute.xlu0 %6425
  %6427 = vrot.lane.b32.xlu0 %v6409, 32
  %v6428 = vpop.permute.xlu0 %6427
  %6429 = vrot.lane.b32.xlu0 %v6410, 32
  %v6430 = vpop.permute.xlu0 %6429
  %6431 = vrot.lane.b32.xlu0 %v6411, 32
  %v6432 = vpop.permute.xlu0 %6431
  %6433 = vrot.lane.b32.xlu0 %v6412, 32
  %v6434 = vpop.permute.xlu0 %6433
  %6435 = vrot.lane.b32.xlu0 %v6413, 32
  %v6436 = vpop.permute.xlu0 %6435
  %6437 = vrot.lane.b32.xlu0 %v6414, 32
  %v6438 = vpop.permute.xlu0 %6437
  %v6439 = vadd.f32 %v6403, %v6416
  %v6440 = vadd.f32 %v6404, %v6418
  %v6441 = vadd.f32 %v6405, %v6420
  %v6442 = vadd.f32 %v6406, %v6422
  %v6443 = vadd.f32 %v6407, %v6424
  %v6444 = vadd.f32 %v6408, %v6426
  %v6445 = vadd.f32 %v6409, %v6428
  %v6446 = vadd.f32 %v6410, %v6430
  %v6447 = vadd.f32 %v6411, %v6432
  %v6448 = vadd.f32 %v6412, %v6434
  %v6449 = vadd.f32 %v6413, %v6436
  %v6450 = vadd.f32 %v6414, %v6438
  %v6451 = vpack.c.bf16 %v6440, %v6439
  %v6452 = vpack.c.bf16 %v6442, %v6441
  %v6453 = vpack.c.bf16 %v6444, %v6443
  %v6454 = vpack.c.bf16 %v6446, %v6445
  %v6455 = vpack.c.bf16 %v6448, %v6447
  %v6456 = vpack.c.bf16 %v6450, %v6449
  %6457 = vmatpush.bf16.msra.mxu0 0
  %6458 = vmatpush.bf16.msra.mxu0 0
  %6459 = vmatpush.bf16.msra.mxu0 %v6456
  %6460 = vmatpush.bf16.msra.mxu0 %v6455
  %6461 = vmatpush.bf16.msra.mxu0 %v6454
  %6462 = vmatpush.bf16.msra.mxu0 %v6453
  %6463 = vmatpush.bf16.msra.mxu0 %v6452
  %6464 = vmatpush.bf16.msra.mxu0 %v6451
  %6465 = vmatmul.bf16.gmra.mxu0 %v1697
  %v6466 = vpop.f32.mrf.mxu0
  %v6467 = vadd.f32 0.0, %v6466
  %v6468 = vpop.f32.mrf.mxu0
  %v6469 = vadd.f32 0.0, %v6468
  %6470 = vmatmul.bf16.gmra.mxu0 %v1700
  %v6471 = vpop.f32.mrf.mxu0
  %v6472 = vadd.f32 0.0, %v6471
  %v6473 = vpop.f32.mrf.mxu0
  %v6474 = vadd.f32 0.0, %v6473
  %6475 = vdwg.mxu0
  %v6476 = vmul.f32 %v6467, %v1724
  %v6477 = vmul.f32 %v6469, %v1729
  %v6478 = vmul.f32 %v6472, %v1734
  %v6479 = vmul.f32 %v6474, %v1739
  %s6480 = scalar_lea.vmem %s18, 48
  %v6481 = vld [vmem:[%s6480] sm:$0xf]
  %v6482 = vld [vmem:[%s6480 + $0x4] sm:$0xf]
  %v6483 = vld [vmem:[%s6480 + $0x8] sm:$0xf]
  %v6484 = vld [vmem:[%s6480 + $0xc] sm:$0xf]
  %v6489 = vunpack.c.l.b16 %v6481
  %v6490 = vunpack.c.l.b16 %v6482
  %v6491 = vunpack.c.l.b16 %v6483
  %v6492 = vunpack.c.l.b16 %v6484
  %v6493 = vpack.c.b16 %v6490, %v6489
  %v6494 = vpack.c.b16 %v6492, %v6491
  %v6498 = vsel %vm303, %v5822, 0
  %v6501 = vsel %vm303, %v5823, 0
  %6503 = vmatpush.bf16.msra.mxu0 0
  %6504 = vmatpush.bf16.msra.mxu0 0
  %6505 = vmatpush.bf16.msra.mxu0 0
  %6506 = vmatpush.bf16.msra.mxu0 0
  %6507 = vmatpush.bf16.msra.mxu0 0
  %6508 = vmatpush.bf16.msra.mxu0 0
  %6509 = vmatpush.bf16.msra.mxu0 %v6494
  %6510 = vmatpush.bf16.msra.mxu0 %v6493
  %6511 = vmatmul.bf16.gmra.mxu0 %v6498
  %v6512 = vpop.f32.mrf.mxu0
  %v6513 = vadd.f32 0.0, %v6512
  %v6514 = vpop.f32.mrf.mxu0
  %v6515 = vadd.f32 0.0, %v6514
  %6516 = vmatmul.bf16.gmra.mxu0 %v6501
  %v6517 = vpop.f32.mrf.mxu0
  %v6518 = vadd.f32 0.0, %v6517
  %v6519 = vpop.f32.mrf.mxu0
  %v6520 = vadd.f32 0.0, %v6519
  %6521 = vdwg.mxu0
  %v6522 = vadd.f32 %v6476, %v6513
  %v6523 = vadd.f32 %v6477, %v6515
  %v6524 = vadd.f32 %v6478, %v6518
  %v6525 = vadd.f32 %v6479, %v6520
  %s6526 = scalar_lea.vmem %s19, 3
  %v6527 = vld [vmem:[%s6526] sm:$0x1]
  %v6529 = vperm.slane %v6527, 0
  %v6531 = vadd.f32 %v6522, %v6529
  %v6532 = vadd.f32 %v6523, %v6529
  %v6533 = vadd.f32 %v6524, %v6529
  %v6534 = vadd.f32 %v6525, %v6529
  %v6535 = vpack.c.bf16 %v6532, %v6531
  %v6536 = vpack.c.bf16 %v6534, %v6533
  %v6537 = vld [vmem:[%s8] sm:$0xf]
  %v6538 = vld [vmem:[%s8 + $0x4] sm:$0xf]
  %v6539 = vld [vmem:[%s8 + $0x8] sm:$0xf]
  %v6540 = vld [vmem:[%s8 + $0xc] sm:$0xf]
  %v6541 = vld [vmem:[%s9] sm:$0x1]
  %v6543 = vperm.slane %v6541, 0
  %v6549 = vunpack.c.l.b16 %v6537
  %v6550 = vunpack.c.l.b16 %v6538
  %v6551 = vunpack.c.l.b16 %v6539
  %v6552 = vunpack.c.l.b16 %v6540
  %v6553 = vpack.c.b16 %v6550, %v6549
  %v6554 = vpack.c.b16 %v6552, %v6551
  %v6558 = vsel %vm303, %v6535, 0
  %v6561 = vsel %vm303, %v6536, 0
  %6563 = vmatpush.bf16.msra.mxu0 0
  %6564 = vmatpush.bf16.msra.mxu0 0
  %6565 = vmatpush.bf16.msra.mxu0 0
  %6566 = vmatpush.bf16.msra.mxu0 0
  %6567 = vmatpush.bf16.msra.mxu0 0
  %6568 = vmatpush.bf16.msra.mxu0 0
  %6569 = vmatpush.bf16.msra.mxu0 %v6554
  %6570 = vmatpush.bf16.msra.mxu0 %v6553
  %6571 = vmatmul.bf16.gmra.mxu0 %v6558
  %v6572 = vpop.f32.mrf.mxu0
  %v6573 = vadd.f32 %v6543, %v6572
  %v6574 = vpop.f32.mrf.mxu0
  %v6575 = vadd.f32 %v6543, %v6574
  %6576 = vmatmul.bf16.gmra.mxu0 %v6561
  %v6577 = vpop.f32.mrf.mxu0
  %v6578 = vadd.f32 %v6543, %v6577
  %v6579 = vpop.f32.mrf.mxu0
  %v6580 = vadd.f32 %v6543, %v6579
  %6581 = vdwg.mxu0
  %v6582 = vmul.f32 %v6573, 0.5
  %v6583 = vmul.f32 %v6575, 0.5
  %v6584 = vmul.f32 %v6578, 0.5
  %v6585 = vmul.f32 %v6580, 0.5
  %v6586 = vmul.f32 %v6573, 0.70710677
  %v6587 = vmul.f32 %v6575, 0.70710677
  %v6588 = vmul.f32 %v6578, 0.70710677
  %v6589 = vmul.f32 %v6580, 0.70710677
  %v6590 = vand.u32 2147483647, %v6586
  %v6591 = vand.u32 2147483647, %v6587
  %v6592 = vand.u32 2147483647, %v6588
  %v6593 = vand.u32 2147483647, %v6589
  %v6594 = vmul.f32 %v6590, 0.3275911
  %v6595 = vmul.f32 %v6591, 0.3275911
  %v6596 = vmul.f32 %v6592, 0.3275911
  %v6597 = vmul.f32 %v6593, 0.3275911
  %v6598 = vadd.f32 %v6594, 1.0
  %v6599 = vadd.f32 %v6595, 1.0
  %v6600 = vadd.f32 %v6596, 1.0
  %v6601 = vadd.f32 %v6597, 1.0
  %v6602 = vrcp.pop %v6598
  %v6603 = vmul.f32 %v6598, %v6602
  %v6604 = vsub.f32 1.0, %v6603
  %v6605 = vmul.f32 %v6602, %v6604
  %v6606 = vadd.f32 %v6602, %v6605
  %vm6607 = vweird.f32 %v6598
  %vm6608 = vweird.f32 %v6602
  %vm6609 = vmor %vm6607, %vm6608
  %v6610 = vsel %vm6609, %v6602, %v6606
  %v6611 = vand.u32 2147483647, %v6598
  %vm6612 = vcmp.eq.f32.partialorder %v6611, 8.507059e+37
  %v6613 = vand.u32 %v6598, 2147483648
  %v6614 = vor.u32 1.1754944e-38, %v6613
  %v6615 = vsel %vm6612, %v6614, %v6610
  %v6616 = vmul.f32 1.0, %v6615
  %v6617 = vrcp.pop %v6599
  %v6618 = vmul.f32 %v6599, %v6617
  %v6619 = vsub.f32 1.0, %v6618
  %v6620 = vmul.f32 %v6617, %v6619
  %v6621 = vadd.f32 %v6617, %v6620
  %vm6622 = vweird.f32 %v6599
  %vm6623 = vweird.f32 %v6617
  %vm6624 = vmor %vm6622, %vm6623
  %v6625 = vsel %vm6624, %v6617, %v6621
  %v6626 = vand.u32 2147483647, %v6599
  %vm6627 = vcmp.eq.f32.partialorder %v6626, 8.507059e+37
  %v6628 = vand.u32 %v6599, 2147483648
  %v6629 = vor.u32 1.1754944e-38, %v6628
  %v6630 = vsel %vm6627, %v6629, %v6625
  %v6631 = vmul.f32 1.0, %v6630
  %v6632 = vrcp.pop %v6600
  %v6633 = vmul.f32 %v6600, %v6632
  %v6634 = vsub.f32 1.0, %v6633
  %v6635 = vmul.f32 %v6632, %v6634
  %v6636 = vadd.f32 %v6632, %v6635
  %vm6637 = vweird.f32 %v6600
  %vm6638 = vweird.f32 %v6632
  %vm6639 = vmor %vm6637, %vm6638
  %v6640 = vsel %vm6639, %v6632, %v6636
  %v6641 = vand.u32 2147483647, %v6600
  %vm6642 = vcmp.eq.f32.partialorder %v6641, 8.507059e+37
  %v6643 = vand.u32 %v6600, 2147483648
  %v6644 = vor.u32 1.1754944e-38, %v6643
  %v6645 = vsel %vm6642, %v6644, %v6640
  %v6646 = vmul.f32 1.0, %v6645
  %v6647 = vrcp.pop %v6601
  %v6648 = vmul.f32 %v6601, %v6647
  %v6649 = vsub.f32 1.0, %v6648
  %v6650 = vmul.f32 %v6647, %v6649
  %v6651 = vadd.f32 %v6647, %v6650
  %vm6652 = vweird.f32 %v6601
  %vm6653 = vweird.f32 %v6647
  %vm6654 = vmor %vm6652, %vm6653
  %v6655 = vsel %vm6654, %v6647, %v6651
  %v6656 = vand.u32 2147483647, %v6601
  %vm6657 = vcmp.eq.f32.partialorder %v6656, 8.507059e+37
  %v6658 = vand.u32 %v6601, 2147483648
  %v6659 = vor.u32 1.1754944e-38, %v6658
  %v6660 = vsel %vm6657, %v6659, %v6655
  %v6661 = vmul.f32 1.0, %v6660
  %v6662 = vmul.f32 %v6616, 1.0614054
  %v6663 = vmul.f32 %v6631, 1.0614054
  %v6664 = vmul.f32 %v6646, 1.0614054
  %v6665 = vmul.f32 %v6661, 1.0614054
  %v6666 = vadd.f32 %v6662, -1.4531521
  %v6667 = vadd.f32 %v6663, -1.4531521
  %v6668 = vadd.f32 %v6664, -1.4531521
  %v6669 = vadd.f32 %v6665, -1.4531521
  %v6670 = vmul.f32 %v6666, %v6616
  %v6671 = vmul.f32 %v6667, %v6631
  %v6672 = vmul.f32 %v6668, %v6646
  %v6673 = vmul.f32 %v6669, %v6661
  %v6674 = vadd.f32 %v6670, 1.4214138
  %v6675 = vadd.f32 %v6671, 1.4214138
  %v6676 = vadd.f32 %v6672, 1.4214138
  %v6677 = vadd.f32 %v6673, 1.4214138
  %v6678 = vmul.f32 %v6674, %v6616
  %v6679 = vmul.f32 %v6675, %v6631
  %v6680 = vmul.f32 %v6676, %v6646
  %v6681 = vmul.f32 %v6677, %v6661
  %v6682 = vadd.f32 %v6678, -0.28449672
  %v6683 = vadd.f32 %v6679, -0.28449672
  %v6684 = vadd.f32 %v6680, -0.28449672
  %v6685 = vadd.f32 %v6681, -0.28449672
  %v6686 = vmul.f32 %v6682, %v6616
  %v6687 = vmul.f32 %v6683, %v6631
  %v6688 = vmul.f32 %v6684, %v6646
  %v6689 = vmul.f32 %v6685, %v6661
  %v6690 = vadd.f32 %v6686, 0.2548296
  %v6691 = vadd.f32 %v6687, 0.2548296
  %v6692 = vadd.f32 %v6688, 0.2548296
  %v6693 = vadd.f32 %v6689, 0.2548296
  %v6694 = vmul.f32 %v6690, %v6616
  %v6695 = vmul.f32 %v6691, %v6631
  %v6696 = vmul.f32 %v6692, %v6646
  %v6697 = vmul.f32 %v6693, %v6661
  %v6698 = vsub.f32 0.0, %v6590
  %v6699 = vsub.f32 0.0, %v6591
  %v6700 = vsub.f32 0.0, %v6592
  %v6701 = vsub.f32 0.0, %v6593
  %v6702 = vmul.f32 %v6698, %v6590
  %v6703 = vmul.f32 %v6699, %v6591
  %v6704 = vmul.f32 %v6700, %v6592
  %v6705 = vmul.f32 %v6701, %v6593
  %v6706 = vmul.f32 %v6702, 1.442695
  %v6707 = vpow.pop %v6706
  %v6708 = vmul.f32 %v6703, 1.442695
  %v6709 = vpow.pop %v6708
  %v6710 = vmul.f32 %v6704, 1.442695
  %v6711 = vpow.pop %v6710
  %v6712 = vmul.f32 %v6705, 1.442695
  %v6713 = vpow.pop %v6712
  %v6714 = vmul.f32 %v6694, %v6707
  %v6715 = vmul.f32 %v6695, %v6709
  %v6716 = vmul.f32 %v6696, %v6711
  %v6717 = vmul.f32 %v6697, %v6713
  %v6718 = vsub.f32 1.0, %v6714
  %v6719 = vsub.f32 1.0, %v6715
  %v6720 = vsub.f32 1.0, %v6716
  %v6721 = vsub.f32 1.0, %v6717
  %vm6722 = vcmp.ge.f32.partialorder %v6586, 0.0
  %vm6723 = vcmp.ge.f32.partialorder %v6587, 0.0
  %vm6724 = vcmp.ge.f32.partialorder %v6588, 0.0
  %vm6725 = vcmp.ge.f32.partialorder %v6589, 0.0
  %v6726 = vsub.f32 0.0, %v6718
  %v6727 = vsub.f32 0.0, %v6719
  %v6728 = vsub.f32 0.0, %v6720
  %v6729 = vsub.f32 0.0, %v6721
  %v6730 = vsel %vm6722, %v6718, %v6726
  %v6731 = vsel %vm6723, %v6719, %v6727
  %v6732 = vsel %vm6724, %v6720, %v6728
  %v6733 = vsel %vm6725, %v6721, %v6729
  %v6734 = vadd.f32 %v6730, 1.0
  %v6735 = vadd.f32 %v6731, 1.0
  %v6736 = vadd.f32 %v6732, 1.0
  %v6737 = vadd.f32 %v6733, 1.0
  %v6738 = vmul.f32 %v6582, %v6734
  %v6739 = vmul.f32 %v6583, %v6735
  %v6740 = vmul.f32 %v6584, %v6736
  %v6741 = vmul.f32 %v6585, %v6737
  %v6742 = vpack.c.bf16 %v6739, %v6738
  %v6743 = vpack.c.bf16 %v6741, %v6740
  %v6744 = vld [vmem:[%s10] sm:$0xf]
  %v6745 = vld [vmem:[%s10 + $0x4] sm:$0xf]
  %v6746 = vld [vmem:[%s10 + $0x8] sm:$0xf]
  %v6747 = vld [vmem:[%s10 + $0xc] sm:$0xf]
  %v6748 = vld [vmem:[%s10 + $0x10] sm:$0xf]
  %v6749 = vld [vmem:[%s10 + $0x14] sm:$0xf]
  %v6750 = vld [vmem:[%s10 + $0x18] sm:$0xf]
  %v6751 = vld [vmem:[%s10 + $0x1c] sm:$0xf]
  %v6752 = vld [vmem:[%s10 + $0x20] sm:$0xf]
  %v6753 = vld [vmem:[%s10 + $0x24] sm:$0xf]
  %v6754 = vld [vmem:[%s10 + $0x28] sm:$0xf]
  %v6755 = vld [vmem:[%s10 + $0x2c] sm:$0xf]
  %v6756 = vld [vmem:[%s10 + $0x30] sm:$0xf]
  %v6757 = vld [vmem:[%s10 + $0x34] sm:$0xf]
  %v6758 = vld [vmem:[%s10 + $0x38] sm:$0xf]
  %v6759 = vld [vmem:[%s10 + $0x3c] sm:$0xf]
  %v6760 = vld [vmem:[#allocation2] sm:$0x1]
  %v6762 = vperm.slane %v6760, 0
  %v6780 = vunpack.c.l.b16 %v6744
  %v6781 = vunpack.c.l.b16 %v6745
  %v6782 = vunpack.c.l.b16 %v6746
  %v6783 = vunpack.c.l.b16 %v6747
  %v6784 = vunpack.c.l.b16 %v6748
  %v6785 = vunpack.c.l.b16 %v6749
  %v6786 = vunpack.c.l.b16 %v6750
  %v6787 = vunpack.c.l.b16 %v6751
  %v6788 = vunpack.c.l.b16 %v6752
  %v6789 = vunpack.c.l.b16 %v6753
  %v6790 = vunpack.c.l.b16 %v6754
  %v6791 = vunpack.c.l.b16 %v6755
  %v6792 = vunpack.c.l.b16 %v6756
  %v6793 = vunpack.c.l.b16 %v6757
  %v6794 = vunpack.c.l.b16 %v6758
  %v6795 = vunpack.c.l.b16 %v6759
  %v6796 = vpack.c.b16 %v6781, %v6780
  %v6797 = vpack.c.b16 %v6783, %v6782
  %v6798 = vpack.c.b16 %v6785, %v6784
  %v6799 = vpack.c.b16 %v6787, %v6786
  %v6800 = vpack.c.b16 %v6789, %v6788
  %v6801 = vpack.c.b16 %v6791, %v6790
  %v6802 = vpack.c.b16 %v6793, %v6792
  %v6803 = vpack.c.b16 %v6795, %v6794
  %6812 = vmatpush.bf16.msra.mxu0 %v6803
  %6813 = vmatpush.bf16.msra.mxu0 %v6802
  %6814 = vmatpush.bf16.msra.mxu0 %v6801
  %6815 = vmatpush.bf16.msra.mxu0 %v6800
  %6816 = vmatpush.bf16.msra.mxu0 %v6799
  %6817 = vmatpush.bf16.msra.mxu0 %v6798
  %6818 = vmatpush.bf16.msra.mxu0 %v6797
  %6819 = vmatpush.bf16.msra.mxu0 %v6796
  %6820 = vmatmul.bf16.gmra.mxu0 %v6742
  %v6821 = vpop.f32.mrf.mxu0
  %v6822 = vadd.f32 %v6762, %v6821
  %v6823 = vpop.f32.mrf.mxu0
  %v6824 = vadd.f32 %v6762, %v6823
  %6825 = vmatmul.bf16.gmra.mxu0 %v6743
  %v6826 = vpop.f32.mrf.mxu0
  %v6827 = vadd.f32 %v6762, %v6826
  %v6828 = vpop.f32.mrf.mxu0
  %v6829 = vadd.f32 %v6762, %v6828
  %6830 = vdwg.mxu0
  %vm6831 = vcmask 7168
  %6832 = vst.msk [vmem:[%s20] sm:$0xff] %vm6831, %v6822
  %6833 = vst.msk [vmem:[%s20 + $0x8] sm:$0xff] %vm6831, %v6824
  %6834 = vst.msk [vmem:[%s20 + $0x10] sm:$0xff] %vm6831, %v6827
  %6835 = vst.msk [vmem:[%s20 + $0x18] sm:$0xff] %vm6831, %v6829
  // Predicated region
  $region82: #{kernelnn3_forward.1} parent=0 // pred_check
    _
  $region83: #{kernelnn3_forward.1} parent=0 // pred_check_branch
    %6837 = sbr.rel (0) target = $region85
  $region84: #{kernelnn3_forward.1} parent=0 // pred_region
    _
  $region85: #{kernelnn3_forward.1} parent=0 // pred_fallthru
    _
  // Predicated region
  $region86: #{kernelnn3_forward.1} parent=0 // pred_check
    _
  $region87: #{kernelnn3_forward.1} parent=0 // pred_check_branch
    %6839 = sbr.rel (0) target = $region89
  $region88: #{kernelnn3_forward.1} parent=0 // pred_region
    _
  $region89: #{kernelnn3_forward.1} parent=0 // pred_fallthru
    _

</llo_original>
